<compile_context>
chip_gen: v6e
topology: v6e:2x2x1
jax: 0.10.0
libtpu: 0.0.40
codegen_flags: <defaults>
</compile_context>

<pallas_src>
import functools

import jax
import jax.numpy as jnp
import numpy as np
from jax import lax
from jax.experimental import pallas as pl
from jax.experimental.pallas import tpu as pltpu

VOCAB_SIZE = 6772  # module-level constant from the PyTorch source

# Large finite negative used for padded vocab lanes.  Must be finite so the
# feedback matmul logp @ wemb (padded wemb rows == 0) gives 0, not NaN.
_NEG_BIG = -1e30


# --------------------------------------------------------------------------
# Pallas kernel: the whole S2VT forward (encoder + decoder) in one invocation.
# --------------------------------------------------------------------------
def s2vt_kernel(
    x_ref,                     # (T_enc, B, Din)  encoder features
    w1i_ref, w1h_ref, b1_ref,  # lstm1: (Din,4H), (H,4H), (1,4H)
    w2i_ref, w2h_ref, b2_ref,  # lstm2: (2H,4H), (H,4H), (1,4H)
    wout_ref, bout_ref,        # hidden2out: (H,Vp), (1,Vp)   [vocab padded]
    wemb_ref, bemb_ref,        # vocab2emb:  (Vp,H), (1,H)    [padded rows 0]
    h10_ref, c10_ref,          # lstm1 initial state (B,H)
    h20_ref, c20_ref,          # lstm2 initial state (B,H)
    out_ref,                   # (T_dec, B, Vp)  log-probabilities (padded)
    *, T_enc, T_dec, B, H, Din,
):
  del B, Din  # shapes are implied by the refs
  f32 = jnp.float32

  # Hoist the small, loop-invariant LSTM weights/biases (tens of KB total).
  w1i = w1i_ref[...]
  w1h = w1h_ref[...]
  b1 = b1_ref[...]
  w2i_l = w2i_ref[0:H, :]        # acts on the padding / prev-embedding half
  w2i_r = w2i_ref[H:2 * H, :]    # acts on the lstm1-output half
  w2h = w2h_ref[...]
  b2 = b2_ref[...]
  bemb = bemb_ref[...]
  # wout_ref / wemb_ref (~880 KB each) are read per use inside the loop.

  def gates(pre, c):
    i = jax.nn.sigmoid(pre[:, 0 * H:1 * H])
    f = jax.nn.sigmoid(pre[:, 1 * H:2 * H])
    g = jnp.tanh(pre[:, 2 * H:3 * H])
    o = jax.nn.sigmoid(pre[:, 3 * H:4 * H])
    c_n = f * c + i * g
    return o * jnp.tanh(c_n), c_n

  # ---------------- Encoder: lstm1 over features, lstm2 over [0 ; h1] -------
  def enc_step(t, carry):
    h1, c1, h2, c2 = carry
    x_t = x_ref[t]                                            # (B, Din)
    pre1 = (jnp.dot(x_t, w1i, preferred_element_type=f32)
            + jnp.dot(h1, w1h, preferred_element_type=f32) + b1)
    h1, c1 = gates(pre1, c1)
    # lstm2 input is cat([zeros(B,H), h1]); the zero-half matmul is dropped.
    pre2 = (jnp.dot(h1, w2i_r, preferred_element_type=f32)
            + jnp.dot(h2, w2h, preferred_element_type=f32) + b2)
    h2, c2 = gates(pre2, c2)
    return (h1, c1, h2, c2)

  h1, c1, h2, c2 = lax.fori_loop(
      0, T_enc, enc_step,
      (h10_ref[...], c10_ref[...], h20_ref[...], c20_ref[...]))

  # <BOS> one-hot through vocab2emb == row 0 of wemb (+ bias).  B == 1.
  emb0 = wemb_ref[0:1, :] + bemb                              # (1, H) == (B, H)

  # ---------------- Decoder: T_dec steps ------------------------------------
  def dec_step(i, carry):
    h1, c1, h2, c2, emb = carry
    # lstm1 step on zero input (padding2 == zeros(B, Din)): x @ w1i == 0.
    pre1 = jnp.dot(h1, w1h, preferred_element_type=f32) + b1
    h1, c1 = gates(pre1, c1)
    # lstm2 step on cat([prev word embedding, h1]); split-weight matmuls.
    pre2 = (jnp.dot(emb, w2i_l, preferred_element_type=f32)
            + jnp.dot(h1, w2i_r, preferred_element_type=f32)
            + jnp.dot(h2, w2h, preferred_element_type=f32) + b2)
    h2, c2 = gates(pre2, c2)
    # hidden2out + LogSoftmax over the (padded) vocab.  Padded wout cols are
    # 0 and padded bout entries are _NEG_BIG, so padded lanes never win the
    # max and contribute exp(huge negative) == 0 to the sum.
    logits = (jnp.dot(h2, wout_ref[...], preferred_element_type=f32)
              + bout_ref[...])                                # (B, Vp)
    m = jnp.max(logits, axis=-1, keepdims=True)
    shifted = logits - m
    logp = shifted - jnp.log(jnp.sum(jnp.exp(shifted), axis=-1, keepdims=True))
    out_ref[i] = logp
    # Feed log-probabilities (as in the original code) back through vocab2emb.
    # Padded wemb rows are exactly 0, so padded logp lanes contribute 0.
    emb = jnp.dot(logp, wemb_ref[...], preferred_element_type=f32) + bemb
    return (h1, c1, h2, c2, emb)

  lax.fori_loop(0, T_dec, dec_step, (h1, c1, h2, c2, emb0))


# --------------------------------------------------------------------------
# Wrapper
# --------------------------------------------------------------------------
def s2vt_forward(x, params, h10, c10, h20, c20, target_length):
  T_enc, B, Din = x.shape
  H = h10.shape[-1]
  V = params["wout"].shape[-1]
  assert B == 1, "original S2VT forward only type-checks for batch_size == 1"

  # Pad the vocab dim to a multiple of 256 (clean MXU tiles on v6e/v7x, and a
  # multiple of 128 lanes everywhere) -> lane-dense stores & full reductions.
  Vp = ((V + 255) // 256) * 256
  pad = Vp - V
  wout_p = jnp.pad(params["wout"], ((0, 0), (0, pad)))
  bout_p = jnp.pad(params["bout"], ((0, 0), (0, pad)), constant_values=_NEG_BIG)
  wemb_p = jnp.pad(params["wemb"], ((0, pad), (0, 0)))

  args = (
      x,
      params["w1i"], params["w1h"], params["b1"],
      params["w2i"], params["w2h"], params["b2"],
      wout_p, bout_p,
      wemb_p, params["bemb"],
      h10, c10, h20, c20,
  )

  out_bytes = target_length * B * Vp * 4
  in_bytes = sum(int(np.prod(a.shape)) * a.dtype.itemsize for a in args)

  # Everything is VMEM-resident once (no grid / no pipelining); give the
  # compiler a limit sized from the actual buffers plus headroom.
  vmem_limit = int(2 * (in_bytes + out_bytes)) + (8 << 20)

  # Advisory cost estimate for XLA scheduling around this long serial call.
  flops = (
      2 * B * T_enc * (Din * 4 * H + 3 * H * 4 * H)             # encoder cells
      + 2 * B * target_length * (4 * H * 4 * H + 2 * H * Vp))   # decoder cells + vocab
  transcendentals = (
      B * (T_enc + target_length) * 10 * H                      # sigmoid/tanh
      + B * target_length * (Vp + 1))                           # exp + log
  cost = pl.CostEstimate(flops=flops, transcendentals=transcendentals,
                         bytes_accessed=in_bytes + out_bytes)

  vmem = pl.BlockSpec(memory_space=pltpu.MemorySpace.VMEM)
  kernel = functools.partial(
      s2vt_kernel, T_enc=T_enc, T_dec=target_length, B=B, H=H, Din=Din)

  out_padded = pl.pallas_call(
      kernel,
      out_shape=jax.ShapeDtypeStruct((target_length, B, Vp), jnp.float32),
      in_specs=[vmem] * len(args),
      out_specs=vmem,
      compiler_params=pltpu.CompilerParams(vmem_limit_bytes=vmem_limit),
      cost_estimate=cost,
  )(*args)

  return out_padded[..., :V]


# --------------------------------------------------------------------------
# Deterministic parameter initialization (shapes from the module __init__).
# --------------------------------------------------------------------------
def init_params(key, input_size, hidden_size, vocab_size):
  H = hidden_size
  ks = jax.random.split(key, 12)

  def u(k, shape, bound):
    return jax.random.uniform(k, shape, jnp.float32, -bound, bound)

  kl = 1.0 / np.sqrt(H)
  return dict(
      # nn.LSTM(input_size, H): weights transposed to (in, 4H); b = b_ih+b_hh
      w1i=u(ks[0], (input_size, 4 * H), kl),
      w1h=u(ks[1], (H, 4 * H), kl),
      b1=u(ks[2], (1, 4 * H), kl) + u(ks[3], (1, 4 * H), kl),
      # nn.LSTM(2H, H)
      w2i=u(ks[4], (2 * H, 4 * H), kl),
      w2h=u(ks[5], (H, 4 * H), kl),
      b2=u(ks[6], (1, 4 * H), kl) + u(ks[7], (1, 4 * H), kl),
      # nn.Linear(H, VOCAB) -> stored as (H, V)
      wout=u(ks[8], (H, vocab_size), 1.0 / np.sqrt(H)),
      bout=u(ks[9], (1, vocab_size), 1.0 / np.sqrt(H)),
      # nn.Linear(VOCAB, H) -> stored as (V, H)
      wemb=u(ks[10], (vocab_size, H), 1.0 / np.sqrt(vocab_size)),
      bemb=u(ks[11], (1, H), 1.0 / np.sqrt(vocab_size)),
  )


# --------------------------------------------------------------------------
# Pure-JAX reference mirroring the original PyTorch forward structure.
# --------------------------------------------------------------------------
def _lstm_cell_ref(x, h, c, wi, wh, b):
  H = h.shape[-1]
  g = x @ wi + h @ wh + b
  i = jax.nn.sigmoid(g[:, :H])
  f = jax.nn.sigmoid(g[:, H:2 * H])
  gg = jnp.tanh(g[:, 2 * H:3 * H])
  o = jax.nn.sigmoid(g[:, 3 * H:])
  c = f * c + i * gg
  return o * jnp.tanh(c), c


def _lstm_seq_ref(xs, h, c, wi, wh, b):
  outs = []
  for t in range(xs.shape[0]):
    h, c = _lstm_cell_ref(xs[t], h, c, wi, wh, b)
    outs.append(h)
  return jnp.stack(outs), (h, c)


def s2vt_reference(x, p, h10, c10, h20, c20, target_length):
  T_enc, B, Din = x.shape
  H = h10.shape[-1]
  V = p["wout"].shape[-1]
  # encode
  out1, (h1, c1) = _lstm_seq_ref(x, h10, c10, p["w1i"], p["w1h"], p["b1"])
  x2 = jnp.concatenate([jnp.zeros((T_enc, B, H), jnp.float32), out1], axis=2)
  _, (h2, c2) = _lstm_seq_ref(x2, h20, c20, p["w2i"], p["w2h"], p["b2"])
  # decode
  pad = jnp.zeros((target_length, B, Din), jnp.float32)
  bos = jnp.zeros((V,), jnp.float32).at[0].set(1.0)
  emb = (bos @ p["wemb"])[None, :] + p["bemb"]                 # (1, H), B == 1
  out1d, _ = _lstm_seq_ref(pad, h1, c1, p["w1i"], p["w1h"], p["b1"])
  outs = []
  for i in range(target_length):
    x2t = jnp.concatenate([emb, out1d[i]], axis=1)             # (B, 2H)
    h2, c2 = _lstm_cell_ref(x2t, h2, c2, p["w2i"], p["w2h"], p["b2"])
    logits = h2 @ p["wout"] + p["bout"]
    logp = jax.nn.log_softmax(logits, axis=1)
    outs.append(logp)
    emb = logp @ p["wemb"] + p["bemb"]
  return jnp.stack(outs)


# --------------------------------------------------------------------------
if __name__ == "__main__":
  key = jax.random.PRNGKey(0)

  # Small shapes consistent with the module's forward:
  #   input_feat: (T_enc, batch, input_size), batch must be 1 (see note above)
  input_size, hidden_size, layer, batch_size = 64, 32, 1, 1
  T_enc, target_length = 8, 6
  V = VOCAB_SIZE

  kp, kx = jax.random.split(key)
  params = init_params(kp, input_size, hidden_size, V)
  x = jax.random.normal(kx, (T_enc, batch_size, input_size), jnp.float32)

  # init_hidden(): zeros (layer=1, so squeeze the layer dim)
  h10 = jnp.zeros((batch_size, hidden_size), jnp.float32)
  c10 = jnp.zeros((batch_size, hidden_size), jnp.float32)
  h20 = jnp.zeros((batch_size, hidden_size), jnp.float32)
  c20 = jnp.zeros((batch_size, hidden_size), jnp.float32)

  out = s2vt_forward(x, params, h10, c10, h20, c20, target_length)
  out = jax.block_until_ready(out)

  ref = jax.block_until_ready(
      s2vt_reference(x, params, h10, c10, h20, c20, target_length))

  np.testing.assert_allclose(np.asarray(out), np.asarray(ref),
                             rtol=1e-3, atol=1e-3)
  assert out.shape == (target_length, batch_size, V)
  print("KERNEL_OK")
</pallas_src>

<mosaic_0001>
module attributes {stable_mosaic.version = 11 : i64} {
  func.func @s2vt_kernel(%arg0: memref<8x1x64xf32, #tpu.memory_space<vmem>>, %arg1: memref<64x128xf32, #tpu.memory_space<vmem>>, %arg2: memref<32x128xf32, #tpu.memory_space<vmem>>, %arg3: memref<1x128xf32, #tpu.memory_space<vmem>>, %arg4: memref<64x128xf32, #tpu.memory_space<vmem>>, %arg5: memref<32x128xf32, #tpu.memory_space<vmem>>, %arg6: memref<1x128xf32, #tpu.memory_space<vmem>>, %arg7: memref<32x6912xf32, #tpu.memory_space<vmem>>, %arg8: memref<1x6912xf32, #tpu.memory_space<vmem>>, %arg9: memref<6912x32xf32, #tpu.memory_space<vmem>>, %arg10: memref<1x32xf32, #tpu.memory_space<vmem>>, %arg11: memref<1x32xf32, #tpu.memory_space<vmem>>, %arg12: memref<1x32xf32, #tpu.memory_space<vmem>>, %arg13: memref<1x32xf32, #tpu.memory_space<vmem>>, %arg14: memref<1x32xf32, #tpu.memory_space<vmem>>, %arg15: memref<6x1x6912xf32, #tpu.memory_space<vmem>>) attributes {dimension_semantics = [], scalar_prefetch = 0 : i64, scratch_operands = 0 : i64, tpu.core_type = #tpu.core_type<tc>} {
    %c0 = arith.constant 0 : index
    %c0_0 = arith.constant 0 : index
    %0 = vector.load %arg1[%c0, %c0_0] : memref<64x128xf32, #tpu.memory_space<vmem>>, vector<64x128xf32>
    %c0_1 = arith.constant 0 : index
    %c0_2 = arith.constant 0 : index
    %1 = vector.load %arg2[%c0_1, %c0_2] : memref<32x128xf32, #tpu.memory_space<vmem>>, vector<32x128xf32>
    %c0_3 = arith.constant 0 : index
    %c0_4 = arith.constant 0 : index
    %2 = vector.load %arg3[%c0_3, %c0_4] : memref<1x128xf32, #tpu.memory_space<vmem>>, vector<1x128xf32>
    %c0_5 = arith.constant 0 : index
    %c0_6 = arith.constant 0 : index
    %3 = vector.load %arg4[%c0_5, %c0_6] : memref<64x128xf32, #tpu.memory_space<vmem>>, vector<32x128xf32>
    %c32 = arith.constant 32 : index
    %c0_7 = arith.constant 0 : index
    %4 = vector.load %arg4[%c32, %c0_7] : memref<64x128xf32, #tpu.memory_space<vmem>>, vector<32x128xf32>
    %c0_8 = arith.constant 0 : index
    %c0_9 = arith.constant 0 : index
    %5 = vector.load %arg5[%c0_8, %c0_9] : memref<32x128xf32, #tpu.memory_space<vmem>>, vector<32x128xf32>
    %c0_10 = arith.constant 0 : index
    %c0_11 = arith.constant 0 : index
    %6 = vector.load %arg6[%c0_10, %c0_11] : memref<1x128xf32, #tpu.memory_space<vmem>>, vector<1x128xf32>
    %c0_12 = arith.constant 0 : index
    %c0_13 = arith.constant 0 : index
    %7 = vector.load %arg10[%c0_12, %c0_13] : memref<1x32xf32, #tpu.memory_space<vmem>>, vector<1x32xf32>
    %c0_14 = arith.constant 0 : index
    %c0_15 = arith.constant 0 : index
    %8 = vector.load %arg11[%c0_14, %c0_15] : memref<1x32xf32, #tpu.memory_space<vmem>>, vector<1x32xf32>
    %c0_16 = arith.constant 0 : index
    %c0_17 = arith.constant 0 : index
    %9 = vector.load %arg12[%c0_16, %c0_17] : memref<1x32xf32, #tpu.memory_space<vmem>>, vector<1x32xf32>
    %c0_18 = arith.constant 0 : index
    %c0_19 = arith.constant 0 : index
    %10 = vector.load %arg13[%c0_18, %c0_19] : memref<1x32xf32, #tpu.memory_space<vmem>>, vector<1x32xf32>
    %c0_20 = arith.constant 0 : index
    %c0_21 = arith.constant 0 : index
    %11 = vector.load %arg14[%c0_20, %c0_21] : memref<1x32xf32, #tpu.memory_space<vmem>>, vector<1x32xf32>
    %c0_i32 = arith.constant 0 : i32
    %c8_i32 = arith.constant 8 : i32
    %12 = arith.addi %c0_i32, %c8_i32 : i32
    %c1_i32 = arith.constant 1 : i32
    %13:4 = scf.for %arg16 = %c0_i32 to %12 step %c1_i32 iter_args(%arg17 = %8, %arg18 = %9, %arg19 = %10, %arg20 = %11) -> (vector<1x32xf32>, vector<1x32xf32>, vector<1x32xf32>, vector<1x32xf32>)  : i32 {
      %18 = arith.index_cast %arg16 : i32 to index
      %c0_28 = arith.constant 0 : index
      %c0_29 = arith.constant 0 : index
      %19 = vector.load %arg0[%18, %c0_28, %c0_29] : memref<8x1x64xf32, #tpu.memory_space<vmem>>, vector<1x1x64xf32>
      %20 = vector.shape_cast %19 : vector<1x1x64xf32> to vector<1x64xf32>
      %cst = arith.constant dense<0.000000e+00> : vector<1x128xf32>
      %21 = tpu.matmul %20, %0, %cst {dimension_numbers = #tpu.dot_dimension_numbers<[1], [0], [0], [1], [0, 0, 1, 1], [], []>} : vector<1x64xf32>, vector<64x128xf32>, vector<1x128xf32> -> vector<1x128xf32>
      %cst_30 = arith.constant dense<0.000000e+00> : vector<1x128xf32>
      %22 = tpu.matmul %arg17, %1, %cst_30 {dimension_numbers = #tpu.dot_dimension_numbers<[1], [0], [0], [1], [0, 0, 1, 1], [], []>} : vector<1x32xf32>, vector<32x128xf32>, vector<1x128xf32> -> vector<1x128xf32>
      %23 = arith.addf %21, %22 : vector<1x128xf32>
      %24 = arith.addf %23, %2 : vector<1x128xf32>
      %25 = vector.extract_strided_slice %24 {offsets = [0, 0], sizes = [1, 32], strides = [1, 1]} : vector<1x128xf32> to vector<1x32xf32>
      %26 = arith.negf %25 : vector<1x32xf32>
      %27 = math.exp %26 : vector<1x32xf32>
      %cst_31 = arith.constant 1.000000e+00 : f32
      %28 = vector.broadcast %cst_31 : f32 to vector<1x32xf32>
      %29 = arith.addf %28, %27 : vector<1x32xf32>
      %30 = arith.divf %28, %29 : vector<1x32xf32>
      %31 = vector.extract_strided_slice %24 {offsets = [0, 32], sizes = [1, 32], strides = [1, 1]} : vector<1x128xf32> to vector<1x32xf32>
      %32 = arith.negf %31 : vector<1x32xf32>
      %33 = math.exp %32 : vector<1x32xf32>
      %cst_32 = arith.constant 1.000000e+00 : f32
      %34 = vector.broadcast %cst_32 : f32 to vector<1x32xf32>
      %35 = arith.addf %34, %33 : vector<1x32xf32>
      %36 = arith.divf %34, %35 : vector<1x32xf32>
      %37 = vector.extract_strided_slice %24 {offsets = [0, 64], sizes = [1, 32], strides = [1, 1]} : vector<1x128xf32> to vector<1x32xf32>
      %38 = math.tanh %37 : vector<1x32xf32>
      %39 = vector.extract_strided_slice %24 {offsets = [0, 96], sizes = [1, 32], strides = [1, 1]} : vector<1x128xf32> to vector<1x32xf32>
      %40 = arith.negf %39 : vector<1x32xf32>
      %41 = math.exp %40 : vector<1x32xf32>
      %cst_33 = arith.constant 1.000000e+00 : f32
      %42 = vector.broadcast %cst_33 : f32 to vector<1x32xf32>
      %43 = arith.addf %42, %41 : vector<1x32xf32>
      %44 = arith.divf %42, %43 : vector<1x32xf32>
      %45 = arith.mulf %36, %arg18 : vector<1x32xf32>
      %46 = arith.mulf %30, %38 : vector<1x32xf32>
      %47 = arith.addf %45, %46 : vector<1x32xf32>
      %48 = math.tanh %47 : vector<1x32xf32>
      %49 = arith.mulf %44, %48 : vector<1x32xf32>
      %cst_34 = arith.constant dense<0.000000e+00> : vector<1x128xf32>
      %50 = tpu.matmul %49, %4, %cst_34 {dimension_numbers = #tpu.dot_dimension_numbers<[1], [0], [0], [1], [0, 0, 1, 1], [], []>} : vector<1x32xf32>, vector<32x128xf32>, vector<1x128xf32> -> vector<1x128xf32>
      %cst_35 = arith.constant dense<0.000000e+00> : vector<1x128xf32>
      %51 = tpu.matmul %arg19, %5, %cst_35 {dimension_numbers = #tpu.dot_dimension_numbers<[1], [0], [0], [1], [0, 0, 1, 1], [], []>} : vector<1x32xf32>, vector<32x128xf32>, vector<1x128xf32> -> vector<1x128xf32>
      %52 = arith.addf %50, %51 : vector<1x128xf32>
      %53 = arith.addf %52, %6 : vector<1x128xf32>
      %54 = vector.extract_strided_slice %53 {offsets = [0, 0], sizes = [1, 32], strides = [1, 1]} : vector<1x128xf32> to vector<1x32xf32>
      %55 = arith.negf %54 : vector<1x32xf32>
      %56 = math.exp %55 : vector<1x32xf32>
      %cst_36 = arith.constant 1.000000e+00 : f32
      %57 = vector.broadcast %cst_36 : f32 to vector<1x32xf32>
      %58 = arith.addf %57, %56 : vector<1x32xf32>
      %59 = arith.divf %57, %58 : vector<1x32xf32>
      %60 = vector.extract_strided_slice %53 {offsets = [0, 32], sizes = [1, 32], strides = [1, 1]} : vector<1x128xf32> to vector<1x32xf32>
      %61 = arith.negf %60 : vector<1x32xf32>
      %62 = math.exp %61 : vector<1x32xf32>
      %cst_37 = arith.constant 1.000000e+00 : f32
      %63 = vector.broadcast %cst_37 : f32 to vector<1x32xf32>
      %64 = arith.addf %63, %62 : vector<1x32xf32>
      %65 = arith.divf %63, %64 : vector<1x32xf32>
      %66 = vector.extract_strided_slice %53 {offsets = [0, 64], sizes = [1, 32], strides = [1, 1]} : vector<1x128xf32> to vector<1x32xf32>
      %67 = math.tanh %66 : vector<1x32xf32>
      %68 = vector.extract_strided_slice %53 {offsets = [0, 96], sizes = [1, 32], strides = [1, 1]} : vector<1x128xf32> to vector<1x32xf32>
      %69 = arith.negf %68 : vector<1x32xf32>
      %70 = math.exp %69 : vector<1x32xf32>
      %cst_38 = arith.constant 1.000000e+00 : f32
      %71 = vector.broadcast %cst_38 : f32 to vector<1x32xf32>
      %72 = arith.addf %71, %70 : vector<1x32xf32>
      %73 = arith.divf %71, %72 : vector<1x32xf32>
      %74 = arith.mulf %65, %arg20 : vector<1x32xf32>
      %75 = arith.mulf %59, %67 : vector<1x32xf32>
      %76 = arith.addf %74, %75 : vector<1x32xf32>
      %77 = math.tanh %76 : vector<1x32xf32>
      %78 = arith.mulf %73, %77 : vector<1x32xf32>
      scf.yield %49, %47, %78, %76 : vector<1x32xf32>, vector<1x32xf32>, vector<1x32xf32>, vector<1x32xf32>
    }
    %c8_i32_22 = arith.constant 8 : i32
    %c0_23 = arith.constant 0 : index
    %c0_24 = arith.constant 0 : index
    %14 = vector.load %arg9[%c0_23, %c0_24] : memref<6912x32xf32, #tpu.memory_space<vmem>>, vector<1x32xf32>
    %15 = arith.addf %14, %7 : vector<1x32xf32>
    %c0_i32_25 = arith.constant 0 : i32
    %c6_i32 = arith.constant 6 : i32
    %16 = arith.addi %c0_i32_25, %c6_i32 : i32
    %c1_i32_26 = arith.constant 1 : i32
    %17:5 = scf.for %arg16 = %c0_i32_25 to %16 step %c1_i32_26 iter_args(%arg17 = %13#0, %arg18 = %13#1, %arg19 = %13#2, %arg20 = %13#3, %arg21 = %15) -> (vector<1x32xf32>, vector<1x32xf32>, vector<1x32xf32>, vector<1x32xf32>, vector<1x32xf32>)  : i32 {
      %cst = arith.constant dense<0.000000e+00> : vector<1x128xf32>
      %18 = tpu.matmul %arg17, %1, %cst {dimension_numbers = #tpu.dot_dimension_numbers<[1], [0], [0], [1], [0, 0, 1, 1], [], []>} : vector<1x32xf32>, vector<32x128xf32>, vector<1x128xf32> -> vector<1x128xf32>
      %19 = arith.addf %18, %2 : vector<1x128xf32>
      %20 = vector.extract_strided_slice %19 {offsets = [0, 0], sizes = [1, 32], strides = [1, 1]} : vector<1x128xf32> to vector<1x32xf32>
      %21 = arith.negf %20 : vector<1x32xf32>
      %22 = math.exp %21 : vector<1x32xf32>
      %cst_28 = arith.constant 1.000000e+00 : f32
      %23 = vector.broadcast %cst_28 : f32 to vector<1x32xf32>
      %24 = arith.addf %23, %22 : vector<1x32xf32>
      %25 = arith.divf %23, %24 : vector<1x32xf32>
      %26 = vector.extract_strided_slice %19 {offsets = [0, 32], sizes = [1, 32], strides = [1, 1]} : vector<1x128xf32> to vector<1x32xf32>
      %27 = arith.negf %26 : vector<1x32xf32>
      %28 = math.exp %27 : vector<1x32xf32>
      %cst_29 = arith.constant 1.000000e+00 : f32
      %29 = vector.broadcast %cst_29 : f32 to vector<1x32xf32>
      %30 = arith.addf %29, %28 : vector<1x32xf32>
      %31 = arith.divf %29, %30 : vector<1x32xf32>
      %32 = vector.extract_strided_slice %19 {offsets = [0, 64], sizes = [1, 32], strides = [1, 1]} : vector<1x128xf32> to vector<1x32xf32>
      %33 = math.tanh %32 : vector<1x32xf32>
      %34 = vector.extract_strided_slice %19 {offsets = [0, 96], sizes = [1, 32], strides = [1, 1]} : vector<1x128xf32> to vector<1x32xf32>
      %35 = arith.negf %34 : vector<1x32xf32>
      %36 = math.exp %35 : vector<1x32xf32>
      %cst_30 = arith.constant 1.000000e+00 : f32
      %37 = vector.broadcast %cst_30 : f32 to vector<1x32xf32>
      %38 = arith.addf %37, %36 : vector<1x32xf32>
      %39 = arith.divf %37, %38 : vector<1x32xf32>
      %40 = arith.mulf %31, %arg18 : vector<1x32xf32>
      %41 = arith.mulf %25, %33 : vector<1x32xf32>
      %42 = arith.addf %40, %41 : vector<1x32xf32>
      %43 = math.tanh %42 : vector<1x32xf32>
      %44 = arith.mulf %39, %43 : vector<1x32xf32>
      %cst_31 = arith.constant dense<0.000000e+00> : vector<1x128xf32>
      %45 = tpu.matmul %arg21, %3, %cst_31 {dimension_numbers = #tpu.dot_dimension_numbers<[1], [0], [0], [1], [0, 0, 1, 1], [], []>} : vector<1x32xf32>, vector<32x128xf32>, vector<1x128xf32> -> vector<1x128xf32>
      %cst_32 = arith.constant dense<0.000000e+00> : vector<1x128xf32>
      %46 = tpu.matmul %44, %4, %cst_32 {dimension_numbers = #tpu.dot_dimension_numbers<[1], [0], [0], [1], [0, 0, 1, 1], [], []>} : vector<1x32xf32>, vector<32x128xf32>, vector<1x128xf32> -> vector<1x128xf32>
      %47 = arith.addf %45, %46 : vector<1x128xf32>
      %cst_33 = arith.constant dense<0.000000e+00> : vector<1x128xf32>
      %48 = tpu.matmul %arg19, %5, %cst_33 {dimension_numbers = #tpu.dot_dimension_numbers<[1], [0], [0], [1], [0, 0, 1, 1], [], []>} : vector<1x32xf32>, vector<32x128xf32>, vector<1x128xf32> -> vector<1x128xf32>
      %49 = arith.addf %47, %48 : vector<1x128xf32>
      %50 = arith.addf %49, %6 : vector<1x128xf32>
      %51 = vector.extract_strided_slice %50 {offsets = [0, 0], sizes = [1, 32], strides = [1, 1]} : vector<1x128xf32> to vector<1x32xf32>
      %52 = arith.negf %51 : vector<1x32xf32>
      %53 = math.exp %52 : vector<1x32xf32>
      %cst_34 = arith.constant 1.000000e+00 : f32
      %54 = vector.broadcast %cst_34 : f32 to vector<1x32xf32>
      %55 = arith.addf %54, %53 : vector<1x32xf32>
      %56 = arith.divf %54, %55 : vector<1x32xf32>
      %57 = vector.extract_strided_slice %50 {offsets = [0, 32], sizes = [1, 32], strides = [1, 1]} : vector<1x128xf32> to vector<1x32xf32>
      %58 = arith.negf %57 : vector<1x32xf32>
      %59 = math.exp %58 : vector<1x32xf32>
      %cst_35 = arith.constant 1.000000e+00 : f32
      %60 = vector.broadcast %cst_35 : f32 to vector<1x32xf32>
      %61 = arith.addf %60, %59 : vector<1x32xf32>
      %62 = arith.divf %60, %61 : vector<1x32xf32>
      %63 = vector.extract_strided_slice %50 {offsets = [0, 64], sizes = [1, 32], strides = [1, 1]} : vector<1x128xf32> to vector<1x32xf32>
      %64 = math.tanh %63 : vector<1x32xf32>
      %65 = vector.extract_strided_slice %50 {offsets = [0, 96], sizes = [1, 32], strides = [1, 1]} : vector<1x128xf32> to vector<1x32xf32>
      %66 = arith.negf %65 : vector<1x32xf32>
      %67 = math.exp %66 : vector<1x32xf32>
      %cst_36 = arith.constant 1.000000e+00 : f32
      %68 = vector.broadcast %cst_36 : f32 to vector<1x32xf32>
      %69 = arith.addf %68, %67 : vector<1x32xf32>
      %70 = arith.divf %68, %69 : vector<1x32xf32>
      %71 = arith.mulf %62, %arg20 : vector<1x32xf32>
      %72 = arith.mulf %56, %64 : vector<1x32xf32>
      %73 = arith.addf %71, %72 : vector<1x32xf32>
      %74 = math.tanh %73 : vector<1x32xf32>
      %75 = arith.mulf %70, %74 : vector<1x32xf32>
      %c0_37 = arith.constant 0 : index
      %c0_38 = arith.constant 0 : index
      %76 = vector.load %arg7[%c0_37, %c0_38] : memref<32x6912xf32, #tpu.memory_space<vmem>>, vector<32x6912xf32>
      %cst_39 = arith.constant dense<0.000000e+00> : vector<1x6912xf32>
      %77 = tpu.matmul %75, %76, %cst_39 {dimension_numbers = #tpu.dot_dimension_numbers<[1], [0], [0], [1], [0, 0, 1, 1], [], []>} : vector<1x32xf32>, vector<32x6912xf32>, vector<1x6912xf32> -> vector<1x6912xf32>
      %c0_40 = arith.constant 0 : index
      %c0_41 = arith.constant 0 : index
      %78 = vector.load %arg8[%c0_40, %c0_41] : memref<1x6912xf32, #tpu.memory_space<vmem>>, vector<1x6912xf32>
      %79 = arith.addf %77, %78 : vector<1x6912xf32>
      %cst_42 = arith.constant dense<0xFF800000> : vector<1xf32>
      %80 = vector.multi_reduction <maximumf>, %79, %cst_42 [1] : vector<1x6912xf32> to vector<1xf32>
      %81 = vector.shape_cast %80 : vector<1xf32> to vector<1x1xf32>
      %82 = vector.broadcast %81 : vector<1x1xf32> to vector<1x6912xf32>
      %83 = arith.subf %79, %82 : vector<1x6912xf32>
      %84 = math.exp %83 : vector<1x6912xf32>
      %cst_43 = arith.constant dense<0.000000e+00> : vector<1xf32>
      %85 = vector.multi_reduction <add>, %84, %cst_43 [1] : vector<1x6912xf32> to vector<1xf32>
      %86 = vector.shape_cast %85 : vector<1xf32> to vector<1x1xf32>
      %87 = math.log %86 : vector<1x1xf32>
      %88 = vector.broadcast %87 : vector<1x1xf32> to vector<1x6912xf32>
      %89 = arith.subf %83, %88 : vector<1x6912xf32>
      %90 = arith.index_cast %arg16 : i32 to index
      %c0_44 = arith.constant 0 : index
      %c0_45 = arith.constant 0 : index
      %91 = vector.load %arg15[%90, %c0_44, %c0_45] : memref<6x1x6912xf32, #tpu.memory_space<vmem>>, vector<1x1x6912xf32>
      %92 = vector.shape_cast %91 : vector<1x1x6912xf32> to vector<1x6912xf32>
      %93 = vector.shape_cast %89 : vector<1x6912xf32> to vector<1x1x6912xf32>
      tpu.vector_store %arg15[%90, %c0_44, %c0_45], %93 {strides = array<i32>} : memref<6x1x6912xf32, #tpu.memory_space<vmem>>, vector<1x1x6912xf32>,
      %c0_46 = arith.constant 0 : index
      %c0_47 = arith.constant 0 : index
      %94 = vector.load %arg9[%c0_46, %c0_47] : memref<6912x32xf32, #tpu.memory_space<vmem>>, vector<6912x32xf32>
      %cst_48 = arith.constant dense<0.000000e+00> : vector<1x32xf32>
      %95 = tpu.matmul %89, %94, %cst_48 {dimension_numbers = #tpu.dot_dimension_numbers<[1], [0], [0], [1], [0, 0, 1, 1], [], []>} : vector<1x6912xf32>, vector<6912x32xf32>, vector<1x32xf32> -> vector<1x32xf32>
      %96 = arith.addf %95, %7 : vector<1x32xf32>
      scf.yield %44, %42, %75, %73, %96 : vector<1x32xf32>, vector<1x32xf32>, vector<1x32xf32>, vector<1x32xf32>, vector<1x32xf32>
    }
    %c6_i32_27 = arith.constant 6 : i32
    return
  }
}

</mosaic_0001>

<llo_original>
// kernel: tpu_custom_call.1
$region0: #{tpu_custom_call.1}
  #allocation0 [shape = 'u32[]', space=smem, size = 0x4, offset = 0x4, fixed_abs, tag = 'smem constant byte address 0x4 - core index']
  #allocation1 [shape = 'u32[144,128]{1,0:T(1,128)}', space=vmem, size = 0x12000, scoped, tag = 'internal scratch']
  %s0 = inlined_call_operand.vmem [shape: f32[8,1,64], index: 0, kind: input, shape index: {}]
  %s1 = inlined_call_operand.vmem [shape: f32[64,128], index: 1, kind: input, shape index: {}]
  %s2 = inlined_call_operand.vmem [shape: f32[32,128], index: 2, kind: input, shape index: {}]
  %s3 = inlined_call_operand.vmem [shape: f32[1,128], index: 3, kind: input, shape index: {}]
  %s4 = inlined_call_operand.vmem [shape: f32[64,128], index: 4, kind: input, shape index: {}]
  %s5 = inlined_call_operand.vmem [shape: f32[32,128], index: 5, kind: input, shape index: {}]
  %s6 = inlined_call_operand.vmem [shape: f32[1,128], index: 6, kind: input, shape index: {}]
  %s7 = inlined_call_operand.vmem [shape: f32[32,6912], index: 7, kind: input, shape index: {}]
  %s8 = inlined_call_operand.vmem [shape: f32[1,6912], index: 8, kind: input, shape index: {}]
  %s9 = inlined_call_operand.vmem [shape: f32[6912,32], index: 9, kind: input, shape index: {}]
  %s10 = inlined_call_operand.vmem [shape: f32[1,32], index: 10, kind: input, shape index: {}]
  %s11 = inlined_call_operand.vmem [shape: f32[1,32], index: 11, kind: input, shape index: {}]
  %s12 = inlined_call_operand.vmem [shape: f32[1,32], index: 12, kind: input, shape index: {}]
  %s13 = inlined_call_operand.vmem [shape: f32[1,32], index: 13, kind: input, shape index: {}]
  %s14 = inlined_call_operand.vmem [shape: f32[1,32], index: 14, kind: input, shape index: {}]
  %s15 = inlined_call_operand.hbm [shape: f32[6,1,6912], index: 15, kind: output, shape index: {}]
  %s16 = sld [smem:[#allocation0]]
  $region84: #{tpu_custom_call.1} parent=0
    _
  %s18 = ssub.s32 1, %s16
  %s19 = scalar_select 0, %s18, %s16
  $region1: #{tpu_custom_call.1} parent=0
    #allocation2 [shape = 'u8[165888]{0}', space=vmem, size = 0x28800, scoped, tag = 'output window, operand 0, single buffered']
    #allocation3 [shape = 's32[1]{0}', space=sflag, size = 0x4, scoped, tag = 'scoped memory for tpu_custom_call.1']
    %20 = vsyncpa [#allocation3], 0
    // Predicated region
    $region2: #{tpu_custom_call.1} parent=1 // pred_check
      _
    $region3: #{tpu_custom_call.1} parent=1 // pred_check_branch
      %22 = sbr.rel (0) target = $region5
    $region4: #{tpu_custom_call.1} parent=1 // pred_region
      _
    $region5: #{tpu_custom_call.1} parent=1 // pred_fallthru
      _
    // Predicated region
    $region6: #{tpu_custom_call.1} parent=1 // pred_check
      _
    $region7: #{tpu_custom_call.1} parent=1 // pred_check_branch
      %24 = sbr.rel (0) target = $region9
    $region8: #{tpu_custom_call.1} parent=1 // pred_region
      _
    $region9: #{tpu_custom_call.1} parent=1 // pred_fallthru
      _
    // Predicated region
    $region10: #{tpu_custom_call.1} parent=1 // pred_check
      _
    $region11: #{tpu_custom_call.1} parent=1 // pred_check_branch
      %26 = sbr.rel (0) target = $region13
    $region12: #{tpu_custom_call.1} parent=1 // pred_region
      _
    $region13: #{tpu_custom_call.1} parent=1 // pred_fallthru
      _
    // Predicated region
    $region14: #{tpu_custom_call.1} parent=1 // pred_check
      _
    $region15: #{tpu_custom_call.1} parent=1 // pred_check_branch
      %28 = sbr.rel (0) target = $region17
    $region16: #{tpu_custom_call.1} parent=1 // pred_region
      _
    $region17: #{tpu_custom_call.1} parent=1 // pred_fallthru
      _
    // Predicated region
    $region18: #{tpu_custom_call.1} parent=1 // pred_check
      _
    $region19: #{tpu_custom_call.1} parent=1 // pred_check_branch
      %30 = sbr.rel (0) target = $region21
    $region20: #{tpu_custom_call.1} parent=1 // pred_region
      _
    $region21: #{tpu_custom_call.1} parent=1 // pred_fallthru
      _
    // Predicated region
    $region22: #{tpu_custom_call.1} parent=1 // pred_check
      _
    $region23: #{tpu_custom_call.1} parent=1 // pred_check_branch
      %32 = sbr.rel (0) target = $region25
    $region24: #{tpu_custom_call.1} parent=1 // pred_region
      _
    $region25: #{tpu_custom_call.1} parent=1 // pred_fallthru
      _
    // Predicated region
    $region26: #{tpu_custom_call.1} parent=1 // pred_check
      _
    $region27: #{tpu_custom_call.1} parent=1 // pred_check_branch
      %34 = sbr.rel (0) target = $region29
    $region28: #{tpu_custom_call.1} parent=1 // pred_region
      _
    $region29: #{tpu_custom_call.1} parent=1 // pred_fallthru
      _
    // Predicated region
    $region30: #{tpu_custom_call.1} parent=1 // pred_check
      _
    $region31: #{tpu_custom_call.1} parent=1 // pred_check_branch
      %36 = sbr.rel (0) target = $region33
    $region32: #{tpu_custom_call.1} parent=1 // pred_region
      _
    $region33: #{tpu_custom_call.1} parent=1 // pred_fallthru
      _
    // Predicated region
    $region34: #{tpu_custom_call.1} parent=1 // pred_check
      _
    $region35: #{tpu_custom_call.1} parent=1 // pred_check_branch
      %38 = sbr.rel (0) target = $region37
    $region36: #{tpu_custom_call.1} parent=1 // pred_region
      _
    $region37: #{tpu_custom_call.1} parent=1 // pred_fallthru
      _
    // Predicated region
    $region38: #{tpu_custom_call.1} parent=1 // pred_check
      _
    $region39: #{tpu_custom_call.1} parent=1 // pred_check_branch
      %40 = sbr.rel (0) target = $region41
    $region40: #{tpu_custom_call.1} parent=1 // pred_region
      _
    $region41: #{tpu_custom_call.1} parent=1 // pred_fallthru
      _
    // Predicated region
    $region42: #{tpu_custom_call.1} parent=1 // pred_check
      _
    $region43: #{tpu_custom_call.1} parent=1 // pred_check_branch
      %42 = sbr.rel (0) target = $region45
    $region44: #{tpu_custom_call.1} parent=1 // pred_region
      _
    $region45: #{tpu_custom_call.1} parent=1 // pred_fallthru
      _
    // Predicated region
    $region46: #{tpu_custom_call.1} parent=1 // pred_check
      _
    $region47: #{tpu_custom_call.1} parent=1 // pred_check_branch
      %44 = sbr.rel (0) target = $region49
    $region48: #{tpu_custom_call.1} parent=1 // pred_region
      _
    $region49: #{tpu_custom_call.1} parent=1 // pred_fallthru
      _
    // Predicated region
    $region50: #{tpu_custom_call.1} parent=1 // pred_check
      _
    $region51: #{tpu_custom_call.1} parent=1 // pred_check_branch
      %46 = sbr.rel (0) target = $region53
    $region52: #{tpu_custom_call.1} parent=1 // pred_region
      _
    $region53: #{tpu_custom_call.1} parent=1 // pred_fallthru
      _
    // Predicated region
    $region54: #{tpu_custom_call.1} parent=1 // pred_check
      _
    $region55: #{tpu_custom_call.1} parent=1 // pred_check_branch
      %48 = sbr.rel (0) target = $region57
    $region56: #{tpu_custom_call.1} parent=1 // pred_region
      _
    $region57: #{tpu_custom_call.1} parent=1 // pred_fallthru
      _
    // Predicated region
    $region58: #{tpu_custom_call.1} parent=1 // pred_check
      _
    $region59: #{tpu_custom_call.1} parent=1 // pred_check_branch
      %50 = sbr.rel (0) target = $region61
    $region60: #{tpu_custom_call.1} parent=1 // pred_region
      _
    $region61: #{tpu_custom_call.1} parent=1 // pred_fallthru
      _
    %v51 = vld [vmem:[%s1] sm:$0xff]
    %v52 = vld [vmem:[%s1 + $0x8] sm:$0xff]
    %v53 = vld [vmem:[%s1 + $0x10] sm:$0xff]
    %v54 = vld [vmem:[%s1 + $0x18] sm:$0xff]
    %v55 = vld [vmem:[%s1 + $0x20] sm:$0xff]
    %v56 = vld [vmem:[%s1 + $0x28] sm:$0xff]
    %v57 = vld [vmem:[%s1 + $0x30] sm:$0xff]
    %v58 = vld [vmem:[%s1 + $0x38] sm:$0xff]
    %v59 = vld [vmem:[%s2] sm:$0xff]
    %v60 = vld [vmem:[%s2 + $0x8] sm:$0xff]
    %v61 = vld [vmem:[%s2 + $0x10] sm:$0xff]
    %v62 = vld [vmem:[%s2 + $0x18] sm:$0xff]
    %v63 = vld [vmem:[%s3] sm:$0x1]
    %v64 = vld [vmem:[%s4] sm:$0xff]
    %v65 = vld [vmem:[%s4 + $0x8] sm:$0xff]
    %v66 = vld [vmem:[%s4 + $0x10] sm:$0xff]
    %v67 = vld [vmem:[%s4 + $0x18] sm:$0xff]
    %v68 = vld [vmem:[%s4 + $0x20] sm:$0xff]
    %v69 = vld [vmem:[%s4 + $0x28] sm:$0xff]
    %v70 = vld [vmem:[%s4 + $0x30] sm:$0xff]
    %v71 = vld [vmem:[%s4 + $0x38] sm:$0xff]
    %v72 = vld [vmem:[%s5] sm:$0xff]
    %v73 = vld [vmem:[%s5 + $0x8] sm:$0xff]
    %v74 = vld [vmem:[%s5 + $0x10] sm:$0xff]
    %v75 = vld [vmem:[%s5 + $0x18] sm:$0xff]
    %v76 = vld [vmem:[%s6] sm:$0x1]
    %v77 = vld [vmem:[%s10] sm:$0x1]
    %v78 = vld [vmem:[%s11] sm:$0x1]
    %v79 = vld [vmem:[%s12] sm:$0x1]
    %v80 = vld [vmem:[%s13] sm:$0x1]
    %v81 = vld [vmem:[%s14] sm:$0x1]
    loop: start=0, step=1, limit=8
    $region62: #{tpu_custom_call.1} parent=1 // loop_pre_header
      _
    $region63: #{tpu_custom_call.1} parent=1 // loop_header
      %s83 = sphi 0, %s87
      %p84 = scmp.ge.s32.totalorder %s83, 8
      %v88 = vphi %v78, %v346
      %v89 = vphi %v79, %v451
      %v90 = vphi %v80, %v455
      %v91 = vphi %v81, %v459
    $region64: #{tpu_custom_call.1} parent=1 // loop_header_branch
      %86 = sbr.rel (%p84) target = $region68
    $region65: #{tpu_custom_call.1} parent=1 // loop_body
      %s92 = scalar_lea.vmem %s0, %s83
      %v93 = vld [vmem:[%s92] sm:$0x1]
      %vm94 = vcmask 261120
      %v96 = vsel %vm94, %v88, 0
      %98 = vmatprep.subr.mxu0 0.0
      %99 = vmatpush1.msra.mxu0 0.0
      %100 = vmatprep.subr.mxu0 0.0
      %101 = vmatpush1.msra.mxu0 0.0
      %102 = vmatprep.subr.mxu0 0.0
      %103 = vmatpush1.msra.mxu0 0.0
      %104 = vmatprep.subr.mxu0 0.0
      %105 = vmatpush1.msra.mxu0 0.0
      %106 = vmatprep.subr.mxu0 0.0
      %107 = vmatpush1.msra.mxu0 0.0
      %108 = vmatprep.subr.mxu0 0.0
      %109 = vmatpush1.msra.mxu0 0.0
      %110 = vmatprep.subr.mxu0 0.0
      %111 = vmatpush1.msra.mxu0 0.0
      %112 = vmatprep.subr.mxu0 0.0
      %113 = vmatpush1.msra.mxu0 0.0
      %114 = vmatprep.subr.mxu0 0.0
      %115 = vmatpush1.msra.mxu0 0.0
      %116 = vmatprep.subr.mxu0 0.0
      %117 = vmatpush1.msra.mxu0 0.0
      %118 = vmatprep.subr.mxu0 0.0
      %119 = vmatpush1.msra.mxu0 0.0
      %120 = vmatprep.subr.mxu0 0.0
      %121 = vmatpush1.msra.mxu0 0.0
      %122 = vmatprep.subr.mxu0 0.0
      %123 = vmatpush1.msra.mxu0 %v62
      %124 = vmatprep.subr.mxu0 0.0
      %125 = vmatpush1.msra.mxu0 %v61
      %126 = vmatprep.subr.mxu0 0.0
      %127 = vmatpush1.msra.mxu0 %v60
      %128 = vmatprep.subr.mxu0 0.0
      %129 = vmatpush1.msra.mxu0 %v59
      %130 = vmatprep.subr.mxu0 0.0
      %131 = vmatpush2.msra.mxu0 0.0
      %132 = vmatprep.subr.mxu0 0.0
      %133 = vmatpush2.msra.mxu0 0.0
      %134 = vmatprep.subr.mxu0 0.0
      %135 = vmatpush2.msra.mxu0 0.0
      %136 = vmatprep.subr.mxu0 0.0
      %137 = vmatpush2.msra.mxu0 0.0
      %138 = vmatprep.subr.mxu0 0.0
      %139 = vmatpush2.msra.mxu0 0.0
      %140 = vmatprep.subr.mxu0 0.0
      %141 = vmatpush2.msra.mxu0 0.0
      %142 = vmatprep.subr.mxu0 0.0
      %143 = vmatpush2.msra.mxu0 0.0
      %144 = vmatprep.subr.mxu0 0.0
      %145 = vmatpush2.msra.mxu0 0.0
      %146 = vmatprep.subr.mxu0 0.0
      %147 = vmatpush2.msra.mxu0 0.0
      %148 = vmatprep.subr.mxu0 0.0
      %149 = vmatpush2.msra.mxu0 0.0
      %150 = vmatprep.subr.mxu0 0.0
      %151 = vmatpush2.msra.mxu0 0.0
      %152 = vmatprep.subr.mxu0 0.0
      %153 = vmatpush2.msra.mxu0 0.0
      %154 = vmatprep.subr.mxu0 0.0
      %155 = vmatpush2.msra.mxu0 0.0
      %156 = vmatprep.subr.mxu0 0.0
      %157 = vmatpush2.msra.mxu0 0.0
      %158 = vmatprep.subr.mxu0 0.0
      %159 = vmatpush2.msra.mxu0 0.0
      %160 = vmatprep.subr.mxu0 0.0
      %161 = vmatpush2.msra.mxu0 0.0
      %162 = vmatprep.mubr.f32.mxu0 0.0
      %163 = vmatmul.mubr.f32.gmra.mxu0 %v96
      %v164 = vpop.f32.mrf.mxu0
      %v165 = vadd.f32 0.0, %v164
      %v166 = vpop.f32.mrf.mxu0
      %167 = vdwg.mxu0
      %vm168 = vcmask 523264
      %v170 = vsel %vm168, %v93, 0
      %172 = vmatprep.subr.mxu0 0.0
      %173 = vmatpush1.msra.mxu0 0.0
      %174 = vmatprep.subr.mxu0 0.0
      %175 = vmatpush1.msra.mxu0 0.0
      %176 = vmatprep.subr.mxu0 0.0
      %177 = vmatpush1.msra.mxu0 0.0
      %178 = vmatprep.subr.mxu0 0.0
      %179 = vmatpush1.msra.mxu0 0.0
      %180 = vmatprep.subr.mxu0 0.0
      %181 = vmatpush1.msra.mxu0 0.0
      %182 = vmatprep.subr.mxu0 0.0
      %183 = vmatpush1.msra.mxu0 0.0
      %184 = vmatprep.subr.mxu0 0.0
      %185 = vmatpush1.msra.mxu0 0.0
      %186 = vmatprep.subr.mxu0 0.0
      %187 = vmatpush1.msra.mxu0 0.0
      %188 = vmatprep.subr.mxu0 0.0
      %189 = vmatpush1.msra.mxu0 %v58
      %190 = vmatprep.subr.mxu0 0.0
      %191 = vmatpush1.msra.mxu0 %v57
      %192 = vmatprep.subr.mxu0 0.0
      %193 = vmatpush1.msra.mxu0 %v56
      %194 = vmatprep.subr.mxu0 0.0
      %195 = vmatpush1.msra.mxu0 %v55
      %196 = vmatprep.subr.mxu0 0.0
      %197 = vmatpush1.msra.mxu0 %v54
      %198 = vmatprep.subr.mxu0 0.0
      %199 = vmatpush1.msra.mxu0 %v53
      %200 = vmatprep.subr.mxu0 0.0
      %201 = vmatpush1.msra.mxu0 %v52
      %202 = vmatprep.subr.mxu0 0.0
      %203 = vmatpush1.msra.mxu0 %v51
      %204 = vmatprep.subr.mxu0 0.0
      %205 = vmatpush2.msra.mxu0 0.0
      %206 = vmatprep.subr.mxu0 0.0
      %207 = vmatpush2.msra.mxu0 0.0
      %208 = vmatprep.subr.mxu0 0.0
      %209 = vmatpush2.msra.mxu0 0.0
      %210 = vmatprep.subr.mxu0 0.0
      %211 = vmatpush2.msra.mxu0 0.0
      %212 = vmatprep.subr.mxu0 0.0
      %213 = vmatpush2.msra.mxu0 0.0
      %214 = vmatprep.subr.mxu0 0.0
      %215 = vmatpush2.msra.mxu0 0.0
      %216 = vmatprep.subr.mxu0 0.0
      %217 = vmatpush2.msra.mxu0 0.0
      %218 = vmatprep.subr.mxu0 0.0
      %219 = vmatpush2.msra.mxu0 0.0
      %220 = vmatprep.subr.mxu0 0.0
      %221 = vmatpush2.msra.mxu0 0.0
      %222 = vmatprep.subr.mxu0 0.0
      %223 = vmatpush2.msra.mxu0 0.0
      %224 = vmatprep.subr.mxu0 0.0
      %225 = vmatpush2.msra.mxu0 0.0
      %226 = vmatprep.subr.mxu0 0.0
      %227 = vmatpush2.msra.mxu0 0.0
      %228 = vmatprep.subr.mxu0 0.0
      %229 = vmatpush2.msra.mxu0 0.0
      %230 = vmatprep.subr.mxu0 0.0
      %231 = vmatpush2.msra.mxu0 0.0
      %232 = vmatprep.subr.mxu0 0.0
      %233 = vmatpush2.msra.mxu0 0.0
      %234 = vmatprep.subr.mxu0 0.0
      %235 = vmatpush2.msra.mxu0 0.0
      %236 = vmatprep.mubr.f32.mxu0 0.0
      %237 = vmatmul.mubr.f32.gmra.mxu0 %v170
      %v238 = vpop.f32.mrf.mxu0
      %v239 = vadd.f32 %v165, %v238
      %v240 = vpop.f32.mrf.mxu0
      %241 = vdwg.mxu0
      %v242 = vadd.f32 %v239, %v63
      %v243 = vxor.u32 %v242, 2147483648
      %v244 = vmul.f32 %v243, 1.442695
      %v245 = vpow.pop %v244
      %v246 = vadd.f32 %v245, 1.0
      %v247 = vrcp.pop %v246
      %v248 = vmul.f32 1.0, %v247
      %v249 = vtanh.pop %v242
      %251 = vrot.lane.b32.xlu0 %v89, 32
      %v252 = vpop.permute.xlu0 %251
      %v254 = vmul.f32 %v248, %v252
      %256 = vrot.lane.b32.xlu0 %v249, 64
      %v257 = vpop.permute.xlu0 %256
      %v259 = vmul.f32 %v248, %v257
      %261 = vrot.lane.b32.xlu0 %v259, 32
      %v262 = vpop.permute.xlu0 %261
      %v264 = vadd.f32 %v254, %v262
      %v265 = vtanh.pop %v264
      %267 = vrot.lane.b32.xlu0 %v265, 64
      %v268 = vpop.permute.xlu0 %267
      %v270 = vmul.f32 %v248, %v268
      %v272 = vsel %vm94, %v90, 0
      %274 = vmatprep.subr.mxu0 0.0
      %275 = vmatpush1.msra.mxu0 0.0
      %276 = vmatprep.subr.mxu0 0.0
      %277 = vmatpush1.msra.mxu0 0.0
      %278 = vmatprep.subr.mxu0 0.0
      %279 = vmatpush1.msra.mxu0 0.0
      %280 = vmatprep.subr.mxu0 0.0
      %281 = vmatpush1.msra.mxu0 0.0
      %282 = vmatprep.subr.mxu0 0.0
      %283 = vmatpush1.msra.mxu0 0.0
      %284 = vmatprep.subr.mxu0 0.0
      %285 = vmatpush1.msra.mxu0 0.0
      %286 = vmatprep.subr.mxu0 0.0
      %287 = vmatpush1.msra.mxu0 0.0
      %288 = vmatprep.subr.mxu0 0.0
      %289 = vmatpush1.msra.mxu0 0.0
      %290 = vmatprep.subr.mxu0 0.0
      %291 = vmatpush1.msra.mxu0 0.0
      %292 = vmatprep.subr.mxu0 0.0
      %293 = vmatpush1.msra.mxu0 0.0
      %294 = vmatprep.subr.mxu0 0.0
      %295 = vmatpush1.msra.mxu0 0.0
      %296 = vmatprep.subr.mxu0 0.0
      %297 = vmatpush1.msra.mxu0 0.0
      %298 = vmatprep.subr.mxu0 0.0
      %299 = vmatpush1.msra.mxu0 %v75
      %300 = vmatprep.subr.mxu0 0.0
      %301 = vmatpush1.msra.mxu0 %v74
      %302 = vmatprep.subr.mxu0 0.0
      %303 = vmatpush1.msra.mxu0 %v73
      %304 = vmatprep.subr.mxu0 0.0
      %305 = vmatpush1.msra.mxu0 %v72
      %306 = vmatprep.subr.mxu0 0.0
      %307 = vmatpush2.msra.mxu0 0.0
      %308 = vmatprep.subr.mxu0 0.0
      %309 = vmatpush2.msra.mxu0 0.0
      %310 = vmatprep.subr.mxu0 0.0
      %311 = vmatpush2.msra.mxu0 0.0
      %312 = vmatprep.subr.mxu0 0.0
      %313 = vmatpush2.msra.mxu0 0.0
      %314 = vmatprep.subr.mxu0 0.0
      %315 = vmatpush2.msra.mxu0 0.0
      %316 = vmatprep.subr.mxu0 0.0
      %317 = vmatpush2.msra.mxu0 0.0
      %318 = vmatprep.subr.mxu0 0.0
      %319 = vmatpush2.msra.mxu0 0.0
      %320 = vmatprep.subr.mxu0 0.0
      %321 = vmatpush2.msra.mxu0 0.0
      %322 = vmatprep.subr.mxu0 0.0
      %323 = vmatpush2.msra.mxu0 0.0
      %324 = vmatprep.subr.mxu0 0.0
      %325 = vmatpush2.msra.mxu0 0.0
      %326 = vmatprep.subr.mxu0 0.0
      %327 = vmatpush2.msra.mxu0 0.0
      %328 = vmatprep.subr.mxu0 0.0
      %329 = vmatpush2.msra.mxu0 0.0
      %330 = vmatprep.subr.mxu0 0.0
      %331 = vmatpush2.msra.mxu0 0.0
      %332 = vmatprep.subr.mxu0 0.0
      %333 = vmatpush2.msra.mxu0 0.0
      %334 = vmatprep.subr.mxu0 0.0
      %335 = vmatpush2.msra.mxu0 0.0
      %336 = vmatprep.subr.mxu0 0.0
      %337 = vmatpush2.msra.mxu0 0.0
      %338 = vmatprep.mubr.f32.mxu0 0.0
      %339 = vmatmul.mubr.f32.gmra.mxu0 %v272
      %v340 = vpop.f32.mrf.mxu0
      %v341 = vadd.f32 0.0, %v340
      %v342 = vpop.f32.mrf.mxu0
      %343 = vdwg.mxu0
      %345 = vrot.lane.b32.xlu0 %v270, 32
      %v346 = vpop.permute.xlu0 %345
      %v347 = vsel %vm94, %v346, 0
      %349 = vmatprep.subr.mxu0 0.0
      %350 = vmatpush1.msra.mxu0 0.0
      %351 = vmatprep.subr.mxu0 0.0
      %352 = vmatpush1.msra.mxu0 0.0
      %353 = vmatprep.subr.mxu0 0.0
      %354 = vmatpush1.msra.mxu0 0.0
      %355 = vmatprep.subr.mxu0 0.0
      %356 = vmatpush1.msra.mxu0 0.0
      %357 = vmatprep.subr.mxu0 0.0
      %358 = vmatpush1.msra.mxu0 0.0
      %359 = vmatprep.subr.mxu0 0.0
      %360 = vmatpush1.msra.mxu0 0.0
      %361 = vmatprep.subr.mxu0 0.0
      %362 = vmatpush1.msra.mxu0 0.0
      %363 = vmatprep.subr.mxu0 0.0
      %364 = vmatpush1.msra.mxu0 0.0
      %365 = vmatprep.subr.mxu0 0.0
      %366 = vmatpush1.msra.mxu0 0.0
      %367 = vmatprep.subr.mxu0 0.0
      %368 = vmatpush1.msra.mxu0 0.0
      %369 = vmatprep.subr.mxu0 0.0
      %370 = vmatpush1.msra.mxu0 0.0
      %371 = vmatprep.subr.mxu0 0.0
      %372 = vmatpush1.msra.mxu0 0.0
      %373 = vmatprep.subr.mxu0 0.0
      %374 = vmatpush1.msra.mxu0 %v71
      %375 = vmatprep.subr.mxu0 0.0
      %376 = vmatpush1.msra.mxu0 %v70
      %377 = vmatprep.subr.mxu0 0.0
      %378 = vmatpush1.msra.mxu0 %v69
      %379 = vmatprep.subr.mxu0 0.0
      %380 = vmatpush1.msra.mxu0 %v68
      %381 = vmatprep.subr.mxu0 0.0
      %382 = vmatpush2.msra.mxu0 0.0
      %383 = vmatprep.subr.mxu0 0.0
      %384 = vmatpush2.msra.mxu0 0.0
      %385 = vmatprep.subr.mxu0 0.0
      %386 = vmatpush2.msra.mxu0 0.0
      %387 = vmatprep.subr.mxu0 0.0
      %388 = vmatpush2.msra.mxu0 0.0
      %389 = vmatprep.subr.mxu0 0.0
      %390 = vmatpush2.msra.mxu0 0.0
      %391 = vmatprep.subr.mxu0 0.0
      %392 = vmatpush2.msra.mxu0 0.0
      %393 = vmatprep.subr.mxu0 0.0
      %394 = vmatpush2.msra.mxu0 0.0
      %395 = vmatprep.subr.mxu0 0.0
      %396 = vmatpush2.msra.mxu0 0.0
      %397 = vmatprep.subr.mxu0 0.0
      %398 = vmatpush2.msra.mxu0 0.0
      %399 = vmatprep.subr.mxu0 0.0
      %400 = vmatpush2.msra.mxu0 0.0
      %401 = vmatprep.subr.mxu0 0.0
      %402 = vmatpush2.msra.mxu0 0.0
      %403 = vmatprep.subr.mxu0 0.0
      %404 = vmatpush2.msra.mxu0 0.0
      %405 = vmatprep.subr.mxu0 0.0
      %406 = vmatpush2.msra.mxu0 0.0
      %407 = vmatprep.subr.mxu0 0.0
      %408 = vmatpush2.msra.mxu0 0.0
      %409 = vmatprep.subr.mxu0 0.0
      %410 = vmatpush2.msra.mxu0 0.0
      %411 = vmatprep.subr.mxu0 0.0
      %412 = vmatpush2.msra.mxu0 0.0
      %413 = vmatprep.mubr.f32.mxu0 0.0
      %414 = vmatmul.mubr.f32.gmra.mxu0 %v347
      %v415 = vpop.f32.mrf.mxu0
      %v416 = vadd.f32 %v341, %v415
      %v417 = vpop.f32.mrf.mxu0
      %418 = vdwg.mxu0
      %v419 = vadd.f32 %v416, %v76
      %v420 = vxor.u32 %v419, 2147483648
      %v421 = vmul.f32 %v420, 1.442695
      %v422 = vpow.pop %v421
      %v423 = vadd.f32 %v422, 1.0
      %v424 = vrcp.pop %v423
      %v425 = vmul.f32 1.0, %v424
      %v426 = vtanh.pop %v419
      %428 = vrot.lane.b32.xlu0 %v91, 32
      %v429 = vpop.permute.xlu0 %428
      %v431 = vmul.f32 %v425, %v429
      %433 = vrot.lane.b32.xlu0 %v426, 64
      %v434 = vpop.permute.xlu0 %433
      %v436 = vmul.f32 %v425, %v434
      %438 = vrot.lane.b32.xlu0 %v436, 32
      %v439 = vpop.permute.xlu0 %438
      %v441 = vadd.f32 %v431, %v439
      %v442 = vtanh.pop %v441
      %444 = vrot.lane.b32.xlu0 %v442, 64
      %v445 = vpop.permute.xlu0 %444
      %v447 = vmul.f32 %v425, %v445
      %450 = vrot.lane.b32.xlu0 %v264, 96
      %v451 = vpop.permute.xlu0 %450
      %454 = vrot.lane.b32.xlu0 %v447, 32
      %v455 = vpop.permute.xlu0 %454
      %458 = vrot.lane.b32.xlu0 %v441, 96
      %v459 = vpop.permute.xlu0 %458
    $region66: #{tpu_custom_call.1} parent=1 // loop_footer
      %s87 = sadd.s32 1, %s83
    $region67: #{tpu_custom_call.1} parent=1 // loop_footer_branch
      %82 = sbr.rel target = $region63
    $region68: #{tpu_custom_call.1} parent=1 // loop_exit
      _
    %v461 = vld [vmem:[%s9] sm:$0x1]
    %v462 = vadd.f32 %v461, %v77
    loop: start=0, step=1, limit=6
    $region69: #{tpu_custom_call.1} parent=1 // loop_pre_header
      _
    $region70: #{tpu_custom_call.1} parent=1 // loop_header
      %s464 = sphi 0, %s468
      %p465 = scmp.ge.s32.totalorder %s464, 6
      %v469 = vphi %v88, %v578
      %v470 = vphi %v89, %v6851
      %v471 = vphi %v90, %v1052
      %v472 = vphi %v91, %v6856
      %v473 = vphi %v462, %v6845
    $region71: #{tpu_custom_call.1} parent=1 // loop_header_branch
      %467 = sbr.rel (%p465) target = $region75
    $region72: #{tpu_custom_call.1} parent=1 // loop_body
      %vm474 = vcmask 261120
      %v476 = vsel %vm474, %v469, 0
      %478 = vmatprep.subr.mxu0 0.0
      %479 = vmatpush1.msra.mxu0 0.0
      %480 = vmatprep.subr.mxu0 0.0
      %481 = vmatpush1.msra.mxu0 0.0
      %482 = vmatprep.subr.mxu0 0.0
      %483 = vmatpush1.msra.mxu0 0.0
      %484 = vmatprep.subr.mxu0 0.0
      %485 = vmatpush1.msra.mxu0 0.0
      %486 = vmatprep.subr.mxu0 0.0
      %487 = vmatpush1.msra.mxu0 0.0
      %488 = vmatprep.subr.mxu0 0.0
      %489 = vmatpush1.msra.mxu0 0.0
      %490 = vmatprep.subr.mxu0 0.0
      %491 = vmatpush1.msra.mxu0 0.0
      %492 = vmatprep.subr.mxu0 0.0
      %493 = vmatpush1.msra.mxu0 0.0
      %494 = vmatprep.subr.mxu0 0.0
      %495 = vmatpush1.msra.mxu0 0.0
      %496 = vmatprep.subr.mxu0 0.0
      %497 = vmatpush1.msra.mxu0 0.0
      %498 = vmatprep.subr.mxu0 0.0
      %499 = vmatpush1.msra.mxu0 0.0
      %500 = vmatprep.subr.mxu0 0.0
      %501 = vmatpush1.msra.mxu0 0.0
      %502 = vmatprep.subr.mxu0 0.0
      %503 = vmatpush1.msra.mxu0 %v62
      %504 = vmatprep.subr.mxu0 0.0
      %505 = vmatpush1.msra.mxu0 %v61
      %506 = vmatprep.subr.mxu0 0.0
      %507 = vmatpush1.msra.mxu0 %v60
      %508 = vmatprep.subr.mxu0 0.0
      %509 = vmatpush1.msra.mxu0 %v59
      %510 = vmatprep.subr.mxu0 0.0
      %511 = vmatpush2.msra.mxu0 0.0
      %512 = vmatprep.subr.mxu0 0.0
      %513 = vmatpush2.msra.mxu0 0.0
      %514 = vmatprep.subr.mxu0 0.0
      %515 = vmatpush2.msra.mxu0 0.0
      %516 = vmatprep.subr.mxu0 0.0
      %517 = vmatpush2.msra.mxu0 0.0
      %518 = vmatprep.subr.mxu0 0.0
      %519 = vmatpush2.msra.mxu0 0.0
      %520 = vmatprep.subr.mxu0 0.0
      %521 = vmatpush2.msra.mxu0 0.0
      %522 = vmatprep.subr.mxu0 0.0
      %523 = vmatpush2.msra.mxu0 0.0
      %524 = vmatprep.subr.mxu0 0.0
      %525 = vmatpush2.msra.mxu0 0.0
      %526 = vmatprep.subr.mxu0 0.0
      %527 = vmatpush2.msra.mxu0 0.0
      %528 = vmatprep.subr.mxu0 0.0
      %529 = vmatpush2.msra.mxu0 0.0
      %530 = vmatprep.subr.mxu0 0.0
      %531 = vmatpush2.msra.mxu0 0.0
      %532 = vmatprep.subr.mxu0 0.0
      %533 = vmatpush2.msra.mxu0 0.0
      %534 = vmatprep.subr.mxu0 0.0
      %535 = vmatpush2.msra.mxu0 0.0
      %536 = vmatprep.subr.mxu0 0.0
      %537 = vmatpush2.msra.mxu0 0.0
      %538 = vmatprep.subr.mxu0 0.0
      %539 = vmatpush2.msra.mxu0 0.0
      %540 = vmatprep.subr.mxu0 0.0
      %541 = vmatpush2.msra.mxu0 0.0
      %542 = vmatprep.mubr.f32.mxu0 0.0
      %543 = vmatmul.mubr.f32.gmra.mxu0 %v476
      %v544 = vpop.f32.mrf.mxu0
      %v545 = vadd.f32 %v63, %v544
      %v546 = vpop.f32.mrf.mxu0
      %547 = vdwg.mxu0
      %v548 = vxor.u32 %v545, 2147483648
      %v549 = vmul.f32 %v548, 1.442695
      %v550 = vpow.pop %v549
      %v551 = vadd.f32 %v550, 1.0
      %v552 = vrcp.pop %v551
      %v553 = vmul.f32 1.0, %v552
      %v554 = vtanh.pop %v545
      %556 = vrot.lane.b32.xlu0 %v470, 32
      %v557 = vpop.permute.xlu0 %556
      %v559 = vmul.f32 %v553, %v557
      %561 = vrot.lane.b32.xlu0 %v554, 64
      %v562 = vpop.permute.xlu0 %561
      %v564 = vmul.f32 %v553, %v562
      %566 = vrot.lane.b32.xlu0 %v564, 32
      %v567 = vpop.permute.xlu0 %566
      %v569 = vadd.f32 %v559, %v567
      %v570 = vtanh.pop %v569
      %572 = vrot.lane.b32.xlu0 %v570, 64
      %v573 = vpop.permute.xlu0 %572
      %v575 = vmul.f32 %v553, %v573
      %577 = vrot.lane.b32.xlu0 %v575, 32
      %v578 = vpop.permute.xlu0 %577
      %v579 = vsel %vm474, %v578, 0
      %581 = vmatprep.subr.mxu0 0.0
      %582 = vmatpush1.msra.mxu0 0.0
      %583 = vmatprep.subr.mxu0 0.0
      %584 = vmatpush1.msra.mxu0 0.0
      %585 = vmatprep.subr.mxu0 0.0
      %586 = vmatpush1.msra.mxu0 0.0
      %587 = vmatprep.subr.mxu0 0.0
      %588 = vmatpush1.msra.mxu0 0.0
      %589 = vmatprep.subr.mxu0 0.0
      %590 = vmatpush1.msra.mxu0 0.0
      %591 = vmatprep.subr.mxu0 0.0
      %592 = vmatpush1.msra.mxu0 0.0
      %593 = vmatprep.subr.mxu0 0.0
      %594 = vmatpush1.msra.mxu0 0.0
      %595 = vmatprep.subr.mxu0 0.0
      %596 = vmatpush1.msra.mxu0 0.0
      %597 = vmatprep.subr.mxu0 0.0
      %598 = vmatpush1.msra.mxu0 0.0
      %599 = vmatprep.subr.mxu0 0.0
      %600 = vmatpush1.msra.mxu0 0.0
      %601 = vmatprep.subr.mxu0 0.0
      %602 = vmatpush1.msra.mxu0 0.0
      %603 = vmatprep.subr.mxu0 0.0
      %604 = vmatpush1.msra.mxu0 0.0
      %605 = vmatprep.subr.mxu0 0.0
      %606 = vmatpush1.msra.mxu0 %v71
      %607 = vmatprep.subr.mxu0 0.0
      %608 = vmatpush1.msra.mxu0 %v70
      %609 = vmatprep.subr.mxu0 0.0
      %610 = vmatpush1.msra.mxu0 %v69
      %611 = vmatprep.subr.mxu0 0.0
      %612 = vmatpush1.msra.mxu0 %v68
      %613 = vmatprep.subr.mxu0 0.0
      %614 = vmatpush2.msra.mxu0 0.0
      %615 = vmatprep.subr.mxu0 0.0
      %616 = vmatpush2.msra.mxu0 0.0
      %617 = vmatprep.subr.mxu0 0.0
      %618 = vmatpush2.msra.mxu0 0.0
      %619 = vmatprep.subr.mxu0 0.0
      %620 = vmatpush2.msra.mxu0 0.0
      %621 = vmatprep.subr.mxu0 0.0
      %622 = vmatpush2.msra.mxu0 0.0
      %623 = vmatprep.subr.mxu0 0.0
      %624 = vmatpush2.msra.mxu0 0.0
      %625 = vmatprep.subr.mxu0 0.0
      %626 = vmatpush2.msra.mxu0 0.0
      %627 = vmatprep.subr.mxu0 0.0
      %628 = vmatpush2.msra.mxu0 0.0
      %629 = vmatprep.subr.mxu0 0.0
      %630 = vmatpush2.msra.mxu0 0.0
      %631 = vmatprep.subr.mxu0 0.0
      %632 = vmatpush2.msra.mxu0 0.0
      %633 = vmatprep.subr.mxu0 0.0
      %634 = vmatpush2.msra.mxu0 0.0
      %635 = vmatprep.subr.mxu0 0.0
      %636 = vmatpush2.msra.mxu0 0.0
      %637 = vmatprep.subr.mxu0 0.0
      %638 = vmatpush2.msra.mxu0 0.0
      %639 = vmatprep.subr.mxu0 0.0
      %640 = vmatpush2.msra.mxu0 0.0
      %641 = vmatprep.subr.mxu0 0.0
      %642 = vmatpush2.msra.mxu0 0.0
      %643 = vmatprep.subr.mxu0 0.0
      %644 = vmatpush2.msra.mxu0 0.0
      %645 = vmatprep.mubr.f32.mxu0 0.0
      %646 = vmatmul.mubr.f32.gmra.mxu0 %v579
      %v647 = vpop.f32.mrf.mxu0
      %v648 = vadd.f32 0.0, %v647
      %v649 = vpop.f32.mrf.mxu0
      %650 = vdwg.mxu0
      %v652 = vsel %vm474, %v473, 0
      %654 = vmatprep.subr.mxu0 0.0
      %655 = vmatpush1.msra.mxu0 0.0
      %656 = vmatprep.subr.mxu0 0.0
      %657 = vmatpush1.msra.mxu0 0.0
      %658 = vmatprep.subr.mxu0 0.0
      %659 = vmatpush1.msra.mxu0 0.0
      %660 = vmatprep.subr.mxu0 0.0
      %661 = vmatpush1.msra.mxu0 0.0
      %662 = vmatprep.subr.mxu0 0.0
      %663 = vmatpush1.msra.mxu0 0.0
      %664 = vmatprep.subr.mxu0 0.0
      %665 = vmatpush1.msra.mxu0 0.0
      %666 = vmatprep.subr.mxu0 0.0
      %667 = vmatpush1.msra.mxu0 0.0
      %668 = vmatprep.subr.mxu0 0.0
      %669 = vmatpush1.msra.mxu0 0.0
      %670 = vmatprep.subr.mxu0 0.0
      %671 = vmatpush1.msra.mxu0 0.0
      %672 = vmatprep.subr.mxu0 0.0
      %673 = vmatpush1.msra.mxu0 0.0
      %674 = vmatprep.subr.mxu0 0.0
      %675 = vmatpush1.msra.mxu0 0.0
      %676 = vmatprep.subr.mxu0 0.0
      %677 = vmatpush1.msra.mxu0 0.0
      %678 = vmatprep.subr.mxu0 0.0
      %679 = vmatpush1.msra.mxu0 %v67
      %680 = vmatprep.subr.mxu0 0.0
      %681 = vmatpush1.msra.mxu0 %v66
      %682 = vmatprep.subr.mxu0 0.0
      %683 = vmatpush1.msra.mxu0 %v65
      %684 = vmatprep.subr.mxu0 0.0
      %685 = vmatpush1.msra.mxu0 %v64
      %686 = vmatprep.subr.mxu0 0.0
      %687 = vmatpush2.msra.mxu0 0.0
      %688 = vmatprep.subr.mxu0 0.0
      %689 = vmatpush2.msra.mxu0 0.0
      %690 = vmatprep.subr.mxu0 0.0
      %691 = vmatpush2.msra.mxu0 0.0
      %692 = vmatprep.subr.mxu0 0.0
      %693 = vmatpush2.msra.mxu0 0.0
      %694 = vmatprep.subr.mxu0 0.0
      %695 = vmatpush2.msra.mxu0 0.0
      %696 = vmatprep.subr.mxu0 0.0
      %697 = vmatpush2.msra.mxu0 0.0
      %698 = vmatprep.subr.mxu0 0.0
      %699 = vmatpush2.msra.mxu0 0.0
      %700 = vmatprep.subr.mxu0 0.0
      %701 = vmatpush2.msra.mxu0 0.0
      %702 = vmatprep.subr.mxu0 0.0
      %703 = vmatpush2.msra.mxu0 0.0
      %704 = vmatprep.subr.mxu0 0.0
      %705 = vmatpush2.msra.mxu0 0.0
      %706 = vmatprep.subr.mxu0 0.0
      %707 = vmatpush2.msra.mxu0 0.0
      %708 = vmatprep.subr.mxu0 0.0
      %709 = vmatpush2.msra.mxu0 0.0
      %710 = vmatprep.subr.mxu0 0.0
      %711 = vmatpush2.msra.mxu0 0.0
      %712 = vmatprep.subr.mxu0 0.0
      %713 = vmatpush2.msra.mxu0 0.0
      %714 = vmatprep.subr.mxu0 0.0
      %715 = vmatpush2.msra.mxu0 0.0
      %716 = vmatprep.subr.mxu0 0.0
      %717 = vmatpush2.msra.mxu0 0.0
      %718 = vmatprep.mubr.f32.mxu0 0.0
      %719 = vmatmul.mubr.f32.gmra.mxu0 %v652
      %v720 = vpop.f32.mrf.mxu0
      %v721 = vadd.f32 %v648, %v720
      %v722 = vpop.f32.mrf.mxu0
      %723 = vdwg.mxu0
      %v725 = vsel %vm474, %v471, 0
      %727 = vmatprep.subr.mxu0 0.0
      %728 = vmatpush1.msra.mxu0 0.0
      %729 = vmatprep.subr.mxu0 0.0
      %730 = vmatpush1.msra.mxu0 0.0
      %731 = vmatprep.subr.mxu0 0.0
      %732 = vmatpush1.msra.mxu0 0.0
      %733 = vmatprep.subr.mxu0 0.0
      %734 = vmatpush1.msra.mxu0 0.0
      %735 = vmatprep.subr.mxu0 0.0
      %736 = vmatpush1.msra.mxu0 0.0
      %737 = vmatprep.subr.mxu0 0.0
      %738 = vmatpush1.msra.mxu0 0.0
      %739 = vmatprep.subr.mxu0 0.0
      %740 = vmatpush1.msra.mxu0 0.0
      %741 = vmatprep.subr.mxu0 0.0
      %742 = vmatpush1.msra.mxu0 0.0
      %743 = vmatprep.subr.mxu0 0.0
      %744 = vmatpush1.msra.mxu0 0.0
      %745 = vmatprep.subr.mxu0 0.0
      %746 = vmatpush1.msra.mxu0 0.0
      %747 = vmatprep.subr.mxu0 0.0
      %748 = vmatpush1.msra.mxu0 0.0
      %749 = vmatprep.subr.mxu0 0.0
      %750 = vmatpush1.msra.mxu0 0.0
      %751 = vmatprep.subr.mxu0 0.0
      %752 = vmatpush1.msra.mxu0 %v75
      %753 = vmatprep.subr.mxu0 0.0
      %754 = vmatpush1.msra.mxu0 %v74
      %755 = vmatprep.subr.mxu0 0.0
      %756 = vmatpush1.msra.mxu0 %v73
      %757 = vmatprep.subr.mxu0 0.0
      %758 = vmatpush1.msra.mxu0 %v72
      %759 = vmatprep.subr.mxu0 0.0
      %760 = vmatpush2.msra.mxu0 0.0
      %761 = vmatprep.subr.mxu0 0.0
      %762 = vmatpush2.msra.mxu0 0.0
      %763 = vmatprep.subr.mxu0 0.0
      %764 = vmatpush2.msra.mxu0 0.0
      %765 = vmatprep.subr.mxu0 0.0
      %766 = vmatpush2.msra.mxu0 0.0
      %767 = vmatprep.subr.mxu0 0.0
      %768 = vmatpush2.msra.mxu0 0.0
      %769 = vmatprep.subr.mxu0 0.0
      %770 = vmatpush2.msra.mxu0 0.0
      %771 = vmatprep.subr.mxu0 0.0
      %772 = vmatpush2.msra.mxu0 0.0
      %773 = vmatprep.subr.mxu0 0.0
      %774 = vmatpush2.msra.mxu0 0.0
      %775 = vmatprep.subr.mxu0 0.0
      %776 = vmatpush2.msra.mxu0 0.0
      %777 = vmatprep.subr.mxu0 0.0
      %778 = vmatpush2.msra.mxu0 0.0
      %779 = vmatprep.subr.mxu0 0.0
      %780 = vmatpush2.msra.mxu0 0.0
      %781 = vmatprep.subr.mxu0 0.0
      %782 = vmatpush2.msra.mxu0 0.0
      %783 = vmatprep.subr.mxu0 0.0
      %784 = vmatpush2.msra.mxu0 0.0
      %785 = vmatprep.subr.mxu0 0.0
      %786 = vmatpush2.msra.mxu0 0.0
      %787 = vmatprep.subr.mxu0 0.0
      %788 = vmatpush2.msra.mxu0 0.0
      %789 = vmatprep.subr.mxu0 0.0
      %790 = vmatpush2.msra.mxu0 0.0
      %791 = vmatprep.mubr.f32.mxu0 0.0
      %792 = vmatmul.mubr.f32.gmra.mxu0 %v725
      %v793 = vpop.f32.mrf.mxu0
      %v794 = vadd.f32 0.0, %v793
      %v795 = vpop.f32.mrf.mxu0
      %796 = vdwg.mxu0
      %v797 = vadd.f32 %v721, %v794
      %v798 = vadd.f32 %v797, %v76
      %v799 = vxor.u32 %v798, 2147483648
      %v800 = vmul.f32 %v799, 1.442695
      %v801 = vpow.pop %v800
      %v802 = vadd.f32 %v801, 1.0
      %v803 = vrcp.pop %v802
      %v804 = vmul.f32 1.0, %v803
      %v805 = vtanh.pop %v798
      %807 = vrot.lane.b32.xlu0 %v472, 32
      %v808 = vpop.permute.xlu0 %807
      %v810 = vmul.f32 %v804, %v808
      %812 = vrot.lane.b32.xlu0 %v805, 64
      %v813 = vpop.permute.xlu0 %812
      %v815 = vmul.f32 %v804, %v813
      %817 = vrot.lane.b32.xlu0 %v815, 32
      %v818 = vpop.permute.xlu0 %817
      %v820 = vadd.f32 %v810, %v818
      %v821 = vtanh.pop %v820
      %823 = vrot.lane.b32.xlu0 %v821, 64
      %v824 = vpop.permute.xlu0 %823
      %v826 = vmul.f32 %v804, %v824
      %v827 = vld [vmem:[%s7] sm:$0xff]
      %v828 = vld [vmem:[%s7 + $0x8] sm:$0xff]
      %v829 = vld [vmem:[%s7 + $0x10] sm:$0xff]
      %v830 = vld [vmem:[%s7 + $0x18] sm:$0xff]
      %v831 = vld [vmem:[%s7 + $0x20] sm:$0xff]
      %v832 = vld [vmem:[%s7 + $0x28] sm:$0xff]
      %v833 = vld [vmem:[%s7 + $0x30] sm:$0xff]
      %v834 = vld [vmem:[%s7 + $0x38] sm:$0xff]
      %v835 = vld [vmem:[%s7 + $0x40] sm:$0xff]
      %v836 = vld [vmem:[%s7 + $0x48] sm:$0xff]
      %v837 = vld [vmem:[%s7 + $0x50] sm:$0xff]
      %v838 = vld [vmem:[%s7 + $0x58] sm:$0xff]
      %v839 = vld [vmem:[%s7 + $0x60] sm:$0xff]
      %v840 = vld [vmem:[%s7 + $0x68] sm:$0xff]
      %v841 = vld [vmem:[%s7 + $0x70] sm:$0xff]
      %v842 = vld [vmem:[%s7 + $0x78] sm:$0xff]
      %v843 = vld [vmem:[%s7 + $0x80] sm:$0xff]
      %v844 = vld [vmem:[%s7 + $0x88] sm:$0xff]
      %v845 = vld [vmem:[%s7 + $0x90] sm:$0xff]
      %v846 = vld [vmem:[%s7 + $0x98] sm:$0xff]
      %v847 = vld [vmem:[%s7 + $0xa0] sm:$0xff]
      %v848 = vld [vmem:[%s7 + $0xa8] sm:$0xff]
      %v849 = vld [vmem:[%s7 + $0xb0] sm:$0xff]
      %v850 = vld [vmem:[%s7 + $0xb8] sm:$0xff]
      %v851 = vld [vmem:[%s7 + $0xc0] sm:$0xff]
      %v852 = vld [vmem:[%s7 + $0xc8] sm:$0xff]
      %v853 = vld [vmem:[%s7 + $0xd0] sm:$0xff]
      %v854 = vld [vmem:[%s7 + $0xd8] sm:$0xff]
      %v855 = vld [vmem:[%s7 + $0xe0] sm:$0xff]
      %v856 = vld [vmem:[%s7 + $0xe8] sm:$0xff]
      %v857 = vld [vmem:[%s7 + $0xf0] sm:$0xff]
      %v858 = vld [vmem:[%s7 + $0xf8] sm:$0xff]
      %v859 = vld [vmem:[%s7 + $0x100] sm:$0xff]
      %v860 = vld [vmem:[%s7 + $0x108] sm:$0xff]
      %v861 = vld [vmem:[%s7 + $0x110] sm:$0xff]
      %v862 = vld [vmem:[%s7 + $0x118] sm:$0xff]
      %v863 = vld [vmem:[%s7 + $0x120] sm:$0xff]
      %v864 = vld [vmem:[%s7 + $0x128] sm:$0xff]
      %v865 = vld [vmem:[%s7 + $0x130] sm:$0xff]
      %v866 = vld [vmem:[%s7 + $0x138] sm:$0xff]
      %v867 = vld [vmem:[%s7 + $0x140] sm:$0xff]
      %v868 = vld [vmem:[%s7 + $0x148] sm:$0xff]
      %v869 = vld [vmem:[%s7 + $0x150] sm:$0xff]
      %v870 = vld [vmem:[%s7 + $0x158] sm:$0xff]
      %v871 = vld [vmem:[%s7 + $0x160] sm:$0xff]
      %v872 = vld [vmem:[%s7 + $0x168] sm:$0xff]
      %v873 = vld [vmem:[%s7 + $0x170] sm:$0xff]
      %v874 = vld [vmem:[%s7 + $0x178] sm:$0xff]
      %v875 = vld [vmem:[%s7 + $0x180] sm:$0xff]
      %v876 = vld [vmem:[%s7 + $0x188] sm:$0xff]
      %v877 = vld [vmem:[%s7 + $0x190] sm:$0xff]
      %v878 = vld [vmem:[%s7 + $0x198] sm:$0xff]
      %v879 = vld [vmem:[%s7 + $0x1a0] sm:$0xff]
      %v880 = vld [vmem:[%s7 + $0x1a8] sm:$0xff]
      %v881 = vld [vmem:[%s7 + $0x1b0] sm:$0xff]
      %v882 = vld [vmem:[%s7 + $0x1b8] sm:$0xff]
      %v883 = vld [vmem:[%s7 + $0x1c0] sm:$0xff]
      %v884 = vld [vmem:[%s7 + $0x1c8] sm:$0xff]
      %v885 = vld [vmem:[%s7 + $0x1d0] sm:$0xff]
      %v886 = vld [vmem:[%s7 + $0x1d8] sm:$0xff]
      %v887 = vld [vmem:[%s7 + $0x1e0] sm:$0xff]
      %v888 = vld [vmem:[%s7 + $0x1e8] sm:$0xff]
      %v889 = vld [vmem:[%s7 + $0x1f0] sm:$0xff]
      %v890 = vld [vmem:[%s7 + $0x1f8] sm:$0xff]
      %v891 = vld [vmem:[%s7 + $0x200] sm:$0xff]
      %v892 = vld [vmem:[%s7 + $0x208] sm:$0xff]
      %v893 = vld [vmem:[%s7 + $0x210] sm:$0xff]
      %v894 = vld [vmem:[%s7 + $0x218] sm:$0xff]
      %v895 = vld [vmem:[%s7 + $0x220] sm:$0xff]
      %v896 = vld [vmem:[%s7 + $0x228] sm:$0xff]
      %v897 = vld [vmem:[%s7 + $0x230] sm:$0xff]
      %v898 = vld [vmem:[%s7 + $0x238] sm:$0xff]
      %v899 = vld [vmem:[%s7 + $0x240] sm:$0xff]
      %v900 = vld [vmem:[%s7 + $0x248] sm:$0xff]
      %v901 = vld [vmem:[%s7 + $0x250] sm:$0xff]
      %v902 = vld [vmem:[%s7 + $0x258] sm:$0xff]
      %v903 = vld [vmem:[%s7 + $0x260] sm:$0xff]
      %v904 = vld [vmem:[%s7 + $0x268] sm:$0xff]
      %v905 = vld [vmem:[%s7 + $0x270] sm:$0xff]
      %v906 = vld [vmem:[%s7 + $0x278] sm:$0xff]
      %v907 = vld [vmem:[%s7 + $0x280] sm:$0xff]
      %v908 = vld [vmem:[%s7 + $0x288] sm:$0xff]
      %v909 = vld [vmem:[%s7 + $0x290] sm:$0xff]
      %v910 = vld [vmem:[%s7 + $0x298] sm:$0xff]
      %v911 = vld [vmem:[%s7 + $0x2a0] sm:$0xff]
      %v912 = vld [vmem:[%s7 + $0x2a8] sm:$0xff]
      %v913 = vld [vmem:[%s7 + $0x2b0] sm:$0xff]
      %v914 = vld [vmem:[%s7 + $0x2b8] sm:$0xff]
      %v915 = vld [vmem:[%s7 + $0x2c0] sm:$0xff]
      %v916 = vld [vmem:[%s7 + $0x2c8] sm:$0xff]
      %v917 = vld [vmem:[%s7 + $0x2d0] sm:$0xff]
      %v918 = vld [vmem:[%s7 + $0x2d8] sm:$0xff]
      %v919 = vld [vmem:[%s7 + $0x2e0] sm:$0xff]
      %v920 = vld [vmem:[%s7 + $0x2e8] sm:$0xff]
      %v921 = vld [vmem:[%s7 + $0x2f0] sm:$0xff]
      %v922 = vld [vmem:[%s7 + $0x2f8] sm:$0xff]
      %v923 = vld [vmem:[%s7 + $0x300] sm:$0xff]
      %v924 = vld [vmem:[%s7 + $0x308] sm:$0xff]
      %v925 = vld [vmem:[%s7 + $0x310] sm:$0xff]
      %v926 = vld [vmem:[%s7 + $0x318] sm:$0xff]
      %v927 = vld [vmem:[%s7 + $0x320] sm:$0xff]
      %v928 = vld [vmem:[%s7 + $0x328] sm:$0xff]
      %v929 = vld [vmem:[%s7 + $0x330] sm:$0xff]
      %v930 = vld [vmem:[%s7 + $0x338] sm:$0xff]
      %v931 = vld [vmem:[%s7 + $0x340] sm:$0xff]
      %v932 = vld [vmem:[%s7 + $0x348] sm:$0xff]
      %v933 = vld [vmem:[%s7 + $0x350] sm:$0xff]
      %v934 = vld [vmem:[%s7 + $0x358] sm:$0xff]
      %v935 = vld [vmem:[%s7 + $0x360] sm:$0xff]
      %v936 = vld [vmem:[%s7 + $0x368] sm:$0xff]
      %v937 = vld [vmem:[%s7 + $0x370] sm:$0xff]
      %v938 = vld [vmem:[%s7 + $0x378] sm:$0xff]
      %v939 = vld [vmem:[%s7 + $0x380] sm:$0xff]
      %v940 = vld [vmem:[%s7 + $0x388] sm:$0xff]
      %v941 = vld [vmem:[%s7 + $0x390] sm:$0xff]
      %v942 = vld [vmem:[%s7 + $0x398] sm:$0xff]
      %v943 = vld [vmem:[%s7 + $0x3a0] sm:$0xff]
      %v944 = vld [vmem:[%s7 + $0x3a8] sm:$0xff]
      %v945 = vld [vmem:[%s7 + $0x3b0] sm:$0xff]
      %v946 = vld [vmem:[%s7 + $0x3b8] sm:$0xff]
      %v947 = vld [vmem:[%s7 + $0x3c0] sm:$0xff]
      %v948 = vld [vmem:[%s7 + $0x3c8] sm:$0xff]
      %v949 = vld [vmem:[%s7 + $0x3d0] sm:$0xff]
      %v950 = vld [vmem:[%s7 + $0x3d8] sm:$0xff]
      %v951 = vld [vmem:[%s7 + $0x3e0] sm:$0xff]
      %v952 = vld [vmem:[%s7 + $0x3e8] sm:$0xff]
      %v953 = vld [vmem:[%s7 + $0x3f0] sm:$0xff]
      %v954 = vld [vmem:[%s7 + $0x3f8] sm:$0xff]
      %v955 = vld [vmem:[%s7 + $0x400] sm:$0xff]
      %v956 = vld [vmem:[%s7 + $0x408] sm:$0xff]
      %v957 = vld [vmem:[%s7 + $0x410] sm:$0xff]
      %v958 = vld [vmem:[%s7 + $0x418] sm:$0xff]
      %v959 = vld [vmem:[%s7 + $0x420] sm:$0xff]
      %v960 = vld [vmem:[%s7 + $0x428] sm:$0xff]
      %v961 = vld [vmem:[%s7 + $0x430] sm:$0xff]
      %v962 = vld [vmem:[%s7 + $0x438] sm:$0xff]
      %v963 = vld [vmem:[%s7 + $0x440] sm:$0xff]
      %v964 = vld [vmem:[%s7 + $0x448] sm:$0xff]
      %v965 = vld [vmem:[%s7 + $0x450] sm:$0xff]
      %v966 = vld [vmem:[%s7 + $0x458] sm:$0xff]
      %v967 = vld [vmem:[%s7 + $0x460] sm:$0xff]
      %v968 = vld [vmem:[%s7 + $0x468] sm:$0xff]
      %v969 = vld [vmem:[%s7 + $0x470] sm:$0xff]
      %v970 = vld [vmem:[%s7 + $0x478] sm:$0xff]
      %v971 = vld [vmem:[%s7 + $0x480] sm:$0xff]
      %v972 = vld [vmem:[%s7 + $0x488] sm:$0xff]
      %v973 = vld [vmem:[%s7 + $0x490] sm:$0xff]
      %v974 = vld [vmem:[%s7 + $0x498] sm:$0xff]
      %v975 = vld [vmem:[%s7 + $0x4a0] sm:$0xff]
      %v976 = vld [vmem:[%s7 + $0x4a8] sm:$0xff]
      %v977 = vld [vmem:[%s7 + $0x4b0] sm:$0xff]
      %v978 = vld [vmem:[%s7 + $0x4b8] sm:$0xff]
      %v979 = vld [vmem:[%s7 + $0x4c0] sm:$0xff]
      %v980 = vld [vmem:[%s7 + $0x4c8] sm:$0xff]
      %v981 = vld [vmem:[%s7 + $0x4d0] sm:$0xff]
      %v982 = vld [vmem:[%s7 + $0x4d8] sm:$0xff]
      %v983 = vld [vmem:[%s7 + $0x4e0] sm:$0xff]
      %v984 = vld [vmem:[%s7 + $0x4e8] sm:$0xff]
      %v985 = vld [vmem:[%s7 + $0x4f0] sm:$0xff]
      %v986 = vld [vmem:[%s7 + $0x4f8] sm:$0xff]
      %v987 = vld [vmem:[%s7 + $0x500] sm:$0xff]
      %v988 = vld [vmem:[%s7 + $0x508] sm:$0xff]
      %v989 = vld [vmem:[%s7 + $0x510] sm:$0xff]
      %v990 = vld [vmem:[%s7 + $0x518] sm:$0xff]
      %v991 = vld [vmem:[%s7 + $0x520] sm:$0xff]
      %v992 = vld [vmem:[%s7 + $0x528] sm:$0xff]
      %v993 = vld [vmem:[%s7 + $0x530] sm:$0xff]
      %v994 = vld [vmem:[%s7 + $0x538] sm:$0xff]
      %v995 = vld [vmem:[%s7 + $0x540] sm:$0xff]
      %v996 = vld [vmem:[%s7 + $0x548] sm:$0xff]
      %v997 = vld [vmem:[%s7 + $0x550] sm:$0xff]
      %v998 = vld [vmem:[%s7 + $0x558] sm:$0xff]
      %v999 = vld [vmem:[%s7 + $0x560] sm:$0xff]
      %v1000 = vld [vmem:[%s7 + $0x568] sm:$0xff]
      %v1001 = vld [vmem:[%s7 + $0x570] sm:$0xff]
      %v1002 = vld [vmem:[%s7 + $0x578] sm:$0xff]
      %v1003 = vld [vmem:[%s7 + $0x580] sm:$0xff]
      %v1004 = vld [vmem:[%s7 + $0x588] sm:$0xff]
      %v1005 = vld [vmem:[%s7 + $0x590] sm:$0xff]
      %v1006 = vld [vmem:[%s7 + $0x598] sm:$0xff]
      %v1007 = vld [vmem:[%s7 + $0x5a0] sm:$0xff]
      %v1008 = vld [vmem:[%s7 + $0x5a8] sm:$0xff]
      %v1009 = vld [vmem:[%s7 + $0x5b0] sm:$0xff]
      %v1010 = vld [vmem:[%s7 + $0x5b8] sm:$0xff]
      %v1011 = vld [vmem:[%s7 + $0x5c0] sm:$0xff]
      %v1012 = vld [vmem:[%s7 + $0x5c8] sm:$0xff]
      %v1013 = vld [vmem:[%s7 + $0x5d0] sm:$0xff]
      %v1014 = vld [vmem:[%s7 + $0x5d8] sm:$0xff]
      %v1015 = vld [vmem:[%s7 + $0x5e0] sm:$0xff]
      %v1016 = vld [vmem:[%s7 + $0x5e8] sm:$0xff]
      %v1017 = vld [vmem:[%s7 + $0x5f0] sm:$0xff]
      %v1018 = vld [vmem:[%s7 + $0x5f8] sm:$0xff]
      %v1019 = vld [vmem:[%s7 + $0x600] sm:$0xff]
      %v1020 = vld [vmem:[%s7 + $0x608] sm:$0xff]
      %v1021 = vld [vmem:[%s7 + $0x610] sm:$0xff]
      %v1022 = vld [vmem:[%s7 + $0x618] sm:$0xff]
      %v1023 = vld [vmem:[%s7 + $0x620] sm:$0xff]
      %v1024 = vld [vmem:[%s7 + $0x628] sm:$0xff]
      %v1025 = vld [vmem:[%s7 + $0x630] sm:$0xff]
      %v1026 = vld [vmem:[%s7 + $0x638] sm:$0xff]
      %v1027 = vld [vmem:[%s7 + $0x640] sm:$0xff]
      %v1028 = vld [vmem:[%s7 + $0x648] sm:$0xff]
      %v1029 = vld [vmem:[%s7 + $0x650] sm:$0xff]
      %v1030 = vld [vmem:[%s7 + $0x658] sm:$0xff]
      %v1031 = vld [vmem:[%s7 + $0x660] sm:$0xff]
      %v1032 = vld [vmem:[%s7 + $0x668] sm:$0xff]
      %v1033 = vld [vmem:[%s7 + $0x670] sm:$0xff]
      %v1034 = vld [vmem:[%s7 + $0x678] sm:$0xff]
      %v1035 = vld [vmem:[%s7 + $0x680] sm:$0xff]
      %v1036 = vld [vmem:[%s7 + $0x688] sm:$0xff]
      %v1037 = vld [vmem:[%s7 + $0x690] sm:$0xff]
      %v1038 = vld [vmem:[%s7 + $0x698] sm:$0xff]
      %v1039 = vld [vmem:[%s7 + $0x6a0] sm:$0xff]
      %v1040 = vld [vmem:[%s7 + $0x6a8] sm:$0xff]
      %v1041 = vld [vmem:[%s7 + $0x6b0] sm:$0xff]
      %v1042 = vld [vmem:[%s7 + $0x6b8] sm:$0xff]
      %v1043 = vld [vmem:[%s8] sm:$0xff]
      %v1044 = vld [vmem:[%s8 + $0x8] sm:$0xff]
      %v1045 = vld [vmem:[%s8 + $0x10] sm:$0xff]
      %v1046 = vld [vmem:[%s8 + $0x18] sm:$0xff]
      %v1047 = vld [vmem:[%s8 + $0x20] sm:$0xff]
      %v1048 = vld [vmem:[%s8 + $0x28] sm:$0xff]
      %v1049 = vld [vmem:[%s8 + $0x30] sm:$0x3f]
      %1051 = vrot.lane.b32.xlu0 %v826, 32
      %v1052 = vpop.permute.xlu0 %1051
      %v1060 = vlaneseq
      %v1061 = vshrl.u32 %v1060, 7
      %v1062 = vsub.s32 0, %v1061
      %v1063 = vrot.slane %v1043, %v1062
      %v1064 = vlaneseq
      %v1065 = vshrl.u32 %v1064, 7
      %v1066 = vsub.s32 1, %v1065
      %v1067 = vrot.slane %v1043, %v1066
      %v1068 = vlaneseq
      %v1069 = vshrl.u32 %v1068, 7
      %v1070 = vsub.s32 2, %v1069
      %v1071 = vrot.slane %v1043, %v1070
      %v1072 = vlaneseq
      %v1073 = vshrl.u32 %v1072, 7
      %v1074 = vsub.s32 3, %v1073
      %v1075 = vrot.slane %v1043, %v1074
      %v1076 = vlaneseq
      %v1077 = vshrl.u32 %v1076, 7
      %v1078 = vsub.s32 4, %v1077
      %v1079 = vrot.slane %v1043, %v1078
      %v1080 = vlaneseq
      %v1081 = vshrl.u32 %v1080, 7
      %v1082 = vsub.s32 5, %v1081
      %v1083 = vrot.slane %v1043, %v1082
      %v1084 = vlaneseq
      %v1085 = vshrl.u32 %v1084, 7
      %v1086 = vsub.s32 6, %v1085
      %v1087 = vrot.slane %v1043, %v1086
      %v1088 = vlaneseq
      %v1089 = vshrl.u32 %v1088, 7
      %v1090 = vsub.s32 7, %v1089
      %v1091 = vrot.slane %v1043, %v1090
      %v1092 = vlaneseq
      %v1093 = vshrl.u32 %v1092, 7
      %v1094 = vsub.s32 0, %v1093
      %v1095 = vrot.slane %v1044, %v1094
      %v1096 = vlaneseq
      %v1097 = vshrl.u32 %v1096, 7
      %v1098 = vsub.s32 1, %v1097
      %v1099 = vrot.slane %v1044, %v1098
      %v1100 = vlaneseq
      %v1101 = vshrl.u32 %v1100, 7
      %v1102 = vsub.s32 2, %v1101
      %v1103 = vrot.slane %v1044, %v1102
      %v1104 = vlaneseq
      %v1105 = vshrl.u32 %v1104, 7
      %v1106 = vsub.s32 3, %v1105
      %v1107 = vrot.slane %v1044, %v1106
      %v1108 = vlaneseq
      %v1109 = vshrl.u32 %v1108, 7
      %v1110 = vsub.s32 4, %v1109
      %v1111 = vrot.slane %v1044, %v1110
      %v1112 = vlaneseq
      %v1113 = vshrl.u32 %v1112, 7
      %v1114 = vsub.s32 5, %v1113
      %v1115 = vrot.slane %v1044, %v1114
      %v1116 = vlaneseq
      %v1117 = vshrl.u32 %v1116, 7
      %v1118 = vsub.s32 6, %v1117
      %v1119 = vrot.slane %v1044, %v1118
      %v1120 = vlaneseq
      %v1121 = vshrl.u32 %v1120, 7
      %v1122 = vsub.s32 7, %v1121
      %v1123 = vrot.slane %v1044, %v1122
      %v1124 = vlaneseq
      %v1125 = vshrl.u32 %v1124, 7
      %v1126 = vsub.s32 0, %v1125
      %v1127 = vrot.slane %v1045, %v1126
      %v1128 = vlaneseq
      %v1129 = vshrl.u32 %v1128, 7
      %v1130 = vsub.s32 1, %v1129
      %v1131 = vrot.slane %v1045, %v1130
      %v1132 = vlaneseq
      %v1133 = vshrl.u32 %v1132, 7
      %v1134 = vsub.s32 2, %v1133
      %v1135 = vrot.slane %v1045, %v1134
      %v1136 = vlaneseq
      %v1137 = vshrl.u32 %v1136, 7
      %v1138 = vsub.s32 3, %v1137
      %v1139 = vrot.slane %v1045, %v1138
      %v1140 = vlaneseq
      %v1141 = vshrl.u32 %v1140, 7
      %v1142 = vsub.s32 4, %v1141
      %v1143 = vrot.slane %v1045, %v1142
      %v1144 = vlaneseq
      %v1145 = vshrl.u32 %v1144, 7
      %v1146 = vsub.s32 5, %v1145
      %v1147 = vrot.slane %v1045, %v1146
      %v1148 = vlaneseq
      %v1149 = vshrl.u32 %v1148, 7
      %v1150 = vsub.s32 6, %v1149
      %v1151 = vrot.slane %v1045, %v1150
      %v1152 = vlaneseq
      %v1153 = vshrl.u32 %v1152, 7
      %v1154 = vsub.s32 7, %v1153
      %v1155 = vrot.slane %v1045, %v1154
      %v1156 = vlaneseq
      %v1157 = vshrl.u32 %v1156, 7
      %v1158 = vsub.s32 0, %v1157
      %v1159 = vrot.slane %v1046, %v1158
      %v1160 = vlaneseq
      %v1161 = vshrl.u32 %v1160, 7
      %v1162 = vsub.s32 1, %v1161
      %v1163 = vrot.slane %v1046, %v1162
      %v1164 = vlaneseq
      %v1165 = vshrl.u32 %v1164, 7
      %v1166 = vsub.s32 2, %v1165
      %v1167 = vrot.slane %v1046, %v1166
      %v1168 = vlaneseq
      %v1169 = vshrl.u32 %v1168, 7
      %v1170 = vsub.s32 3, %v1169
      %v1171 = vrot.slane %v1046, %v1170
      %v1172 = vlaneseq
      %v1173 = vshrl.u32 %v1172, 7
      %v1174 = vsub.s32 4, %v1173
      %v1175 = vrot.slane %v1046, %v1174
      %v1176 = vlaneseq
      %v1177 = vshrl.u32 %v1176, 7
      %v1178 = vsub.s32 5, %v1177
      %v1179 = vrot.slane %v1046, %v1178
      %v1180 = vlaneseq
      %v1181 = vshrl.u32 %v1180, 7
      %v1182 = vsub.s32 6, %v1181
      %v1183 = vrot.slane %v1046, %v1182
      %v1184 = vlaneseq
      %v1185 = vshrl.u32 %v1184, 7
      %v1186 = vsub.s32 7, %v1185
      %v1187 = vrot.slane %v1046, %v1186
      %v1188 = vlaneseq
      %v1189 = vshrl.u32 %v1188, 7
      %v1190 = vsub.s32 0, %v1189
      %v1191 = vrot.slane %v1047, %v1190
      %v1192 = vlaneseq
      %v1193 = vshrl.u32 %v1192, 7
      %v1194 = vsub.s32 1, %v1193
      %v1195 = vrot.slane %v1047, %v1194
      %v1196 = vlaneseq
      %v1197 = vshrl.u32 %v1196, 7
      %v1198 = vsub.s32 2, %v1197
      %v1199 = vrot.slane %v1047, %v1198
      %v1200 = vlaneseq
      %v1201 = vshrl.u32 %v1200, 7
      %v1202 = vsub.s32 3, %v1201
      %v1203 = vrot.slane %v1047, %v1202
      %v1204 = vlaneseq
      %v1205 = vshrl.u32 %v1204, 7
      %v1206 = vsub.s32 4, %v1205
      %v1207 = vrot.slane %v1047, %v1206
      %v1208 = vlaneseq
      %v1209 = vshrl.u32 %v1208, 7
      %v1210 = vsub.s32 5, %v1209
      %v1211 = vrot.slane %v1047, %v1210
      %v1212 = vlaneseq
      %v1213 = vshrl.u32 %v1212, 7
      %v1214 = vsub.s32 6, %v1213
      %v1215 = vrot.slane %v1047, %v1214
      %v1216 = vlaneseq
      %v1217 = vshrl.u32 %v1216, 7
      %v1218 = vsub.s32 7, %v1217
      %v1219 = vrot.slane %v1047, %v1218
      %v1220 = vlaneseq
      %v1221 = vshrl.u32 %v1220, 7
      %v1222 = vsub.s32 0, %v1221
      %v1223 = vrot.slane %v1048, %v1222
      %v1224 = vlaneseq
      %v1225 = vshrl.u32 %v1224, 7
      %v1226 = vsub.s32 1, %v1225
      %v1227 = vrot.slane %v1048, %v1226
      %v1228 = vlaneseq
      %v1229 = vshrl.u32 %v1228, 7
      %v1230 = vsub.s32 2, %v1229
      %v1231 = vrot.slane %v1048, %v1230
      %v1232 = vlaneseq
      %v1233 = vshrl.u32 %v1232, 7
      %v1234 = vsub.s32 3, %v1233
      %v1235 = vrot.slane %v1048, %v1234
      %v1236 = vlaneseq
      %v1237 = vshrl.u32 %v1236, 7
      %v1238 = vsub.s32 4, %v1237
      %v1239 = vrot.slane %v1048, %v1238
      %v1240 = vlaneseq
      %v1241 = vshrl.u32 %v1240, 7
      %v1242 = vsub.s32 5, %v1241
      %v1243 = vrot.slane %v1048, %v1242
      %v1244 = vlaneseq
      %v1245 = vshrl.u32 %v1244, 7
      %v1246 = vsub.s32 6, %v1245
      %v1247 = vrot.slane %v1048, %v1246
      %v1248 = vlaneseq
      %v1249 = vshrl.u32 %v1248, 7
      %v1250 = vsub.s32 7, %v1249
      %v1251 = vrot.slane %v1048, %v1250
      %v1252 = vlaneseq
      %v1253 = vshrl.u32 %v1252, 7
      %v1254 = vsub.s32 0, %v1253
      %v1255 = vrot.slane %v1049, %v1254
      %v1256 = vlaneseq
      %v1257 = vshrl.u32 %v1256, 7
      %v1258 = vsub.s32 1, %v1257
      %v1259 = vrot.slane %v1049, %v1258
      %v1260 = vlaneseq
      %v1261 = vshrl.u32 %v1260, 7
      %v1262 = vsub.s32 2, %v1261
      %v1263 = vrot.slane %v1049, %v1262
      %v1264 = vlaneseq
      %v1265 = vshrl.u32 %v1264, 7
      %v1266 = vsub.s32 3, %v1265
      %v1267 = vrot.slane %v1049, %v1266
      %v1268 = vlaneseq
      %v1269 = vshrl.u32 %v1268, 7
      %v1270 = vsub.s32 4, %v1269
      %v1271 = vrot.slane %v1049, %v1270
      %v1272 = vlaneseq
      %v1273 = vshrl.u32 %v1272, 7
      %v1274 = vsub.s32 5, %v1273
      %v1275 = vrot.slane %v1049, %v1274
      %v1330 = vsel %vm474, %v1052, 0
      %1332 = vmatprep.subr.mxu0 0.0
      %1333 = vmatpush1.msra.mxu0 0.0
      %1334 = vmatprep.subr.mxu0 0.0
      %1335 = vmatpush1.msra.mxu0 0.0
      %1336 = vmatprep.subr.mxu0 0.0
      %1337 = vmatpush1.msra.mxu0 0.0
      %1338 = vmatprep.subr.mxu0 0.0
      %1339 = vmatpush1.msra.mxu0 0.0
      %1340 = vmatprep.subr.mxu0 0.0
      %1341 = vmatpush1.msra.mxu0 0.0
      %1342 = vmatprep.subr.mxu0 0.0
      %1343 = vmatpush1.msra.mxu0 0.0
      %1344 = vmatprep.subr.mxu0 0.0
      %1345 = vmatpush1.msra.mxu0 0.0
      %1346 = vmatprep.subr.mxu0 0.0
      %1347 = vmatpush1.msra.mxu0 0.0
      %1348 = vmatprep.subr.mxu0 0.0
      %1349 = vmatpush1.msra.mxu0 0.0
      %1350 = vmatprep.subr.mxu0 0.0
      %1351 = vmatpush1.msra.mxu0 0.0
      %1352 = vmatprep.subr.mxu0 0.0
      %1353 = vmatpush1.msra.mxu0 0.0
      %1354 = vmatprep.subr.mxu0 0.0
      %1355 = vmatpush1.msra.mxu0 0.0
      %1356 = vmatprep.subr.mxu0 %v990
      %1357 = vmatpush1.msra.mxu0 %v989
      %1358 = vmatprep.subr.mxu0 %v936
      %1359 = vmatpush1.msra.mxu0 %v935
      %1360 = vmatprep.subr.mxu0 %v882
      %1361 = vmatpush1.msra.mxu0 %v881
      %1362 = vmatprep.subr.mxu0 %v828
      %1363 = vmatpush1.msra.mxu0 %v827
      %1364 = vmatprep.subr.mxu0 0.0
      %1365 = vmatpush2.msra.mxu0 0.0
      %1366 = vmatprep.subr.mxu0 0.0
      %1367 = vmatpush2.msra.mxu0 0.0
      %1368 = vmatprep.subr.mxu0 0.0
      %1369 = vmatpush2.msra.mxu0 0.0
      %1370 = vmatprep.subr.mxu0 0.0
      %1371 = vmatpush2.msra.mxu0 0.0
      %1372 = vmatprep.subr.mxu0 0.0
      %1373 = vmatpush2.msra.mxu0 0.0
      %1374 = vmatprep.subr.mxu0 0.0
      %1375 = vmatpush2.msra.mxu0 0.0
      %1376 = vmatprep.subr.mxu0 0.0
      %1377 = vmatpush2.msra.mxu0 0.0
      %1378 = vmatprep.subr.mxu0 0.0
      %1379 = vmatpush2.msra.mxu0 0.0
      %1380 = vmatprep.subr.mxu0 0.0
      %1381 = vmatpush2.msra.mxu0 0.0
      %1382 = vmatprep.subr.mxu0 0.0
      %1383 = vmatpush2.msra.mxu0 0.0
      %1384 = vmatprep.subr.mxu0 0.0
      %1385 = vmatpush2.msra.mxu0 0.0
      %1386 = vmatprep.subr.mxu0 0.0
      %1387 = vmatpush2.msra.mxu0 0.0
      %1388 = vmatprep.subr.mxu0 0.0
      %1389 = vmatpush2.msra.mxu0 0.0
      %1390 = vmatprep.subr.mxu0 0.0
      %1391 = vmatpush2.msra.mxu0 0.0
      %1392 = vmatprep.subr.mxu0 0.0
      %1393 = vmatpush2.msra.mxu0 0.0
      %1394 = vmatprep.subr.mxu0 0.0
      %1395 = vmatpush2.msra.mxu0 0.0
      %1396 = vmatprep.mubr.f32.mxu0 0.0
      %1397 = vmatmul.mubr.f32.gmra.mxu0 %v1330
      %v1398 = vpop.f32.mrf.mxu0
      %v1399 = vadd.f32 %v1063, %v1398
      %v1400 = vpop.f32.mrf.mxu0
      %v1401 = vadd.f32 %v1067, %v1400
      %1402 = vdwg.mxu0
      %1403 = vmatprep.subr.mxu0 0.0
      %1404 = vmatpush1.msra.mxu0 0.0
      %1405 = vmatprep.subr.mxu0 0.0
      %1406 = vmatpush1.msra.mxu0 0.0
      %1407 = vmatprep.subr.mxu0 0.0
      %1408 = vmatpush1.msra.mxu0 0.0
      %1409 = vmatprep.subr.mxu0 0.0
      %1410 = vmatpush1.msra.mxu0 0.0
      %1411 = vmatprep.subr.mxu0 0.0
      %1412 = vmatpush1.msra.mxu0 0.0
      %1413 = vmatprep.subr.mxu0 0.0
      %1414 = vmatpush1.msra.mxu0 0.0
      %1415 = vmatprep.subr.mxu0 0.0
      %1416 = vmatpush1.msra.mxu0 0.0
      %1417 = vmatprep.subr.mxu0 0.0
      %1418 = vmatpush1.msra.mxu0 0.0
      %1419 = vmatprep.subr.mxu0 0.0
      %1420 = vmatpush1.msra.mxu0 0.0
      %1421 = vmatprep.subr.mxu0 0.0
      %1422 = vmatpush1.msra.mxu0 0.0
      %1423 = vmatprep.subr.mxu0 0.0
      %1424 = vmatpush1.msra.mxu0 0.0
      %1425 = vmatprep.subr.mxu0 0.0
      %1426 = vmatpush1.msra.mxu0 0.0
      %1427 = vmatprep.subr.mxu0 %v992
      %1428 = vmatpush1.msra.mxu0 %v991
      %1429 = vmatprep.subr.mxu0 %v938
      %1430 = vmatpush1.msra.mxu0 %v937
      %1431 = vmatprep.subr.mxu0 %v884
      %1432 = vmatpush1.msra.mxu0 %v883
      %1433 = vmatprep.subr.mxu0 %v830
      %1434 = vmatpush1.msra.mxu0 %v829
      %1435 = vmatprep.subr.mxu0 0.0
      %1436 = vmatpush2.msra.mxu0 0.0
      %1437 = vmatprep.subr.mxu0 0.0
      %1438 = vmatpush2.msra.mxu0 0.0
      %1439 = vmatprep.subr.mxu0 0.0
      %1440 = vmatpush2.msra.mxu0 0.0
      %1441 = vmatprep.subr.mxu0 0.0
      %1442 = vmatpush2.msra.mxu0 0.0
      %1443 = vmatprep.subr.mxu0 0.0
      %1444 = vmatpush2.msra.mxu0 0.0
      %1445 = vmatprep.subr.mxu0 0.0
      %1446 = vmatpush2.msra.mxu0 0.0
      %1447 = vmatprep.subr.mxu0 0.0
      %1448 = vmatpush2.msra.mxu0 0.0
      %1449 = vmatprep.subr.mxu0 0.0
      %1450 = vmatpush2.msra.mxu0 0.0
      %1451 = vmatprep.subr.mxu0 0.0
      %1452 = vmatpush2.msra.mxu0 0.0
      %1453 = vmatprep.subr.mxu0 0.0
      %1454 = vmatpush2.msra.mxu0 0.0
      %1455 = vmatprep.subr.mxu0 0.0
      %1456 = vmatpush2.msra.mxu0 0.0
      %1457 = vmatprep.subr.mxu0 0.0
      %1458 = vmatpush2.msra.mxu0 0.0
      %1459 = vmatprep.subr.mxu0 0.0
      %1460 = vmatpush2.msra.mxu0 0.0
      %1461 = vmatprep.subr.mxu0 0.0
      %1462 = vmatpush2.msra.mxu0 0.0
      %1463 = vmatprep.subr.mxu0 0.0
      %1464 = vmatpush2.msra.mxu0 0.0
      %1465 = vmatprep.subr.mxu0 0.0
      %1466 = vmatpush2.msra.mxu0 0.0
      %1467 = vmatprep.mubr.f32.mxu0 0.0
      %1468 = vmatmul.mubr.f32.gmra.mxu0 %v1330
      %v1469 = vpop.f32.mrf.mxu0
      %v1470 = vadd.f32 %v1071, %v1469
      %v1471 = vpop.f32.mrf.mxu0
      %v1472 = vadd.f32 %v1075, %v1471
      %1473 = vdwg.mxu0
      %1474 = vmatprep.subr.mxu0 0.0
      %1475 = vmatpush1.msra.mxu0 0.0
      %1476 = vmatprep.subr.mxu0 0.0
      %1477 = vmatpush1.msra.mxu0 0.0
      %1478 = vmatprep.subr.mxu0 0.0
      %1479 = vmatpush1.msra.mxu0 0.0
      %1480 = vmatprep.subr.mxu0 0.0
      %1481 = vmatpush1.msra.mxu0 0.0
      %1482 = vmatprep.subr.mxu0 0.0
      %1483 = vmatpush1.msra.mxu0 0.0
      %1484 = vmatprep.subr.mxu0 0.0
      %1485 = vmatpush1.msra.mxu0 0.0
      %1486 = vmatprep.subr.mxu0 0.0
      %1487 = vmatpush1.msra.mxu0 0.0
      %1488 = vmatprep.subr.mxu0 0.0
      %1489 = vmatpush1.msra.mxu0 0.0
      %1490 = vmatprep.subr.mxu0 0.0
      %1491 = vmatpush1.msra.mxu0 0.0
      %1492 = vmatprep.subr.mxu0 0.0
      %1493 = vmatpush1.msra.mxu0 0.0
      %1494 = vmatprep.subr.mxu0 0.0
      %1495 = vmatpush1.msra.mxu0 0.0
      %1496 = vmatprep.subr.mxu0 0.0
      %1497 = vmatpush1.msra.mxu0 0.0
      %1498 = vmatprep.subr.mxu0 %v994
      %1499 = vmatpush1.msra.mxu0 %v993
      %1500 = vmatprep.subr.mxu0 %v940
      %1501 = vmatpush1.msra.mxu0 %v939
      %1502 = vmatprep.subr.mxu0 %v886
      %1503 = vmatpush1.msra.mxu0 %v885
      %1504 = vmatprep.subr.mxu0 %v832
      %1505 = vmatpush1.msra.mxu0 %v831
      %1506 = vmatprep.subr.mxu0 0.0
      %1507 = vmatpush2.msra.mxu0 0.0
      %1508 = vmatprep.subr.mxu0 0.0
      %1509 = vmatpush2.msra.mxu0 0.0
      %1510 = vmatprep.subr.mxu0 0.0
      %1511 = vmatpush2.msra.mxu0 0.0
      %1512 = vmatprep.subr.mxu0 0.0
      %1513 = vmatpush2.msra.mxu0 0.0
      %1514 = vmatprep.subr.mxu0 0.0
      %1515 = vmatpush2.msra.mxu0 0.0
      %1516 = vmatprep.subr.mxu0 0.0
      %1517 = vmatpush2.msra.mxu0 0.0
      %1518 = vmatprep.subr.mxu0 0.0
      %1519 = vmatpush2.msra.mxu0 0.0
      %1520 = vmatprep.subr.mxu0 0.0
      %1521 = vmatpush2.msra.mxu0 0.0
      %1522 = vmatprep.subr.mxu0 0.0
      %1523 = vmatpush2.msra.mxu0 0.0
      %1524 = vmatprep.subr.mxu0 0.0
      %1525 = vmatpush2.msra.mxu0 0.0
      %1526 = vmatprep.subr.mxu0 0.0
      %1527 = vmatpush2.msra.mxu0 0.0
      %1528 = vmatprep.subr.mxu0 0.0
      %1529 = vmatpush2.msra.mxu0 0.0
      %1530 = vmatprep.subr.mxu0 0.0
      %1531 = vmatpush2.msra.mxu0 0.0
      %1532 = vmatprep.subr.mxu0 0.0
      %1533 = vmatpush2.msra.mxu0 0.0
      %1534 = vmatprep.subr.mxu0 0.0
      %1535 = vmatpush2.msra.mxu0 0.0
      %1536 = vmatprep.subr.mxu0 0.0
      %1537 = vmatpush2.msra.mxu0 0.0
      %1538 = vmatprep.mubr.f32.mxu0 0.0
      %1539 = vmatmul.mubr.f32.gmra.mxu0 %v1330
      %v1540 = vpop.f32.mrf.mxu0
      %v1541 = vadd.f32 %v1079, %v1540
      %v1542 = vpop.f32.mrf.mxu0
      %v1543 = vadd.f32 %v1083, %v1542
      %1544 = vdwg.mxu0
      %1545 = vmatprep.subr.mxu0 0.0
      %1546 = vmatpush1.msra.mxu0 0.0
      %1547 = vmatprep.subr.mxu0 0.0
      %1548 = vmatpush1.msra.mxu0 0.0
      %1549 = vmatprep.subr.mxu0 0.0
      %1550 = vmatpush1.msra.mxu0 0.0
      %1551 = vmatprep.subr.mxu0 0.0
      %1552 = vmatpush1.msra.mxu0 0.0
      %1553 = vmatprep.subr.mxu0 0.0
      %1554 = vmatpush1.msra.mxu0 0.0
      %1555 = vmatprep.subr.mxu0 0.0
      %1556 = vmatpush1.msra.mxu0 0.0
      %1557 = vmatprep.subr.mxu0 0.0
      %1558 = vmatpush1.msra.mxu0 0.0
      %1559 = vmatprep.subr.mxu0 0.0
      %1560 = vmatpush1.msra.mxu0 0.0
      %1561 = vmatprep.subr.mxu0 0.0
      %1562 = vmatpush1.msra.mxu0 0.0
      %1563 = vmatprep.subr.mxu0 0.0
      %1564 = vmatpush1.msra.mxu0 0.0
      %1565 = vmatprep.subr.mxu0 0.0
      %1566 = vmatpush1.msra.mxu0 0.0
      %1567 = vmatprep.subr.mxu0 0.0
      %1568 = vmatpush1.msra.mxu0 0.0
      %1569 = vmatprep.subr.mxu0 %v996
      %1570 = vmatpush1.msra.mxu0 %v995
      %1571 = vmatprep.subr.mxu0 %v942
      %1572 = vmatpush1.msra.mxu0 %v941
      %1573 = vmatprep.subr.mxu0 %v888
      %1574 = vmatpush1.msra.mxu0 %v887
      %1575 = vmatprep.subr.mxu0 %v834
      %1576 = vmatpush1.msra.mxu0 %v833
      %1577 = vmatprep.subr.mxu0 0.0
      %1578 = vmatpush2.msra.mxu0 0.0
      %1579 = vmatprep.subr.mxu0 0.0
      %1580 = vmatpush2.msra.mxu0 0.0
      %1581 = vmatprep.subr.mxu0 0.0
      %1582 = vmatpush2.msra.mxu0 0.0
      %1583 = vmatprep.subr.mxu0 0.0
      %1584 = vmatpush2.msra.mxu0 0.0
      %1585 = vmatprep.subr.mxu0 0.0
      %1586 = vmatpush2.msra.mxu0 0.0
      %1587 = vmatprep.subr.mxu0 0.0
      %1588 = vmatpush2.msra.mxu0 0.0
      %1589 = vmatprep.subr.mxu0 0.0
      %1590 = vmatpush2.msra.mxu0 0.0
      %1591 = vmatprep.subr.mxu0 0.0
      %1592 = vmatpush2.msra.mxu0 0.0
      %1593 = vmatprep.subr.mxu0 0.0
      %1594 = vmatpush2.msra.mxu0 0.0
      %1595 = vmatprep.subr.mxu0 0.0
      %1596 = vmatpush2.msra.mxu0 0.0
      %1597 = vmatprep.subr.mxu0 0.0
      %1598 = vmatpush2.msra.mxu0 0.0
      %1599 = vmatprep.subr.mxu0 0.0
      %1600 = vmatpush2.msra.mxu0 0.0
      %1601 = vmatprep.subr.mxu0 0.0
      %1602 = vmatpush2.msra.mxu0 0.0
      %1603 = vmatprep.subr.mxu0 0.0
      %1604 = vmatpush2.msra.mxu0 0.0
      %1605 = vmatprep.subr.mxu0 0.0
      %1606 = vmatpush2.msra.mxu0 0.0
      %1607 = vmatprep.subr.mxu0 0.0
      %1608 = vmatpush2.msra.mxu0 0.0
      %1609 = vmatprep.mubr.f32.mxu0 0.0
      %1610 = vmatmul.mubr.f32.gmra.mxu0 %v1330
      %v1611 = vpop.f32.mrf.mxu0
      %v1612 = vadd.f32 %v1087, %v1611
      %v1613 = vpop.f32.mrf.mxu0
      %v1614 = vadd.f32 %v1091, %v1613
      %1615 = vdwg.mxu0
      %1616 = vmatprep.subr.mxu0 0.0
      %1617 = vmatpush1.msra.mxu0 0.0
      %1618 = vmatprep.subr.mxu0 0.0
      %1619 = vmatpush1.msra.mxu0 0.0
      %1620 = vmatprep.subr.mxu0 0.0
      %1621 = vmatpush1.msra.mxu0 0.0
      %1622 = vmatprep.subr.mxu0 0.0
      %1623 = vmatpush1.msra.mxu0 0.0
      %1624 = vmatprep.subr.mxu0 0.0
      %1625 = vmatpush1.msra.mxu0 0.0
      %1626 = vmatprep.subr.mxu0 0.0
      %1627 = vmatpush1.msra.mxu0 0.0
      %1628 = vmatprep.subr.mxu0 0.0
      %1629 = vmatpush1.msra.mxu0 0.0
      %1630 = vmatprep.subr.mxu0 0.0
      %1631 = vmatpush1.msra.mxu0 0.0
      %1632 = vmatprep.subr.mxu0 0.0
      %1633 = vmatpush1.msra.mxu0 0.0
      %1634 = vmatprep.subr.mxu0 0.0
      %1635 = vmatpush1.msra.mxu0 0.0
      %1636 = vmatprep.subr.mxu0 0.0
      %1637 = vmatpush1.msra.mxu0 0.0
      %1638 = vmatprep.subr.mxu0 0.0
      %1639 = vmatpush1.msra.mxu0 0.0
      %1640 = vmatprep.subr.mxu0 %v998
      %1641 = vmatpush1.msra.mxu0 %v997
      %1642 = vmatprep.subr.mxu0 %v944
      %1643 = vmatpush1.msra.mxu0 %v943
      %1644 = vmatprep.subr.mxu0 %v890
      %1645 = vmatpush1.msra.mxu0 %v889
      %1646 = vmatprep.subr.mxu0 %v836
      %1647 = vmatpush1.msra.mxu0 %v835
      %1648 = vmatprep.subr.mxu0 0.0
      %1649 = vmatpush2.msra.mxu0 0.0
      %1650 = vmatprep.subr.mxu0 0.0
      %1651 = vmatpush2.msra.mxu0 0.0
      %1652 = vmatprep.subr.mxu0 0.0
      %1653 = vmatpush2.msra.mxu0 0.0
      %1654 = vmatprep.subr.mxu0 0.0
      %1655 = vmatpush2.msra.mxu0 0.0
      %1656 = vmatprep.subr.mxu0 0.0
      %1657 = vmatpush2.msra.mxu0 0.0
      %1658 = vmatprep.subr.mxu0 0.0
      %1659 = vmatpush2.msra.mxu0 0.0
      %1660 = vmatprep.subr.mxu0 0.0
      %1661 = vmatpush2.msra.mxu0 0.0
      %1662 = vmatprep.subr.mxu0 0.0
      %1663 = vmatpush2.msra.mxu0 0.0
      %1664 = vmatprep.subr.mxu0 0.0
      %1665 = vmatpush2.msra.mxu0 0.0
      %1666 = vmatprep.subr.mxu0 0.0
      %1667 = vmatpush2.msra.mxu0 0.0
      %1668 = vmatprep.subr.mxu0 0.0
      %1669 = vmatpush2.msra.mxu0 0.0
      %1670 = vmatprep.subr.mxu0 0.0
      %1671 = vmatpush2.msra.mxu0 0.0
      %1672 = vmatprep.subr.mxu0 0.0
      %1673 = vmatpush2.msra.mxu0 0.0
      %1674 = vmatprep.subr.mxu0 0.0
      %1675 = vmatpush2.msra.mxu0 0.0
      %1676 = vmatprep.subr.mxu0 0.0
      %1677 = vmatpush2.msra.mxu0 0.0
      %1678 = vmatprep.subr.mxu0 0.0
      %1679 = vmatpush2.msra.mxu0 0.0
      %1680 = vmatprep.mubr.f32.mxu0 0.0
      %1681 = vmatmul.mubr.f32.gmra.mxu0 %v1330
      %v1682 = vpop.f32.mrf.mxu0
      %v1683 = vadd.f32 %v1095, %v1682
      %v1684 = vpop.f32.mrf.mxu0
      %v1685 = vadd.f32 %v1099, %v1684
      %1686 = vdwg.mxu0
      %1687 = vmatprep.subr.mxu0 0.0
      %1688 = vmatpush1.msra.mxu0 0.0
      %1689 = vmatprep.subr.mxu0 0.0
      %1690 = vmatpush1.msra.mxu0 0.0
      %1691 = vmatprep.subr.mxu0 0.0
      %1692 = vmatpush1.msra.mxu0 0.0
      %1693 = vmatprep.subr.mxu0 0.0
      %1694 = vmatpush1.msra.mxu0 0.0
      %1695 = vmatprep.subr.mxu0 0.0
      %1696 = vmatpush1.msra.mxu0 0.0
      %1697 = vmatprep.subr.mxu0 0.0
      %1698 = vmatpush1.msra.mxu0 0.0
      %1699 = vmatprep.subr.mxu0 0.0
      %1700 = vmatpush1.msra.mxu0 0.0
      %1701 = vmatprep.subr.mxu0 0.0
      %1702 = vmatpush1.msra.mxu0 0.0
      %1703 = vmatprep.subr.mxu0 0.0
      %1704 = vmatpush1.msra.mxu0 0.0
      %1705 = vmatprep.subr.mxu0 0.0
      %1706 = vmatpush1.msra.mxu0 0.0
      %1707 = vmatprep.subr.mxu0 0.0
      %1708 = vmatpush1.msra.mxu0 0.0
      %1709 = vmatprep.subr.mxu0 0.0
      %1710 = vmatpush1.msra.mxu0 0.0
      %1711 = vmatprep.subr.mxu0 %v1000
      %1712 = vmatpush1.msra.mxu0 %v999
      %1713 = vmatprep.subr.mxu0 %v946
      %1714 = vmatpush1.msra.mxu0 %v945
      %1715 = vmatprep.subr.mxu0 %v892
      %1716 = vmatpush1.msra.mxu0 %v891
      %1717 = vmatprep.subr.mxu0 %v838
      %1718 = vmatpush1.msra.mxu0 %v837
      %1719 = vmatprep.subr.mxu0 0.0
      %1720 = vmatpush2.msra.mxu0 0.0
      %1721 = vmatprep.subr.mxu0 0.0
      %1722 = vmatpush2.msra.mxu0 0.0
      %1723 = vmatprep.subr.mxu0 0.0
      %1724 = vmatpush2.msra.mxu0 0.0
      %1725 = vmatprep.subr.mxu0 0.0
      %1726 = vmatpush2.msra.mxu0 0.0
      %1727 = vmatprep.subr.mxu0 0.0
      %1728 = vmatpush2.msra.mxu0 0.0
      %1729 = vmatprep.subr.mxu0 0.0
      %1730 = vmatpush2.msra.mxu0 0.0
      %1731 = vmatprep.subr.mxu0 0.0
      %1732 = vmatpush2.msra.mxu0 0.0
      %1733 = vmatprep.subr.mxu0 0.0
      %1734 = vmatpush2.msra.mxu0 0.0
      %1735 = vmatprep.subr.mxu0 0.0
      %1736 = vmatpush2.msra.mxu0 0.0
      %1737 = vmatprep.subr.mxu0 0.0
      %1738 = vmatpush2.msra.mxu0 0.0
      %1739 = vmatprep.subr.mxu0 0.0
      %1740 = vmatpush2.msra.mxu0 0.0
      %1741 = vmatprep.subr.mxu0 0.0
      %1742 = vmatpush2.msra.mxu0 0.0
      %1743 = vmatprep.subr.mxu0 0.0
      %1744 = vmatpush2.msra.mxu0 0.0
      %1745 = vmatprep.subr.mxu0 0.0
      %1746 = vmatpush2.msra.mxu0 0.0
      %1747 = vmatprep.subr.mxu0 0.0
      %1748 = vmatpush2.msra.mxu0 0.0
      %1749 = vmatprep.subr.mxu0 0.0
      %1750 = vmatpush2.msra.mxu0 0.0
      %1751 = vmatprep.mubr.f32.mxu0 0.0
      %1752 = vmatmul.mubr.f32.gmra.mxu0 %v1330
      %v1753 = vpop.f32.mrf.mxu0
      %v1754 = vadd.f32 %v1103, %v1753
      %v1755 = vpop.f32.mrf.mxu0
      %v1756 = vadd.f32 %v1107, %v1755
      %1757 = vdwg.mxu0
      %1758 = vmatprep.subr.mxu0 0.0
      %1759 = vmatpush1.msra.mxu0 0.0
      %1760 = vmatprep.subr.mxu0 0.0
      %1761 = vmatpush1.msra.mxu0 0.0
      %1762 = vmatprep.subr.mxu0 0.0
      %1763 = vmatpush1.msra.mxu0 0.0
      %1764 = vmatprep.subr.mxu0 0.0
      %1765 = vmatpush1.msra.mxu0 0.0
      %1766 = vmatprep.subr.mxu0 0.0
      %1767 = vmatpush1.msra.mxu0 0.0
      %1768 = vmatprep.subr.mxu0 0.0
      %1769 = vmatpush1.msra.mxu0 0.0
      %1770 = vmatprep.subr.mxu0 0.0
      %1771 = vmatpush1.msra.mxu0 0.0
      %1772 = vmatprep.subr.mxu0 0.0
      %1773 = vmatpush1.msra.mxu0 0.0
      %1774 = vmatprep.subr.mxu0 0.0
      %1775 = vmatpush1.msra.mxu0 0.0
      %1776 = vmatprep.subr.mxu0 0.0
      %1777 = vmatpush1.msra.mxu0 0.0
      %1778 = vmatprep.subr.mxu0 0.0
      %1779 = vmatpush1.msra.mxu0 0.0
      %1780 = vmatprep.subr.mxu0 0.0
      %1781 = vmatpush1.msra.mxu0 0.0
      %1782 = vmatprep.subr.mxu0 %v1002
      %1783 = vmatpush1.msra.mxu0 %v1001
      %1784 = vmatprep.subr.mxu0 %v948
      %1785 = vmatpush1.msra.mxu0 %v947
      %1786 = vmatprep.subr.mxu0 %v894
      %1787 = vmatpush1.msra.mxu0 %v893
      %1788 = vmatprep.subr.mxu0 %v840
      %1789 = vmatpush1.msra.mxu0 %v839
      %1790 = vmatprep.subr.mxu0 0.0
      %1791 = vmatpush2.msra.mxu0 0.0
      %1792 = vmatprep.subr.mxu0 0.0
      %1793 = vmatpush2.msra.mxu0 0.0
      %1794 = vmatprep.subr.mxu0 0.0
      %1795 = vmatpush2.msra.mxu0 0.0
      %1796 = vmatprep.subr.mxu0 0.0
      %1797 = vmatpush2.msra.mxu0 0.0
      %1798 = vmatprep.subr.mxu0 0.0
      %1799 = vmatpush2.msra.mxu0 0.0
      %1800 = vmatprep.subr.mxu0 0.0
      %1801 = vmatpush2.msra.mxu0 0.0
      %1802 = vmatprep.subr.mxu0 0.0
      %1803 = vmatpush2.msra.mxu0 0.0
      %1804 = vmatprep.subr.mxu0 0.0
      %1805 = vmatpush2.msra.mxu0 0.0
      %1806 = vmatprep.subr.mxu0 0.0
      %1807 = vmatpush2.msra.mxu0 0.0
      %1808 = vmatprep.subr.mxu0 0.0
      %1809 = vmatpush2.msra.mxu0 0.0
      %1810 = vmatprep.subr.mxu0 0.0
      %1811 = vmatpush2.msra.mxu0 0.0
      %1812 = vmatprep.subr.mxu0 0.0
      %1813 = vmatpush2.msra.mxu0 0.0
      %1814 = vmatprep.subr.mxu0 0.0
      %1815 = vmatpush2.msra.mxu0 0.0
      %1816 = vmatprep.subr.mxu0 0.0
      %1817 = vmatpush2.msra.mxu0 0.0
      %1818 = vmatprep.subr.mxu0 0.0
      %1819 = vmatpush2.msra.mxu0 0.0
      %1820 = vmatprep.subr.mxu0 0.0
      %1821 = vmatpush2.msra.mxu0 0.0
      %1822 = vmatprep.mubr.f32.mxu0 0.0
      %1823 = vmatmul.mubr.f32.gmra.mxu0 %v1330
      %v1824 = vpop.f32.mrf.mxu0
      %v1825 = vadd.f32 %v1111, %v1824
      %v1826 = vpop.f32.mrf.mxu0
      %v1827 = vadd.f32 %v1115, %v1826
      %1828 = vdwg.mxu0
      %1829 = vmatprep.subr.mxu0 0.0
      %1830 = vmatpush1.msra.mxu0 0.0
      %1831 = vmatprep.subr.mxu0 0.0
      %1832 = vmatpush1.msra.mxu0 0.0
      %1833 = vmatprep.subr.mxu0 0.0
      %1834 = vmatpush1.msra.mxu0 0.0
      %1835 = vmatprep.subr.mxu0 0.0
      %1836 = vmatpush1.msra.mxu0 0.0
      %1837 = vmatprep.subr.mxu0 0.0
      %1838 = vmatpush1.msra.mxu0 0.0
      %1839 = vmatprep.subr.mxu0 0.0
      %1840 = vmatpush1.msra.mxu0 0.0
      %1841 = vmatprep.subr.mxu0 0.0
      %1842 = vmatpush1.msra.mxu0 0.0
      %1843 = vmatprep.subr.mxu0 0.0
      %1844 = vmatpush1.msra.mxu0 0.0
      %1845 = vmatprep.subr.mxu0 0.0
      %1846 = vmatpush1.msra.mxu0 0.0
      %1847 = vmatprep.subr.mxu0 0.0
      %1848 = vmatpush1.msra.mxu0 0.0
      %1849 = vmatprep.subr.mxu0 0.0
      %1850 = vmatpush1.msra.mxu0 0.0
      %1851 = vmatprep.subr.mxu0 0.0
      %1852 = vmatpush1.msra.mxu0 0.0
      %1853 = vmatprep.subr.mxu0 %v1004
      %1854 = vmatpush1.msra.mxu0 %v1003
      %1855 = vmatprep.subr.mxu0 %v950
      %1856 = vmatpush1.msra.mxu0 %v949
      %1857 = vmatprep.subr.mxu0 %v896
      %1858 = vmatpush1.msra.mxu0 %v895
      %1859 = vmatprep.subr.mxu0 %v842
      %1860 = vmatpush1.msra.mxu0 %v841
      %1861 = vmatprep.subr.mxu0 0.0
      %1862 = vmatpush2.msra.mxu0 0.0
      %1863 = vmatprep.subr.mxu0 0.0
      %1864 = vmatpush2.msra.mxu0 0.0
      %1865 = vmatprep.subr.mxu0 0.0
      %1866 = vmatpush2.msra.mxu0 0.0
      %1867 = vmatprep.subr.mxu0 0.0
      %1868 = vmatpush2.msra.mxu0 0.0
      %1869 = vmatprep.subr.mxu0 0.0
      %1870 = vmatpush2.msra.mxu0 0.0
      %1871 = vmatprep.subr.mxu0 0.0
      %1872 = vmatpush2.msra.mxu0 0.0
      %1873 = vmatprep.subr.mxu0 0.0
      %1874 = vmatpush2.msra.mxu0 0.0
      %1875 = vmatprep.subr.mxu0 0.0
      %1876 = vmatpush2.msra.mxu0 0.0
      %1877 = vmatprep.subr.mxu0 0.0
      %1878 = vmatpush2.msra.mxu0 0.0
      %1879 = vmatprep.subr.mxu0 0.0
      %1880 = vmatpush2.msra.mxu0 0.0
      %1881 = vmatprep.subr.mxu0 0.0
      %1882 = vmatpush2.msra.mxu0 0.0
      %1883 = vmatprep.subr.mxu0 0.0
      %1884 = vmatpush2.msra.mxu0 0.0
      %1885 = vmatprep.subr.mxu0 0.0
      %1886 = vmatpush2.msra.mxu0 0.0
      %1887 = vmatprep.subr.mxu0 0.0
      %1888 = vmatpush2.msra.mxu0 0.0
      %1889 = vmatprep.subr.mxu0 0.0
      %1890 = vmatpush2.msra.mxu0 0.0
      %1891 = vmatprep.subr.mxu0 0.0
      %1892 = vmatpush2.msra.mxu0 0.0
      %1893 = vmatprep.mubr.f32.mxu0 0.0
      %1894 = vmatmul.mubr.f32.gmra.mxu0 %v1330
      %v1895 = vpop.f32.mrf.mxu0
      %v1896 = vadd.f32 %v1119, %v1895
      %v1897 = vpop.f32.mrf.mxu0
      %v1898 = vadd.f32 %v1123, %v1897
      %1899 = vdwg.mxu0
      %1900 = vmatprep.subr.mxu0 0.0
      %1901 = vmatpush1.msra.mxu0 0.0
      %1902 = vmatprep.subr.mxu0 0.0
      %1903 = vmatpush1.msra.mxu0 0.0
      %1904 = vmatprep.subr.mxu0 0.0
      %1905 = vmatpush1.msra.mxu0 0.0
      %1906 = vmatprep.subr.mxu0 0.0
      %1907 = vmatpush1.msra.mxu0 0.0
      %1908 = vmatprep.subr.mxu0 0.0
      %1909 = vmatpush1.msra.mxu0 0.0
      %1910 = vmatprep.subr.mxu0 0.0
      %1911 = vmatpush1.msra.mxu0 0.0
      %1912 = vmatprep.subr.mxu0 0.0
      %1913 = vmatpush1.msra.mxu0 0.0
      %1914 = vmatprep.subr.mxu0 0.0
      %1915 = vmatpush1.msra.mxu0 0.0
      %1916 = vmatprep.subr.mxu0 0.0
      %1917 = vmatpush1.msra.mxu0 0.0
      %1918 = vmatprep.subr.mxu0 0.0
      %1919 = vmatpush1.msra.mxu0 0.0
      %1920 = vmatprep.subr.mxu0 0.0
      %1921 = vmatpush1.msra.mxu0 0.0
      %1922 = vmatprep.subr.mxu0 0.0
      %1923 = vmatpush1.msra.mxu0 0.0
      %1924 = vmatprep.subr.mxu0 %v1006
      %1925 = vmatpush1.msra.mxu0 %v1005
      %1926 = vmatprep.subr.mxu0 %v952
      %1927 = vmatpush1.msra.mxu0 %v951
      %1928 = vmatprep.subr.mxu0 %v898
      %1929 = vmatpush1.msra.mxu0 %v897
      %1930 = vmatprep.subr.mxu0 %v844
      %1931 = vmatpush1.msra.mxu0 %v843
      %1932 = vmatprep.subr.mxu0 0.0
      %1933 = vmatpush2.msra.mxu0 0.0
      %1934 = vmatprep.subr.mxu0 0.0
      %1935 = vmatpush2.msra.mxu0 0.0
      %1936 = vmatprep.subr.mxu0 0.0
      %1937 = vmatpush2.msra.mxu0 0.0
      %1938 = vmatprep.subr.mxu0 0.0
      %1939 = vmatpush2.msra.mxu0 0.0
      %1940 = vmatprep.subr.mxu0 0.0
      %1941 = vmatpush2.msra.mxu0 0.0
      %1942 = vmatprep.subr.mxu0 0.0
      %1943 = vmatpush2.msra.mxu0 0.0
      %1944 = vmatprep.subr.mxu0 0.0
      %1945 = vmatpush2.msra.mxu0 0.0
      %1946 = vmatprep.subr.mxu0 0.0
      %1947 = vmatpush2.msra.mxu0 0.0
      %1948 = vmatprep.subr.mxu0 0.0
      %1949 = vmatpush2.msra.mxu0 0.0
      %1950 = vmatprep.subr.mxu0 0.0
      %1951 = vmatpush2.msra.mxu0 0.0
      %1952 = vmatprep.subr.mxu0 0.0
      %1953 = vmatpush2.msra.mxu0 0.0
      %1954 = vmatprep.subr.mxu0 0.0
      %1955 = vmatpush2.msra.mxu0 0.0
      %1956 = vmatprep.subr.mxu0 0.0
      %1957 = vmatpush2.msra.mxu0 0.0
      %1958 = vmatprep.subr.mxu0 0.0
      %1959 = vmatpush2.msra.mxu0 0.0
      %1960 = vmatprep.subr.mxu0 0.0
      %1961 = vmatpush2.msra.mxu0 0.0
      %1962 = vmatprep.subr.mxu0 0.0
      %1963 = vmatpush2.msra.mxu0 0.0
      %1964 = vmatprep.mubr.f32.mxu0 0.0
      %1965 = vmatmul.mubr.f32.gmra.mxu0 %v1330
      %v1966 = vpop.f32.mrf.mxu0
      %v1967 = vadd.f32 %v1127, %v1966
      %v1968 = vpop.f32.mrf.mxu0
      %v1969 = vadd.f32 %v1131, %v1968
      %1970 = vdwg.mxu0
      %1971 = vmatprep.subr.mxu0 0.0
      %1972 = vmatpush1.msra.mxu0 0.0
      %1973 = vmatprep.subr.mxu0 0.0
      %1974 = vmatpush1.msra.mxu0 0.0
      %1975 = vmatprep.subr.mxu0 0.0
      %1976 = vmatpush1.msra.mxu0 0.0
      %1977 = vmatprep.subr.mxu0 0.0
      %1978 = vmatpush1.msra.mxu0 0.0
      %1979 = vmatprep.subr.mxu0 0.0
      %1980 = vmatpush1.msra.mxu0 0.0
      %1981 = vmatprep.subr.mxu0 0.0
      %1982 = vmatpush1.msra.mxu0 0.0
      %1983 = vmatprep.subr.mxu0 0.0
      %1984 = vmatpush1.msra.mxu0 0.0
      %1985 = vmatprep.subr.mxu0 0.0
      %1986 = vmatpush1.msra.mxu0 0.0
      %1987 = vmatprep.subr.mxu0 0.0
      %1988 = vmatpush1.msra.mxu0 0.0
      %1989 = vmatprep.subr.mxu0 0.0
      %1990 = vmatpush1.msra.mxu0 0.0
      %1991 = vmatprep.subr.mxu0 0.0
      %1992 = vmatpush1.msra.mxu0 0.0
      %1993 = vmatprep.subr.mxu0 0.0
      %1994 = vmatpush1.msra.mxu0 0.0
      %1995 = vmatprep.subr.mxu0 %v1008
      %1996 = vmatpush1.msra.mxu0 %v1007
      %1997 = vmatprep.subr.mxu0 %v954
      %1998 = vmatpush1.msra.mxu0 %v953
      %1999 = vmatprep.subr.mxu0 %v900
      %2000 = vmatpush1.msra.mxu0 %v899
      %2001 = vmatprep.subr.mxu0 %v846
      %2002 = vmatpush1.msra.mxu0 %v845
      %2003 = vmatprep.subr.mxu0 0.0
      %2004 = vmatpush2.msra.mxu0 0.0
      %2005 = vmatprep.subr.mxu0 0.0
      %2006 = vmatpush2.msra.mxu0 0.0
      %2007 = vmatprep.subr.mxu0 0.0
      %2008 = vmatpush2.msra.mxu0 0.0
      %2009 = vmatprep.subr.mxu0 0.0
      %2010 = vmatpush2.msra.mxu0 0.0
      %2011 = vmatprep.subr.mxu0 0.0
      %2012 = vmatpush2.msra.mxu0 0.0
      %2013 = vmatprep.subr.mxu0 0.0
      %2014 = vmatpush2.msra.mxu0 0.0
      %2015 = vmatprep.subr.mxu0 0.0
      %2016 = vmatpush2.msra.mxu0 0.0
      %2017 = vmatprep.subr.mxu0 0.0
      %2018 = vmatpush2.msra.mxu0 0.0
      %2019 = vmatprep.subr.mxu0 0.0
      %2020 = vmatpush2.msra.mxu0 0.0
      %2021 = vmatprep.subr.mxu0 0.0
      %2022 = vmatpush2.msra.mxu0 0.0
      %2023 = vmatprep.subr.mxu0 0.0
      %2024 = vmatpush2.msra.mxu0 0.0
      %2025 = vmatprep.subr.mxu0 0.0
      %2026 = vmatpush2.msra.mxu0 0.0
      %2027 = vmatprep.subr.mxu0 0.0
      %2028 = vmatpush2.msra.mxu0 0.0
      %2029 = vmatprep.subr.mxu0 0.0
      %2030 = vmatpush2.msra.mxu0 0.0
      %2031 = vmatprep.subr.mxu0 0.0
      %2032 = vmatpush2.msra.mxu0 0.0
      %2033 = vmatprep.subr.mxu0 0.0
      %2034 = vmatpush2.msra.mxu0 0.0
      %2035 = vmatprep.mubr.f32.mxu0 0.0
      %2036 = vmatmul.mubr.f32.gmra.mxu0 %v1330
      %v2037 = vpop.f32.mrf.mxu0
      %v2038 = vadd.f32 %v1135, %v2037
      %v2039 = vpop.f32.mrf.mxu0
      %v2040 = vadd.f32 %v1139, %v2039
      %2041 = vdwg.mxu0
      %2042 = vmatprep.subr.mxu0 0.0
      %2043 = vmatpush1.msra.mxu0 0.0
      %2044 = vmatprep.subr.mxu0 0.0
      %2045 = vmatpush1.msra.mxu0 0.0
      %2046 = vmatprep.subr.mxu0 0.0
      %2047 = vmatpush1.msra.mxu0 0.0
      %2048 = vmatprep.subr.mxu0 0.0
      %2049 = vmatpush1.msra.mxu0 0.0
      %2050 = vmatprep.subr.mxu0 0.0
      %2051 = vmatpush1.msra.mxu0 0.0
      %2052 = vmatprep.subr.mxu0 0.0
      %2053 = vmatpush1.msra.mxu0 0.0
      %2054 = vmatprep.subr.mxu0 0.0
      %2055 = vmatpush1.msra.mxu0 0.0
      %2056 = vmatprep.subr.mxu0 0.0
      %2057 = vmatpush1.msra.mxu0 0.0
      %2058 = vmatprep.subr.mxu0 0.0
      %2059 = vmatpush1.msra.mxu0 0.0
      %2060 = vmatprep.subr.mxu0 0.0
      %2061 = vmatpush1.msra.mxu0 0.0
      %2062 = vmatprep.subr.mxu0 0.0
      %2063 = vmatpush1.msra.mxu0 0.0
      %2064 = vmatprep.subr.mxu0 0.0
      %2065 = vmatpush1.msra.mxu0 0.0
      %2066 = vmatprep.subr.mxu0 %v1010
      %2067 = vmatpush1.msra.mxu0 %v1009
      %2068 = vmatprep.subr.mxu0 %v956
      %2069 = vmatpush1.msra.mxu0 %v955
      %2070 = vmatprep.subr.mxu0 %v902
      %2071 = vmatpush1.msra.mxu0 %v901
      %2072 = vmatprep.subr.mxu0 %v848
      %2073 = vmatpush1.msra.mxu0 %v847
      %2074 = vmatprep.subr.mxu0 0.0
      %2075 = vmatpush2.msra.mxu0 0.0
      %2076 = vmatprep.subr.mxu0 0.0
      %2077 = vmatpush2.msra.mxu0 0.0
      %2078 = vmatprep.subr.mxu0 0.0
      %2079 = vmatpush2.msra.mxu0 0.0
      %2080 = vmatprep.subr.mxu0 0.0
      %2081 = vmatpush2.msra.mxu0 0.0
      %2082 = vmatprep.subr.mxu0 0.0
      %2083 = vmatpush2.msra.mxu0 0.0
      %2084 = vmatprep.subr.mxu0 0.0
      %2085 = vmatpush2.msra.mxu0 0.0
      %2086 = vmatprep.subr.mxu0 0.0
      %2087 = vmatpush2.msra.mxu0 0.0
      %2088 = vmatprep.subr.mxu0 0.0
      %2089 = vmatpush2.msra.mxu0 0.0
      %2090 = vmatprep.subr.mxu0 0.0
      %2091 = vmatpush2.msra.mxu0 0.0
      %2092 = vmatprep.subr.mxu0 0.0
      %2093 = vmatpush2.msra.mxu0 0.0
      %2094 = vmatprep.subr.mxu0 0.0
      %2095 = vmatpush2.msra.mxu0 0.0
      %2096 = vmatprep.subr.mxu0 0.0
      %2097 = vmatpush2.msra.mxu0 0.0
      %2098 = vmatprep.subr.mxu0 0.0
      %2099 = vmatpush2.msra.mxu0 0.0
      %2100 = vmatprep.subr.mxu0 0.0
      %2101 = vmatpush2.msra.mxu0 0.0
      %2102 = vmatprep.subr.mxu0 0.0
      %2103 = vmatpush2.msra.mxu0 0.0
      %2104 = vmatprep.subr.mxu0 0.0
      %2105 = vmatpush2.msra.mxu0 0.0
      %2106 = vmatprep.mubr.f32.mxu0 0.0
      %2107 = vmatmul.mubr.f32.gmra.mxu0 %v1330
      %v2108 = vpop.f32.mrf.mxu0
      %v2109 = vadd.f32 %v1143, %v2108
      %v2110 = vpop.f32.mrf.mxu0
      %v2111 = vadd.f32 %v1147, %v2110
      %2112 = vdwg.mxu0
      %2113 = vmatprep.subr.mxu0 0.0
      %2114 = vmatpush1.msra.mxu0 0.0
      %2115 = vmatprep.subr.mxu0 0.0
      %2116 = vmatpush1.msra.mxu0 0.0
      %2117 = vmatprep.subr.mxu0 0.0
      %2118 = vmatpush1.msra.mxu0 0.0
      %2119 = vmatprep.subr.mxu0 0.0
      %2120 = vmatpush1.msra.mxu0 0.0
      %2121 = vmatprep.subr.mxu0 0.0
      %2122 = vmatpush1.msra.mxu0 0.0
      %2123 = vmatprep.subr.mxu0 0.0
      %2124 = vmatpush1.msra.mxu0 0.0
      %2125 = vmatprep.subr.mxu0 0.0
      %2126 = vmatpush1.msra.mxu0 0.0
      %2127 = vmatprep.subr.mxu0 0.0
      %2128 = vmatpush1.msra.mxu0 0.0
      %2129 = vmatprep.subr.mxu0 0.0
      %2130 = vmatpush1.msra.mxu0 0.0
      %2131 = vmatprep.subr.mxu0 0.0
      %2132 = vmatpush1.msra.mxu0 0.0
      %2133 = vmatprep.subr.mxu0 0.0
      %2134 = vmatpush1.msra.mxu0 0.0
      %2135 = vmatprep.subr.mxu0 0.0
      %2136 = vmatpush1.msra.mxu0 0.0
      %2137 = vmatprep.subr.mxu0 %v1012
      %2138 = vmatpush1.msra.mxu0 %v1011
      %2139 = vmatprep.subr.mxu0 %v958
      %2140 = vmatpush1.msra.mxu0 %v957
      %2141 = vmatprep.subr.mxu0 %v904
      %2142 = vmatpush1.msra.mxu0 %v903
      %2143 = vmatprep.subr.mxu0 %v850
      %2144 = vmatpush1.msra.mxu0 %v849
      %2145 = vmatprep.subr.mxu0 0.0
      %2146 = vmatpush2.msra.mxu0 0.0
      %2147 = vmatprep.subr.mxu0 0.0
      %2148 = vmatpush2.msra.mxu0 0.0
      %2149 = vmatprep.subr.mxu0 0.0
      %2150 = vmatpush2.msra.mxu0 0.0
      %2151 = vmatprep.subr.mxu0 0.0
      %2152 = vmatpush2.msra.mxu0 0.0
      %2153 = vmatprep.subr.mxu0 0.0
      %2154 = vmatpush2.msra.mxu0 0.0
      %2155 = vmatprep.subr.mxu0 0.0
      %2156 = vmatpush2.msra.mxu0 0.0
      %2157 = vmatprep.subr.mxu0 0.0
      %2158 = vmatpush2.msra.mxu0 0.0
      %2159 = vmatprep.subr.mxu0 0.0
      %2160 = vmatpush2.msra.mxu0 0.0
      %2161 = vmatprep.subr.mxu0 0.0
      %2162 = vmatpush2.msra.mxu0 0.0
      %2163 = vmatprep.subr.mxu0 0.0
      %2164 = vmatpush2.msra.mxu0 0.0
      %2165 = vmatprep.subr.mxu0 0.0
      %2166 = vmatpush2.msra.mxu0 0.0
      %2167 = vmatprep.subr.mxu0 0.0
      %2168 = vmatpush2.msra.mxu0 0.0
      %2169 = vmatprep.subr.mxu0 0.0
      %2170 = vmatpush2.msra.mxu0 0.0
      %2171 = vmatprep.subr.mxu0 0.0
      %2172 = vmatpush2.msra.mxu0 0.0
      %2173 = vmatprep.subr.mxu0 0.0
      %2174 = vmatpush2.msra.mxu0 0.0
      %2175 = vmatprep.subr.mxu0 0.0
      %2176 = vmatpush2.msra.mxu0 0.0
      %2177 = vmatprep.mubr.f32.mxu0 0.0
      %2178 = vmatmul.mubr.f32.gmra.mxu0 %v1330
      %v2179 = vpop.f32.mrf.mxu0
      %v2180 = vadd.f32 %v1151, %v2179
      %v2181 = vpop.f32.mrf.mxu0
      %v2182 = vadd.f32 %v1155, %v2181
      %2183 = vdwg.mxu0
      %2184 = vmatprep.subr.mxu0 0.0
      %2185 = vmatpush1.msra.mxu0 0.0
      %2186 = vmatprep.subr.mxu0 0.0
      %2187 = vmatpush1.msra.mxu0 0.0
      %2188 = vmatprep.subr.mxu0 0.0
      %2189 = vmatpush1.msra.mxu0 0.0
      %2190 = vmatprep.subr.mxu0 0.0
      %2191 = vmatpush1.msra.mxu0 0.0
      %2192 = vmatprep.subr.mxu0 0.0
      %2193 = vmatpush1.msra.mxu0 0.0
      %2194 = vmatprep.subr.mxu0 0.0
      %2195 = vmatpush1.msra.mxu0 0.0
      %2196 = vmatprep.subr.mxu0 0.0
      %2197 = vmatpush1.msra.mxu0 0.0
      %2198 = vmatprep.subr.mxu0 0.0
      %2199 = vmatpush1.msra.mxu0 0.0
      %2200 = vmatprep.subr.mxu0 0.0
      %2201 = vmatpush1.msra.mxu0 0.0
      %2202 = vmatprep.subr.mxu0 0.0
      %2203 = vmatpush1.msra.mxu0 0.0
      %2204 = vmatprep.subr.mxu0 0.0
      %2205 = vmatpush1.msra.mxu0 0.0
      %2206 = vmatprep.subr.mxu0 0.0
      %2207 = vmatpush1.msra.mxu0 0.0
      %2208 = vmatprep.subr.mxu0 %v1014
      %2209 = vmatpush1.msra.mxu0 %v1013
      %2210 = vmatprep.subr.mxu0 %v960
      %2211 = vmatpush1.msra.mxu0 %v959
      %2212 = vmatprep.subr.mxu0 %v906
      %2213 = vmatpush1.msra.mxu0 %v905
      %2214 = vmatprep.subr.mxu0 %v852
      %2215 = vmatpush1.msra.mxu0 %v851
      %2216 = vmatprep.subr.mxu0 0.0
      %2217 = vmatpush2.msra.mxu0 0.0
      %2218 = vmatprep.subr.mxu0 0.0
      %2219 = vmatpush2.msra.mxu0 0.0
      %2220 = vmatprep.subr.mxu0 0.0
      %2221 = vmatpush2.msra.mxu0 0.0
      %2222 = vmatprep.subr.mxu0 0.0
      %2223 = vmatpush2.msra.mxu0 0.0
      %2224 = vmatprep.subr.mxu0 0.0
      %2225 = vmatpush2.msra.mxu0 0.0
      %2226 = vmatprep.subr.mxu0 0.0
      %2227 = vmatpush2.msra.mxu0 0.0
      %2228 = vmatprep.subr.mxu0 0.0
      %2229 = vmatpush2.msra.mxu0 0.0
      %2230 = vmatprep.subr.mxu0 0.0
      %2231 = vmatpush2.msra.mxu0 0.0
      %2232 = vmatprep.subr.mxu0 0.0
      %2233 = vmatpush2.msra.mxu0 0.0
      %2234 = vmatprep.subr.mxu0 0.0
      %2235 = vmatpush2.msra.mxu0 0.0
      %2236 = vmatprep.subr.mxu0 0.0
      %2237 = vmatpush2.msra.mxu0 0.0
      %2238 = vmatprep.subr.mxu0 0.0
      %2239 = vmatpush2.msra.mxu0 0.0
      %2240 = vmatprep.subr.mxu0 0.0
      %2241 = vmatpush2.msra.mxu0 0.0
      %2242 = vmatprep.subr.mxu0 0.0
      %2243 = vmatpush2.msra.mxu0 0.0
      %2244 = vmatprep.subr.mxu0 0.0
      %2245 = vmatpush2.msra.mxu0 0.0
      %2246 = vmatprep.subr.mxu0 0.0
      %2247 = vmatpush2.msra.mxu0 0.0
      %2248 = vmatprep.mubr.f32.mxu0 0.0
      %2249 = vmatmul.mubr.f32.gmra.mxu0 %v1330
      %v2250 = vpop.f32.mrf.mxu0
      %v2251 = vadd.f32 %v1159, %v2250
      %v2252 = vpop.f32.mrf.mxu0
      %v2253 = vadd.f32 %v1163, %v2252
      %2254 = vdwg.mxu0
      %2255 = vmatprep.subr.mxu0 0.0
      %2256 = vmatpush1.msra.mxu0 0.0
      %2257 = vmatprep.subr.mxu0 0.0
      %2258 = vmatpush1.msra.mxu0 0.0
      %2259 = vmatprep.subr.mxu0 0.0
      %2260 = vmatpush1.msra.mxu0 0.0
      %2261 = vmatprep.subr.mxu0 0.0
      %2262 = vmatpush1.msra.mxu0 0.0
      %2263 = vmatprep.subr.mxu0 0.0
      %2264 = vmatpush1.msra.mxu0 0.0
      %2265 = vmatprep.subr.mxu0 0.0
      %2266 = vmatpush1.msra.mxu0 0.0
      %2267 = vmatprep.subr.mxu0 0.0
      %2268 = vmatpush1.msra.mxu0 0.0
      %2269 = vmatprep.subr.mxu0 0.0
      %2270 = vmatpush1.msra.mxu0 0.0
      %2271 = vmatprep.subr.mxu0 0.0
      %2272 = vmatpush1.msra.mxu0 0.0
      %2273 = vmatprep.subr.mxu0 0.0
      %2274 = vmatpush1.msra.mxu0 0.0
      %2275 = vmatprep.subr.mxu0 0.0
      %2276 = vmatpush1.msra.mxu0 0.0
      %2277 = vmatprep.subr.mxu0 0.0
      %2278 = vmatpush1.msra.mxu0 0.0
      %2279 = vmatprep.subr.mxu0 %v1016
      %2280 = vmatpush1.msra.mxu0 %v1015
      %2281 = vmatprep.subr.mxu0 %v962
      %2282 = vmatpush1.msra.mxu0 %v961
      %2283 = vmatprep.subr.mxu0 %v908
      %2284 = vmatpush1.msra.mxu0 %v907
      %2285 = vmatprep.subr.mxu0 %v854
      %2286 = vmatpush1.msra.mxu0 %v853
      %2287 = vmatprep.subr.mxu0 0.0
      %2288 = vmatpush2.msra.mxu0 0.0
      %2289 = vmatprep.subr.mxu0 0.0
      %2290 = vmatpush2.msra.mxu0 0.0
      %2291 = vmatprep.subr.mxu0 0.0
      %2292 = vmatpush2.msra.mxu0 0.0
      %2293 = vmatprep.subr.mxu0 0.0
      %2294 = vmatpush2.msra.mxu0 0.0
      %2295 = vmatprep.subr.mxu0 0.0
      %2296 = vmatpush2.msra.mxu0 0.0
      %2297 = vmatprep.subr.mxu0 0.0
      %2298 = vmatpush2.msra.mxu0 0.0
      %2299 = vmatprep.subr.mxu0 0.0
      %2300 = vmatpush2.msra.mxu0 0.0
      %2301 = vmatprep.subr.mxu0 0.0
      %2302 = vmatpush2.msra.mxu0 0.0
      %2303 = vmatprep.subr.mxu0 0.0
      %2304 = vmatpush2.msra.mxu0 0.0
      %2305 = vmatprep.subr.mxu0 0.0
      %2306 = vmatpush2.msra.mxu0 0.0
      %2307 = vmatprep.subr.mxu0 0.0
      %2308 = vmatpush2.msra.mxu0 0.0
      %2309 = vmatprep.subr.mxu0 0.0
      %2310 = vmatpush2.msra.mxu0 0.0
      %2311 = vmatprep.subr.mxu0 0.0
      %2312 = vmatpush2.msra.mxu0 0.0
      %2313 = vmatprep.subr.mxu0 0.0
      %2314 = vmatpush2.msra.mxu0 0.0
      %2315 = vmatprep.subr.mxu0 0.0
      %2316 = vmatpush2.msra.mxu0 0.0
      %2317 = vmatprep.subr.mxu0 0.0
      %2318 = vmatpush2.msra.mxu0 0.0
      %2319 = vmatprep.mubr.f32.mxu0 0.0
      %2320 = vmatmul.mubr.f32.gmra.mxu0 %v1330
      %v2321 = vpop.f32.mrf.mxu0
      %v2322 = vadd.f32 %v1167, %v2321
      %v2323 = vpop.f32.mrf.mxu0
      %v2324 = vadd.f32 %v1171, %v2323
      %2325 = vdwg.mxu0
      %2326 = vmatprep.subr.mxu0 0.0
      %2327 = vmatpush1.msra.mxu0 0.0
      %2328 = vmatprep.subr.mxu0 0.0
      %2329 = vmatpush1.msra.mxu0 0.0
      %2330 = vmatprep.subr.mxu0 0.0
      %2331 = vmatpush1.msra.mxu0 0.0
      %2332 = vmatprep.subr.mxu0 0.0
      %2333 = vmatpush1.msra.mxu0 0.0
      %2334 = vmatprep.subr.mxu0 0.0
      %2335 = vmatpush1.msra.mxu0 0.0
      %2336 = vmatprep.subr.mxu0 0.0
      %2337 = vmatpush1.msra.mxu0 0.0
      %2338 = vmatprep.subr.mxu0 0.0
      %2339 = vmatpush1.msra.mxu0 0.0
      %2340 = vmatprep.subr.mxu0 0.0
      %2341 = vmatpush1.msra.mxu0 0.0
      %2342 = vmatprep.subr.mxu0 0.0
      %2343 = vmatpush1.msra.mxu0 0.0
      %2344 = vmatprep.subr.mxu0 0.0
      %2345 = vmatpush1.msra.mxu0 0.0
      %2346 = vmatprep.subr.mxu0 0.0
      %2347 = vmatpush1.msra.mxu0 0.0
      %2348 = vmatprep.subr.mxu0 0.0
      %2349 = vmatpush1.msra.mxu0 0.0
      %2350 = vmatprep.subr.mxu0 %v1018
      %2351 = vmatpush1.msra.mxu0 %v1017
      %2352 = vmatprep.subr.mxu0 %v964
      %2353 = vmatpush1.msra.mxu0 %v963
      %2354 = vmatprep.subr.mxu0 %v910
      %2355 = vmatpush1.msra.mxu0 %v909
      %2356 = vmatprep.subr.mxu0 %v856
      %2357 = vmatpush1.msra.mxu0 %v855
      %2358 = vmatprep.subr.mxu0 0.0
      %2359 = vmatpush2.msra.mxu0 0.0
      %2360 = vmatprep.subr.mxu0 0.0
      %2361 = vmatpush2.msra.mxu0 0.0
      %2362 = vmatprep.subr.mxu0 0.0
      %2363 = vmatpush2.msra.mxu0 0.0
      %2364 = vmatprep.subr.mxu0 0.0
      %2365 = vmatpush2.msra.mxu0 0.0
      %2366 = vmatprep.subr.mxu0 0.0
      %2367 = vmatpush2.msra.mxu0 0.0
      %2368 = vmatprep.subr.mxu0 0.0
      %2369 = vmatpush2.msra.mxu0 0.0
      %2370 = vmatprep.subr.mxu0 0.0
      %2371 = vmatpush2.msra.mxu0 0.0
      %2372 = vmatprep.subr.mxu0 0.0
      %2373 = vmatpush2.msra.mxu0 0.0
      %2374 = vmatprep.subr.mxu0 0.0
      %2375 = vmatpush2.msra.mxu0 0.0
      %2376 = vmatprep.subr.mxu0 0.0
      %2377 = vmatpush2.msra.mxu0 0.0
      %2378 = vmatprep.subr.mxu0 0.0
      %2379 = vmatpush2.msra.mxu0 0.0
      %2380 = vmatprep.subr.mxu0 0.0
      %2381 = vmatpush2.msra.mxu0 0.0
      %2382 = vmatprep.subr.mxu0 0.0
      %2383 = vmatpush2.msra.mxu0 0.0
      %2384 = vmatprep.subr.mxu0 0.0
      %2385 = vmatpush2.msra.mxu0 0.0
      %2386 = vmatprep.subr.mxu0 0.0
      %2387 = vmatpush2.msra.mxu0 0.0
      %2388 = vmatprep.subr.mxu0 0.0
      %2389 = vmatpush2.msra.mxu0 0.0
      %2390 = vmatprep.mubr.f32.mxu0 0.0
      %2391 = vmatmul.mubr.f32.gmra.mxu0 %v1330
      %v2392 = vpop.f32.mrf.mxu0
      %v2393 = vadd.f32 %v1175, %v2392
      %v2394 = vpop.f32.mrf.mxu0
      %v2395 = vadd.f32 %v1179, %v2394
      %2396 = vdwg.mxu0
      %2397 = vmatprep.subr.mxu0 0.0
      %2398 = vmatpush1.msra.mxu0 0.0
      %2399 = vmatprep.subr.mxu0 0.0
      %2400 = vmatpush1.msra.mxu0 0.0
      %2401 = vmatprep.subr.mxu0 0.0
      %2402 = vmatpush1.msra.mxu0 0.0
      %2403 = vmatprep.subr.mxu0 0.0
      %2404 = vmatpush1.msra.mxu0 0.0
      %2405 = vmatprep.subr.mxu0 0.0
      %2406 = vmatpush1.msra.mxu0 0.0
      %2407 = vmatprep.subr.mxu0 0.0
      %2408 = vmatpush1.msra.mxu0 0.0
      %2409 = vmatprep.subr.mxu0 0.0
      %2410 = vmatpush1.msra.mxu0 0.0
      %2411 = vmatprep.subr.mxu0 0.0
      %2412 = vmatpush1.msra.mxu0 0.0
      %2413 = vmatprep.subr.mxu0 0.0
      %2414 = vmatpush1.msra.mxu0 0.0
      %2415 = vmatprep.subr.mxu0 0.0
      %2416 = vmatpush1.msra.mxu0 0.0
      %2417 = vmatprep.subr.mxu0 0.0
      %2418 = vmatpush1.msra.mxu0 0.0
      %2419 = vmatprep.subr.mxu0 0.0
      %2420 = vmatpush1.msra.mxu0 0.0
      %2421 = vmatprep.subr.mxu0 %v1020
      %2422 = vmatpush1.msra.mxu0 %v1019
      %2423 = vmatprep.subr.mxu0 %v966
      %2424 = vmatpush1.msra.mxu0 %v965
      %2425 = vmatprep.subr.mxu0 %v912
      %2426 = vmatpush1.msra.mxu0 %v911
      %2427 = vmatprep.subr.mxu0 %v858
      %2428 = vmatpush1.msra.mxu0 %v857
      %2429 = vmatprep.subr.mxu0 0.0
      %2430 = vmatpush2.msra.mxu0 0.0
      %2431 = vmatprep.subr.mxu0 0.0
      %2432 = vmatpush2.msra.mxu0 0.0
      %2433 = vmatprep.subr.mxu0 0.0
      %2434 = vmatpush2.msra.mxu0 0.0
      %2435 = vmatprep.subr.mxu0 0.0
      %2436 = vmatpush2.msra.mxu0 0.0
      %2437 = vmatprep.subr.mxu0 0.0
      %2438 = vmatpush2.msra.mxu0 0.0
      %2439 = vmatprep.subr.mxu0 0.0
      %2440 = vmatpush2.msra.mxu0 0.0
      %2441 = vmatprep.subr.mxu0 0.0
      %2442 = vmatpush2.msra.mxu0 0.0
      %2443 = vmatprep.subr.mxu0 0.0
      %2444 = vmatpush2.msra.mxu0 0.0
      %2445 = vmatprep.subr.mxu0 0.0
      %2446 = vmatpush2.msra.mxu0 0.0
      %2447 = vmatprep.subr.mxu0 0.0
      %2448 = vmatpush2.msra.mxu0 0.0
      %2449 = vmatprep.subr.mxu0 0.0
      %2450 = vmatpush2.msra.mxu0 0.0
      %2451 = vmatprep.subr.mxu0 0.0
      %2452 = vmatpush2.msra.mxu0 0.0
      %2453 = vmatprep.subr.mxu0 0.0
      %2454 = vmatpush2.msra.mxu0 0.0
      %2455 = vmatprep.subr.mxu0 0.0
      %2456 = vmatpush2.msra.mxu0 0.0
      %2457 = vmatprep.subr.mxu0 0.0
      %2458 = vmatpush2.msra.mxu0 0.0
      %2459 = vmatprep.subr.mxu0 0.0
      %2460 = vmatpush2.msra.mxu0 0.0
      %2461 = vmatprep.mubr.f32.mxu0 0.0
      %2462 = vmatmul.mubr.f32.gmra.mxu0 %v1330
      %v2463 = vpop.f32.mrf.mxu0
      %v2464 = vadd.f32 %v1183, %v2463
      %v2465 = vpop.f32.mrf.mxu0
      %v2466 = vadd.f32 %v1187, %v2465
      %2467 = vdwg.mxu0
      %2468 = vmatprep.subr.mxu0 0.0
      %2469 = vmatpush1.msra.mxu0 0.0
      %2470 = vmatprep.subr.mxu0 0.0
      %2471 = vmatpush1.msra.mxu0 0.0
      %2472 = vmatprep.subr.mxu0 0.0
      %2473 = vmatpush1.msra.mxu0 0.0
      %2474 = vmatprep.subr.mxu0 0.0
      %2475 = vmatpush1.msra.mxu0 0.0
      %2476 = vmatprep.subr.mxu0 0.0
      %2477 = vmatpush1.msra.mxu0 0.0
      %2478 = vmatprep.subr.mxu0 0.0
      %2479 = vmatpush1.msra.mxu0 0.0
      %2480 = vmatprep.subr.mxu0 0.0
      %2481 = vmatpush1.msra.mxu0 0.0
      %2482 = vmatprep.subr.mxu0 0.0
      %2483 = vmatpush1.msra.mxu0 0.0
      %2484 = vmatprep.subr.mxu0 0.0
      %2485 = vmatpush1.msra.mxu0 0.0
      %2486 = vmatprep.subr.mxu0 0.0
      %2487 = vmatpush1.msra.mxu0 0.0
      %2488 = vmatprep.subr.mxu0 0.0
      %2489 = vmatpush1.msra.mxu0 0.0
      %2490 = vmatprep.subr.mxu0 0.0
      %2491 = vmatpush1.msra.mxu0 0.0
      %2492 = vmatprep.subr.mxu0 %v1022
      %2493 = vmatpush1.msra.mxu0 %v1021
      %2494 = vmatprep.subr.mxu0 %v968
      %2495 = vmatpush1.msra.mxu0 %v967
      %2496 = vmatprep.subr.mxu0 %v914
      %2497 = vmatpush1.msra.mxu0 %v913
      %2498 = vmatprep.subr.mxu0 %v860
      %2499 = vmatpush1.msra.mxu0 %v859
      %2500 = vmatprep.subr.mxu0 0.0
      %2501 = vmatpush2.msra.mxu0 0.0
      %2502 = vmatprep.subr.mxu0 0.0
      %2503 = vmatpush2.msra.mxu0 0.0
      %2504 = vmatprep.subr.mxu0 0.0
      %2505 = vmatpush2.msra.mxu0 0.0
      %2506 = vmatprep.subr.mxu0 0.0
      %2507 = vmatpush2.msra.mxu0 0.0
      %2508 = vmatprep.subr.mxu0 0.0
      %2509 = vmatpush2.msra.mxu0 0.0
      %2510 = vmatprep.subr.mxu0 0.0
      %2511 = vmatpush2.msra.mxu0 0.0
      %2512 = vmatprep.subr.mxu0 0.0
      %2513 = vmatpush2.msra.mxu0 0.0
      %2514 = vmatprep.subr.mxu0 0.0
      %2515 = vmatpush2.msra.mxu0 0.0
      %2516 = vmatprep.subr.mxu0 0.0
      %2517 = vmatpush2.msra.mxu0 0.0
      %2518 = vmatprep.subr.mxu0 0.0
      %2519 = vmatpush2.msra.mxu0 0.0
      %2520 = vmatprep.subr.mxu0 0.0
      %2521 = vmatpush2.msra.mxu0 0.0
      %2522 = vmatprep.subr.mxu0 0.0
      %2523 = vmatpush2.msra.mxu0 0.0
      %2524 = vmatprep.subr.mxu0 0.0
      %2525 = vmatpush2.msra.mxu0 0.0
      %2526 = vmatprep.subr.mxu0 0.0
      %2527 = vmatpush2.msra.mxu0 0.0
      %2528 = vmatprep.subr.mxu0 0.0
      %2529 = vmatpush2.msra.mxu0 0.0
      %2530 = vmatprep.subr.mxu0 0.0
      %2531 = vmatpush2.msra.mxu0 0.0
      %2532 = vmatprep.mubr.f32.mxu0 0.0
      %2533 = vmatmul.mubr.f32.gmra.mxu0 %v1330
      %v2534 = vpop.f32.mrf.mxu0
      %v2535 = vadd.f32 %v1191, %v2534
      %v2536 = vpop.f32.mrf.mxu0
      %v2537 = vadd.f32 %v1195, %v2536
      %2538 = vdwg.mxu0
      %2539 = vmatprep.subr.mxu0 0.0
      %2540 = vmatpush1.msra.mxu0 0.0
      %2541 = vmatprep.subr.mxu0 0.0
      %2542 = vmatpush1.msra.mxu0 0.0
      %2543 = vmatprep.subr.mxu0 0.0
      %2544 = vmatpush1.msra.mxu0 0.0
      %2545 = vmatprep.subr.mxu0 0.0
      %2546 = vmatpush1.msra.mxu0 0.0
      %2547 = vmatprep.subr.mxu0 0.0
      %2548 = vmatpush1.msra.mxu0 0.0
      %2549 = vmatprep.subr.mxu0 0.0
      %2550 = vmatpush1.msra.mxu0 0.0
      %2551 = vmatprep.subr.mxu0 0.0
      %2552 = vmatpush1.msra.mxu0 0.0
      %2553 = vmatprep.subr.mxu0 0.0
      %2554 = vmatpush1.msra.mxu0 0.0
      %2555 = vmatprep.subr.mxu0 0.0
      %2556 = vmatpush1.msra.mxu0 0.0
      %2557 = vmatprep.subr.mxu0 0.0
      %2558 = vmatpush1.msra.mxu0 0.0
      %2559 = vmatprep.subr.mxu0 0.0
      %2560 = vmatpush1.msra.mxu0 0.0
      %2561 = vmatprep.subr.mxu0 0.0
      %2562 = vmatpush1.msra.mxu0 0.0
      %2563 = vmatprep.subr.mxu0 %v1024
      %2564 = vmatpush1.msra.mxu0 %v1023
      %2565 = vmatprep.subr.mxu0 %v970
      %2566 = vmatpush1.msra.mxu0 %v969
      %2567 = vmatprep.subr.mxu0 %v916
      %2568 = vmatpush1.msra.mxu0 %v915
      %2569 = vmatprep.subr.mxu0 %v862
      %2570 = vmatpush1.msra.mxu0 %v861
      %2571 = vmatprep.subr.mxu0 0.0
      %2572 = vmatpush2.msra.mxu0 0.0
      %2573 = vmatprep.subr.mxu0 0.0
      %2574 = vmatpush2.msra.mxu0 0.0
      %2575 = vmatprep.subr.mxu0 0.0
      %2576 = vmatpush2.msra.mxu0 0.0
      %2577 = vmatprep.subr.mxu0 0.0
      %2578 = vmatpush2.msra.mxu0 0.0
      %2579 = vmatprep.subr.mxu0 0.0
      %2580 = vmatpush2.msra.mxu0 0.0
      %2581 = vmatprep.subr.mxu0 0.0
      %2582 = vmatpush2.msra.mxu0 0.0
      %2583 = vmatprep.subr.mxu0 0.0
      %2584 = vmatpush2.msra.mxu0 0.0
      %2585 = vmatprep.subr.mxu0 0.0
      %2586 = vmatpush2.msra.mxu0 0.0
      %2587 = vmatprep.subr.mxu0 0.0
      %2588 = vmatpush2.msra.mxu0 0.0
      %2589 = vmatprep.subr.mxu0 0.0
      %2590 = vmatpush2.msra.mxu0 0.0
      %2591 = vmatprep.subr.mxu0 0.0
      %2592 = vmatpush2.msra.mxu0 0.0
      %2593 = vmatprep.subr.mxu0 0.0
      %2594 = vmatpush2.msra.mxu0 0.0
      %2595 = vmatprep.subr.mxu0 0.0
      %2596 = vmatpush2.msra.mxu0 0.0
      %2597 = vmatprep.subr.mxu0 0.0
      %2598 = vmatpush2.msra.mxu0 0.0
      %2599 = vmatprep.subr.mxu0 0.0
      %2600 = vmatpush2.msra.mxu0 0.0
      %2601 = vmatprep.subr.mxu0 0.0
      %2602 = vmatpush2.msra.mxu0 0.0
      %2603 = vmatprep.mubr.f32.mxu0 0.0
      %2604 = vmatmul.mubr.f32.gmra.mxu0 %v1330
      %v2605 = vpop.f32.mrf.mxu0
      %v2606 = vadd.f32 %v1199, %v2605
      %v2607 = vpop.f32.mrf.mxu0
      %v2608 = vadd.f32 %v1203, %v2607
      %2609 = vdwg.mxu0
      %2610 = vmatprep.subr.mxu0 0.0
      %2611 = vmatpush1.msra.mxu0 0.0
      %2612 = vmatprep.subr.mxu0 0.0
      %2613 = vmatpush1.msra.mxu0 0.0
      %2614 = vmatprep.subr.mxu0 0.0
      %2615 = vmatpush1.msra.mxu0 0.0
      %2616 = vmatprep.subr.mxu0 0.0
      %2617 = vmatpush1.msra.mxu0 0.0
      %2618 = vmatprep.subr.mxu0 0.0
      %2619 = vmatpush1.msra.mxu0 0.0
      %2620 = vmatprep.subr.mxu0 0.0
      %2621 = vmatpush1.msra.mxu0 0.0
      %2622 = vmatprep.subr.mxu0 0.0
      %2623 = vmatpush1.msra.mxu0 0.0
      %2624 = vmatprep.subr.mxu0 0.0
      %2625 = vmatpush1.msra.mxu0 0.0
      %2626 = vmatprep.subr.mxu0 0.0
      %2627 = vmatpush1.msra.mxu0 0.0
      %2628 = vmatprep.subr.mxu0 0.0
      %2629 = vmatpush1.msra.mxu0 0.0
      %2630 = vmatprep.subr.mxu0 0.0
      %2631 = vmatpush1.msra.mxu0 0.0
      %2632 = vmatprep.subr.mxu0 0.0
      %2633 = vmatpush1.msra.mxu0 0.0
      %2634 = vmatprep.subr.mxu0 %v1026
      %2635 = vmatpush1.msra.mxu0 %v1025
      %2636 = vmatprep.subr.mxu0 %v972
      %2637 = vmatpush1.msra.mxu0 %v971
      %2638 = vmatprep.subr.mxu0 %v918
      %2639 = vmatpush1.msra.mxu0 %v917
      %2640 = vmatprep.subr.mxu0 %v864
      %2641 = vmatpush1.msra.mxu0 %v863
      %2642 = vmatprep.subr.mxu0 0.0
      %2643 = vmatpush2.msra.mxu0 0.0
      %2644 = vmatprep.subr.mxu0 0.0
      %2645 = vmatpush2.msra.mxu0 0.0
      %2646 = vmatprep.subr.mxu0 0.0
      %2647 = vmatpush2.msra.mxu0 0.0
      %2648 = vmatprep.subr.mxu0 0.0
      %2649 = vmatpush2.msra.mxu0 0.0
      %2650 = vmatprep.subr.mxu0 0.0
      %2651 = vmatpush2.msra.mxu0 0.0
      %2652 = vmatprep.subr.mxu0 0.0
      %2653 = vmatpush2.msra.mxu0 0.0
      %2654 = vmatprep.subr.mxu0 0.0
      %2655 = vmatpush2.msra.mxu0 0.0
      %2656 = vmatprep.subr.mxu0 0.0
      %2657 = vmatpush2.msra.mxu0 0.0
      %2658 = vmatprep.subr.mxu0 0.0
      %2659 = vmatpush2.msra.mxu0 0.0
      %2660 = vmatprep.subr.mxu0 0.0
      %2661 = vmatpush2.msra.mxu0 0.0
      %2662 = vmatprep.subr.mxu0 0.0
      %2663 = vmatpush2.msra.mxu0 0.0
      %2664 = vmatprep.subr.mxu0 0.0
      %2665 = vmatpush2.msra.mxu0 0.0
      %2666 = vmatprep.subr.mxu0 0.0
      %2667 = vmatpush2.msra.mxu0 0.0
      %2668 = vmatprep.subr.mxu0 0.0
      %2669 = vmatpush2.msra.mxu0 0.0
      %2670 = vmatprep.subr.mxu0 0.0
      %2671 = vmatpush2.msra.mxu0 0.0
      %2672 = vmatprep.subr.mxu0 0.0
      %2673 = vmatpush2.msra.mxu0 0.0
      %2674 = vmatprep.mubr.f32.mxu0 0.0
      %2675 = vmatmul.mubr.f32.gmra.mxu0 %v1330
      %v2676 = vpop.f32.mrf.mxu0
      %v2677 = vadd.f32 %v1207, %v2676
      %v2678 = vpop.f32.mrf.mxu0
      %v2679 = vadd.f32 %v1211, %v2678
      %2680 = vdwg.mxu0
      %2681 = vmatprep.subr.mxu0 0.0
      %2682 = vmatpush1.msra.mxu0 0.0
      %2683 = vmatprep.subr.mxu0 0.0
      %2684 = vmatpush1.msra.mxu0 0.0
      %2685 = vmatprep.subr.mxu0 0.0
      %2686 = vmatpush1.msra.mxu0 0.0
      %2687 = vmatprep.subr.mxu0 0.0
      %2688 = vmatpush1.msra.mxu0 0.0
      %2689 = vmatprep.subr.mxu0 0.0
      %2690 = vmatpush1.msra.mxu0 0.0
      %2691 = vmatprep.subr.mxu0 0.0
      %2692 = vmatpush1.msra.mxu0 0.0
      %2693 = vmatprep.subr.mxu0 0.0
      %2694 = vmatpush1.msra.mxu0 0.0
      %2695 = vmatprep.subr.mxu0 0.0
      %2696 = vmatpush1.msra.mxu0 0.0
      %2697 = vmatprep.subr.mxu0 0.0
      %2698 = vmatpush1.msra.mxu0 0.0
      %2699 = vmatprep.subr.mxu0 0.0
      %2700 = vmatpush1.msra.mxu0 0.0
      %2701 = vmatprep.subr.mxu0 0.0
      %2702 = vmatpush1.msra.mxu0 0.0
      %2703 = vmatprep.subr.mxu0 0.0
      %2704 = vmatpush1.msra.mxu0 0.0
      %2705 = vmatprep.subr.mxu0 %v1028
      %2706 = vmatpush1.msra.mxu0 %v1027
      %2707 = vmatprep.subr.mxu0 %v974
      %2708 = vmatpush1.msra.mxu0 %v973
      %2709 = vmatprep.subr.mxu0 %v920
      %2710 = vmatpush1.msra.mxu0 %v919
      %2711 = vmatprep.subr.mxu0 %v866
      %2712 = vmatpush1.msra.mxu0 %v865
      %2713 = vmatprep.subr.mxu0 0.0
      %2714 = vmatpush2.msra.mxu0 0.0
      %2715 = vmatprep.subr.mxu0 0.0
      %2716 = vmatpush2.msra.mxu0 0.0
      %2717 = vmatprep.subr.mxu0 0.0
      %2718 = vmatpush2.msra.mxu0 0.0
      %2719 = vmatprep.subr.mxu0 0.0
      %2720 = vmatpush2.msra.mxu0 0.0
      %2721 = vmatprep.subr.mxu0 0.0
      %2722 = vmatpush2.msra.mxu0 0.0
      %2723 = vmatprep.subr.mxu0 0.0
      %2724 = vmatpush2.msra.mxu0 0.0
      %2725 = vmatprep.subr.mxu0 0.0
      %2726 = vmatpush2.msra.mxu0 0.0
      %2727 = vmatprep.subr.mxu0 0.0
      %2728 = vmatpush2.msra.mxu0 0.0
      %2729 = vmatprep.subr.mxu0 0.0
      %2730 = vmatpush2.msra.mxu0 0.0
      %2731 = vmatprep.subr.mxu0 0.0
      %2732 = vmatpush2.msra.mxu0 0.0
      %2733 = vmatprep.subr.mxu0 0.0
      %2734 = vmatpush2.msra.mxu0 0.0
      %2735 = vmatprep.subr.mxu0 0.0
      %2736 = vmatpush2.msra.mxu0 0.0
      %2737 = vmatprep.subr.mxu0 0.0
      %2738 = vmatpush2.msra.mxu0 0.0
      %2739 = vmatprep.subr.mxu0 0.0
      %2740 = vmatpush2.msra.mxu0 0.0
      %2741 = vmatprep.subr.mxu0 0.0
      %2742 = vmatpush2.msra.mxu0 0.0
      %2743 = vmatprep.subr.mxu0 0.0
      %2744 = vmatpush2.msra.mxu0 0.0
      %2745 = vmatprep.mubr.f32.mxu0 0.0
      %2746 = vmatmul.mubr.f32.gmra.mxu0 %v1330
      %v2747 = vpop.f32.mrf.mxu0
      %v2748 = vadd.f32 %v1215, %v2747
      %v2749 = vpop.f32.mrf.mxu0
      %v2750 = vadd.f32 %v1219, %v2749
      %2751 = vdwg.mxu0
      %2752 = vmatprep.subr.mxu0 0.0
      %2753 = vmatpush1.msra.mxu0 0.0
      %2754 = vmatprep.subr.mxu0 0.0
      %2755 = vmatpush1.msra.mxu0 0.0
      %2756 = vmatprep.subr.mxu0 0.0
      %2757 = vmatpush1.msra.mxu0 0.0
      %2758 = vmatprep.subr.mxu0 0.0
      %2759 = vmatpush1.msra.mxu0 0.0
      %2760 = vmatprep.subr.mxu0 0.0
      %2761 = vmatpush1.msra.mxu0 0.0
      %2762 = vmatprep.subr.mxu0 0.0
      %2763 = vmatpush1.msra.mxu0 0.0
      %2764 = vmatprep.subr.mxu0 0.0
      %2765 = vmatpush1.msra.mxu0 0.0
      %2766 = vmatprep.subr.mxu0 0.0
      %2767 = vmatpush1.msra.mxu0 0.0
      %2768 = vmatprep.subr.mxu0 0.0
      %2769 = vmatpush1.msra.mxu0 0.0
      %2770 = vmatprep.subr.mxu0 0.0
      %2771 = vmatpush1.msra.mxu0 0.0
      %2772 = vmatprep.subr.mxu0 0.0
      %2773 = vmatpush1.msra.mxu0 0.0
      %2774 = vmatprep.subr.mxu0 0.0
      %2775 = vmatpush1.msra.mxu0 0.0
      %2776 = vmatprep.subr.mxu0 %v1030
      %2777 = vmatpush1.msra.mxu0 %v1029
      %2778 = vmatprep.subr.mxu0 %v976
      %2779 = vmatpush1.msra.mxu0 %v975
      %2780 = vmatprep.subr.mxu0 %v922
      %2781 = vmatpush1.msra.mxu0 %v921
      %2782 = vmatprep.subr.mxu0 %v868
      %2783 = vmatpush1.msra.mxu0 %v867
      %2784 = vmatprep.subr.mxu0 0.0
      %2785 = vmatpush2.msra.mxu0 0.0
      %2786 = vmatprep.subr.mxu0 0.0
      %2787 = vmatpush2.msra.mxu0 0.0
      %2788 = vmatprep.subr.mxu0 0.0
      %2789 = vmatpush2.msra.mxu0 0.0
      %2790 = vmatprep.subr.mxu0 0.0
      %2791 = vmatpush2.msra.mxu0 0.0
      %2792 = vmatprep.subr.mxu0 0.0
      %2793 = vmatpush2.msra.mxu0 0.0
      %2794 = vmatprep.subr.mxu0 0.0
      %2795 = vmatpush2.msra.mxu0 0.0
      %2796 = vmatprep.subr.mxu0 0.0
      %2797 = vmatpush2.msra.mxu0 0.0
      %2798 = vmatprep.subr.mxu0 0.0
      %2799 = vmatpush2.msra.mxu0 0.0
      %2800 = vmatprep.subr.mxu0 0.0
      %2801 = vmatpush2.msra.mxu0 0.0
      %2802 = vmatprep.subr.mxu0 0.0
      %2803 = vmatpush2.msra.mxu0 0.0
      %2804 = vmatprep.subr.mxu0 0.0
      %2805 = vmatpush2.msra.mxu0 0.0
      %2806 = vmatprep.subr.mxu0 0.0
      %2807 = vmatpush2.msra.mxu0 0.0
      %2808 = vmatprep.subr.mxu0 0.0
      %2809 = vmatpush2.msra.mxu0 0.0
      %2810 = vmatprep.subr.mxu0 0.0
      %2811 = vmatpush2.msra.mxu0 0.0
      %2812 = vmatprep.subr.mxu0 0.0
      %2813 = vmatpush2.msra.mxu0 0.0
      %2814 = vmatprep.subr.mxu0 0.0
      %2815 = vmatpush2.msra.mxu0 0.0
      %2816 = vmatprep.mubr.f32.mxu0 0.0
      %2817 = vmatmul.mubr.f32.gmra.mxu0 %v1330
      %v2818 = vpop.f32.mrf.mxu0
      %v2819 = vadd.f32 %v1223, %v2818
      %v2820 = vpop.f32.mrf.mxu0
      %v2821 = vadd.f32 %v1227, %v2820
      %2822 = vdwg.mxu0
      %2823 = vmatprep.subr.mxu0 0.0
      %2824 = vmatpush1.msra.mxu0 0.0
      %2825 = vmatprep.subr.mxu0 0.0
      %2826 = vmatpush1.msra.mxu0 0.0
      %2827 = vmatprep.subr.mxu0 0.0
      %2828 = vmatpush1.msra.mxu0 0.0
      %2829 = vmatprep.subr.mxu0 0.0
      %2830 = vmatpush1.msra.mxu0 0.0
      %2831 = vmatprep.subr.mxu0 0.0
      %2832 = vmatpush1.msra.mxu0 0.0
      %2833 = vmatprep.subr.mxu0 0.0
      %2834 = vmatpush1.msra.mxu0 0.0
      %2835 = vmatprep.subr.mxu0 0.0
      %2836 = vmatpush1.msra.mxu0 0.0
      %2837 = vmatprep.subr.mxu0 0.0
      %2838 = vmatpush1.msra.mxu0 0.0
      %2839 = vmatprep.subr.mxu0 0.0
      %2840 = vmatpush1.msra.mxu0 0.0
      %2841 = vmatprep.subr.mxu0 0.0
      %2842 = vmatpush1.msra.mxu0 0.0
      %2843 = vmatprep.subr.mxu0 0.0
      %2844 = vmatpush1.msra.mxu0 0.0
      %2845 = vmatprep.subr.mxu0 0.0
      %2846 = vmatpush1.msra.mxu0 0.0
      %2847 = vmatprep.subr.mxu0 %v1032
      %2848 = vmatpush1.msra.mxu0 %v1031
      %2849 = vmatprep.subr.mxu0 %v978
      %2850 = vmatpush1.msra.mxu0 %v977
      %2851 = vmatprep.subr.mxu0 %v924
      %2852 = vmatpush1.msra.mxu0 %v923
      %2853 = vmatprep.subr.mxu0 %v870
      %2854 = vmatpush1.msra.mxu0 %v869
      %2855 = vmatprep.subr.mxu0 0.0
      %2856 = vmatpush2.msra.mxu0 0.0
      %2857 = vmatprep.subr.mxu0 0.0
      %2858 = vmatpush2.msra.mxu0 0.0
      %2859 = vmatprep.subr.mxu0 0.0
      %2860 = vmatpush2.msra.mxu0 0.0
      %2861 = vmatprep.subr.mxu0 0.0
      %2862 = vmatpush2.msra.mxu0 0.0
      %2863 = vmatprep.subr.mxu0 0.0
      %2864 = vmatpush2.msra.mxu0 0.0
      %2865 = vmatprep.subr.mxu0 0.0
      %2866 = vmatpush2.msra.mxu0 0.0
      %2867 = vmatprep.subr.mxu0 0.0
      %2868 = vmatpush2.msra.mxu0 0.0
      %2869 = vmatprep.subr.mxu0 0.0
      %2870 = vmatpush2.msra.mxu0 0.0
      %2871 = vmatprep.subr.mxu0 0.0
      %2872 = vmatpush2.msra.mxu0 0.0
      %2873 = vmatprep.subr.mxu0 0.0
      %2874 = vmatpush2.msra.mxu0 0.0
      %2875 = vmatprep.subr.mxu0 0.0
      %2876 = vmatpush2.msra.mxu0 0.0
      %2877 = vmatprep.subr.mxu0 0.0
      %2878 = vmatpush2.msra.mxu0 0.0
      %2879 = vmatprep.subr.mxu0 0.0
      %2880 = vmatpush2.msra.mxu0 0.0
      %2881 = vmatprep.subr.mxu0 0.0
      %2882 = vmatpush2.msra.mxu0 0.0
      %2883 = vmatprep.subr.mxu0 0.0
      %2884 = vmatpush2.msra.mxu0 0.0
      %2885 = vmatprep.subr.mxu0 0.0
      %2886 = vmatpush2.msra.mxu0 0.0
      %2887 = vmatprep.mubr.f32.mxu0 0.0
      %2888 = vmatmul.mubr.f32.gmra.mxu0 %v1330
      %v2889 = vpop.f32.mrf.mxu0
      %v2890 = vadd.f32 %v1231, %v2889
      %v2891 = vpop.f32.mrf.mxu0
      %v2892 = vadd.f32 %v1235, %v2891
      %2893 = vdwg.mxu0
      %2894 = vmatprep.subr.mxu0 0.0
      %2895 = vmatpush1.msra.mxu0 0.0
      %2896 = vmatprep.subr.mxu0 0.0
      %2897 = vmatpush1.msra.mxu0 0.0
      %2898 = vmatprep.subr.mxu0 0.0
      %2899 = vmatpush1.msra.mxu0 0.0
      %2900 = vmatprep.subr.mxu0 0.0
      %2901 = vmatpush1.msra.mxu0 0.0
      %2902 = vmatprep.subr.mxu0 0.0
      %2903 = vmatpush1.msra.mxu0 0.0
      %2904 = vmatprep.subr.mxu0 0.0
      %2905 = vmatpush1.msra.mxu0 0.0
      %2906 = vmatprep.subr.mxu0 0.0
      %2907 = vmatpush1.msra.mxu0 0.0
      %2908 = vmatprep.subr.mxu0 0.0
      %2909 = vmatpush1.msra.mxu0 0.0
      %2910 = vmatprep.subr.mxu0 0.0
      %2911 = vmatpush1.msra.mxu0 0.0
      %2912 = vmatprep.subr.mxu0 0.0
      %2913 = vmatpush1.msra.mxu0 0.0
      %2914 = vmatprep.subr.mxu0 0.0
      %2915 = vmatpush1.msra.mxu0 0.0
      %2916 = vmatprep.subr.mxu0 0.0
      %2917 = vmatpush1.msra.mxu0 0.0
      %2918 = vmatprep.subr.mxu0 %v1034
      %2919 = vmatpush1.msra.mxu0 %v1033
      %2920 = vmatprep.subr.mxu0 %v980
      %2921 = vmatpush1.msra.mxu0 %v979
      %2922 = vmatprep.subr.mxu0 %v926
      %2923 = vmatpush1.msra.mxu0 %v925
      %2924 = vmatprep.subr.mxu0 %v872
      %2925 = vmatpush1.msra.mxu0 %v871
      %2926 = vmatprep.subr.mxu0 0.0
      %2927 = vmatpush2.msra.mxu0 0.0
      %2928 = vmatprep.subr.mxu0 0.0
      %2929 = vmatpush2.msra.mxu0 0.0
      %2930 = vmatprep.subr.mxu0 0.0
      %2931 = vmatpush2.msra.mxu0 0.0
      %2932 = vmatprep.subr.mxu0 0.0
      %2933 = vmatpush2.msra.mxu0 0.0
      %2934 = vmatprep.subr.mxu0 0.0
      %2935 = vmatpush2.msra.mxu0 0.0
      %2936 = vmatprep.subr.mxu0 0.0
      %2937 = vmatpush2.msra.mxu0 0.0
      %2938 = vmatprep.subr.mxu0 0.0
      %2939 = vmatpush2.msra.mxu0 0.0
      %2940 = vmatprep.subr.mxu0 0.0
      %2941 = vmatpush2.msra.mxu0 0.0
      %2942 = vmatprep.subr.mxu0 0.0
      %2943 = vmatpush2.msra.mxu0 0.0
      %2944 = vmatprep.subr.mxu0 0.0
      %2945 = vmatpush2.msra.mxu0 0.0
      %2946 = vmatprep.subr.mxu0 0.0
      %2947 = vmatpush2.msra.mxu0 0.0
      %2948 = vmatprep.subr.mxu0 0.0
      %2949 = vmatpush2.msra.mxu0 0.0
      %2950 = vmatprep.subr.mxu0 0.0
      %2951 = vmatpush2.msra.mxu0 0.0
      %2952 = vmatprep.subr.mxu0 0.0
      %2953 = vmatpush2.msra.mxu0 0.0
      %2954 = vmatprep.subr.mxu0 0.0
      %2955 = vmatpush2.msra.mxu0 0.0
      %2956 = vmatprep.subr.mxu0 0.0
      %2957 = vmatpush2.msra.mxu0 0.0
      %2958 = vmatprep.mubr.f32.mxu0 0.0
      %2959 = vmatmul.mubr.f32.gmra.mxu0 %v1330
      %v2960 = vpop.f32.mrf.mxu0
      %v2961 = vadd.f32 %v1239, %v2960
      %v2962 = vpop.f32.mrf.mxu0
      %v2963 = vadd.f32 %v1243, %v2962
      %2964 = vdwg.mxu0
      %2965 = vmatprep.subr.mxu0 0.0
      %2966 = vmatpush1.msra.mxu0 0.0
      %2967 = vmatprep.subr.mxu0 0.0
      %2968 = vmatpush1.msra.mxu0 0.0
      %2969 = vmatprep.subr.mxu0 0.0
      %2970 = vmatpush1.msra.mxu0 0.0
      %2971 = vmatprep.subr.mxu0 0.0
      %2972 = vmatpush1.msra.mxu0 0.0
      %2973 = vmatprep.subr.mxu0 0.0
      %2974 = vmatpush1.msra.mxu0 0.0
      %2975 = vmatprep.subr.mxu0 0.0
      %2976 = vmatpush1.msra.mxu0 0.0
      %2977 = vmatprep.subr.mxu0 0.0
      %2978 = vmatpush1.msra.mxu0 0.0
      %2979 = vmatprep.subr.mxu0 0.0
      %2980 = vmatpush1.msra.mxu0 0.0
      %2981 = vmatprep.subr.mxu0 0.0
      %2982 = vmatpush1.msra.mxu0 0.0
      %2983 = vmatprep.subr.mxu0 0.0
      %2984 = vmatpush1.msra.mxu0 0.0
      %2985 = vmatprep.subr.mxu0 0.0
      %2986 = vmatpush1.msra.mxu0 0.0
      %2987 = vmatprep.subr.mxu0 0.0
      %2988 = vmatpush1.msra.mxu0 0.0
      %2989 = vmatprep.subr.mxu0 %v1036
      %2990 = vmatpush1.msra.mxu0 %v1035
      %2991 = vmatprep.subr.mxu0 %v982
      %2992 = vmatpush1.msra.mxu0 %v981
      %2993 = vmatprep.subr.mxu0 %v928
      %2994 = vmatpush1.msra.mxu0 %v927
      %2995 = vmatprep.subr.mxu0 %v874
      %2996 = vmatpush1.msra.mxu0 %v873
      %2997 = vmatprep.subr.mxu0 0.0
      %2998 = vmatpush2.msra.mxu0 0.0
      %2999 = vmatprep.subr.mxu0 0.0
      %3000 = vmatpush2.msra.mxu0 0.0
      %3001 = vmatprep.subr.mxu0 0.0
      %3002 = vmatpush2.msra.mxu0 0.0
      %3003 = vmatprep.subr.mxu0 0.0
      %3004 = vmatpush2.msra.mxu0 0.0
      %3005 = vmatprep.subr.mxu0 0.0
      %3006 = vmatpush2.msra.mxu0 0.0
      %3007 = vmatprep.subr.mxu0 0.0
      %3008 = vmatpush2.msra.mxu0 0.0
      %3009 = vmatprep.subr.mxu0 0.0
      %3010 = vmatpush2.msra.mxu0 0.0
      %3011 = vmatprep.subr.mxu0 0.0
      %3012 = vmatpush2.msra.mxu0 0.0
      %3013 = vmatprep.subr.mxu0 0.0
      %3014 = vmatpush2.msra.mxu0 0.0
      %3015 = vmatprep.subr.mxu0 0.0
      %3016 = vmatpush2.msra.mxu0 0.0
      %3017 = vmatprep.subr.mxu0 0.0
      %3018 = vmatpush2.msra.mxu0 0.0
      %3019 = vmatprep.subr.mxu0 0.0
      %3020 = vmatpush2.msra.mxu0 0.0
      %3021 = vmatprep.subr.mxu0 0.0
      %3022 = vmatpush2.msra.mxu0 0.0
      %3023 = vmatprep.subr.mxu0 0.0
      %3024 = vmatpush2.msra.mxu0 0.0
      %3025 = vmatprep.subr.mxu0 0.0
      %3026 = vmatpush2.msra.mxu0 0.0
      %3027 = vmatprep.subr.mxu0 0.0
      %3028 = vmatpush2.msra.mxu0 0.0
      %3029 = vmatprep.mubr.f32.mxu0 0.0
      %3030 = vmatmul.mubr.f32.gmra.mxu0 %v1330
      %v3031 = vpop.f32.mrf.mxu0
      %v3032 = vadd.f32 %v1247, %v3031
      %v3033 = vpop.f32.mrf.mxu0
      %v3034 = vadd.f32 %v1251, %v3033
      %3035 = vdwg.mxu0
      %3036 = vmatprep.subr.mxu0 0.0
      %3037 = vmatpush1.msra.mxu0 0.0
      %3038 = vmatprep.subr.mxu0 0.0
      %3039 = vmatpush1.msra.mxu0 0.0
      %3040 = vmatprep.subr.mxu0 0.0
      %3041 = vmatpush1.msra.mxu0 0.0
      %3042 = vmatprep.subr.mxu0 0.0
      %3043 = vmatpush1.msra.mxu0 0.0
      %3044 = vmatprep.subr.mxu0 0.0
      %3045 = vmatpush1.msra.mxu0 0.0
      %3046 = vmatprep.subr.mxu0 0.0
      %3047 = vmatpush1.msra.mxu0 0.0
      %3048 = vmatprep.subr.mxu0 0.0
      %3049 = vmatpush1.msra.mxu0 0.0
      %3050 = vmatprep.subr.mxu0 0.0
      %3051 = vmatpush1.msra.mxu0 0.0
      %3052 = vmatprep.subr.mxu0 0.0
      %3053 = vmatpush1.msra.mxu0 0.0
      %3054 = vmatprep.subr.mxu0 0.0
      %3055 = vmatpush1.msra.mxu0 0.0
      %3056 = vmatprep.subr.mxu0 0.0
      %3057 = vmatpush1.msra.mxu0 0.0
      %3058 = vmatprep.subr.mxu0 0.0
      %3059 = vmatpush1.msra.mxu0 0.0
      %3060 = vmatprep.subr.mxu0 %v1038
      %3061 = vmatpush1.msra.mxu0 %v1037
      %3062 = vmatprep.subr.mxu0 %v984
      %3063 = vmatpush1.msra.mxu0 %v983
      %3064 = vmatprep.subr.mxu0 %v930
      %3065 = vmatpush1.msra.mxu0 %v929
      %3066 = vmatprep.subr.mxu0 %v876
      %3067 = vmatpush1.msra.mxu0 %v875
      %3068 = vmatprep.subr.mxu0 0.0
      %3069 = vmatpush2.msra.mxu0 0.0
      %3070 = vmatprep.subr.mxu0 0.0
      %3071 = vmatpush2.msra.mxu0 0.0
      %3072 = vmatprep.subr.mxu0 0.0
      %3073 = vmatpush2.msra.mxu0 0.0
      %3074 = vmatprep.subr.mxu0 0.0
      %3075 = vmatpush2.msra.mxu0 0.0
      %3076 = vmatprep.subr.mxu0 0.0
      %3077 = vmatpush2.msra.mxu0 0.0
      %3078 = vmatprep.subr.mxu0 0.0
      %3079 = vmatpush2.msra.mxu0 0.0
      %3080 = vmatprep.subr.mxu0 0.0
      %3081 = vmatpush2.msra.mxu0 0.0
      %3082 = vmatprep.subr.mxu0 0.0
      %3083 = vmatpush2.msra.mxu0 0.0
      %3084 = vmatprep.subr.mxu0 0.0
      %3085 = vmatpush2.msra.mxu0 0.0
      %3086 = vmatprep.subr.mxu0 0.0
      %3087 = vmatpush2.msra.mxu0 0.0
      %3088 = vmatprep.subr.mxu0 0.0
      %3089 = vmatpush2.msra.mxu0 0.0
      %3090 = vmatprep.subr.mxu0 0.0
      %3091 = vmatpush2.msra.mxu0 0.0
      %3092 = vmatprep.subr.mxu0 0.0
      %3093 = vmatpush2.msra.mxu0 0.0
      %3094 = vmatprep.subr.mxu0 0.0
      %3095 = vmatpush2.msra.mxu0 0.0
      %3096 = vmatprep.subr.mxu0 0.0
      %3097 = vmatpush2.msra.mxu0 0.0
      %3098 = vmatprep.subr.mxu0 0.0
      %3099 = vmatpush2.msra.mxu0 0.0
      %3100 = vmatprep.mubr.f32.mxu0 0.0
      %3101 = vmatmul.mubr.f32.gmra.mxu0 %v1330
      %v3102 = vpop.f32.mrf.mxu0
      %v3103 = vadd.f32 %v1255, %v3102
      %v3104 = vpop.f32.mrf.mxu0
      %v3105 = vadd.f32 %v1259, %v3104
      %3106 = vdwg.mxu0
      %3107 = vmatprep.subr.mxu0 0.0
      %3108 = vmatpush1.msra.mxu0 0.0
      %3109 = vmatprep.subr.mxu0 0.0
      %3110 = vmatpush1.msra.mxu0 0.0
      %3111 = vmatprep.subr.mxu0 0.0
      %3112 = vmatpush1.msra.mxu0 0.0
      %3113 = vmatprep.subr.mxu0 0.0
      %3114 = vmatpush1.msra.mxu0 0.0
      %3115 = vmatprep.subr.mxu0 0.0
      %3116 = vmatpush1.msra.mxu0 0.0
      %3117 = vmatprep.subr.mxu0 0.0
      %3118 = vmatpush1.msra.mxu0 0.0
      %3119 = vmatprep.subr.mxu0 0.0
      %3120 = vmatpush1.msra.mxu0 0.0
      %3121 = vmatprep.subr.mxu0 0.0
      %3122 = vmatpush1.msra.mxu0 0.0
      %3123 = vmatprep.subr.mxu0 0.0
      %3124 = vmatpush1.msra.mxu0 0.0
      %3125 = vmatprep.subr.mxu0 0.0
      %3126 = vmatpush1.msra.mxu0 0.0
      %3127 = vmatprep.subr.mxu0 0.0
      %3128 = vmatpush1.msra.mxu0 0.0
      %3129 = vmatprep.subr.mxu0 0.0
      %3130 = vmatpush1.msra.mxu0 0.0
      %3131 = vmatprep.subr.mxu0 %v1040
      %3132 = vmatpush1.msra.mxu0 %v1039
      %3133 = vmatprep.subr.mxu0 %v986
      %3134 = vmatpush1.msra.mxu0 %v985
      %3135 = vmatprep.subr.mxu0 %v932
      %3136 = vmatpush1.msra.mxu0 %v931
      %3137 = vmatprep.subr.mxu0 %v878
      %3138 = vmatpush1.msra.mxu0 %v877
      %3139 = vmatprep.subr.mxu0 0.0
      %3140 = vmatpush2.msra.mxu0 0.0
      %3141 = vmatprep.subr.mxu0 0.0
      %3142 = vmatpush2.msra.mxu0 0.0
      %3143 = vmatprep.subr.mxu0 0.0
      %3144 = vmatpush2.msra.mxu0 0.0
      %3145 = vmatprep.subr.mxu0 0.0
      %3146 = vmatpush2.msra.mxu0 0.0
      %3147 = vmatprep.subr.mxu0 0.0
      %3148 = vmatpush2.msra.mxu0 0.0
      %3149 = vmatprep.subr.mxu0 0.0
      %3150 = vmatpush2.msra.mxu0 0.0
      %3151 = vmatprep.subr.mxu0 0.0
      %3152 = vmatpush2.msra.mxu0 0.0
      %3153 = vmatprep.subr.mxu0 0.0
      %3154 = vmatpush2.msra.mxu0 0.0
      %3155 = vmatprep.subr.mxu0 0.0
      %3156 = vmatpush2.msra.mxu0 0.0
      %3157 = vmatprep.subr.mxu0 0.0
      %3158 = vmatpush2.msra.mxu0 0.0
      %3159 = vmatprep.subr.mxu0 0.0
      %3160 = vmatpush2.msra.mxu0 0.0
      %3161 = vmatprep.subr.mxu0 0.0
      %3162 = vmatpush2.msra.mxu0 0.0
      %3163 = vmatprep.subr.mxu0 0.0
      %3164 = vmatpush2.msra.mxu0 0.0
      %3165 = vmatprep.subr.mxu0 0.0
      %3166 = vmatpush2.msra.mxu0 0.0
      %3167 = vmatprep.subr.mxu0 0.0
      %3168 = vmatpush2.msra.mxu0 0.0
      %3169 = vmatprep.subr.mxu0 0.0
      %3170 = vmatpush2.msra.mxu0 0.0
      %3171 = vmatprep.mubr.f32.mxu0 0.0
      %3172 = vmatmul.mubr.f32.gmra.mxu0 %v1330
      %v3173 = vpop.f32.mrf.mxu0
      %v3174 = vadd.f32 %v1263, %v3173
      %v3175 = vpop.f32.mrf.mxu0
      %v3176 = vadd.f32 %v1267, %v3175
      %3177 = vdwg.mxu0
      %3178 = vmatprep.subr.mxu0 0.0
      %3179 = vmatpush1.msra.mxu0 0.0
      %3180 = vmatprep.subr.mxu0 0.0
      %3181 = vmatpush1.msra.mxu0 0.0
      %3182 = vmatprep.subr.mxu0 0.0
      %3183 = vmatpush1.msra.mxu0 0.0
      %3184 = vmatprep.subr.mxu0 0.0
      %3185 = vmatpush1.msra.mxu0 0.0
      %3186 = vmatprep.subr.mxu0 0.0
      %3187 = vmatpush1.msra.mxu0 0.0
      %3188 = vmatprep.subr.mxu0 0.0
      %3189 = vmatpush1.msra.mxu0 0.0
      %3190 = vmatprep.subr.mxu0 0.0
      %3191 = vmatpush1.msra.mxu0 0.0
      %3192 = vmatprep.subr.mxu0 0.0
      %3193 = vmatpush1.msra.mxu0 0.0
      %3194 = vmatprep.subr.mxu0 0.0
      %3195 = vmatpush1.msra.mxu0 0.0
      %3196 = vmatprep.subr.mxu0 0.0
      %3197 = vmatpush1.msra.mxu0 0.0
      %3198 = vmatprep.subr.mxu0 0.0
      %3199 = vmatpush1.msra.mxu0 0.0
      %3200 = vmatprep.subr.mxu0 0.0
      %3201 = vmatpush1.msra.mxu0 0.0
      %3202 = vmatprep.subr.mxu0 %v1042
      %3203 = vmatpush1.msra.mxu0 %v1041
      %3204 = vmatprep.subr.mxu0 %v988
      %3205 = vmatpush1.msra.mxu0 %v987
      %3206 = vmatprep.subr.mxu0 %v934
      %3207 = vmatpush1.msra.mxu0 %v933
      %3208 = vmatprep.subr.mxu0 %v880
      %3209 = vmatpush1.msra.mxu0 %v879
      %3210 = vmatprep.subr.mxu0 0.0
      %3211 = vmatpush2.msra.mxu0 0.0
      %3212 = vmatprep.subr.mxu0 0.0
      %3213 = vmatpush2.msra.mxu0 0.0
      %3214 = vmatprep.subr.mxu0 0.0
      %3215 = vmatpush2.msra.mxu0 0.0
      %3216 = vmatprep.subr.mxu0 0.0
      %3217 = vmatpush2.msra.mxu0 0.0
      %3218 = vmatprep.subr.mxu0 0.0
      %3219 = vmatpush2.msra.mxu0 0.0
      %3220 = vmatprep.subr.mxu0 0.0
      %3221 = vmatpush2.msra.mxu0 0.0
      %3222 = vmatprep.subr.mxu0 0.0
      %3223 = vmatpush2.msra.mxu0 0.0
      %3224 = vmatprep.subr.mxu0 0.0
      %3225 = vmatpush2.msra.mxu0 0.0
      %3226 = vmatprep.subr.mxu0 0.0
      %3227 = vmatpush2.msra.mxu0 0.0
      %3228 = vmatprep.subr.mxu0 0.0
      %3229 = vmatpush2.msra.mxu0 0.0
      %3230 = vmatprep.subr.mxu0 0.0
      %3231 = vmatpush2.msra.mxu0 0.0
      %3232 = vmatprep.subr.mxu0 0.0
      %3233 = vmatpush2.msra.mxu0 0.0
      %3234 = vmatprep.subr.mxu0 0.0
      %3235 = vmatpush2.msra.mxu0 0.0
      %3236 = vmatprep.subr.mxu0 0.0
      %3237 = vmatpush2.msra.mxu0 0.0
      %3238 = vmatprep.subr.mxu0 0.0
      %3239 = vmatpush2.msra.mxu0 0.0
      %3240 = vmatprep.subr.mxu0 0.0
      %3241 = vmatpush2.msra.mxu0 0.0
      %3242 = vmatprep.mubr.f32.mxu0 0.0
      %3243 = vmatmul.mubr.f32.gmra.mxu0 %v1330
      %v3244 = vpop.f32.mrf.mxu0
      %v3245 = vadd.f32 %v1271, %v3244
      %v3246 = vpop.f32.mrf.mxu0
      %v3247 = vadd.f32 %v1275, %v3246
      %3248 = vdwg.mxu0
      %vm3249 = vcmask 1040384
      %v3250 = vsel %vm3249, %v1399, -inf
      %v3251 = vsel %vm3249, %v1401, -inf
      %v3252 = vsel %vm3249, %v1470, -inf
      %v3253 = vsel %vm3249, %v1472, -inf
      %v3254 = vsel %vm3249, %v1541, -inf
      %v3255 = vmax.f32 %v3250, %v3254
      %v3256 = vsel %vm3249, %v1543, -inf
      %v3257 = vmax.f32 %v3251, %v3256
      %v3258 = vsel %vm3249, %v1612, -inf
      %v3259 = vmax.f32 %v3252, %v3258
      %v3260 = vsel %vm3249, %v1614, -inf
      %v3261 = vmax.f32 %v3253, %v3260
      %v3262 = vsel %vm3249, %v1683, -inf
      %v3263 = vmax.f32 %v3255, %v3262
      %v3264 = vsel %vm3249, %v1685, -inf
      %v3265 = vmax.f32 %v3257, %v3264
      %v3266 = vsel %vm3249, %v1754, -inf
      %v3267 = vmax.f32 %v3259, %v3266
      %v3268 = vsel %vm3249, %v1756, -inf
      %v3269 = vmax.f32 %v3261, %v3268
      %v3270 = vsel %vm3249, %v1825, -inf
      %v3271 = vmax.f32 %v3263, %v3270
      %v3272 = vsel %vm3249, %v1827, -inf
      %v3273 = vmax.f32 %v3265, %v3272
      %v3274 = vsel %vm3249, %v1896, -inf
      %v3275 = vmax.f32 %v3267, %v3274
      %v3276 = vsel %vm3249, %v1898, -inf
      %v3277 = vmax.f32 %v3269, %v3276
      %v3278 = vsel %vm3249, %v1967, -inf
      %v3279 = vmax.f32 %v3271, %v3278
      %v3280 = vsel %vm3249, %v1969, -inf
      %v3281 = vmax.f32 %v3273, %v3280
      %v3282 = vsel %vm3249, %v2038, -inf
      %v3283 = vmax.f32 %v3275, %v3282
      %v3284 = vsel %vm3249, %v2040, -inf
      %v3285 = vmax.f32 %v3277, %v3284
      %v3286 = vsel %vm3249, %v2109, -inf
      %v3287 = vmax.f32 %v3279, %v3286
      %v3288 = vsel %vm3249, %v2111, -inf
      %v3289 = vmax.f32 %v3281, %v3288
      %v3290 = vsel %vm3249, %v2180, -inf
      %v3291 = vmax.f32 %v3283, %v3290
      %v3292 = vsel %vm3249, %v2182, -inf
      %v3293 = vmax.f32 %v3285, %v3292
      %v3294 = vsel %vm3249, %v2251, -inf
      %v3295 = vmax.f32 %v3287, %v3294
      %v3296 = vsel %vm3249, %v2253, -inf
      %v3297 = vmax.f32 %v3289, %v3296
      %v3298 = vsel %vm3249, %v2322, -inf
      %v3299 = vmax.f32 %v3291, %v3298
      %v3300 = vsel %vm3249, %v2324, -inf
      %v3301 = vmax.f32 %v3293, %v3300
      %v3302 = vsel %vm3249, %v2393, -inf
      %v3303 = vmax.f32 %v3295, %v3302
      %v3304 = vsel %vm3249, %v2395, -inf
      %v3305 = vmax.f32 %v3297, %v3304
      %v3306 = vsel %vm3249, %v2464, -inf
      %v3307 = vmax.f32 %v3299, %v3306
      %v3308 = vsel %vm3249, %v2466, -inf
      %v3309 = vmax.f32 %v3301, %v3308
      %v3310 = vsel %vm3249, %v2535, -inf
      %v3311 = vmax.f32 %v3303, %v3310
      %v3312 = vsel %vm3249, %v2537, -inf
      %v3313 = vmax.f32 %v3305, %v3312
      %v3314 = vsel %vm3249, %v2606, -inf
      %v3315 = vmax.f32 %v3307, %v3314
      %v3316 = vsel %vm3249, %v2608, -inf
      %v3317 = vmax.f32 %v3309, %v3316
      %v3318 = vsel %vm3249, %v2677, -inf
      %v3319 = vmax.f32 %v3311, %v3318
      %v3320 = vsel %vm3249, %v2679, -inf
      %v3321 = vmax.f32 %v3313, %v3320
      %v3322 = vsel %vm3249, %v2748, -inf
      %v3323 = vmax.f32 %v3315, %v3322
      %v3324 = vsel %vm3249, %v2750, -inf
      %v3325 = vmax.f32 %v3317, %v3324
      %v3326 = vsel %vm3249, %v2819, -inf
      %v3327 = vmax.f32 %v3319, %v3326
      %v3328 = vsel %vm3249, %v2821, -inf
      %v3329 = vmax.f32 %v3321, %v3328
      %v3330 = vsel %vm3249, %v2890, -inf
      %v3331 = vmax.f32 %v3323, %v3330
      %v3332 = vsel %vm3249, %v2892, -inf
      %v3333 = vmax.f32 %v3325, %v3332
      %v3334 = vsel %vm3249, %v2961, -inf
      %v3335 = vmax.f32 %v3327, %v3334
      %v3336 = vsel %vm3249, %v2963, -inf
      %v3337 = vmax.f32 %v3329, %v3336
      %v3338 = vsel %vm3249, %v3032, -inf
      %v3339 = vmax.f32 %v3331, %v3338
      %v3340 = vsel %vm3249, %v3034, -inf
      %v3341 = vmax.f32 %v3333, %v3340
      %v3342 = vsel %vm3249, %v3103, -inf
      %v3343 = vmax.f32 %v3335, %v3342
      %v3344 = vsel %vm3249, %v3105, -inf
      %v3345 = vmax.f32 %v3337, %v3344
      %v3346 = vsel %vm3249, %v3174, -inf
      %v3347 = vmax.f32 %v3339, %v3346
      %v3348 = vsel %vm3249, %v3176, -inf
      %v3349 = vmax.f32 %v3341, %v3348
      %v3350 = vsel %vm3249, %v3245, -inf
      %v3351 = vmax.f32 %v3343, %v3350
      %v3352 = vsel %vm3249, %v3247, -inf
      %v3353 = vmax.f32 %v3345, %v3352
      %v3354 = vmax.f32 %v3351, %v3353
      %v3355 = vmax.f32 %v3347, %v3349
      %v3356 = vmax.f32 %v3354, %v3355
      %3357 = vmax.xlane.f32.xlu0 %v3356
      %v3358 = vpop.xlane.xlu0 %3357
      %v3359 = vsub.f32 %v1399, %v3358
      %v3360 = vsub.f32 %v1401, %v3358
      %v3361 = vsub.f32 %v1470, %v3358
      %v3362 = vsub.f32 %v1472, %v3358
      %v3363 = vsub.f32 %v1541, %v3358
      %v3364 = vsub.f32 %v1543, %v3358
      %v3365 = vsub.f32 %v1612, %v3358
      %v3366 = vsub.f32 %v1614, %v3358
      %v3367 = vsub.f32 %v1683, %v3358
      %v3368 = vsub.f32 %v1685, %v3358
      %v3369 = vsub.f32 %v1754, %v3358
      %v3370 = vsub.f32 %v1756, %v3358
      %v3371 = vsub.f32 %v1825, %v3358
      %v3372 = vsub.f32 %v1827, %v3358
      %v3373 = vsub.f32 %v1896, %v3358
      %v3374 = vsub.f32 %v1898, %v3358
      %v3375 = vsub.f32 %v1967, %v3358
      %v3376 = vsub.f32 %v1969, %v3358
      %v3377 = vsub.f32 %v2038, %v3358
      %v3378 = vsub.f32 %v2040, %v3358
      %v3379 = vsub.f32 %v2109, %v3358
      %v3380 = vsub.f32 %v2111, %v3358
      %v3381 = vsub.f32 %v2180, %v3358
      %v3382 = vsub.f32 %v2182, %v3358
      %v3383 = vsub.f32 %v2251, %v3358
      %v3384 = vsub.f32 %v2253, %v3358
      %v3385 = vsub.f32 %v2322, %v3358
      %v3386 = vsub.f32 %v2324, %v3358
      %v3387 = vsub.f32 %v2393, %v3358
      %v3388 = vsub.f32 %v2395, %v3358
      %v3389 = vsub.f32 %v2464, %v3358
      %v3390 = vsub.f32 %v2466, %v3358
      %v3391 = vsub.f32 %v2535, %v3358
      %v3392 = vsub.f32 %v2537, %v3358
      %v3393 = vsub.f32 %v2606, %v3358
      %v3394 = vsub.f32 %v2608, %v3358
      %v3395 = vsub.f32 %v2677, %v3358
      %v3396 = vsub.f32 %v2679, %v3358
      %v3397 = vsub.f32 %v2748, %v3358
      %v3398 = vsub.f32 %v2750, %v3358
      %v3399 = vsub.f32 %v2819, %v3358
      %v3400 = vsub.f32 %v2821, %v3358
      %v3401 = vsub.f32 %v2890, %v3358
      %v3402 = vsub.f32 %v2892, %v3358
      %v3403 = vsub.f32 %v2961, %v3358
      %v3404 = vsub.f32 %v2963, %v3358
      %v3405 = vsub.f32 %v3032, %v3358
      %v3406 = vsub.f32 %v3034, %v3358
      %v3407 = vsub.f32 %v3103, %v3358
      %v3408 = vsub.f32 %v3105, %v3358
      %v3409 = vsub.f32 %v3174, %v3358
      %v3410 = vsub.f32 %v3176, %v3358
      %v3411 = vsub.f32 %v3245, %v3358
      %v3412 = vsub.f32 %v3247, %v3358
      %v3413 = vmul.f32 %v3359, 1.442695
      %v3414 = vpow.pop %v3413
      %v3415 = vmul.f32 %v3360, 1.442695
      %v3416 = vpow.pop %v3415
      %v3417 = vmul.f32 %v3361, 1.442695
      %v3418 = vpow.pop %v3417
      %v3419 = vmul.f32 %v3362, 1.442695
      %v3420 = vpow.pop %v3419
      %v3421 = vmul.f32 %v3363, 1.442695
      %v3422 = vpow.pop %v3421
      %v3423 = vmul.f32 %v3364, 1.442695
      %v3424 = vpow.pop %v3423
      %v3425 = vmul.f32 %v3365, 1.442695
      %v3426 = vpow.pop %v3425
      %v3427 = vmul.f32 %v3366, 1.442695
      %v3428 = vpow.pop %v3427
      %v3429 = vmul.f32 %v3367, 1.442695
      %v3430 = vpow.pop %v3429
      %v3431 = vmul.f32 %v3368, 1.442695
      %v3432 = vpow.pop %v3431
      %v3433 = vmul.f32 %v3369, 1.442695
      %v3434 = vpow.pop %v3433
      %v3435 = vmul.f32 %v3370, 1.442695
      %v3436 = vpow.pop %v3435
      %v3437 = vmul.f32 %v3371, 1.442695
      %v3438 = vpow.pop %v3437
      %v3439 = vmul.f32 %v3372, 1.442695
      %v3440 = vpow.pop %v3439
      %v3441 = vmul.f32 %v3373, 1.442695
      %v3442 = vpow.pop %v3441
      %v3443 = vmul.f32 %v3374, 1.442695
      %v3444 = vpow.pop %v3443
      %v3445 = vmul.f32 %v3375, 1.442695
      %v3446 = vpow.pop %v3445
      %v3447 = vmul.f32 %v3376, 1.442695
      %v3448 = vpow.pop %v3447
      %v3449 = vmul.f32 %v3377, 1.442695
      %v3450 = vpow.pop %v3449
      %v3451 = vmul.f32 %v3378, 1.442695
      %v3452 = vpow.pop %v3451
      %v3453 = vmul.f32 %v3379, 1.442695
      %v3454 = vpow.pop %v3453
      %v3455 = vmul.f32 %v3380, 1.442695
      %v3456 = vpow.pop %v3455
      %v3457 = vmul.f32 %v3381, 1.442695
      %v3458 = vpow.pop %v3457
      %v3459 = vmul.f32 %v3382, 1.442695
      %v3460 = vpow.pop %v3459
      %v3461 = vmul.f32 %v3383, 1.442695
      %v3462 = vpow.pop %v3461
      %v3463 = vmul.f32 %v3384, 1.442695
      %v3464 = vpow.pop %v3463
      %v3465 = vmul.f32 %v3385, 1.442695
      %v3466 = vpow.pop %v3465
      %v3467 = vmul.f32 %v3386, 1.442695
      %v3468 = vpow.pop %v3467
      %v3469 = vmul.f32 %v3387, 1.442695
      %v3470 = vpow.pop %v3469
      %v3471 = vmul.f32 %v3388, 1.442695
      %v3472 = vpow.pop %v3471
      %v3473 = vmul.f32 %v3389, 1.442695
      %v3474 = vpow.pop %v3473
      %v3475 = vmul.f32 %v3390, 1.442695
      %v3476 = vpow.pop %v3475
      %v3477 = vmul.f32 %v3391, 1.442695
      %v3478 = vpow.pop %v3477
      %v3479 = vmul.f32 %v3392, 1.442695
      %v3480 = vpow.pop %v3479
      %v3481 = vmul.f32 %v3393, 1.442695
      %v3482 = vpow.pop %v3481
      %v3483 = vmul.f32 %v3394, 1.442695
      %v3484 = vpow.pop %v3483
      %v3485 = vmul.f32 %v3395, 1.442695
      %v3486 = vpow.pop %v3485
      %v3487 = vmul.f32 %v3396, 1.442695
      %v3488 = vpow.pop %v3487
      %v3489 = vmul.f32 %v3397, 1.442695
      %v3490 = vpow.pop %v3489
      %v3491 = vmul.f32 %v3398, 1.442695
      %v3492 = vpow.pop %v3491
      %v3493 = vmul.f32 %v3399, 1.442695
      %v3494 = vpow.pop %v3493
      %v3495 = vmul.f32 %v3400, 1.442695
      %v3496 = vpow.pop %v3495
      %v3497 = vmul.f32 %v3401, 1.442695
      %v3498 = vpow.pop %v3497
      %v3499 = vmul.f32 %v3402, 1.442695
      %v3500 = vpow.pop %v3499
      %v3501 = vmul.f32 %v3403, 1.442695
      %v3502 = vpow.pop %v3501
      %v3503 = vmul.f32 %v3404, 1.442695
      %v3504 = vpow.pop %v3503
      %v3505 = vmul.f32 %v3405, 1.442695
      %v3506 = vpow.pop %v3505
      %v3507 = vmul.f32 %v3406, 1.442695
      %v3508 = vpow.pop %v3507
      %v3509 = vmul.f32 %v3407, 1.442695
      %v3510 = vpow.pop %v3509
      %v3511 = vmul.f32 %v3408, 1.442695
      %v3512 = vpow.pop %v3511
      %v3513 = vmul.f32 %v3409, 1.442695
      %v3514 = vpow.pop %v3513
      %v3515 = vmul.f32 %v3410, 1.442695
      %v3516 = vpow.pop %v3515
      %v3517 = vmul.f32 %v3411, 1.442695
      %v3518 = vpow.pop %v3517
      %v3519 = vmul.f32 %v3412, 1.442695
      %v3520 = vpow.pop %v3519
      %v3521 = vsel %vm3249, %v3414, 0.0
      %v3522 = vsel %vm3249, %v3416, 0.0
      %v3523 = vadd.f32 %v3521, %v3522
      %v3524 = vsel %vm3249, %v3418, 0.0
      %v3525 = vadd.f32 %v3523, %v3524
      %v3526 = vsel %vm3249, %v3420, 0.0
      %v3527 = vadd.f32 %v3525, %v3526
      %v3528 = vsel %vm3249, %v3422, 0.0
      %v3529 = vadd.f32 %v3527, %v3528
      %v3530 = vsel %vm3249, %v3424, 0.0
      %v3531 = vadd.f32 %v3529, %v3530
      %v3532 = vsel %vm3249, %v3426, 0.0
      %v3533 = vadd.f32 %v3531, %v3532
      %v3534 = vsel %vm3249, %v3428, 0.0
      %v3535 = vadd.f32 %v3533, %v3534
      %v3536 = vsel %vm3249, %v3430, 0.0
      %v3537 = vadd.f32 %v3535, %v3536
      %v3538 = vsel %vm3249, %v3432, 0.0
      %v3539 = vadd.f32 %v3537, %v3538
      %v3540 = vsel %vm3249, %v3434, 0.0
      %v3541 = vadd.f32 %v3539, %v3540
      %v3542 = vsel %vm3249, %v3436, 0.0
      %v3543 = vadd.f32 %v3541, %v3542
      %v3544 = vsel %vm3249, %v3438, 0.0
      %v3545 = vadd.f32 %v3543, %v3544
      %v3546 = vsel %vm3249, %v3440, 0.0
      %v3547 = vadd.f32 %v3545, %v3546
      %v3548 = vsel %vm3249, %v3442, 0.0
      %v3549 = vadd.f32 %v3547, %v3548
      %v3550 = vsel %vm3249, %v3444, 0.0
      %v3551 = vadd.f32 %v3549, %v3550
      %v3552 = vsel %vm3249, %v3446, 0.0
      %v3553 = vadd.f32 %v3551, %v3552
      %v3554 = vsel %vm3249, %v3448, 0.0
      %v3555 = vadd.f32 %v3553, %v3554
      %v3556 = vsel %vm3249, %v3450, 0.0
      %v3557 = vadd.f32 %v3555, %v3556
      %v3558 = vsel %vm3249, %v3452, 0.0
      %v3559 = vadd.f32 %v3557, %v3558
      %v3560 = vsel %vm3249, %v3454, 0.0
      %v3561 = vadd.f32 %v3559, %v3560
      %v3562 = vsel %vm3249, %v3456, 0.0
      %v3563 = vadd.f32 %v3561, %v3562
      %v3564 = vsel %vm3249, %v3458, 0.0
      %v3565 = vadd.f32 %v3563, %v3564
      %v3566 = vsel %vm3249, %v3460, 0.0
      %v3567 = vadd.f32 %v3565, %v3566
      %v3568 = vsel %vm3249, %v3462, 0.0
      %v3569 = vadd.f32 %v3567, %v3568
      %v3570 = vsel %vm3249, %v3464, 0.0
      %v3571 = vadd.f32 %v3569, %v3570
      %v3572 = vsel %vm3249, %v3466, 0.0
      %v3573 = vadd.f32 %v3571, %v3572
      %v3574 = vsel %vm3249, %v3468, 0.0
      %v3575 = vadd.f32 %v3573, %v3574
      %v3576 = vsel %vm3249, %v3470, 0.0
      %v3577 = vadd.f32 %v3575, %v3576
      %v3578 = vsel %vm3249, %v3472, 0.0
      %v3579 = vadd.f32 %v3577, %v3578
      %v3580 = vsel %vm3249, %v3474, 0.0
      %v3581 = vadd.f32 %v3579, %v3580
      %v3582 = vsel %vm3249, %v3476, 0.0
      %v3583 = vadd.f32 %v3581, %v3582
      %v3584 = vsel %vm3249, %v3478, 0.0
      %v3585 = vadd.f32 %v3583, %v3584
      %v3586 = vsel %vm3249, %v3480, 0.0
      %v3587 = vadd.f32 %v3585, %v3586
      %v3588 = vsel %vm3249, %v3482, 0.0
      %v3589 = vadd.f32 %v3587, %v3588
      %v3590 = vsel %vm3249, %v3484, 0.0
      %v3591 = vadd.f32 %v3589, %v3590
      %v3592 = vsel %vm3249, %v3486, 0.0
      %v3593 = vadd.f32 %v3591, %v3592
      %v3594 = vsel %vm3249, %v3488, 0.0
      %v3595 = vadd.f32 %v3593, %v3594
      %v3596 = vsel %vm3249, %v3490, 0.0
      %v3597 = vadd.f32 %v3595, %v3596
      %v3598 = vsel %vm3249, %v3492, 0.0
      %v3599 = vadd.f32 %v3597, %v3598
      %v3600 = vsel %vm3249, %v3494, 0.0
      %v3601 = vadd.f32 %v3599, %v3600
      %v3602 = vsel %vm3249, %v3496, 0.0
      %v3603 = vadd.f32 %v3601, %v3602
      %v3604 = vsel %vm3249, %v3498, 0.0
      %v3605 = vadd.f32 %v3603, %v3604
      %v3606 = vsel %vm3249, %v3500, 0.0
      %v3607 = vadd.f32 %v3605, %v3606
      %v3608 = vsel %vm3249, %v3502, 0.0
      %v3609 = vadd.f32 %v3607, %v3608
      %v3610 = vsel %vm3249, %v3504, 0.0
      %v3611 = vadd.f32 %v3609, %v3610
      %v3612 = vsel %vm3249, %v3506, 0.0
      %v3613 = vadd.f32 %v3611, %v3612
      %v3614 = vsel %vm3249, %v3508, 0.0
      %v3615 = vadd.f32 %v3613, %v3614
      %v3616 = vsel %vm3249, %v3510, 0.0
      %v3617 = vadd.f32 %v3615, %v3616
      %v3618 = vsel %vm3249, %v3512, 0.0
      %v3619 = vadd.f32 %v3617, %v3618
      %v3620 = vsel %vm3249, %v3514, 0.0
      %v3621 = vadd.f32 %v3619, %v3620
      %v3622 = vsel %vm3249, %v3516, 0.0
      %v3623 = vadd.f32 %v3621, %v3622
      %v3624 = vsel %vm3249, %v3518, 0.0
      %v3625 = vadd.f32 %v3623, %v3624
      %v3626 = vsel %vm3249, %v3520, 0.0
      %v3627 = vadd.f32 %v3625, %v3626
      %3628 = vadd.xlane.f32.xlu0 %v3627
      %v3629 = vpop.xlane.xlu0 %3628
      %v3630 = vlog2.pop %v3629
      %v3631 = vmul.f32 %v3630, 0.6931472
      %v3632 = vsub.f32 %v3359, %v3631
      %v3633 = vsub.f32 %v3360, %v3631
      %v3634 = vsub.f32 %v3361, %v3631
      %v3635 = vsub.f32 %v3362, %v3631
      %v3636 = vsub.f32 %v3363, %v3631
      %v3637 = vsub.f32 %v3364, %v3631
      %v3638 = vsub.f32 %v3365, %v3631
      %v3639 = vsub.f32 %v3366, %v3631
      %v3640 = vsub.f32 %v3367, %v3631
      %v3641 = vsub.f32 %v3368, %v3631
      %v3642 = vsub.f32 %v3369, %v3631
      %v3643 = vsub.f32 %v3370, %v3631
      %v3644 = vsub.f32 %v3371, %v3631
      %v3645 = vsub.f32 %v3372, %v3631
      %v3646 = vsub.f32 %v3373, %v3631
      %v3647 = vsub.f32 %v3374, %v3631
      %v3648 = vsub.f32 %v3375, %v3631
      %v3649 = vsub.f32 %v3376, %v3631
      %v3650 = vsub.f32 %v3377, %v3631
      %v3651 = vsub.f32 %v3378, %v3631
      %v3652 = vsub.f32 %v3379, %v3631
      %v3653 = vsub.f32 %v3380, %v3631
      %v3654 = vsub.f32 %v3381, %v3631
      %v3655 = vsub.f32 %v3382, %v3631
      %v3656 = vsub.f32 %v3383, %v3631
      %v3657 = vsub.f32 %v3384, %v3631
      %v3658 = vsub.f32 %v3385, %v3631
      %v3659 = vsub.f32 %v3386, %v3631
      %v3660 = vsub.f32 %v3387, %v3631
      %v3661 = vsub.f32 %v3388, %v3631
      %v3662 = vsub.f32 %v3389, %v3631
      %v3663 = vsub.f32 %v3390, %v3631
      %v3664 = vsub.f32 %v3391, %v3631
      %v3665 = vsub.f32 %v3392, %v3631
      %v3666 = vsub.f32 %v3393, %v3631
      %v3667 = vsub.f32 %v3394, %v3631
      %v3668 = vsub.f32 %v3395, %v3631
      %v3669 = vsub.f32 %v3396, %v3631
      %v3670 = vsub.f32 %v3397, %v3631
      %v3671 = vsub.f32 %v3398, %v3631
      %v3672 = vsub.f32 %v3399, %v3631
      %v3673 = vsub.f32 %v3400, %v3631
      %v3674 = vsub.f32 %v3401, %v3631
      %v3675 = vsub.f32 %v3402, %v3631
      %v3676 = vsub.f32 %v3403, %v3631
      %v3677 = vsub.f32 %v3404, %v3631
      %v3678 = vsub.f32 %v3405, %v3631
      %v3679 = vsub.f32 %v3406, %v3631
      %v3680 = vsub.f32 %v3407, %v3631
      %v3681 = vsub.f32 %v3408, %v3631
      %v3682 = vsub.f32 %v3409, %v3631
      %v3683 = vsub.f32 %v3410, %v3631
      %v3684 = vsub.f32 %v3411, %v3631
      %v3685 = vsub.f32 %v3412, %v3631
      %v3740 = vcombine.low %v3632, %v3633
      %v3741 = vcombine.low %v3634, %v3635
      %v3742 = vcombine.low %v3636, %v3637
      %v3743 = vcombine.low %v3638, %v3639
      %v3745 = vunpack.c.l.s4 1966171168
      %v3746 = vunpack.c.0.s8 %v3745
      %v3747 = vlaneseq
      %v3748 = vshrl.u32 %v3747, 7
      %v3749 = vsub.s32 %v3746, %v3748
      %v3750 = vrot.slane %v3740, %v3749
      %v3752 = vunpack.c.l.s4 1966171168
      %v3753 = vunpack.c.0.s8 %v3752
      %v3754 = vlaneseq
      %v3755 = vshrl.u32 %v3754, 7
      %v3756 = vsub.s32 %v3753, %v3755
      %v3757 = vrot.slane %v3741, %v3756
      %v3759 = vunpack.c.l.s4 1966171168
      %v3760 = vunpack.c.0.s8 %v3759
      %v3761 = vlaneseq
      %v3762 = vshrl.u32 %v3761, 7
      %v3763 = vsub.s32 %v3760, %v3762
      %v3764 = vrot.slane %v3742, %v3763
      %v3766 = vunpack.c.l.s4 1966171168
      %v3767 = vunpack.c.0.s8 %v3766
      %v3768 = vlaneseq
      %v3769 = vshrl.u32 %v3768, 7
      %v3770 = vsub.s32 %v3767, %v3769
      %v3771 = vrot.slane %v3743, %v3770
      %v3772 = vcombine.low %v3750, %v3757
      %v3773 = vcombine.low %v3764, %v3771
      %v3775 = vunpack.c.l.s4 1966171168
      %v3776 = vunpack.c.0.s8 %v3775
      %v3777 = vlaneseq
      %v3778 = vshrl.u32 %v3777, 7
      %v3779 = vsub.s32 %v3776, %v3778
      %v3780 = vrot.slane %v3772, %v3779
      %v3782 = vunpack.c.l.s4 1966171168
      %v3783 = vunpack.c.0.s8 %v3782
      %v3784 = vlaneseq
      %v3785 = vshrl.u32 %v3784, 7
      %v3786 = vsub.s32 %v3783, %v3785
      %v3787 = vrot.slane %v3773, %v3786
      %v3788 = vcombine.low %v3780, %v3787
      %v3789 = vcombine.low %v3640, %v3641
      %v3790 = vcombine.low %v3642, %v3643
      %v3791 = vcombine.low %v3644, %v3645
      %v3792 = vcombine.low %v3646, %v3647
      %v3794 = vunpack.c.l.s4 1966171168
      %v3795 = vunpack.c.0.s8 %v3794
      %v3796 = vlaneseq
      %v3797 = vshrl.u32 %v3796, 7
      %v3798 = vsub.s32 %v3795, %v3797
      %v3799 = vrot.slane %v3789, %v3798
      %v3801 = vunpack.c.l.s4 1966171168
      %v3802 = vunpack.c.0.s8 %v3801
      %v3803 = vlaneseq
      %v3804 = vshrl.u32 %v3803, 7
      %v3805 = vsub.s32 %v3802, %v3804
      %v3806 = vrot.slane %v3790, %v3805
      %v3808 = vunpack.c.l.s4 1966171168
      %v3809 = vunpack.c.0.s8 %v3808
      %v3810 = vlaneseq
      %v3811 = vshrl.u32 %v3810, 7
      %v3812 = vsub.s32 %v3809, %v3811
      %v3813 = vrot.slane %v3791, %v3812
      %v3815 = vunpack.c.l.s4 1966171168
      %v3816 = vunpack.c.0.s8 %v3815
      %v3817 = vlaneseq
      %v3818 = vshrl.u32 %v3817, 7
      %v3819 = vsub.s32 %v3816, %v3818
      %v3820 = vrot.slane %v3792, %v3819
      %v3821 = vcombine.low %v3799, %v3806
      %v3822 = vcombine.low %v3813, %v3820
      %v3824 = vunpack.c.l.s4 1966171168
      %v3825 = vunpack.c.0.s8 %v3824
      %v3826 = vlaneseq
      %v3827 = vshrl.u32 %v3826, 7
      %v3828 = vsub.s32 %v3825, %v3827
      %v3829 = vrot.slane %v3821, %v3828
      %v3831 = vunpack.c.l.s4 1966171168
      %v3832 = vunpack.c.0.s8 %v3831
      %v3833 = vlaneseq
      %v3834 = vshrl.u32 %v3833, 7
      %v3835 = vsub.s32 %v3832, %v3834
      %v3836 = vrot.slane %v3822, %v3835
      %v3837 = vcombine.low %v3829, %v3836
      %v3838 = vcombine.low %v3648, %v3649
      %v3839 = vcombine.low %v3650, %v3651
      %v3840 = vcombine.low %v3652, %v3653
      %v3841 = vcombine.low %v3654, %v3655
      %v3843 = vunpack.c.l.s4 1966171168
      %v3844 = vunpack.c.0.s8 %v3843
      %v3845 = vlaneseq
      %v3846 = vshrl.u32 %v3845, 7
      %v3847 = vsub.s32 %v3844, %v3846
      %v3848 = vrot.slane %v3838, %v3847
      %v3850 = vunpack.c.l.s4 1966171168
      %v3851 = vunpack.c.0.s8 %v3850
      %v3852 = vlaneseq
      %v3853 = vshrl.u32 %v3852, 7
      %v3854 = vsub.s32 %v3851, %v3853
      %v3855 = vrot.slane %v3839, %v3854
      %v3857 = vunpack.c.l.s4 1966171168
      %v3858 = vunpack.c.0.s8 %v3857
      %v3859 = vlaneseq
      %v3860 = vshrl.u32 %v3859, 7
      %v3861 = vsub.s32 %v3858, %v3860
      %v3862 = vrot.slane %v3840, %v3861
      %v3864 = vunpack.c.l.s4 1966171168
      %v3865 = vunpack.c.0.s8 %v3864
      %v3866 = vlaneseq
      %v3867 = vshrl.u32 %v3866, 7
      %v3868 = vsub.s32 %v3865, %v3867
      %v3869 = vrot.slane %v3841, %v3868
      %v3870 = vcombine.low %v3848, %v3855
      %v3871 = vcombine.low %v3862, %v3869
      %v3873 = vunpack.c.l.s4 1966171168
      %v3874 = vunpack.c.0.s8 %v3873
      %v3875 = vlaneseq
      %v3876 = vshrl.u32 %v3875, 7
      %v3877 = vsub.s32 %v3874, %v3876
      %v3878 = vrot.slane %v3870, %v3877
      %v3880 = vunpack.c.l.s4 1966171168
      %v3881 = vunpack.c.0.s8 %v3880
      %v3882 = vlaneseq
      %v3883 = vshrl.u32 %v3882, 7
      %v3884 = vsub.s32 %v3881, %v3883
      %v3885 = vrot.slane %v3871, %v3884
      %v3886 = vcombine.low %v3878, %v3885
      %v3887 = vcombine.low %v3656, %v3657
      %v3888 = vcombine.low %v3658, %v3659
      %v3889 = vcombine.low %v3660, %v3661
      %v3890 = vcombine.low %v3662, %v3663
      %v3892 = vunpack.c.l.s4 1966171168
      %v3893 = vunpack.c.0.s8 %v3892
      %v3894 = vlaneseq
      %v3895 = vshrl.u32 %v3894, 7
      %v3896 = vsub.s32 %v3893, %v3895
      %v3897 = vrot.slane %v3887, %v3896
      %v3899 = vunpack.c.l.s4 1966171168
      %v3900 = vunpack.c.0.s8 %v3899
      %v3901 = vlaneseq
      %v3902 = vshrl.u32 %v3901, 7
      %v3903 = vsub.s32 %v3900, %v3902
      %v3904 = vrot.slane %v3888, %v3903
      %v3906 = vunpack.c.l.s4 1966171168
      %v3907 = vunpack.c.0.s8 %v3906
      %v3908 = vlaneseq
      %v3909 = vshrl.u32 %v3908, 7
      %v3910 = vsub.s32 %v3907, %v3909
      %v3911 = vrot.slane %v3889, %v3910
      %v3913 = vunpack.c.l.s4 1966171168
      %v3914 = vunpack.c.0.s8 %v3913
      %v3915 = vlaneseq
      %v3916 = vshrl.u32 %v3915, 7
      %v3917 = vsub.s32 %v3914, %v3916
      %v3918 = vrot.slane %v3890, %v3917
      %v3919 = vcombine.low %v3897, %v3904
      %v3920 = vcombine.low %v3911, %v3918
      %v3922 = vunpack.c.l.s4 1966171168
      %v3923 = vunpack.c.0.s8 %v3922
      %v3924 = vlaneseq
      %v3925 = vshrl.u32 %v3924, 7
      %v3926 = vsub.s32 %v3923, %v3925
      %v3927 = vrot.slane %v3919, %v3926
      %v3929 = vunpack.c.l.s4 1966171168
      %v3930 = vunpack.c.0.s8 %v3929
      %v3931 = vlaneseq
      %v3932 = vshrl.u32 %v3931, 7
      %v3933 = vsub.s32 %v3930, %v3932
      %v3934 = vrot.slane %v3920, %v3933
      %v3935 = vcombine.low %v3927, %v3934
      %v3936 = vcombine.low %v3664, %v3665
      %v3937 = vcombine.low %v3666, %v3667
      %v3938 = vcombine.low %v3668, %v3669
      %v3939 = vcombine.low %v3670, %v3671
      %v3941 = vunpack.c.l.s4 1966171168
      %v3942 = vunpack.c.0.s8 %v3941
      %v3943 = vlaneseq
      %v3944 = vshrl.u32 %v3943, 7
      %v3945 = vsub.s32 %v3942, %v3944
      %v3946 = vrot.slane %v3936, %v3945
      %v3948 = vunpack.c.l.s4 1966171168
      %v3949 = vunpack.c.0.s8 %v3948
      %v3950 = vlaneseq
      %v3951 = vshrl.u32 %v3950, 7
      %v3952 = vsub.s32 %v3949, %v3951
      %v3953 = vrot.slane %v3937, %v3952
      %v3955 = vunpack.c.l.s4 1966171168
      %v3956 = vunpack.c.0.s8 %v3955
      %v3957 = vlaneseq
      %v3958 = vshrl.u32 %v3957, 7
      %v3959 = vsub.s32 %v3956, %v3958
      %v3960 = vrot.slane %v3938, %v3959
      %v3962 = vunpack.c.l.s4 1966171168
      %v3963 = vunpack.c.0.s8 %v3962
      %v3964 = vlaneseq
      %v3965 = vshrl.u32 %v3964, 7
      %v3966 = vsub.s32 %v3963, %v3965
      %v3967 = vrot.slane %v3939, %v3966
      %v3968 = vcombine.low %v3946, %v3953
      %v3969 = vcombine.low %v3960, %v3967
      %v3971 = vunpack.c.l.s4 1966171168
      %v3972 = vunpack.c.0.s8 %v3971
      %v3973 = vlaneseq
      %v3974 = vshrl.u32 %v3973, 7
      %v3975 = vsub.s32 %v3972, %v3974
      %v3976 = vrot.slane %v3968, %v3975
      %v3978 = vunpack.c.l.s4 1966171168
      %v3979 = vunpack.c.0.s8 %v3978
      %v3980 = vlaneseq
      %v3981 = vshrl.u32 %v3980, 7
      %v3982 = vsub.s32 %v3979, %v3981
      %v3983 = vrot.slane %v3969, %v3982
      %v3984 = vcombine.low %v3976, %v3983
      %v3985 = vcombine.low %v3672, %v3673
      %v3986 = vcombine.low %v3674, %v3675
      %v3987 = vcombine.low %v3676, %v3677
      %v3988 = vcombine.low %v3678, %v3679
      %v3990 = vunpack.c.l.s4 1966171168
      %v3991 = vunpack.c.0.s8 %v3990
      %v3992 = vlaneseq
      %v3993 = vshrl.u32 %v3992, 7
      %v3994 = vsub.s32 %v3991, %v3993
      %v3995 = vrot.slane %v3985, %v3994
      %v3997 = vunpack.c.l.s4 1966171168
      %v3998 = vunpack.c.0.s8 %v3997
      %v3999 = vlaneseq
      %v4000 = vshrl.u32 %v3999, 7
      %v4001 = vsub.s32 %v3998, %v4000
      %v4002 = vrot.slane %v3986, %v4001
      %v4004 = vunpack.c.l.s4 1966171168
      %v4005 = vunpack.c.0.s8 %v4004
      %v4006 = vlaneseq
      %v4007 = vshrl.u32 %v4006, 7
      %v4008 = vsub.s32 %v4005, %v4007
      %v4009 = vrot.slane %v3987, %v4008
      %v4011 = vunpack.c.l.s4 1966171168
      %v4012 = vunpack.c.0.s8 %v4011
      %v4013 = vlaneseq
      %v4014 = vshrl.u32 %v4013, 7
      %v4015 = vsub.s32 %v4012, %v4014
      %v4016 = vrot.slane %v3988, %v4015
      %v4017 = vcombine.low %v3995, %v4002
      %v4018 = vcombine.low %v4009, %v4016
      %v4020 = vunpack.c.l.s4 1966171168
      %v4021 = vunpack.c.0.s8 %v4020
      %v4022 = vlaneseq
      %v4023 = vshrl.u32 %v4022, 7
      %v4024 = vsub.s32 %v4021, %v4023
      %v4025 = vrot.slane %v4017, %v4024
      %v4027 = vunpack.c.l.s4 1966171168
      %v4028 = vunpack.c.0.s8 %v4027
      %v4029 = vlaneseq
      %v4030 = vshrl.u32 %v4029, 7
      %v4031 = vsub.s32 %v4028, %v4030
      %v4032 = vrot.slane %v4018, %v4031
      %v4033 = vcombine.low %v4025, %v4032
      %v4034 = vcombine.low %v3680, %v3681
      %v4035 = vcombine.low %v3682, %v3683
      %v4036 = vcombine.low %v3684, %v3685
      %v4038 = vunpack.c.l.s4 1966171168
      %v4039 = vunpack.c.0.s8 %v4038
      %v4040 = vlaneseq
      %v4041 = vshrl.u32 %v4040, 7
      %v4042 = vsub.s32 %v4039, %v4041
      %v4043 = vrot.slane %v4034, %v4042
      %v4045 = vunpack.c.l.s4 1966171168
      %v4046 = vunpack.c.0.s8 %v4045
      %v4047 = vlaneseq
      %v4048 = vshrl.u32 %v4047, 7
      %v4049 = vsub.s32 %v4046, %v4048
      %v4050 = vrot.slane %v4035, %v4049
      %v4052 = vunpack.c.l.s4 1966171168
      %v4053 = vunpack.c.0.s8 %v4052
      %v4054 = vlaneseq
      %v4055 = vshrl.u32 %v4054, 7
      %v4056 = vsub.s32 %v4053, %v4055
      %v4057 = vrot.slane %v4036, %v4056
      %v4058 = vcombine.low %v4043, %v4050
      %v4060 = vunpack.c.l.s4 1966171168
      %v4061 = vunpack.c.0.s8 %v4060
      %v4062 = vlaneseq
      %v4063 = vshrl.u32 %v4062, 7
      %v4064 = vsub.s32 %v4061, %v4063
      %v4065 = vrot.slane %v4058, %v4064
      %v4067 = vunpack.c.l.s4 1966171168
      %v4068 = vunpack.c.0.s8 %v4067
      %v4069 = vlaneseq
      %v4070 = vshrl.u32 %v4069, 7
      %v4071 = vsub.s32 %v4068, %v4070
      %v4072 = vrot.slane %v4057, %v4071
      %v4073 = vcombine.low %v4065, %v4072
      %s4081 = smul.u32 %s464, 54
      %s4082 = scalar_lea.vmem [#allocation2], %s4081
      %4083 = vst [vmem:[%s4082] sm:$0xff] %v3788
      %4084 = vst [vmem:[%s4082 + $0x8] sm:$0xff] %v3837
      %4085 = vst [vmem:[%s4082 + $0x10] sm:$0xff] %v3886
      %4086 = vst [vmem:[%s4082 + $0x18] sm:$0xff] %v3935
      %4087 = vst [vmem:[%s4082 + $0x20] sm:$0xff] %v3984
      %4088 = vst [vmem:[%s4082 + $0x28] sm:$0xff] %v4033
      %v4089 = vlaneseq
      %vm4090 = vcmp.ge.s32.totalorder %v4089, 0
      %vm4091 = vcmp.lt.s32.totalorder %v4089, 768
      %vm4092 = vmand %vm4090, %vm4091
      %4093 = vst.msk [vmem:[%s4082 + $0x30] sm:$0x3f] %vm4092, %v4073
      %v4094 = vld [vmem:[%s9] sm:$0xff]
      %v4095 = vld [vmem:[%s9 + $0x8] sm:$0xff]
      %v4096 = vld [vmem:[%s9 + $0x10] sm:$0xff]
      %v4097 = vld [vmem:[%s9 + $0x18] sm:$0xff]
      %v4098 = vld [vmem:[%s9 + $0x20] sm:$0xff]
      %v4099 = vld [vmem:[%s9 + $0x28] sm:$0xff]
      %v4100 = vld [vmem:[%s9 + $0x30] sm:$0xff]
      %v4101 = vld [vmem:[%s9 + $0x38] sm:$0xff]
      %v4102 = vld [vmem:[%s9 + $0x40] sm:$0xff]
      %v4103 = vld [vmem:[%s9 + $0x48] sm:$0xff]
      %v4104 = vld [vmem:[%s9 + $0x50] sm:$0xff]
      %v4105 = vld [vmem:[%s9 + $0x58] sm:$0xff]
      %v4106 = vld [vmem:[%s9 + $0x60] sm:$0xff]
      %v4107 = vld [vmem:[%s9 + $0x68] sm:$0xff]
      %v4108 = vld [vmem:[%s9 + $0x70] sm:$0xff]
      %v4109 = vld [vmem:[%s9 + $0x78] sm:$0xff]
      %v4110 = vld [vmem:[%s9 + $0x80] sm:$0xff]
      %v4111 = vld [vmem:[%s9 + $0x88] sm:$0xff]
      %v4112 = vld [vmem:[%s9 + $0x90] sm:$0xff]
      %v4113 = vld [vmem:[%s9 + $0x98] sm:$0xff]
      %v4114 = vld [vmem:[%s9 + $0xa0] sm:$0xff]
      %v4115 = vld [vmem:[%s9 + $0xa8] sm:$0xff]
      %v4116 = vld [vmem:[%s9 + $0xb0] sm:$0xff]
      %v4117 = vld [vmem:[%s9 + $0xb8] sm:$0xff]
      %v4118 = vld [vmem:[%s9 + $0xc0] sm:$0xff]
      %v4119 = vld [vmem:[%s9 + $0xc8] sm:$0xff]
      %v4120 = vld [vmem:[%s9 + $0xd0] sm:$0xff]
      %v4121 = vld [vmem:[%s9 + $0xd8] sm:$0xff]
      %v4122 = vld [vmem:[%s9 + $0xe0] sm:$0xff]
      %v4123 = vld [vmem:[%s9 + $0xe8] sm:$0xff]
      %v4124 = vld [vmem:[%s9 + $0xf0] sm:$0xff]
      %v4125 = vld [vmem:[%s9 + $0xf8] sm:$0xff]
      %v4126 = vld [vmem:[%s9 + $0x100] sm:$0xff]
      %v4127 = vld [vmem:[%s9 + $0x108] sm:$0xff]
      %v4128 = vld [vmem:[%s9 + $0x110] sm:$0xff]
      %v4129 = vld [vmem:[%s9 + $0x118] sm:$0xff]
      %v4130 = vld [vmem:[%s9 + $0x120] sm:$0xff]
      %v4131 = vld [vmem:[%s9 + $0x128] sm:$0xff]
      %v4132 = vld [vmem:[%s9 + $0x130] sm:$0xff]
      %v4133 = vld [vmem:[%s9 + $0x138] sm:$0xff]
      %v4134 = vld [vmem:[%s9 + $0x140] sm:$0xff]
      %v4135 = vld [vmem:[%s9 + $0x148] sm:$0xff]
      %v4136 = vld [vmem:[%s9 + $0x150] sm:$0xff]
      %v4137 = vld [vmem:[%s9 + $0x158] sm:$0xff]
      %v4138 = vld [vmem:[%s9 + $0x160] sm:$0xff]
      %v4139 = vld [vmem:[%s9 + $0x168] sm:$0xff]
      %v4140 = vld [vmem:[%s9 + $0x170] sm:$0xff]
      %v4141 = vld [vmem:[%s9 + $0x178] sm:$0xff]
      %v4142 = vld [vmem:[%s9 + $0x180] sm:$0xff]
      %v4143 = vld [vmem:[%s9 + $0x188] sm:$0xff]
      %v4144 = vld [vmem:[%s9 + $0x190] sm:$0xff]
      %v4145 = vld [vmem:[%s9 + $0x198] sm:$0xff]
      %v4146 = vld [vmem:[%s9 + $0x1a0] sm:$0xff]
      %v4147 = vld [vmem:[%s9 + $0x1a8] sm:$0xff]
      %v4148 = vld [vmem:[%s9 + $0x1b0] sm:$0xff]
      %v4149 = vld [vmem:[%s9 + $0x1b8] sm:$0xff]
      %v4150 = vld [vmem:[%s9 + $0x1c0] sm:$0xff]
      %v4151 = vld [vmem:[%s9 + $0x1c8] sm:$0xff]
      %v4152 = vld [vmem:[%s9 + $0x1d0] sm:$0xff]
      %v4153 = vld [vmem:[%s9 + $0x1d8] sm:$0xff]
      %v4154 = vld [vmem:[%s9 + $0x1e0] sm:$0xff]
      %v4155 = vld [vmem:[%s9 + $0x1e8] sm:$0xff]
      %v4156 = vld [vmem:[%s9 + $0x1f0] sm:$0xff]
      %v4157 = vld [vmem:[%s9 + $0x1f8] sm:$0xff]
      %v4158 = vld [vmem:[%s9 + $0x200] sm:$0xff]
      %v4159 = vld [vmem:[%s9 + $0x208] sm:$0xff]
      %v4160 = vld [vmem:[%s9 + $0x210] sm:$0xff]
      %v4161 = vld [vmem:[%s9 + $0x218] sm:$0xff]
      %v4162 = vld [vmem:[%s9 + $0x220] sm:$0xff]
      %v4163 = vld [vmem:[%s9 + $0x228] sm:$0xff]
      %v4164 = vld [vmem:[%s9 + $0x230] sm:$0xff]
      %v4165 = vld [vmem:[%s9 + $0x238] sm:$0xff]
      %v4166 = vld [vmem:[%s9 + $0x240] sm:$0xff]
      %v4167 = vld [vmem:[%s9 + $0x248] sm:$0xff]
      %v4168 = vld [vmem:[%s9 + $0x250] sm:$0xff]
      %v4169 = vld [vmem:[%s9 + $0x258] sm:$0xff]
      %v4170 = vld [vmem:[%s9 + $0x260] sm:$0xff]
      %v4171 = vld [vmem:[%s9 + $0x268] sm:$0xff]
      %v4172 = vld [vmem:[%s9 + $0x270] sm:$0xff]
      %v4173 = vld [vmem:[%s9 + $0x278] sm:$0xff]
      %v4174 = vld [vmem:[%s9 + $0x280] sm:$0xff]
      %v4175 = vld [vmem:[%s9 + $0x288] sm:$0xff]
      %v4176 = vld [vmem:[%s9 + $0x290] sm:$0xff]
      %v4177 = vld [vmem:[%s9 + $0x298] sm:$0xff]
      %v4178 = vld [vmem:[%s9 + $0x2a0] sm:$0xff]
      %v4179 = vld [vmem:[%s9 + $0x2a8] sm:$0xff]
      %v4180 = vld [vmem:[%s9 + $0x2b0] sm:$0xff]
      %v4181 = vld [vmem:[%s9 + $0x2b8] sm:$0xff]
      %v4182 = vld [vmem:[%s9 + $0x2c0] sm:$0xff]
      %v4183 = vld [vmem:[%s9 + $0x2c8] sm:$0xff]
      %v4184 = vld [vmem:[%s9 + $0x2d0] sm:$0xff]
      %v4185 = vld [vmem:[%s9 + $0x2d8] sm:$0xff]
      %v4186 = vld [vmem:[%s9 + $0x2e0] sm:$0xff]
      %v4187 = vld [vmem:[%s9 + $0x2e8] sm:$0xff]
      %v4188 = vld [vmem:[%s9 + $0x2f0] sm:$0xff]
      %v4189 = vld [vmem:[%s9 + $0x2f8] sm:$0xff]
      %v4190 = vld [vmem:[%s9 + $0x300] sm:$0xff]
      %v4191 = vld [vmem:[%s9 + $0x308] sm:$0xff]
      %v4192 = vld [vmem:[%s9 + $0x310] sm:$0xff]
      %v4193 = vld [vmem:[%s9 + $0x318] sm:$0xff]
      %v4194 = vld [vmem:[%s9 + $0x320] sm:$0xff]
      %v4195 = vld [vmem:[%s9 + $0x328] sm:$0xff]
      %v4196 = vld [vmem:[%s9 + $0x330] sm:$0xff]
      %v4197 = vld [vmem:[%s9 + $0x338] sm:$0xff]
      %v4198 = vld [vmem:[%s9 + $0x340] sm:$0xff]
      %v4199 = vld [vmem:[%s9 + $0x348] sm:$0xff]
      %v4200 = vld [vmem:[%s9 + $0x350] sm:$0xff]
      %v4201 = vld [vmem:[%s9 + $0x358] sm:$0xff]
      %v4202 = vld [vmem:[%s9 + $0x360] sm:$0xff]
      %v4203 = vld [vmem:[%s9 + $0x368] sm:$0xff]
      %v4204 = vld [vmem:[%s9 + $0x370] sm:$0xff]
      %v4205 = vld [vmem:[%s9 + $0x378] sm:$0xff]
      %v4206 = vld [vmem:[%s9 + $0x380] sm:$0xff]
      %v4207 = vld [vmem:[%s9 + $0x388] sm:$0xff]
      %v4208 = vld [vmem:[%s9 + $0x390] sm:$0xff]
      %v4209 = vld [vmem:[%s9 + $0x398] sm:$0xff]
      %v4210 = vld [vmem:[%s9 + $0x3a0] sm:$0xff]
      %v4211 = vld [vmem:[%s9 + $0x3a8] sm:$0xff]
      %v4212 = vld [vmem:[%s9 + $0x3b0] sm:$0xff]
      %v4213 = vld [vmem:[%s9 + $0x3b8] sm:$0xff]
      %v4214 = vld [vmem:[%s9 + $0x3c0] sm:$0xff]
      %v4215 = vld [vmem:[%s9 + $0x3c8] sm:$0xff]
      %v4216 = vld [vmem:[%s9 + $0x3d0] sm:$0xff]
      %v4217 = vld [vmem:[%s9 + $0x3d8] sm:$0xff]
      %v4218 = vld [vmem:[%s9 + $0x3e0] sm:$0xff]
      %v4219 = vld [vmem:[%s9 + $0x3e8] sm:$0xff]
      %v4220 = vld [vmem:[%s9 + $0x3f0] sm:$0xff]
      %v4221 = vld [vmem:[%s9 + $0x3f8] sm:$0xff]
      %v4222 = vld [vmem:[%s9 + $0x400] sm:$0xff]
      %v4223 = vld [vmem:[%s9 + $0x408] sm:$0xff]
      %v4224 = vld [vmem:[%s9 + $0x410] sm:$0xff]
      %v4225 = vld [vmem:[%s9 + $0x418] sm:$0xff]
      %v4226 = vld [vmem:[%s9 + $0x420] sm:$0xff]
      %v4227 = vld [vmem:[%s9 + $0x428] sm:$0xff]
      %v4228 = vld [vmem:[%s9 + $0x430] sm:$0xff]
      %v4229 = vld [vmem:[%s9 + $0x438] sm:$0xff]
      %v4230 = vld [vmem:[%s9 + $0x440] sm:$0xff]
      %v4231 = vld [vmem:[%s9 + $0x448] sm:$0xff]
      %v4232 = vld [vmem:[%s9 + $0x450] sm:$0xff]
      %v4233 = vld [vmem:[%s9 + $0x458] sm:$0xff]
      %v4234 = vld [vmem:[%s9 + $0x460] sm:$0xff]
      %v4235 = vld [vmem:[%s9 + $0x468] sm:$0xff]
      %v4236 = vld [vmem:[%s9 + $0x470] sm:$0xff]
      %v4237 = vld [vmem:[%s9 + $0x478] sm:$0xff]
      %v4238 = vld [vmem:[%s9 + $0x480] sm:$0xff]
      %v4239 = vld [vmem:[%s9 + $0x488] sm:$0xff]
      %v4240 = vld [vmem:[%s9 + $0x490] sm:$0xff]
      %v4241 = vld [vmem:[%s9 + $0x498] sm:$0xff]
      %v4242 = vld [vmem:[%s9 + $0x4a0] sm:$0xff]
      %v4243 = vld [vmem:[%s9 + $0x4a8] sm:$0xff]
      %v4244 = vld [vmem:[%s9 + $0x4b0] sm:$0xff]
      %v4245 = vld [vmem:[%s9 + $0x4b8] sm:$0xff]
      %v4246 = vld [vmem:[%s9 + $0x4c0] sm:$0xff]
      %v4247 = vld [vmem:[%s9 + $0x4c8] sm:$0xff]
      %v4248 = vld [vmem:[%s9 + $0x4d0] sm:$0xff]
      %v4249 = vld [vmem:[%s9 + $0x4d8] sm:$0xff]
      %v4250 = vld [vmem:[%s9 + $0x4e0] sm:$0xff]
      %v4251 = vld [vmem:[%s9 + $0x4e8] sm:$0xff]
      %v4252 = vld [vmem:[%s9 + $0x4f0] sm:$0xff]
      %v4253 = vld [vmem:[%s9 + $0x4f8] sm:$0xff]
      %v4254 = vld [vmem:[%s9 + $0x500] sm:$0xff]
      %v4255 = vld [vmem:[%s9 + $0x508] sm:$0xff]
      %v4256 = vld [vmem:[%s9 + $0x510] sm:$0xff]
      %v4257 = vld [vmem:[%s9 + $0x518] sm:$0xff]
      %v4258 = vld [vmem:[%s9 + $0x520] sm:$0xff]
      %v4259 = vld [vmem:[%s9 + $0x528] sm:$0xff]
      %v4260 = vld [vmem:[%s9 + $0x530] sm:$0xff]
      %v4261 = vld [vmem:[%s9 + $0x538] sm:$0xff]
      %v4262 = vld [vmem:[%s9 + $0x540] sm:$0xff]
      %v4263 = vld [vmem:[%s9 + $0x548] sm:$0xff]
      %v4264 = vld [vmem:[%s9 + $0x550] sm:$0xff]
      %v4265 = vld [vmem:[%s9 + $0x558] sm:$0xff]
      %v4266 = vld [vmem:[%s9 + $0x560] sm:$0xff]
      %v4267 = vld [vmem:[%s9 + $0x568] sm:$0xff]
      %v4268 = vld [vmem:[%s9 + $0x570] sm:$0xff]
      %v4269 = vld [vmem:[%s9 + $0x578] sm:$0xff]
      %v4270 = vld [vmem:[%s9 + $0x580] sm:$0xff]
      %v4271 = vld [vmem:[%s9 + $0x588] sm:$0xff]
      %v4272 = vld [vmem:[%s9 + $0x590] sm:$0xff]
      %v4273 = vld [vmem:[%s9 + $0x598] sm:$0xff]
      %v4274 = vld [vmem:[%s9 + $0x5a0] sm:$0xff]
      %v4275 = vld [vmem:[%s9 + $0x5a8] sm:$0xff]
      %v4276 = vld [vmem:[%s9 + $0x5b0] sm:$0xff]
      %v4277 = vld [vmem:[%s9 + $0x5b8] sm:$0xff]
      %v4278 = vld [vmem:[%s9 + $0x5c0] sm:$0xff]
      %v4279 = vld [vmem:[%s9 + $0x5c8] sm:$0xff]
      %v4280 = vld [vmem:[%s9 + $0x5d0] sm:$0xff]
      %v4281 = vld [vmem:[%s9 + $0x5d8] sm:$0xff]
      %v4282 = vld [vmem:[%s9 + $0x5e0] sm:$0xff]
      %v4283 = vld [vmem:[%s9 + $0x5e8] sm:$0xff]
      %v4284 = vld [vmem:[%s9 + $0x5f0] sm:$0xff]
      %v4285 = vld [vmem:[%s9 + $0x5f8] sm:$0xff]
      %v4286 = vld [vmem:[%s9 + $0x600] sm:$0xff]
      %v4287 = vld [vmem:[%s9 + $0x608] sm:$0xff]
      %v4288 = vld [vmem:[%s9 + $0x610] sm:$0xff]
      %v4289 = vld [vmem:[%s9 + $0x618] sm:$0xff]
      %v4290 = vld [vmem:[%s9 + $0x620] sm:$0xff]
      %v4291 = vld [vmem:[%s9 + $0x628] sm:$0xff]
      %v4292 = vld [vmem:[%s9 + $0x630] sm:$0xff]
      %v4293 = vld [vmem:[%s9 + $0x638] sm:$0xff]
      %v4294 = vld [vmem:[%s9 + $0x640] sm:$0xff]
      %v4295 = vld [vmem:[%s9 + $0x648] sm:$0xff]
      %v4296 = vld [vmem:[%s9 + $0x650] sm:$0xff]
      %v4297 = vld [vmem:[%s9 + $0x658] sm:$0xff]
      %v4298 = vld [vmem:[%s9 + $0x660] sm:$0xff]
      %v4299 = vld [vmem:[%s9 + $0x668] sm:$0xff]
      %v4300 = vld [vmem:[%s9 + $0x670] sm:$0xff]
      %v4301 = vld [vmem:[%s9 + $0x678] sm:$0xff]
      %v4302 = vld [vmem:[%s9 + $0x680] sm:$0xff]
      %v4303 = vld [vmem:[%s9 + $0x688] sm:$0xff]
      %v4304 = vld [vmem:[%s9 + $0x690] sm:$0xff]
      %v4305 = vld [vmem:[%s9 + $0x698] sm:$0xff]
      %v4306 = vld [vmem:[%s9 + $0x6a0] sm:$0xff]
      %v4307 = vld [vmem:[%s9 + $0x6a8] sm:$0xff]
      %v4308 = vld [vmem:[%s9 + $0x6b0] sm:$0xff]
      %v4309 = vld [vmem:[%s9 + $0x6b8] sm:$0xff]
      %v4310 = vld [vmem:[%s9 + $0x6c0] sm:$0xff]
      %v4311 = vld [vmem:[%s9 + $0x6c8] sm:$0xff]
      %v4312 = vld [vmem:[%s9 + $0x6d0] sm:$0xff]
      %v4313 = vld [vmem:[%s9 + $0x6d8] sm:$0xff]
      %v4314 = vld [vmem:[%s9 + $0x6e0] sm:$0xff]
      %v4315 = vld [vmem:[%s9 + $0x6e8] sm:$0xff]
      %v4316 = vld [vmem:[%s9 + $0x6f0] sm:$0xff]
      %v4317 = vld [vmem:[%s9 + $0x6f8] sm:$0xff]
      %v4318 = vld [vmem:[%s9 + $0x700] sm:$0xff]
      %v4319 = vld [vmem:[%s9 + $0x708] sm:$0xff]
      %v4320 = vld [vmem:[%s9 + $0x710] sm:$0xff]
      %v4321 = vld [vmem:[%s9 + $0x718] sm:$0xff]
      %v4322 = vld [vmem:[%s9 + $0x720] sm:$0xff]
      %v4323 = vld [vmem:[%s9 + $0x728] sm:$0xff]
      %v4324 = vld [vmem:[%s9 + $0x730] sm:$0xff]
      %v4325 = vld [vmem:[%s9 + $0x738] sm:$0xff]
      %v4326 = vld [vmem:[%s9 + $0x740] sm:$0xff]
      %v4327 = vld [vmem:[%s9 + $0x748] sm:$0xff]
      %v4328 = vld [vmem:[%s9 + $0x750] sm:$0xff]
      %v4329 = vld [vmem:[%s9 + $0x758] sm:$0xff]
      %v4330 = vld [vmem:[%s9 + $0x760] sm:$0xff]
      %v4331 = vld [vmem:[%s9 + $0x768] sm:$0xff]
      %v4332 = vld [vmem:[%s9 + $0x770] sm:$0xff]
      %v4333 = vld [vmem:[%s9 + $0x778] sm:$0xff]
      %v4334 = vld [vmem:[%s9 + $0x780] sm:$0xff]
      %v4335 = vld [vmem:[%s9 + $0x788] sm:$0xff]
      %v4336 = vld [vmem:[%s9 + $0x790] sm:$0xff]
      %v4337 = vld [vmem:[%s9 + $0x798] sm:$0xff]
      %v4338 = vld [vmem:[%s9 + $0x7a0] sm:$0xff]
      %v4339 = vld [vmem:[%s9 + $0x7a8] sm:$0xff]
      %v4340 = vld [vmem:[%s9 + $0x7b0] sm:$0xff]
      %v4341 = vld [vmem:[%s9 + $0x7b8] sm:$0xff]
      %v4342 = vld [vmem:[%s9 + $0x7c0] sm:$0xff]
      %v4343 = vld [vmem:[%s9 + $0x7c8] sm:$0xff]
      %v4344 = vld [vmem:[%s9 + $0x7d0] sm:$0xff]
      %v4345 = vld [vmem:[%s9 + $0x7d8] sm:$0xff]
      %v4346 = vld [vmem:[%s9 + $0x7e0] sm:$0xff]
      %v4347 = vld [vmem:[%s9 + $0x7e8] sm:$0xff]
      %v4348 = vld [vmem:[%s9 + $0x7f0] sm:$0xff]
      %v4349 = vld [vmem:[%s9 + $0x7f8] sm:$0xff]
      %v4350 = vld [vmem:[%s9 + $0x800] sm:$0xff]
      %v4351 = vld [vmem:[%s9 + $0x808] sm:$0xff]
      %v4352 = vld [vmem:[%s9 + $0x810] sm:$0xff]
      %v4353 = vld [vmem:[%s9 + $0x818] sm:$0xff]
      %v4354 = vld [vmem:[%s9 + $0x820] sm:$0xff]
      %v4355 = vld [vmem:[%s9 + $0x828] sm:$0xff]
      %v4356 = vld [vmem:[%s9 + $0x830] sm:$0xff]
      %v4357 = vld [vmem:[%s9 + $0x838] sm:$0xff]
      %v4358 = vld [vmem:[%s9 + $0x840] sm:$0xff]
      %v4359 = vld [vmem:[%s9 + $0x848] sm:$0xff]
      %v4360 = vld [vmem:[%s9 + $0x850] sm:$0xff]
      %v4361 = vld [vmem:[%s9 + $0x858] sm:$0xff]
      %v4362 = vld [vmem:[%s9 + $0x860] sm:$0xff]
      %v4363 = vld [vmem:[%s9 + $0x868] sm:$0xff]
      %v4364 = vld [vmem:[%s9 + $0x870] sm:$0xff]
      %v4365 = vld [vmem:[%s9 + $0x878] sm:$0xff]
      %v4366 = vld [vmem:[%s9 + $0x880] sm:$0xff]
      %v4367 = vld [vmem:[%s9 + $0x888] sm:$0xff]
      %v4368 = vld [vmem:[%s9 + $0x890] sm:$0xff]
      %v4369 = vld [vmem:[%s9 + $0x898] sm:$0xff]
      %v4370 = vld [vmem:[%s9 + $0x8a0] sm:$0xff]
      %v4371 = vld [vmem:[%s9 + $0x8a8] sm:$0xff]
      %v4372 = vld [vmem:[%s9 + $0x8b0] sm:$0xff]
      %v4373 = vld [vmem:[%s9 + $0x8b8] sm:$0xff]
      %v4374 = vld [vmem:[%s9 + $0x8c0] sm:$0xff]
      %v4375 = vld [vmem:[%s9 + $0x8c8] sm:$0xff]
      %v4376 = vld [vmem:[%s9 + $0x8d0] sm:$0xff]
      %v4377 = vld [vmem:[%s9 + $0x8d8] sm:$0xff]
      %v4378 = vld [vmem:[%s9 + $0x8e0] sm:$0xff]
      %v4379 = vld [vmem:[%s9 + $0x8e8] sm:$0xff]
      %v4380 = vld [vmem:[%s9 + $0x8f0] sm:$0xff]
      %v4381 = vld [vmem:[%s9 + $0x8f8] sm:$0xff]
      %v4382 = vld [vmem:[%s9 + $0x900] sm:$0xff]
      %v4383 = vld [vmem:[%s9 + $0x908] sm:$0xff]
      %v4384 = vld [vmem:[%s9 + $0x910] sm:$0xff]
      %v4385 = vld [vmem:[%s9 + $0x918] sm:$0xff]
      %v4386 = vld [vmem:[%s9 + $0x920] sm:$0xff]
      %v4387 = vld [vmem:[%s9 + $0x928] sm:$0xff]
      %v4388 = vld [vmem:[%s9 + $0x930] sm:$0xff]
      %v4389 = vld [vmem:[%s9 + $0x938] sm:$0xff]
      %v4390 = vld [vmem:[%s9 + $0x940] sm:$0xff]
      %v4391 = vld [vmem:[%s9 + $0x948] sm:$0xff]
      %v4392 = vld [vmem:[%s9 + $0x950] sm:$0xff]
      %v4393 = vld [vmem:[%s9 + $0x958] sm:$0xff]
      %v4394 = vld [vmem:[%s9 + $0x960] sm:$0xff]
      %v4395 = vld [vmem:[%s9 + $0x968] sm:$0xff]
      %v4396 = vld [vmem:[%s9 + $0x970] sm:$0xff]
      %v4397 = vld [vmem:[%s9 + $0x978] sm:$0xff]
      %v4398 = vld [vmem:[%s9 + $0x980] sm:$0xff]
      %v4399 = vld [vmem:[%s9 + $0x988] sm:$0xff]
      %v4400 = vld [vmem:[%s9 + $0x990] sm:$0xff]
      %v4401 = vld [vmem:[%s9 + $0x998] sm:$0xff]
      %v4402 = vld [vmem:[%s9 + $0x9a0] sm:$0xff]
      %v4403 = vld [vmem:[%s9 + $0x9a8] sm:$0xff]
      %v4404 = vld [vmem:[%s9 + $0x9b0] sm:$0xff]
      %v4405 = vld [vmem:[%s9 + $0x9b8] sm:$0xff]
      %v4406 = vld [vmem:[%s9 + $0x9c0] sm:$0xff]
      %v4407 = vld [vmem:[%s9 + $0x9c8] sm:$0xff]
      %v4408 = vld [vmem:[%s9 + $0x9d0] sm:$0xff]
      %v4409 = vld [vmem:[%s9 + $0x9d8] sm:$0xff]
      %v4410 = vld [vmem:[%s9 + $0x9e0] sm:$0xff]
      %v4411 = vld [vmem:[%s9 + $0x9e8] sm:$0xff]
      %v4412 = vld [vmem:[%s9 + $0x9f0] sm:$0xff]
      %v4413 = vld [vmem:[%s9 + $0x9f8] sm:$0xff]
      %v4414 = vld [vmem:[%s9 + $0xa00] sm:$0xff]
      %v4415 = vld [vmem:[%s9 + $0xa08] sm:$0xff]
      %v4416 = vld [vmem:[%s9 + $0xa10] sm:$0xff]
      %v4417 = vld [vmem:[%s9 + $0xa18] sm:$0xff]
      %v4418 = vld [vmem:[%s9 + $0xa20] sm:$0xff]
      %v4419 = vld [vmem:[%s9 + $0xa28] sm:$0xff]
      %v4420 = vld [vmem:[%s9 + $0xa30] sm:$0xff]
      %v4421 = vld [vmem:[%s9 + $0xa38] sm:$0xff]
      %v4422 = vld [vmem:[%s9 + $0xa40] sm:$0xff]
      %v4423 = vld [vmem:[%s9 + $0xa48] sm:$0xff]
      %v4424 = vld [vmem:[%s9 + $0xa50] sm:$0xff]
      %v4425 = vld [vmem:[%s9 + $0xa58] sm:$0xff]
      %v4426 = vld [vmem:[%s9 + $0xa60] sm:$0xff]
      %v4427 = vld [vmem:[%s9 + $0xa68] sm:$0xff]
      %v4428 = vld [vmem:[%s9 + $0xa70] sm:$0xff]
      %v4429 = vld [vmem:[%s9 + $0xa78] sm:$0xff]
      %v4430 = vld [vmem:[%s9 + $0xa80] sm:$0xff]
      %v4431 = vld [vmem:[%s9 + $0xa88] sm:$0xff]
      %v4432 = vld [vmem:[%s9 + $0xa90] sm:$0xff]
      %v4433 = vld [vmem:[%s9 + $0xa98] sm:$0xff]
      %v4434 = vld [vmem:[%s9 + $0xaa0] sm:$0xff]
      %v4435 = vld [vmem:[%s9 + $0xaa8] sm:$0xff]
      %v4436 = vld [vmem:[%s9 + $0xab0] sm:$0xff]
      %v4437 = vld [vmem:[%s9 + $0xab8] sm:$0xff]
      %v4438 = vld [vmem:[%s9 + $0xac0] sm:$0xff]
      %v4439 = vld [vmem:[%s9 + $0xac8] sm:$0xff]
      %v4440 = vld [vmem:[%s9 + $0xad0] sm:$0xff]
      %v4441 = vld [vmem:[%s9 + $0xad8] sm:$0xff]
      %v4442 = vld [vmem:[%s9 + $0xae0] sm:$0xff]
      %v4443 = vld [vmem:[%s9 + $0xae8] sm:$0xff]
      %v4444 = vld [vmem:[%s9 + $0xaf0] sm:$0xff]
      %v4445 = vld [vmem:[%s9 + $0xaf8] sm:$0xff]
      %v4446 = vld [vmem:[%s9 + $0xb00] sm:$0xff]
      %v4447 = vld [vmem:[%s9 + $0xb08] sm:$0xff]
      %v4448 = vld [vmem:[%s9 + $0xb10] sm:$0xff]
      %v4449 = vld [vmem:[%s9 + $0xb18] sm:$0xff]
      %v4450 = vld [vmem:[%s9 + $0xb20] sm:$0xff]
      %v4451 = vld [vmem:[%s9 + $0xb28] sm:$0xff]
      %v4452 = vld [vmem:[%s9 + $0xb30] sm:$0xff]
      %v4453 = vld [vmem:[%s9 + $0xb38] sm:$0xff]
      %v4454 = vld [vmem:[%s9 + $0xb40] sm:$0xff]
      %v4455 = vld [vmem:[%s9 + $0xb48] sm:$0xff]
      %v4456 = vld [vmem:[%s9 + $0xb50] sm:$0xff]
      %v4457 = vld [vmem:[%s9 + $0xb58] sm:$0xff]
      %v4458 = vld [vmem:[%s9 + $0xb60] sm:$0xff]
      %v4459 = vld [vmem:[%s9 + $0xb68] sm:$0xff]
      %v4460 = vld [vmem:[%s9 + $0xb70] sm:$0xff]
      %v4461 = vld [vmem:[%s9 + $0xb78] sm:$0xff]
      %v4462 = vld [vmem:[%s9 + $0xb80] sm:$0xff]
      %v4463 = vld [vmem:[%s9 + $0xb88] sm:$0xff]
      %v4464 = vld [vmem:[%s9 + $0xb90] sm:$0xff]
      %v4465 = vld [vmem:[%s9 + $0xb98] sm:$0xff]
      %v4466 = vld [vmem:[%s9 + $0xba0] sm:$0xff]
      %v4467 = vld [vmem:[%s9 + $0xba8] sm:$0xff]
      %v4468 = vld [vmem:[%s9 + $0xbb0] sm:$0xff]
      %v4469 = vld [vmem:[%s9 + $0xbb8] sm:$0xff]
      %v4470 = vld [vmem:[%s9 + $0xbc0] sm:$0xff]
      %v4471 = vld [vmem:[%s9 + $0xbc8] sm:$0xff]
      %v4472 = vld [vmem:[%s9 + $0xbd0] sm:$0xff]
      %v4473 = vld [vmem:[%s9 + $0xbd8] sm:$0xff]
      %v4474 = vld [vmem:[%s9 + $0xbe0] sm:$0xff]
      %v4475 = vld [vmem:[%s9 + $0xbe8] sm:$0xff]
      %v4476 = vld [vmem:[%s9 + $0xbf0] sm:$0xff]
      %v4477 = vld [vmem:[%s9 + $0xbf8] sm:$0xff]
      %v4478 = vld [vmem:[%s9 + $0xc00] sm:$0xff]
      %v4479 = vld [vmem:[%s9 + $0xc08] sm:$0xff]
      %v4480 = vld [vmem:[%s9 + $0xc10] sm:$0xff]
      %v4481 = vld [vmem:[%s9 + $0xc18] sm:$0xff]
      %v4482 = vld [vmem:[%s9 + $0xc20] sm:$0xff]
      %v4483 = vld [vmem:[%s9 + $0xc28] sm:$0xff]
      %v4484 = vld [vmem:[%s9 + $0xc30] sm:$0xff]
      %v4485 = vld [vmem:[%s9 + $0xc38] sm:$0xff]
      %v4486 = vld [vmem:[%s9 + $0xc40] sm:$0xff]
      %v4487 = vld [vmem:[%s9 + $0xc48] sm:$0xff]
      %v4488 = vld [vmem:[%s9 + $0xc50] sm:$0xff]
      %v4489 = vld [vmem:[%s9 + $0xc58] sm:$0xff]
      %v4490 = vld [vmem:[%s9 + $0xc60] sm:$0xff]
      %v4491 = vld [vmem:[%s9 + $0xc68] sm:$0xff]
      %v4492 = vld [vmem:[%s9 + $0xc70] sm:$0xff]
      %v4493 = vld [vmem:[%s9 + $0xc78] sm:$0xff]
      %v4494 = vld [vmem:[%s9 + $0xc80] sm:$0xff]
      %v4495 = vld [vmem:[%s9 + $0xc88] sm:$0xff]
      %v4496 = vld [vmem:[%s9 + $0xc90] sm:$0xff]
      %v4497 = vld [vmem:[%s9 + $0xc98] sm:$0xff]
      %v4498 = vld [vmem:[%s9 + $0xca0] sm:$0xff]
      %v4499 = vld [vmem:[%s9 + $0xca8] sm:$0xff]
      %v4500 = vld [vmem:[%s9 + $0xcb0] sm:$0xff]
      %v4501 = vld [vmem:[%s9 + $0xcb8] sm:$0xff]
      %v4502 = vld [vmem:[%s9 + $0xcc0] sm:$0xff]
      %v4503 = vld [vmem:[%s9 + $0xcc8] sm:$0xff]
      %v4504 = vld [vmem:[%s9 + $0xcd0] sm:$0xff]
      %v4505 = vld [vmem:[%s9 + $0xcd8] sm:$0xff]
      %v4506 = vld [vmem:[%s9 + $0xce0] sm:$0xff]
      %v4507 = vld [vmem:[%s9 + $0xce8] sm:$0xff]
      %v4508 = vld [vmem:[%s9 + $0xcf0] sm:$0xff]
      %v4509 = vld [vmem:[%s9 + $0xcf8] sm:$0xff]
      %v4510 = vld [vmem:[%s9 + $0xd00] sm:$0xff]
      %v4511 = vld [vmem:[%s9 + $0xd08] sm:$0xff]
      %v4512 = vld [vmem:[%s9 + $0xd10] sm:$0xff]
      %v4513 = vld [vmem:[%s9 + $0xd18] sm:$0xff]
      %v4514 = vld [vmem:[%s9 + $0xd20] sm:$0xff]
      %v4515 = vld [vmem:[%s9 + $0xd28] sm:$0xff]
      %v4516 = vld [vmem:[%s9 + $0xd30] sm:$0xff]
      %v4517 = vld [vmem:[%s9 + $0xd38] sm:$0xff]
      %v4518 = vld [vmem:[%s9 + $0xd40] sm:$0xff]
      %v4519 = vld [vmem:[%s9 + $0xd48] sm:$0xff]
      %v4520 = vld [vmem:[%s9 + $0xd50] sm:$0xff]
      %v4521 = vld [vmem:[%s9 + $0xd58] sm:$0xff]
      %v4522 = vld [vmem:[%s9 + $0xd60] sm:$0xff]
      %v4523 = vld [vmem:[%s9 + $0xd68] sm:$0xff]
      %v4524 = vld [vmem:[%s9 + $0xd70] sm:$0xff]
      %v4525 = vld [vmem:[%s9 + $0xd78] sm:$0xff]
      %v4526 = vld [vmem:[%s9 + $0xd80] sm:$0xff]
      %v4527 = vld [vmem:[%s9 + $0xd88] sm:$0xff]
      %v4528 = vld [vmem:[%s9 + $0xd90] sm:$0xff]
      %v4529 = vld [vmem:[%s9 + $0xd98] sm:$0xff]
      %v4530 = vld [vmem:[%s9 + $0xda0] sm:$0xff]
      %v4531 = vld [vmem:[%s9 + $0xda8] sm:$0xff]
      %v4532 = vld [vmem:[%s9 + $0xdb0] sm:$0xff]
      %v4533 = vld [vmem:[%s9 + $0xdb8] sm:$0xff]
      %v4534 = vld [vmem:[%s9 + $0xdc0] sm:$0xff]
      %v4535 = vld [vmem:[%s9 + $0xdc8] sm:$0xff]
      %v4536 = vld [vmem:[%s9 + $0xdd0] sm:$0xff]
      %v4537 = vld [vmem:[%s9 + $0xdd8] sm:$0xff]
      %v4538 = vld [vmem:[%s9 + $0xde0] sm:$0xff]
      %v4539 = vld [vmem:[%s9 + $0xde8] sm:$0xff]
      %v4540 = vld [vmem:[%s9 + $0xdf0] sm:$0xff]
      %v4541 = vld [vmem:[%s9 + $0xdf8] sm:$0xff]
      %v4542 = vld [vmem:[%s9 + $0xe00] sm:$0xff]
      %v4543 = vld [vmem:[%s9 + $0xe08] sm:$0xff]
      %v4544 = vld [vmem:[%s9 + $0xe10] sm:$0xff]
      %v4545 = vld [vmem:[%s9 + $0xe18] sm:$0xff]
      %v4546 = vld [vmem:[%s9 + $0xe20] sm:$0xff]
      %v4547 = vld [vmem:[%s9 + $0xe28] sm:$0xff]
      %v4548 = vld [vmem:[%s9 + $0xe30] sm:$0xff]
      %v4549 = vld [vmem:[%s9 + $0xe38] sm:$0xff]
      %v4550 = vld [vmem:[%s9 + $0xe40] sm:$0xff]
      %v4551 = vld [vmem:[%s9 + $0xe48] sm:$0xff]
      %v4552 = vld [vmem:[%s9 + $0xe50] sm:$0xff]
      %v4553 = vld [vmem:[%s9 + $0xe58] sm:$0xff]
      %v4554 = vld [vmem:[%s9 + $0xe60] sm:$0xff]
      %v4555 = vld [vmem:[%s9 + $0xe68] sm:$0xff]
      %v4556 = vld [vmem:[%s9 + $0xe70] sm:$0xff]
      %v4557 = vld [vmem:[%s9 + $0xe78] sm:$0xff]
      %v4558 = vld [vmem:[%s9 + $0xe80] sm:$0xff]
      %v4559 = vld [vmem:[%s9 + $0xe88] sm:$0xff]
      %v4560 = vld [vmem:[%s9 + $0xe90] sm:$0xff]
      %v4561 = vld [vmem:[%s9 + $0xe98] sm:$0xff]
      %v4562 = vld [vmem:[%s9 + $0xea0] sm:$0xff]
      %v4563 = vld [vmem:[%s9 + $0xea8] sm:$0xff]
      %v4564 = vld [vmem:[%s9 + $0xeb0] sm:$0xff]
      %v4565 = vld [vmem:[%s9 + $0xeb8] sm:$0xff]
      %v4566 = vld [vmem:[%s9 + $0xec0] sm:$0xff]
      %v4567 = vld [vmem:[%s9 + $0xec8] sm:$0xff]
      %v4568 = vld [vmem:[%s9 + $0xed0] sm:$0xff]
      %v4569 = vld [vmem:[%s9 + $0xed8] sm:$0xff]
      %v4570 = vld [vmem:[%s9 + $0xee0] sm:$0xff]
      %v4571 = vld [vmem:[%s9 + $0xee8] sm:$0xff]
      %v4572 = vld [vmem:[%s9 + $0xef0] sm:$0xff]
      %v4573 = vld [vmem:[%s9 + $0xef8] sm:$0xff]
      %v4574 = vld [vmem:[%s9 + $0xf00] sm:$0xff]
      %v4575 = vld [vmem:[%s9 + $0xf08] sm:$0xff]
      %v4576 = vld [vmem:[%s9 + $0xf10] sm:$0xff]
      %v4577 = vld [vmem:[%s9 + $0xf18] sm:$0xff]
      %v4578 = vld [vmem:[%s9 + $0xf20] sm:$0xff]
      %v4579 = vld [vmem:[%s9 + $0xf28] sm:$0xff]
      %v4580 = vld [vmem:[%s9 + $0xf30] sm:$0xff]
      %v4581 = vld [vmem:[%s9 + $0xf38] sm:$0xff]
      %v4582 = vld [vmem:[%s9 + $0xf40] sm:$0xff]
      %v4583 = vld [vmem:[%s9 + $0xf48] sm:$0xff]
      %v4584 = vld [vmem:[%s9 + $0xf50] sm:$0xff]
      %v4585 = vld [vmem:[%s9 + $0xf58] sm:$0xff]
      %v4586 = vld [vmem:[%s9 + $0xf60] sm:$0xff]
      %v4587 = vld [vmem:[%s9 + $0xf68] sm:$0xff]
      %v4588 = vld [vmem:[%s9 + $0xf70] sm:$0xff]
      %v4589 = vld [vmem:[%s9 + $0xf78] sm:$0xff]
      %v4590 = vld [vmem:[%s9 + $0xf80] sm:$0xff]
      %v4591 = vld [vmem:[%s9 + $0xf88] sm:$0xff]
      %v4592 = vld [vmem:[%s9 + $0xf90] sm:$0xff]
      %v4593 = vld [vmem:[%s9 + $0xf98] sm:$0xff]
      %v4594 = vld [vmem:[%s9 + $0xfa0] sm:$0xff]
      %v4595 = vld [vmem:[%s9 + $0xfa8] sm:$0xff]
      %v4596 = vld [vmem:[%s9 + $0xfb0] sm:$0xff]
      %v4597 = vld [vmem:[%s9 + $0xfb8] sm:$0xff]
      %v4598 = vld [vmem:[%s9 + $0xfc0] sm:$0xff]
      %v4599 = vld [vmem:[%s9 + $0xfc8] sm:$0xff]
      %v4600 = vld [vmem:[%s9 + $0xfd0] sm:$0xff]
      %v4601 = vld [vmem:[%s9 + $0xfd8] sm:$0xff]
      %v4602 = vld [vmem:[%s9 + $0xfe0] sm:$0xff]
      %v4603 = vld [vmem:[%s9 + $0xfe8] sm:$0xff]
      %v4604 = vld [vmem:[%s9 + $0xff0] sm:$0xff]
      %v4605 = vld [vmem:[%s9 + $0xff8] sm:$0xff]
      %v4606 = vld [vmem:[%s9 + $0x1000] sm:$0xff]
      %v4607 = vld [vmem:[%s9 + $0x1008] sm:$0xff]
      %v4608 = vld [vmem:[%s9 + $0x1010] sm:$0xff]
      %v4609 = vld [vmem:[%s9 + $0x1018] sm:$0xff]
      %v4610 = vld [vmem:[%s9 + $0x1020] sm:$0xff]
      %v4611 = vld [vmem:[%s9 + $0x1028] sm:$0xff]
      %v4612 = vld [vmem:[%s9 + $0x1030] sm:$0xff]
      %v4613 = vld [vmem:[%s9 + $0x1038] sm:$0xff]
      %v4614 = vld [vmem:[%s9 + $0x1040] sm:$0xff]
      %v4615 = vld [vmem:[%s9 + $0x1048] sm:$0xff]
      %v4616 = vld [vmem:[%s9 + $0x1050] sm:$0xff]
      %v4617 = vld [vmem:[%s9 + $0x1058] sm:$0xff]
      %v4618 = vld [vmem:[%s9 + $0x1060] sm:$0xff]
      %v4619 = vld [vmem:[%s9 + $0x1068] sm:$0xff]
      %v4620 = vld [vmem:[%s9 + $0x1070] sm:$0xff]
      %v4621 = vld [vmem:[%s9 + $0x1078] sm:$0xff]
      %v4622 = vld [vmem:[%s9 + $0x1080] sm:$0xff]
      %v4623 = vld [vmem:[%s9 + $0x1088] sm:$0xff]
      %v4624 = vld [vmem:[%s9 + $0x1090] sm:$0xff]
      %v4625 = vld [vmem:[%s9 + $0x1098] sm:$0xff]
      %v4626 = vld [vmem:[%s9 + $0x10a0] sm:$0xff]
      %v4627 = vld [vmem:[%s9 + $0x10a8] sm:$0xff]
      %v4628 = vld [vmem:[%s9 + $0x10b0] sm:$0xff]
      %v4629 = vld [vmem:[%s9 + $0x10b8] sm:$0xff]
      %v4630 = vld [vmem:[%s9 + $0x10c0] sm:$0xff]
      %v4631 = vld [vmem:[%s9 + $0x10c8] sm:$0xff]
      %v4632 = vld [vmem:[%s9 + $0x10d0] sm:$0xff]
      %v4633 = vld [vmem:[%s9 + $0x10d8] sm:$0xff]
      %v4634 = vld [vmem:[%s9 + $0x10e0] sm:$0xff]
      %v4635 = vld [vmem:[%s9 + $0x10e8] sm:$0xff]
      %v4636 = vld [vmem:[%s9 + $0x10f0] sm:$0xff]
      %v4637 = vld [vmem:[%s9 + $0x10f8] sm:$0xff]
      %v4638 = vld [vmem:[%s9 + $0x1100] sm:$0xff]
      %v4639 = vld [vmem:[%s9 + $0x1108] sm:$0xff]
      %v4640 = vld [vmem:[%s9 + $0x1110] sm:$0xff]
      %v4641 = vld [vmem:[%s9 + $0x1118] sm:$0xff]
      %v4642 = vld [vmem:[%s9 + $0x1120] sm:$0xff]
      %v4643 = vld [vmem:[%s9 + $0x1128] sm:$0xff]
      %v4644 = vld [vmem:[%s9 + $0x1130] sm:$0xff]
      %v4645 = vld [vmem:[%s9 + $0x1138] sm:$0xff]
      %v4646 = vld [vmem:[%s9 + $0x1140] sm:$0xff]
      %v4647 = vld [vmem:[%s9 + $0x1148] sm:$0xff]
      %v4648 = vld [vmem:[%s9 + $0x1150] sm:$0xff]
      %v4649 = vld [vmem:[%s9 + $0x1158] sm:$0xff]
      %v4650 = vld [vmem:[%s9 + $0x1160] sm:$0xff]
      %v4651 = vld [vmem:[%s9 + $0x1168] sm:$0xff]
      %v4652 = vld [vmem:[%s9 + $0x1170] sm:$0xff]
      %v4653 = vld [vmem:[%s9 + $0x1178] sm:$0xff]
      %v4654 = vld [vmem:[%s9 + $0x1180] sm:$0xff]
      %v4655 = vld [vmem:[%s9 + $0x1188] sm:$0xff]
      %v4656 = vld [vmem:[%s9 + $0x1190] sm:$0xff]
      %v4657 = vld [vmem:[%s9 + $0x1198] sm:$0xff]
      %v4658 = vld [vmem:[%s9 + $0x11a0] sm:$0xff]
      %v4659 = vld [vmem:[%s9 + $0x11a8] sm:$0xff]
      %v4660 = vld [vmem:[%s9 + $0x11b0] sm:$0xff]
      %v4661 = vld [vmem:[%s9 + $0x11b8] sm:$0xff]
      %v4662 = vld [vmem:[%s9 + $0x11c0] sm:$0xff]
      %v4663 = vld [vmem:[%s9 + $0x11c8] sm:$0xff]
      %v4664 = vld [vmem:[%s9 + $0x11d0] sm:$0xff]
      %v4665 = vld [vmem:[%s9 + $0x11d8] sm:$0xff]
      %v4666 = vld [vmem:[%s9 + $0x11e0] sm:$0xff]
      %v4667 = vld [vmem:[%s9 + $0x11e8] sm:$0xff]
      %v4668 = vld [vmem:[%s9 + $0x11f0] sm:$0xff]
      %v4669 = vld [vmem:[%s9 + $0x11f8] sm:$0xff]
      %v4670 = vld [vmem:[%s9 + $0x1200] sm:$0xff]
      %v4671 = vld [vmem:[%s9 + $0x1208] sm:$0xff]
      %v4672 = vld [vmem:[%s9 + $0x1210] sm:$0xff]
      %v4673 = vld [vmem:[%s9 + $0x1218] sm:$0xff]
      %v4674 = vld [vmem:[%s9 + $0x1220] sm:$0xff]
      %v4675 = vld [vmem:[%s9 + $0x1228] sm:$0xff]
      %v4676 = vld [vmem:[%s9 + $0x1230] sm:$0xff]
      %v4677 = vld [vmem:[%s9 + $0x1238] sm:$0xff]
      %v4678 = vld [vmem:[%s9 + $0x1240] sm:$0xff]
      %v4679 = vld [vmem:[%s9 + $0x1248] sm:$0xff]
      %v4680 = vld [vmem:[%s9 + $0x1250] sm:$0xff]
      %v4681 = vld [vmem:[%s9 + $0x1258] sm:$0xff]
      %v4682 = vld [vmem:[%s9 + $0x1260] sm:$0xff]
      %v4683 = vld [vmem:[%s9 + $0x1268] sm:$0xff]
      %v4684 = vld [vmem:[%s9 + $0x1270] sm:$0xff]
      %v4685 = vld [vmem:[%s9 + $0x1278] sm:$0xff]
      %v4686 = vld [vmem:[%s9 + $0x1280] sm:$0xff]
      %v4687 = vld [vmem:[%s9 + $0x1288] sm:$0xff]
      %v4688 = vld [vmem:[%s9 + $0x1290] sm:$0xff]
      %v4689 = vld [vmem:[%s9 + $0x1298] sm:$0xff]
      %v4690 = vld [vmem:[%s9 + $0x12a0] sm:$0xff]
      %v4691 = vld [vmem:[%s9 + $0x12a8] sm:$0xff]
      %v4692 = vld [vmem:[%s9 + $0x12b0] sm:$0xff]
      %v4693 = vld [vmem:[%s9 + $0x12b8] sm:$0xff]
      %v4694 = vld [vmem:[%s9 + $0x12c0] sm:$0xff]
      %v4695 = vld [vmem:[%s9 + $0x12c8] sm:$0xff]
      %v4696 = vld [vmem:[%s9 + $0x12d0] sm:$0xff]
      %v4697 = vld [vmem:[%s9 + $0x12d8] sm:$0xff]
      %v4698 = vld [vmem:[%s9 + $0x12e0] sm:$0xff]
      %v4699 = vld [vmem:[%s9 + $0x12e8] sm:$0xff]
      %v4700 = vld [vmem:[%s9 + $0x12f0] sm:$0xff]
      %v4701 = vld [vmem:[%s9 + $0x12f8] sm:$0xff]
      %v4702 = vld [vmem:[%s9 + $0x1300] sm:$0xff]
      %v4703 = vld [vmem:[%s9 + $0x1308] sm:$0xff]
      %v4704 = vld [vmem:[%s9 + $0x1310] sm:$0xff]
      %v4705 = vld [vmem:[%s9 + $0x1318] sm:$0xff]
      %v4706 = vld [vmem:[%s9 + $0x1320] sm:$0xff]
      %v4707 = vld [vmem:[%s9 + $0x1328] sm:$0xff]
      %v4708 = vld [vmem:[%s9 + $0x1330] sm:$0xff]
      %v4709 = vld [vmem:[%s9 + $0x1338] sm:$0xff]
      %v4710 = vld [vmem:[%s9 + $0x1340] sm:$0xff]
      %v4711 = vld [vmem:[%s9 + $0x1348] sm:$0xff]
      %v4712 = vld [vmem:[%s9 + $0x1350] sm:$0xff]
      %v4713 = vld [vmem:[%s9 + $0x1358] sm:$0xff]
      %v4714 = vld [vmem:[%s9 + $0x1360] sm:$0xff]
      %v4715 = vld [vmem:[%s9 + $0x1368] sm:$0xff]
      %v4716 = vld [vmem:[%s9 + $0x1370] sm:$0xff]
      %v4717 = vld [vmem:[%s9 + $0x1378] sm:$0xff]
      %v4718 = vld [vmem:[%s9 + $0x1380] sm:$0xff]
      %v4719 = vld [vmem:[%s9 + $0x1388] sm:$0xff]
      %v4720 = vld [vmem:[%s9 + $0x1390] sm:$0xff]
      %v4721 = vld [vmem:[%s9 + $0x1398] sm:$0xff]
      %v4722 = vld [vmem:[%s9 + $0x13a0] sm:$0xff]
      %v4723 = vld [vmem:[%s9 + $0x13a8] sm:$0xff]
      %v4724 = vld [vmem:[%s9 + $0x13b0] sm:$0xff]
      %v4725 = vld [vmem:[%s9 + $0x13b8] sm:$0xff]
      %v4726 = vld [vmem:[%s9 + $0x13c0] sm:$0xff]
      %v4727 = vld [vmem:[%s9 + $0x13c8] sm:$0xff]
      %v4728 = vld [vmem:[%s9 + $0x13d0] sm:$0xff]
      %v4729 = vld [vmem:[%s9 + $0x13d8] sm:$0xff]
      %v4730 = vld [vmem:[%s9 + $0x13e0] sm:$0xff]
      %v4731 = vld [vmem:[%s9 + $0x13e8] sm:$0xff]
      %v4732 = vld [vmem:[%s9 + $0x13f0] sm:$0xff]
      %v4733 = vld [vmem:[%s9 + $0x13f8] sm:$0xff]
      %v4734 = vld [vmem:[%s9 + $0x1400] sm:$0xff]
      %v4735 = vld [vmem:[%s9 + $0x1408] sm:$0xff]
      %v4736 = vld [vmem:[%s9 + $0x1410] sm:$0xff]
      %v4737 = vld [vmem:[%s9 + $0x1418] sm:$0xff]
      %v4738 = vld [vmem:[%s9 + $0x1420] sm:$0xff]
      %v4739 = vld [vmem:[%s9 + $0x1428] sm:$0xff]
      %v4740 = vld [vmem:[%s9 + $0x1430] sm:$0xff]
      %v4741 = vld [vmem:[%s9 + $0x1438] sm:$0xff]
      %v4742 = vld [vmem:[%s9 + $0x1440] sm:$0xff]
      %v4743 = vld [vmem:[%s9 + $0x1448] sm:$0xff]
      %v4744 = vld [vmem:[%s9 + $0x1450] sm:$0xff]
      %v4745 = vld [vmem:[%s9 + $0x1458] sm:$0xff]
      %v4746 = vld [vmem:[%s9 + $0x1460] sm:$0xff]
      %v4747 = vld [vmem:[%s9 + $0x1468] sm:$0xff]
      %v4748 = vld [vmem:[%s9 + $0x1470] sm:$0xff]
      %v4749 = vld [vmem:[%s9 + $0x1478] sm:$0xff]
      %v4750 = vld [vmem:[%s9 + $0x1480] sm:$0xff]
      %v4751 = vld [vmem:[%s9 + $0x1488] sm:$0xff]
      %v4752 = vld [vmem:[%s9 + $0x1490] sm:$0xff]
      %v4753 = vld [vmem:[%s9 + $0x1498] sm:$0xff]
      %v4754 = vld [vmem:[%s9 + $0x14a0] sm:$0xff]
      %v4755 = vld [vmem:[%s9 + $0x14a8] sm:$0xff]
      %v4756 = vld [vmem:[%s9 + $0x14b0] sm:$0xff]
      %v4757 = vld [vmem:[%s9 + $0x14b8] sm:$0xff]
      %v4758 = vld [vmem:[%s9 + $0x14c0] sm:$0xff]
      %v4759 = vld [vmem:[%s9 + $0x14c8] sm:$0xff]
      %v4760 = vld [vmem:[%s9 + $0x14d0] sm:$0xff]
      %v4761 = vld [vmem:[%s9 + $0x14d8] sm:$0xff]
      %v4762 = vld [vmem:[%s9 + $0x14e0] sm:$0xff]
      %v4763 = vld [vmem:[%s9 + $0x14e8] sm:$0xff]
      %v4764 = vld [vmem:[%s9 + $0x14f0] sm:$0xff]
      %v4765 = vld [vmem:[%s9 + $0x14f8] sm:$0xff]
      %v4766 = vld [vmem:[%s9 + $0x1500] sm:$0xff]
      %v4767 = vld [vmem:[%s9 + $0x1508] sm:$0xff]
      %v4768 = vld [vmem:[%s9 + $0x1510] sm:$0xff]
      %v4769 = vld [vmem:[%s9 + $0x1518] sm:$0xff]
      %v4770 = vld [vmem:[%s9 + $0x1520] sm:$0xff]
      %v4771 = vld [vmem:[%s9 + $0x1528] sm:$0xff]
      %v4772 = vld [vmem:[%s9 + $0x1530] sm:$0xff]
      %v4773 = vld [vmem:[%s9 + $0x1538] sm:$0xff]
      %v4774 = vld [vmem:[%s9 + $0x1540] sm:$0xff]
      %v4775 = vld [vmem:[%s9 + $0x1548] sm:$0xff]
      %v4776 = vld [vmem:[%s9 + $0x1550] sm:$0xff]
      %v4777 = vld [vmem:[%s9 + $0x1558] sm:$0xff]
      %v4778 = vld [vmem:[%s9 + $0x1560] sm:$0xff]
      %v4779 = vld [vmem:[%s9 + $0x1568] sm:$0xff]
      %v4780 = vld [vmem:[%s9 + $0x1570] sm:$0xff]
      %v4781 = vld [vmem:[%s9 + $0x1578] sm:$0xff]
      %v4782 = vld [vmem:[%s9 + $0x1580] sm:$0xff]
      %v4783 = vld [vmem:[%s9 + $0x1588] sm:$0xff]
      %v4784 = vld [vmem:[%s9 + $0x1590] sm:$0xff]
      %v4785 = vld [vmem:[%s9 + $0x1598] sm:$0xff]
      %v4786 = vld [vmem:[%s9 + $0x15a0] sm:$0xff]
      %v4787 = vld [vmem:[%s9 + $0x15a8] sm:$0xff]
      %v4788 = vld [vmem:[%s9 + $0x15b0] sm:$0xff]
      %v4789 = vld [vmem:[%s9 + $0x15b8] sm:$0xff]
      %v4790 = vld [vmem:[%s9 + $0x15c0] sm:$0xff]
      %v4791 = vld [vmem:[%s9 + $0x15c8] sm:$0xff]
      %v4792 = vld [vmem:[%s9 + $0x15d0] sm:$0xff]
      %v4793 = vld [vmem:[%s9 + $0x15d8] sm:$0xff]
      %v4794 = vld [vmem:[%s9 + $0x15e0] sm:$0xff]
      %v4795 = vld [vmem:[%s9 + $0x15e8] sm:$0xff]
      %v4796 = vld [vmem:[%s9 + $0x15f0] sm:$0xff]
      %v4797 = vld [vmem:[%s9 + $0x15f8] sm:$0xff]
      %v4798 = vld [vmem:[%s9 + $0x1600] sm:$0xff]
      %v4799 = vld [vmem:[%s9 + $0x1608] sm:$0xff]
      %v4800 = vld [vmem:[%s9 + $0x1610] sm:$0xff]
      %v4801 = vld [vmem:[%s9 + $0x1618] sm:$0xff]
      %v4802 = vld [vmem:[%s9 + $0x1620] sm:$0xff]
      %v4803 = vld [vmem:[%s9 + $0x1628] sm:$0xff]
      %v4804 = vld [vmem:[%s9 + $0x1630] sm:$0xff]
      %v4805 = vld [vmem:[%s9 + $0x1638] sm:$0xff]
      %v4806 = vld [vmem:[%s9 + $0x1640] sm:$0xff]
      %v4807 = vld [vmem:[%s9 + $0x1648] sm:$0xff]
      %v4808 = vld [vmem:[%s9 + $0x1650] sm:$0xff]
      %v4809 = vld [vmem:[%s9 + $0x1658] sm:$0xff]
      %v4810 = vld [vmem:[%s9 + $0x1660] sm:$0xff]
      %v4811 = vld [vmem:[%s9 + $0x1668] sm:$0xff]
      %v4812 = vld [vmem:[%s9 + $0x1670] sm:$0xff]
      %v4813 = vld [vmem:[%s9 + $0x1678] sm:$0xff]
      %v4814 = vld [vmem:[%s9 + $0x1680] sm:$0xff]
      %v4815 = vld [vmem:[%s9 + $0x1688] sm:$0xff]
      %v4816 = vld [vmem:[%s9 + $0x1690] sm:$0xff]
      %v4817 = vld [vmem:[%s9 + $0x1698] sm:$0xff]
      %v4818 = vld [vmem:[%s9 + $0x16a0] sm:$0xff]
      %v4819 = vld [vmem:[%s9 + $0x16a8] sm:$0xff]
      %v4820 = vld [vmem:[%s9 + $0x16b0] sm:$0xff]
      %v4821 = vld [vmem:[%s9 + $0x16b8] sm:$0xff]
      %v4822 = vld [vmem:[%s9 + $0x16c0] sm:$0xff]
      %v4823 = vld [vmem:[%s9 + $0x16c8] sm:$0xff]
      %v4824 = vld [vmem:[%s9 + $0x16d0] sm:$0xff]
      %v4825 = vld [vmem:[%s9 + $0x16d8] sm:$0xff]
      %v4826 = vld [vmem:[%s9 + $0x16e0] sm:$0xff]
      %v4827 = vld [vmem:[%s9 + $0x16e8] sm:$0xff]
      %v4828 = vld [vmem:[%s9 + $0x16f0] sm:$0xff]
      %v4829 = vld [vmem:[%s9 + $0x16f8] sm:$0xff]
      %v4830 = vld [vmem:[%s9 + $0x1700] sm:$0xff]
      %v4831 = vld [vmem:[%s9 + $0x1708] sm:$0xff]
      %v4832 = vld [vmem:[%s9 + $0x1710] sm:$0xff]
      %v4833 = vld [vmem:[%s9 + $0x1718] sm:$0xff]
      %v4834 = vld [vmem:[%s9 + $0x1720] sm:$0xff]
      %v4835 = vld [vmem:[%s9 + $0x1728] sm:$0xff]
      %v4836 = vld [vmem:[%s9 + $0x1730] sm:$0xff]
      %v4837 = vld [vmem:[%s9 + $0x1738] sm:$0xff]
      %v4838 = vld [vmem:[%s9 + $0x1740] sm:$0xff]
      %v4839 = vld [vmem:[%s9 + $0x1748] sm:$0xff]
      %v4840 = vld [vmem:[%s9 + $0x1750] sm:$0xff]
      %v4841 = vld [vmem:[%s9 + $0x1758] sm:$0xff]
      %v4842 = vld [vmem:[%s9 + $0x1760] sm:$0xff]
      %v4843 = vld [vmem:[%s9 + $0x1768] sm:$0xff]
      %v4844 = vld [vmem:[%s9 + $0x1770] sm:$0xff]
      %v4845 = vld [vmem:[%s9 + $0x1778] sm:$0xff]
      %v4846 = vld [vmem:[%s9 + $0x1780] sm:$0xff]
      %v4847 = vld [vmem:[%s9 + $0x1788] sm:$0xff]
      %v4848 = vld [vmem:[%s9 + $0x1790] sm:$0xff]
      %v4849 = vld [vmem:[%s9 + $0x1798] sm:$0xff]
      %v4850 = vld [vmem:[%s9 + $0x17a0] sm:$0xff]
      %v4851 = vld [vmem:[%s9 + $0x17a8] sm:$0xff]
      %v4852 = vld [vmem:[%s9 + $0x17b0] sm:$0xff]
      %v4853 = vld [vmem:[%s9 + $0x17b8] sm:$0xff]
      %v4854 = vld [vmem:[%s9 + $0x17c0] sm:$0xff]
      %v4855 = vld [vmem:[%s9 + $0x17c8] sm:$0xff]
      %v4856 = vld [vmem:[%s9 + $0x17d0] sm:$0xff]
      %v4857 = vld [vmem:[%s9 + $0x17d8] sm:$0xff]
      %v4858 = vld [vmem:[%s9 + $0x17e0] sm:$0xff]
      %v4859 = vld [vmem:[%s9 + $0x17e8] sm:$0xff]
      %v4860 = vld [vmem:[%s9 + $0x17f0] sm:$0xff]
      %v4861 = vld [vmem:[%s9 + $0x17f8] sm:$0xff]
      %v4862 = vld [vmem:[%s9 + $0x1800] sm:$0xff]
      %v4863 = vld [vmem:[%s9 + $0x1808] sm:$0xff]
      %v4864 = vld [vmem:[%s9 + $0x1810] sm:$0xff]
      %v4865 = vld [vmem:[%s9 + $0x1818] sm:$0xff]
      %v4866 = vld [vmem:[%s9 + $0x1820] sm:$0xff]
      %v4867 = vld [vmem:[%s9 + $0x1828] sm:$0xff]
      %v4868 = vld [vmem:[%s9 + $0x1830] sm:$0xff]
      %v4869 = vld [vmem:[%s9 + $0x1838] sm:$0xff]
      %v4870 = vld [vmem:[%s9 + $0x1840] sm:$0xff]
      %v4871 = vld [vmem:[%s9 + $0x1848] sm:$0xff]
      %v4872 = vld [vmem:[%s9 + $0x1850] sm:$0xff]
      %v4873 = vld [vmem:[%s9 + $0x1858] sm:$0xff]
      %v4874 = vld [vmem:[%s9 + $0x1860] sm:$0xff]
      %v4875 = vld [vmem:[%s9 + $0x1868] sm:$0xff]
      %v4876 = vld [vmem:[%s9 + $0x1870] sm:$0xff]
      %v4877 = vld [vmem:[%s9 + $0x1878] sm:$0xff]
      %v4878 = vld [vmem:[%s9 + $0x1880] sm:$0xff]
      %v4879 = vld [vmem:[%s9 + $0x1888] sm:$0xff]
      %v4880 = vld [vmem:[%s9 + $0x1890] sm:$0xff]
      %v4881 = vld [vmem:[%s9 + $0x1898] sm:$0xff]
      %v4882 = vld [vmem:[%s9 + $0x18a0] sm:$0xff]
      %v4883 = vld [vmem:[%s9 + $0x18a8] sm:$0xff]
      %v4884 = vld [vmem:[%s9 + $0x18b0] sm:$0xff]
      %v4885 = vld [vmem:[%s9 + $0x18b8] sm:$0xff]
      %v4886 = vld [vmem:[%s9 + $0x18c0] sm:$0xff]
      %v4887 = vld [vmem:[%s9 + $0x18c8] sm:$0xff]
      %v4888 = vld [vmem:[%s9 + $0x18d0] sm:$0xff]
      %v4889 = vld [vmem:[%s9 + $0x18d8] sm:$0xff]
      %v4890 = vld [vmem:[%s9 + $0x18e0] sm:$0xff]
      %v4891 = vld [vmem:[%s9 + $0x18e8] sm:$0xff]
      %v4892 = vld [vmem:[%s9 + $0x18f0] sm:$0xff]
      %v4893 = vld [vmem:[%s9 + $0x18f8] sm:$0xff]
      %v4894 = vld [vmem:[%s9 + $0x1900] sm:$0xff]
      %v4895 = vld [vmem:[%s9 + $0x1908] sm:$0xff]
      %v4896 = vld [vmem:[%s9 + $0x1910] sm:$0xff]
      %v4897 = vld [vmem:[%s9 + $0x1918] sm:$0xff]
      %v4898 = vld [vmem:[%s9 + $0x1920] sm:$0xff]
      %v4899 = vld [vmem:[%s9 + $0x1928] sm:$0xff]
      %v4900 = vld [vmem:[%s9 + $0x1930] sm:$0xff]
      %v4901 = vld [vmem:[%s9 + $0x1938] sm:$0xff]
      %v4902 = vld [vmem:[%s9 + $0x1940] sm:$0xff]
      %v4903 = vld [vmem:[%s9 + $0x1948] sm:$0xff]
      %v4904 = vld [vmem:[%s9 + $0x1950] sm:$0xff]
      %v4905 = vld [vmem:[%s9 + $0x1958] sm:$0xff]
      %v4906 = vld [vmem:[%s9 + $0x1960] sm:$0xff]
      %v4907 = vld [vmem:[%s9 + $0x1968] sm:$0xff]
      %v4908 = vld [vmem:[%s9 + $0x1970] sm:$0xff]
      %v4909 = vld [vmem:[%s9 + $0x1978] sm:$0xff]
      %v4910 = vld [vmem:[%s9 + $0x1980] sm:$0xff]
      %v4911 = vld [vmem:[%s9 + $0x1988] sm:$0xff]
      %v4912 = vld [vmem:[%s9 + $0x1990] sm:$0xff]
      %v4913 = vld [vmem:[%s9 + $0x1998] sm:$0xff]
      %v4914 = vld [vmem:[%s9 + $0x19a0] sm:$0xff]
      %v4915 = vld [vmem:[%s9 + $0x19a8] sm:$0xff]
      %v4916 = vld [vmem:[%s9 + $0x19b0] sm:$0xff]
      %v4917 = vld [vmem:[%s9 + $0x19b8] sm:$0xff]
      %v4918 = vld [vmem:[%s9 + $0x19c0] sm:$0xff]
      %v4919 = vld [vmem:[%s9 + $0x19c8] sm:$0xff]
      %v4920 = vld [vmem:[%s9 + $0x19d0] sm:$0xff]
      %v4921 = vld [vmem:[%s9 + $0x19d8] sm:$0xff]
      %v4922 = vld [vmem:[%s9 + $0x19e0] sm:$0xff]
      %v4923 = vld [vmem:[%s9 + $0x19e8] sm:$0xff]
      %v4924 = vld [vmem:[%s9 + $0x19f0] sm:$0xff]
      %v4925 = vld [vmem:[%s9 + $0x19f8] sm:$0xff]
      %v4926 = vld [vmem:[%s9 + $0x1a00] sm:$0xff]
      %v4927 = vld [vmem:[%s9 + $0x1a08] sm:$0xff]
      %v4928 = vld [vmem:[%s9 + $0x1a10] sm:$0xff]
      %v4929 = vld [vmem:[%s9 + $0x1a18] sm:$0xff]
      %v4930 = vld [vmem:[%s9 + $0x1a20] sm:$0xff]
      %v4931 = vld [vmem:[%s9 + $0x1a28] sm:$0xff]
      %v4932 = vld [vmem:[%s9 + $0x1a30] sm:$0xff]
      %v4933 = vld [vmem:[%s9 + $0x1a38] sm:$0xff]
      %v4934 = vld [vmem:[%s9 + $0x1a40] sm:$0xff]
      %v4935 = vld [vmem:[%s9 + $0x1a48] sm:$0xff]
      %v4936 = vld [vmem:[%s9 + $0x1a50] sm:$0xff]
      %v4937 = vld [vmem:[%s9 + $0x1a58] sm:$0xff]
      %v4938 = vld [vmem:[%s9 + $0x1a60] sm:$0xff]
      %v4939 = vld [vmem:[%s9 + $0x1a68] sm:$0xff]
      %v4940 = vld [vmem:[%s9 + $0x1a70] sm:$0xff]
      %v4941 = vld [vmem:[%s9 + $0x1a78] sm:$0xff]
      %v4942 = vld [vmem:[%s9 + $0x1a80] sm:$0xff]
      %v4943 = vld [vmem:[%s9 + $0x1a88] sm:$0xff]
      %v4944 = vld [vmem:[%s9 + $0x1a90] sm:$0xff]
      %v4945 = vld [vmem:[%s9 + $0x1a98] sm:$0xff]
      %v4946 = vld [vmem:[%s9 + $0x1aa0] sm:$0xff]
      %v4947 = vld [vmem:[%s9 + $0x1aa8] sm:$0xff]
      %v4948 = vld [vmem:[%s9 + $0x1ab0] sm:$0xff]
      %v4949 = vld [vmem:[%s9 + $0x1ab8] sm:$0xff]
      %v4950 = vld [vmem:[%s9 + $0x1ac0] sm:$0xff]
      %v4951 = vld [vmem:[%s9 + $0x1ac8] sm:$0xff]
      %v4952 = vld [vmem:[%s9 + $0x1ad0] sm:$0xff]
      %v4953 = vld [vmem:[%s9 + $0x1ad8] sm:$0xff]
      %v4954 = vld [vmem:[%s9 + $0x1ae0] sm:$0xff]
      %v4955 = vld [vmem:[%s9 + $0x1ae8] sm:$0xff]
      %v4956 = vld [vmem:[%s9 + $0x1af0] sm:$0xff]
      %v4957 = vld [vmem:[%s9 + $0x1af8] sm:$0xff]
      %4958 = vmatprep.subr.mxu0 0.0
      %4959 = vmatpush1.msra.mxu0 %v4109
      %4960 = vmatprep.subr.mxu0 0.0
      %4961 = vmatpush1.msra.mxu0 %v4108
      %4962 = vmatprep.subr.mxu0 0.0
      %4963 = vmatpush1.msra.mxu0 %v4107
      %4964 = vmatprep.subr.mxu0 0.0
      %4965 = vmatpush1.msra.mxu0 %v4106
      %4966 = vmatprep.subr.mxu0 0.0
      %4967 = vmatpush1.msra.mxu0 %v4105
      %4968 = vmatprep.subr.mxu0 0.0
      %4969 = vmatpush1.msra.mxu0 %v4104
      %4970 = vmatprep.subr.mxu0 0.0
      %4971 = vmatpush1.msra.mxu0 %v4103
      %4972 = vmatprep.subr.mxu0 0.0
      %4973 = vmatpush1.msra.mxu0 %v4102
      %4974 = vmatprep.subr.mxu0 0.0
      %4975 = vmatpush1.msra.mxu0 %v4101
      %4976 = vmatprep.subr.mxu0 0.0
      %4977 = vmatpush1.msra.mxu0 %v4100
      %4978 = vmatprep.subr.mxu0 0.0
      %4979 = vmatpush1.msra.mxu0 %v4099
      %4980 = vmatprep.subr.mxu0 0.0
      %4981 = vmatpush1.msra.mxu0 %v4098
      %4982 = vmatprep.subr.mxu0 0.0
      %4983 = vmatpush1.msra.mxu0 %v4097
      %4984 = vmatprep.subr.mxu0 0.0
      %4985 = vmatpush1.msra.mxu0 %v4096
      %4986 = vmatprep.subr.mxu0 0.0
      %4987 = vmatpush1.msra.mxu0 %v4095
      %4988 = vmatprep.subr.mxu0 0.0
      %4989 = vmatpush1.msra.mxu0 %v4094
      %4990 = vmatprep.subr.mxu0 0.0
      %4991 = vmatpush2.msra.mxu0 %v4125
      %4992 = vmatprep.subr.mxu0 0.0
      %4993 = vmatpush2.msra.mxu0 %v4124
      %4994 = vmatprep.subr.mxu0 0.0
      %4995 = vmatpush2.msra.mxu0 %v4123
      %4996 = vmatprep.subr.mxu0 0.0
      %4997 = vmatpush2.msra.mxu0 %v4122
      %4998 = vmatprep.subr.mxu0 0.0
      %4999 = vmatpush2.msra.mxu0 %v4121
      %5000 = vmatprep.subr.mxu0 0.0
      %5001 = vmatpush2.msra.mxu0 %v4120
      %5002 = vmatprep.subr.mxu0 0.0
      %5003 = vmatpush2.msra.mxu0 %v4119
      %5004 = vmatprep.subr.mxu0 0.0
      %5005 = vmatpush2.msra.mxu0 %v4118
      %5006 = vmatprep.subr.mxu0 0.0
      %5007 = vmatpush2.msra.mxu0 %v4117
      %5008 = vmatprep.subr.mxu0 0.0
      %5009 = vmatpush2.msra.mxu0 %v4116
      %5010 = vmatprep.subr.mxu0 0.0
      %5011 = vmatpush2.msra.mxu0 %v4115
      %5012 = vmatprep.subr.mxu0 0.0
      %5013 = vmatpush2.msra.mxu0 %v4114
      %5014 = vmatprep.subr.mxu0 0.0
      %5015 = vmatpush2.msra.mxu0 %v4113
      %5016 = vmatprep.subr.mxu0 0.0
      %5017 = vmatpush2.msra.mxu0 %v4112
      %5018 = vmatprep.subr.mxu0 0.0
      %5019 = vmatpush2.msra.mxu0 %v4111
      %5020 = vmatprep.subr.mxu0 0.0
      %5021 = vmatpush2.msra.mxu0 %v4110
      %5022 = vmatprep.mubr.f32.mxu0 %v3633
      %5023 = vmatmul.mubr.f32.gmra.mxu0 %v3632
      %v5024 = vpop.f32.mrf.mxu0
      %v5025 = vadd.f32 %v77, %v5024
      %v5026 = vpop.f32.mrf.mxu0
      %5027 = vdwg.mxu0
      %5028 = vmatprep.subr.mxu0 0.0
      %5029 = vmatpush1.msra.mxu0 %v4141
      %5030 = vmatprep.subr.mxu0 0.0
      %5031 = vmatpush1.msra.mxu0 %v4140
      %5032 = vmatprep.subr.mxu0 0.0
      %5033 = vmatpush1.msra.mxu0 %v4139
      %5034 = vmatprep.subr.mxu0 0.0
      %5035 = vmatpush1.msra.mxu0 %v4138
      %5036 = vmatprep.subr.mxu0 0.0
      %5037 = vmatpush1.msra.mxu0 %v4137
      %5038 = vmatprep.subr.mxu0 0.0
      %5039 = vmatpush1.msra.mxu0 %v4136
      %5040 = vmatprep.subr.mxu0 0.0
      %5041 = vmatpush1.msra.mxu0 %v4135
      %5042 = vmatprep.subr.mxu0 0.0
      %5043 = vmatpush1.msra.mxu0 %v4134
      %5044 = vmatprep.subr.mxu0 0.0
      %5045 = vmatpush1.msra.mxu0 %v4133
      %5046 = vmatprep.subr.mxu0 0.0
      %5047 = vmatpush1.msra.mxu0 %v4132
      %5048 = vmatprep.subr.mxu0 0.0
      %5049 = vmatpush1.msra.mxu0 %v4131
      %5050 = vmatprep.subr.mxu0 0.0
      %5051 = vmatpush1.msra.mxu0 %v4130
      %5052 = vmatprep.subr.mxu0 0.0
      %5053 = vmatpush1.msra.mxu0 %v4129
      %5054 = vmatprep.subr.mxu0 0.0
      %5055 = vmatpush1.msra.mxu0 %v4128
      %5056 = vmatprep.subr.mxu0 0.0
      %5057 = vmatpush1.msra.mxu0 %v4127
      %5058 = vmatprep.subr.mxu0 0.0
      %5059 = vmatpush1.msra.mxu0 %v4126
      %5060 = vmatprep.subr.mxu0 0.0
      %5061 = vmatpush2.msra.mxu0 %v4157
      %5062 = vmatprep.subr.mxu0 0.0
      %5063 = vmatpush2.msra.mxu0 %v4156
      %5064 = vmatprep.subr.mxu0 0.0
      %5065 = vmatpush2.msra.mxu0 %v4155
      %5066 = vmatprep.subr.mxu0 0.0
      %5067 = vmatpush2.msra.mxu0 %v4154
      %5068 = vmatprep.subr.mxu0 0.0
      %5069 = vmatpush2.msra.mxu0 %v4153
      %5070 = vmatprep.subr.mxu0 0.0
      %5071 = vmatpush2.msra.mxu0 %v4152
      %5072 = vmatprep.subr.mxu0 0.0
      %5073 = vmatpush2.msra.mxu0 %v4151
      %5074 = vmatprep.subr.mxu0 0.0
      %5075 = vmatpush2.msra.mxu0 %v4150
      %5076 = vmatprep.subr.mxu0 0.0
      %5077 = vmatpush2.msra.mxu0 %v4149
      %5078 = vmatprep.subr.mxu0 0.0
      %5079 = vmatpush2.msra.mxu0 %v4148
      %5080 = vmatprep.subr.mxu0 0.0
      %5081 = vmatpush2.msra.mxu0 %v4147
      %5082 = vmatprep.subr.mxu0 0.0
      %5083 = vmatpush2.msra.mxu0 %v4146
      %5084 = vmatprep.subr.mxu0 0.0
      %5085 = vmatpush2.msra.mxu0 %v4145
      %5086 = vmatprep.subr.mxu0 0.0
      %5087 = vmatpush2.msra.mxu0 %v4144
      %5088 = vmatprep.subr.mxu0 0.0
      %5089 = vmatpush2.msra.mxu0 %v4143
      %5090 = vmatprep.subr.mxu0 0.0
      %5091 = vmatpush2.msra.mxu0 %v4142
      %5092 = vmatprep.mubr.f32.mxu0 %v3635
      %5093 = vmatmul.mubr.f32.gmra.mxu0 %v3634
      %v5094 = vpop.f32.mrf.mxu0
      %v5095 = vadd.f32 %v5025, %v5094
      %v5096 = vpop.f32.mrf.mxu0
      %5097 = vdwg.mxu0
      %5098 = vmatprep.subr.mxu0 0.0
      %5099 = vmatpush1.msra.mxu0 %v4173
      %5100 = vmatprep.subr.mxu0 0.0
      %5101 = vmatpush1.msra.mxu0 %v4172
      %5102 = vmatprep.subr.mxu0 0.0
      %5103 = vmatpush1.msra.mxu0 %v4171
      %5104 = vmatprep.subr.mxu0 0.0
      %5105 = vmatpush1.msra.mxu0 %v4170
      %5106 = vmatprep.subr.mxu0 0.0
      %5107 = vmatpush1.msra.mxu0 %v4169
      %5108 = vmatprep.subr.mxu0 0.0
      %5109 = vmatpush1.msra.mxu0 %v4168
      %5110 = vmatprep.subr.mxu0 0.0
      %5111 = vmatpush1.msra.mxu0 %v4167
      %5112 = vmatprep.subr.mxu0 0.0
      %5113 = vmatpush1.msra.mxu0 %v4166
      %5114 = vmatprep.subr.mxu0 0.0
      %5115 = vmatpush1.msra.mxu0 %v4165
      %5116 = vmatprep.subr.mxu0 0.0
      %5117 = vmatpush1.msra.mxu0 %v4164
      %5118 = vmatprep.subr.mxu0 0.0
      %5119 = vmatpush1.msra.mxu0 %v4163
      %5120 = vmatprep.subr.mxu0 0.0
      %5121 = vmatpush1.msra.mxu0 %v4162
      %5122 = vmatprep.subr.mxu0 0.0
      %5123 = vmatpush1.msra.mxu0 %v4161
      %5124 = vmatprep.subr.mxu0 0.0
      %5125 = vmatpush1.msra.mxu0 %v4160
      %5126 = vmatprep.subr.mxu0 0.0
      %5127 = vmatpush1.msra.mxu0 %v4159
      %5128 = vmatprep.subr.mxu0 0.0
      %5129 = vmatpush1.msra.mxu0 %v4158
      %5130 = vmatprep.subr.mxu0 0.0
      %5131 = vmatpush2.msra.mxu0 %v4189
      %5132 = vmatprep.subr.mxu0 0.0
      %5133 = vmatpush2.msra.mxu0 %v4188
      %5134 = vmatprep.subr.mxu0 0.0
      %5135 = vmatpush2.msra.mxu0 %v4187
      %5136 = vmatprep.subr.mxu0 0.0
      %5137 = vmatpush2.msra.mxu0 %v4186
      %5138 = vmatprep.subr.mxu0 0.0
      %5139 = vmatpush2.msra.mxu0 %v4185
      %5140 = vmatprep.subr.mxu0 0.0
      %5141 = vmatpush2.msra.mxu0 %v4184
      %5142 = vmatprep.subr.mxu0 0.0
      %5143 = vmatpush2.msra.mxu0 %v4183
      %5144 = vmatprep.subr.mxu0 0.0
      %5145 = vmatpush2.msra.mxu0 %v4182
      %5146 = vmatprep.subr.mxu0 0.0
      %5147 = vmatpush2.msra.mxu0 %v4181
      %5148 = vmatprep.subr.mxu0 0.0
      %5149 = vmatpush2.msra.mxu0 %v4180
      %5150 = vmatprep.subr.mxu0 0.0
      %5151 = vmatpush2.msra.mxu0 %v4179
      %5152 = vmatprep.subr.mxu0 0.0
      %5153 = vmatpush2.msra.mxu0 %v4178
      %5154 = vmatprep.subr.mxu0 0.0
      %5155 = vmatpush2.msra.mxu0 %v4177
      %5156 = vmatprep.subr.mxu0 0.0
      %5157 = vmatpush2.msra.mxu0 %v4176
      %5158 = vmatprep.subr.mxu0 0.0
      %5159 = vmatpush2.msra.mxu0 %v4175
      %5160 = vmatprep.subr.mxu0 0.0
      %5161 = vmatpush2.msra.mxu0 %v4174
      %5162 = vmatprep.mubr.f32.mxu0 %v3637
      %5163 = vmatmul.mubr.f32.gmra.mxu0 %v3636
      %v5164 = vpop.f32.mrf.mxu0
      %v5165 = vadd.f32 %v5095, %v5164
      %v5166 = vpop.f32.mrf.mxu0
      %5167 = vdwg.mxu0
      %5168 = vmatprep.subr.mxu0 0.0
      %5169 = vmatpush1.msra.mxu0 %v4205
      %5170 = vmatprep.subr.mxu0 0.0
      %5171 = vmatpush1.msra.mxu0 %v4204
      %5172 = vmatprep.subr.mxu0 0.0
      %5173 = vmatpush1.msra.mxu0 %v4203
      %5174 = vmatprep.subr.mxu0 0.0
      %5175 = vmatpush1.msra.mxu0 %v4202
      %5176 = vmatprep.subr.mxu0 0.0
      %5177 = vmatpush1.msra.mxu0 %v4201
      %5178 = vmatprep.subr.mxu0 0.0
      %5179 = vmatpush1.msra.mxu0 %v4200
      %5180 = vmatprep.subr.mxu0 0.0
      %5181 = vmatpush1.msra.mxu0 %v4199
      %5182 = vmatprep.subr.mxu0 0.0
      %5183 = vmatpush1.msra.mxu0 %v4198
      %5184 = vmatprep.subr.mxu0 0.0
      %5185 = vmatpush1.msra.mxu0 %v4197
      %5186 = vmatprep.subr.mxu0 0.0
      %5187 = vmatpush1.msra.mxu0 %v4196
      %5188 = vmatprep.subr.mxu0 0.0
      %5189 = vmatpush1.msra.mxu0 %v4195
      %5190 = vmatprep.subr.mxu0 0.0
      %5191 = vmatpush1.msra.mxu0 %v4194
      %5192 = vmatprep.subr.mxu0 0.0
      %5193 = vmatpush1.msra.mxu0 %v4193
      %5194 = vmatprep.subr.mxu0 0.0
      %5195 = vmatpush1.msra.mxu0 %v4192
      %5196 = vmatprep.subr.mxu0 0.0
      %5197 = vmatpush1.msra.mxu0 %v4191
      %5198 = vmatprep.subr.mxu0 0.0
      %5199 = vmatpush1.msra.mxu0 %v4190
      %5200 = vmatprep.subr.mxu0 0.0
      %5201 = vmatpush2.msra.mxu0 %v4221
      %5202 = vmatprep.subr.mxu0 0.0
      %5203 = vmatpush2.msra.mxu0 %v4220
      %5204 = vmatprep.subr.mxu0 0.0
      %5205 = vmatpush2.msra.mxu0 %v4219
      %5206 = vmatprep.subr.mxu0 0.0
      %5207 = vmatpush2.msra.mxu0 %v4218
      %5208 = vmatprep.subr.mxu0 0.0
      %5209 = vmatpush2.msra.mxu0 %v4217
      %5210 = vmatprep.subr.mxu0 0.0
      %5211 = vmatpush2.msra.mxu0 %v4216
      %5212 = vmatprep.subr.mxu0 0.0
      %5213 = vmatpush2.msra.mxu0 %v4215
      %5214 = vmatprep.subr.mxu0 0.0
      %5215 = vmatpush2.msra.mxu0 %v4214
      %5216 = vmatprep.subr.mxu0 0.0
      %5217 = vmatpush2.msra.mxu0 %v4213
      %5218 = vmatprep.subr.mxu0 0.0
      %5219 = vmatpush2.msra.mxu0 %v4212
      %5220 = vmatprep.subr.mxu0 0.0
      %5221 = vmatpush2.msra.mxu0 %v4211
      %5222 = vmatprep.subr.mxu0 0.0
      %5223 = vmatpush2.msra.mxu0 %v4210
      %5224 = vmatprep.subr.mxu0 0.0
      %5225 = vmatpush2.msra.mxu0 %v4209
      %5226 = vmatprep.subr.mxu0 0.0
      %5227 = vmatpush2.msra.mxu0 %v4208
      %5228 = vmatprep.subr.mxu0 0.0
      %5229 = vmatpush2.msra.mxu0 %v4207
      %5230 = vmatprep.subr.mxu0 0.0
      %5231 = vmatpush2.msra.mxu0 %v4206
      %5232 = vmatprep.mubr.f32.mxu0 %v3639
      %5233 = vmatmul.mubr.f32.gmra.mxu0 %v3638
      %v5234 = vpop.f32.mrf.mxu0
      %v5235 = vadd.f32 %v5165, %v5234
      %v5236 = vpop.f32.mrf.mxu0
      %5237 = vdwg.mxu0
      %5238 = vmatprep.subr.mxu0 0.0
      %5239 = vmatpush1.msra.mxu0 %v4237
      %5240 = vmatprep.subr.mxu0 0.0
      %5241 = vmatpush1.msra.mxu0 %v4236
      %5242 = vmatprep.subr.mxu0 0.0
      %5243 = vmatpush1.msra.mxu0 %v4235
      %5244 = vmatprep.subr.mxu0 0.0
      %5245 = vmatpush1.msra.mxu0 %v4234
      %5246 = vmatprep.subr.mxu0 0.0
      %5247 = vmatpush1.msra.mxu0 %v4233
      %5248 = vmatprep.subr.mxu0 0.0
      %5249 = vmatpush1.msra.mxu0 %v4232
      %5250 = vmatprep.subr.mxu0 0.0
      %5251 = vmatpush1.msra.mxu0 %v4231
      %5252 = vmatprep.subr.mxu0 0.0
      %5253 = vmatpush1.msra.mxu0 %v4230
      %5254 = vmatprep.subr.mxu0 0.0
      %5255 = vmatpush1.msra.mxu0 %v4229
      %5256 = vmatprep.subr.mxu0 0.0
      %5257 = vmatpush1.msra.mxu0 %v4228
      %5258 = vmatprep.subr.mxu0 0.0
      %5259 = vmatpush1.msra.mxu0 %v4227
      %5260 = vmatprep.subr.mxu0 0.0
      %5261 = vmatpush1.msra.mxu0 %v4226
      %5262 = vmatprep.subr.mxu0 0.0
      %5263 = vmatpush1.msra.mxu0 %v4225
      %5264 = vmatprep.subr.mxu0 0.0
      %5265 = vmatpush1.msra.mxu0 %v4224
      %5266 = vmatprep.subr.mxu0 0.0
      %5267 = vmatpush1.msra.mxu0 %v4223
      %5268 = vmatprep.subr.mxu0 0.0
      %5269 = vmatpush1.msra.mxu0 %v4222
      %5270 = vmatprep.subr.mxu0 0.0
      %5271 = vmatpush2.msra.mxu0 %v4253
      %5272 = vmatprep.subr.mxu0 0.0
      %5273 = vmatpush2.msra.mxu0 %v4252
      %5274 = vmatprep.subr.mxu0 0.0
      %5275 = vmatpush2.msra.mxu0 %v4251
      %5276 = vmatprep.subr.mxu0 0.0
      %5277 = vmatpush2.msra.mxu0 %v4250
      %5278 = vmatprep.subr.mxu0 0.0
      %5279 = vmatpush2.msra.mxu0 %v4249
      %5280 = vmatprep.subr.mxu0 0.0
      %5281 = vmatpush2.msra.mxu0 %v4248
      %5282 = vmatprep.subr.mxu0 0.0
      %5283 = vmatpush2.msra.mxu0 %v4247
      %5284 = vmatprep.subr.mxu0 0.0
      %5285 = vmatpush2.msra.mxu0 %v4246
      %5286 = vmatprep.subr.mxu0 0.0
      %5287 = vmatpush2.msra.mxu0 %v4245
      %5288 = vmatprep.subr.mxu0 0.0
      %5289 = vmatpush2.msra.mxu0 %v4244
      %5290 = vmatprep.subr.mxu0 0.0
      %5291 = vmatpush2.msra.mxu0 %v4243
      %5292 = vmatprep.subr.mxu0 0.0
      %5293 = vmatpush2.msra.mxu0 %v4242
      %5294 = vmatprep.subr.mxu0 0.0
      %5295 = vmatpush2.msra.mxu0 %v4241
      %5296 = vmatprep.subr.mxu0 0.0
      %5297 = vmatpush2.msra.mxu0 %v4240
      %5298 = vmatprep.subr.mxu0 0.0
      %5299 = vmatpush2.msra.mxu0 %v4239
      %5300 = vmatprep.subr.mxu0 0.0
      %5301 = vmatpush2.msra.mxu0 %v4238
      %5302 = vmatprep.mubr.f32.mxu0 %v3641
      %5303 = vmatmul.mubr.f32.gmra.mxu0 %v3640
      %v5304 = vpop.f32.mrf.mxu0
      %v5305 = vadd.f32 %v5235, %v5304
      %v5306 = vpop.f32.mrf.mxu0
      %5307 = vdwg.mxu0
      %5308 = vmatprep.subr.mxu0 0.0
      %5309 = vmatpush1.msra.mxu0 %v4269
      %5310 = vmatprep.subr.mxu0 0.0
      %5311 = vmatpush1.msra.mxu0 %v4268
      %5312 = vmatprep.subr.mxu0 0.0
      %5313 = vmatpush1.msra.mxu0 %v4267
      %5314 = vmatprep.subr.mxu0 0.0
      %5315 = vmatpush1.msra.mxu0 %v4266
      %5316 = vmatprep.subr.mxu0 0.0
      %5317 = vmatpush1.msra.mxu0 %v4265
      %5318 = vmatprep.subr.mxu0 0.0
      %5319 = vmatpush1.msra.mxu0 %v4264
      %5320 = vmatprep.subr.mxu0 0.0
      %5321 = vmatpush1.msra.mxu0 %v4263
      %5322 = vmatprep.subr.mxu0 0.0
      %5323 = vmatpush1.msra.mxu0 %v4262
      %5324 = vmatprep.subr.mxu0 0.0
      %5325 = vmatpush1.msra.mxu0 %v4261
      %5326 = vmatprep.subr.mxu0 0.0
      %5327 = vmatpush1.msra.mxu0 %v4260
      %5328 = vmatprep.subr.mxu0 0.0
      %5329 = vmatpush1.msra.mxu0 %v4259
      %5330 = vmatprep.subr.mxu0 0.0
      %5331 = vmatpush1.msra.mxu0 %v4258
      %5332 = vmatprep.subr.mxu0 0.0
      %5333 = vmatpush1.msra.mxu0 %v4257
      %5334 = vmatprep.subr.mxu0 0.0
      %5335 = vmatpush1.msra.mxu0 %v4256
      %5336 = vmatprep.subr.mxu0 0.0
      %5337 = vmatpush1.msra.mxu0 %v4255
      %5338 = vmatprep.subr.mxu0 0.0
      %5339 = vmatpush1.msra.mxu0 %v4254
      %5340 = vmatprep.subr.mxu0 0.0
      %5341 = vmatpush2.msra.mxu0 %v4285
      %5342 = vmatprep.subr.mxu0 0.0
      %5343 = vmatpush2.msra.mxu0 %v4284
      %5344 = vmatprep.subr.mxu0 0.0
      %5345 = vmatpush2.msra.mxu0 %v4283
      %5346 = vmatprep.subr.mxu0 0.0
      %5347 = vmatpush2.msra.mxu0 %v4282
      %5348 = vmatprep.subr.mxu0 0.0
      %5349 = vmatpush2.msra.mxu0 %v4281
      %5350 = vmatprep.subr.mxu0 0.0
      %5351 = vmatpush2.msra.mxu0 %v4280
      %5352 = vmatprep.subr.mxu0 0.0
      %5353 = vmatpush2.msra.mxu0 %v4279
      %5354 = vmatprep.subr.mxu0 0.0
      %5355 = vmatpush2.msra.mxu0 %v4278
      %5356 = vmatprep.subr.mxu0 0.0
      %5357 = vmatpush2.msra.mxu0 %v4277
      %5358 = vmatprep.subr.mxu0 0.0
      %5359 = vmatpush2.msra.mxu0 %v4276
      %5360 = vmatprep.subr.mxu0 0.0
      %5361 = vmatpush2.msra.mxu0 %v4275
      %5362 = vmatprep.subr.mxu0 0.0
      %5363 = vmatpush2.msra.mxu0 %v4274
      %5364 = vmatprep.subr.mxu0 0.0
      %5365 = vmatpush2.msra.mxu0 %v4273
      %5366 = vmatprep.subr.mxu0 0.0
      %5367 = vmatpush2.msra.mxu0 %v4272
      %5368 = vmatprep.subr.mxu0 0.0
      %5369 = vmatpush2.msra.mxu0 %v4271
      %5370 = vmatprep.subr.mxu0 0.0
      %5371 = vmatpush2.msra.mxu0 %v4270
      %5372 = vmatprep.mubr.f32.mxu0 %v3643
      %5373 = vmatmul.mubr.f32.gmra.mxu0 %v3642
      %v5374 = vpop.f32.mrf.mxu0
      %v5375 = vadd.f32 %v5305, %v5374
      %v5376 = vpop.f32.mrf.mxu0
      %5377 = vdwg.mxu0
      %5378 = vmatprep.subr.mxu0 0.0
      %5379 = vmatpush1.msra.mxu0 %v4301
      %5380 = vmatprep.subr.mxu0 0.0
      %5381 = vmatpush1.msra.mxu0 %v4300
      %5382 = vmatprep.subr.mxu0 0.0
      %5383 = vmatpush1.msra.mxu0 %v4299
      %5384 = vmatprep.subr.mxu0 0.0
      %5385 = vmatpush1.msra.mxu0 %v4298
      %5386 = vmatprep.subr.mxu0 0.0
      %5387 = vmatpush1.msra.mxu0 %v4297
      %5388 = vmatprep.subr.mxu0 0.0
      %5389 = vmatpush1.msra.mxu0 %v4296
      %5390 = vmatprep.subr.mxu0 0.0
      %5391 = vmatpush1.msra.mxu0 %v4295
      %5392 = vmatprep.subr.mxu0 0.0
      %5393 = vmatpush1.msra.mxu0 %v4294
      %5394 = vmatprep.subr.mxu0 0.0
      %5395 = vmatpush1.msra.mxu0 %v4293
      %5396 = vmatprep.subr.mxu0 0.0
      %5397 = vmatpush1.msra.mxu0 %v4292
      %5398 = vmatprep.subr.mxu0 0.0
      %5399 = vmatpush1.msra.mxu0 %v4291
      %5400 = vmatprep.subr.mxu0 0.0
      %5401 = vmatpush1.msra.mxu0 %v4290
      %5402 = vmatprep.subr.mxu0 0.0
      %5403 = vmatpush1.msra.mxu0 %v4289
      %5404 = vmatprep.subr.mxu0 0.0
      %5405 = vmatpush1.msra.mxu0 %v4288
      %5406 = vmatprep.subr.mxu0 0.0
      %5407 = vmatpush1.msra.mxu0 %v4287
      %5408 = vmatprep.subr.mxu0 0.0
      %5409 = vmatpush1.msra.mxu0 %v4286
      %5410 = vmatprep.subr.mxu0 0.0
      %5411 = vmatpush2.msra.mxu0 %v4317
      %5412 = vmatprep.subr.mxu0 0.0
      %5413 = vmatpush2.msra.mxu0 %v4316
      %5414 = vmatprep.subr.mxu0 0.0
      %5415 = vmatpush2.msra.mxu0 %v4315
      %5416 = vmatprep.subr.mxu0 0.0
      %5417 = vmatpush2.msra.mxu0 %v4314
      %5418 = vmatprep.subr.mxu0 0.0
      %5419 = vmatpush2.msra.mxu0 %v4313
      %5420 = vmatprep.subr.mxu0 0.0
      %5421 = vmatpush2.msra.mxu0 %v4312
      %5422 = vmatprep.subr.mxu0 0.0
      %5423 = vmatpush2.msra.mxu0 %v4311
      %5424 = vmatprep.subr.mxu0 0.0
      %5425 = vmatpush2.msra.mxu0 %v4310
      %5426 = vmatprep.subr.mxu0 0.0
      %5427 = vmatpush2.msra.mxu0 %v4309
      %5428 = vmatprep.subr.mxu0 0.0
      %5429 = vmatpush2.msra.mxu0 %v4308
      %5430 = vmatprep.subr.mxu0 0.0
      %5431 = vmatpush2.msra.mxu0 %v4307
      %5432 = vmatprep.subr.mxu0 0.0
      %5433 = vmatpush2.msra.mxu0 %v4306
      %5434 = vmatprep.subr.mxu0 0.0
      %5435 = vmatpush2.msra.mxu0 %v4305
      %5436 = vmatprep.subr.mxu0 0.0
      %5437 = vmatpush2.msra.mxu0 %v4304
      %5438 = vmatprep.subr.mxu0 0.0
      %5439 = vmatpush2.msra.mxu0 %v4303
      %5440 = vmatprep.subr.mxu0 0.0
      %5441 = vmatpush2.msra.mxu0 %v4302
      %5442 = vmatprep.mubr.f32.mxu0 %v3645
      %5443 = vmatmul.mubr.f32.gmra.mxu0 %v3644
      %v5444 = vpop.f32.mrf.mxu0
      %v5445 = vadd.f32 %v5375, %v5444
      %v5446 = vpop.f32.mrf.mxu0
      %5447 = vdwg.mxu0
      %5448 = vmatprep.subr.mxu0 0.0
      %5449 = vmatpush1.msra.mxu0 %v4333
      %5450 = vmatprep.subr.mxu0 0.0
      %5451 = vmatpush1.msra.mxu0 %v4332
      %5452 = vmatprep.subr.mxu0 0.0
      %5453 = vmatpush1.msra.mxu0 %v4331
      %5454 = vmatprep.subr.mxu0 0.0
      %5455 = vmatpush1.msra.mxu0 %v4330
      %5456 = vmatprep.subr.mxu0 0.0
      %5457 = vmatpush1.msra.mxu0 %v4329
      %5458 = vmatprep.subr.mxu0 0.0
      %5459 = vmatpush1.msra.mxu0 %v4328
      %5460 = vmatprep.subr.mxu0 0.0
      %5461 = vmatpush1.msra.mxu0 %v4327
      %5462 = vmatprep.subr.mxu0 0.0
      %5463 = vmatpush1.msra.mxu0 %v4326
      %5464 = vmatprep.subr.mxu0 0.0
      %5465 = vmatpush1.msra.mxu0 %v4325
      %5466 = vmatprep.subr.mxu0 0.0
      %5467 = vmatpush1.msra.mxu0 %v4324
      %5468 = vmatprep.subr.mxu0 0.0
      %5469 = vmatpush1.msra.mxu0 %v4323
      %5470 = vmatprep.subr.mxu0 0.0
      %5471 = vmatpush1.msra.mxu0 %v4322
      %5472 = vmatprep.subr.mxu0 0.0
      %5473 = vmatpush1.msra.mxu0 %v4321
      %5474 = vmatprep.subr.mxu0 0.0
      %5475 = vmatpush1.msra.mxu0 %v4320
      %5476 = vmatprep.subr.mxu0 0.0
      %5477 = vmatpush1.msra.mxu0 %v4319
      %5478 = vmatprep.subr.mxu0 0.0
      %5479 = vmatpush1.msra.mxu0 %v4318
      %5480 = vmatprep.subr.mxu0 0.0
      %5481 = vmatpush2.msra.mxu0 %v4349
      %5482 = vmatprep.subr.mxu0 0.0
      %5483 = vmatpush2.msra.mxu0 %v4348
      %5484 = vmatprep.subr.mxu0 0.0
      %5485 = vmatpush2.msra.mxu0 %v4347
      %5486 = vmatprep.subr.mxu0 0.0
      %5487 = vmatpush2.msra.mxu0 %v4346
      %5488 = vmatprep.subr.mxu0 0.0
      %5489 = vmatpush2.msra.mxu0 %v4345
      %5490 = vmatprep.subr.mxu0 0.0
      %5491 = vmatpush2.msra.mxu0 %v4344
      %5492 = vmatprep.subr.mxu0 0.0
      %5493 = vmatpush2.msra.mxu0 %v4343
      %5494 = vmatprep.subr.mxu0 0.0
      %5495 = vmatpush2.msra.mxu0 %v4342
      %5496 = vmatprep.subr.mxu0 0.0
      %5497 = vmatpush2.msra.mxu0 %v4341
      %5498 = vmatprep.subr.mxu0 0.0
      %5499 = vmatpush2.msra.mxu0 %v4340
      %5500 = vmatprep.subr.mxu0 0.0
      %5501 = vmatpush2.msra.mxu0 %v4339
      %5502 = vmatprep.subr.mxu0 0.0
      %5503 = vmatpush2.msra.mxu0 %v4338
      %5504 = vmatprep.subr.mxu0 0.0
      %5505 = vmatpush2.msra.mxu0 %v4337
      %5506 = vmatprep.subr.mxu0 0.0
      %5507 = vmatpush2.msra.mxu0 %v4336
      %5508 = vmatprep.subr.mxu0 0.0
      %5509 = vmatpush2.msra.mxu0 %v4335
      %5510 = vmatprep.subr.mxu0 0.0
      %5511 = vmatpush2.msra.mxu0 %v4334
      %5512 = vmatprep.mubr.f32.mxu0 %v3647
      %5513 = vmatmul.mubr.f32.gmra.mxu0 %v3646
      %v5514 = vpop.f32.mrf.mxu0
      %v5515 = vadd.f32 %v5445, %v5514
      %v5516 = vpop.f32.mrf.mxu0
      %5517 = vdwg.mxu0
      %5518 = vmatprep.subr.mxu0 0.0
      %5519 = vmatpush1.msra.mxu0 %v4365
      %5520 = vmatprep.subr.mxu0 0.0
      %5521 = vmatpush1.msra.mxu0 %v4364
      %5522 = vmatprep.subr.mxu0 0.0
      %5523 = vmatpush1.msra.mxu0 %v4363
      %5524 = vmatprep.subr.mxu0 0.0
      %5525 = vmatpush1.msra.mxu0 %v4362
      %5526 = vmatprep.subr.mxu0 0.0
      %5527 = vmatpush1.msra.mxu0 %v4361
      %5528 = vmatprep.subr.mxu0 0.0
      %5529 = vmatpush1.msra.mxu0 %v4360
      %5530 = vmatprep.subr.mxu0 0.0
      %5531 = vmatpush1.msra.mxu0 %v4359
      %5532 = vmatprep.subr.mxu0 0.0
      %5533 = vmatpush1.msra.mxu0 %v4358
      %5534 = vmatprep.subr.mxu0 0.0
      %5535 = vmatpush1.msra.mxu0 %v4357
      %5536 = vmatprep.subr.mxu0 0.0
      %5537 = vmatpush1.msra.mxu0 %v4356
      %5538 = vmatprep.subr.mxu0 0.0
      %5539 = vmatpush1.msra.mxu0 %v4355
      %5540 = vmatprep.subr.mxu0 0.0
      %5541 = vmatpush1.msra.mxu0 %v4354
      %5542 = vmatprep.subr.mxu0 0.0
      %5543 = vmatpush1.msra.mxu0 %v4353
      %5544 = vmatprep.subr.mxu0 0.0
      %5545 = vmatpush1.msra.mxu0 %v4352
      %5546 = vmatprep.subr.mxu0 0.0
      %5547 = vmatpush1.msra.mxu0 %v4351
      %5548 = vmatprep.subr.mxu0 0.0
      %5549 = vmatpush1.msra.mxu0 %v4350
      %5550 = vmatprep.subr.mxu0 0.0
      %5551 = vmatpush2.msra.mxu0 %v4381
      %5552 = vmatprep.subr.mxu0 0.0
      %5553 = vmatpush2.msra.mxu0 %v4380
      %5554 = vmatprep.subr.mxu0 0.0
      %5555 = vmatpush2.msra.mxu0 %v4379
      %5556 = vmatprep.subr.mxu0 0.0
      %5557 = vmatpush2.msra.mxu0 %v4378
      %5558 = vmatprep.subr.mxu0 0.0
      %5559 = vmatpush2.msra.mxu0 %v4377
      %5560 = vmatprep.subr.mxu0 0.0
      %5561 = vmatpush2.msra.mxu0 %v4376
      %5562 = vmatprep.subr.mxu0 0.0
      %5563 = vmatpush2.msra.mxu0 %v4375
      %5564 = vmatprep.subr.mxu0 0.0
      %5565 = vmatpush2.msra.mxu0 %v4374
      %5566 = vmatprep.subr.mxu0 0.0
      %5567 = vmatpush2.msra.mxu0 %v4373
      %5568 = vmatprep.subr.mxu0 0.0
      %5569 = vmatpush2.msra.mxu0 %v4372
      %5570 = vmatprep.subr.mxu0 0.0
      %5571 = vmatpush2.msra.mxu0 %v4371
      %5572 = vmatprep.subr.mxu0 0.0
      %5573 = vmatpush2.msra.mxu0 %v4370
      %5574 = vmatprep.subr.mxu0 0.0
      %5575 = vmatpush2.msra.mxu0 %v4369
      %5576 = vmatprep.subr.mxu0 0.0
      %5577 = vmatpush2.msra.mxu0 %v4368
      %5578 = vmatprep.subr.mxu0 0.0
      %5579 = vmatpush2.msra.mxu0 %v4367
      %5580 = vmatprep.subr.mxu0 0.0
      %5581 = vmatpush2.msra.mxu0 %v4366
      %5582 = vmatprep.mubr.f32.mxu0 %v3649
      %5583 = vmatmul.mubr.f32.gmra.mxu0 %v3648
      %v5584 = vpop.f32.mrf.mxu0
      %v5585 = vadd.f32 %v5515, %v5584
      %v5586 = vpop.f32.mrf.mxu0
      %5587 = vdwg.mxu0
      %5588 = vmatprep.subr.mxu0 0.0
      %5589 = vmatpush1.msra.mxu0 %v4397
      %5590 = vmatprep.subr.mxu0 0.0
      %5591 = vmatpush1.msra.mxu0 %v4396
      %5592 = vmatprep.subr.mxu0 0.0
      %5593 = vmatpush1.msra.mxu0 %v4395
      %5594 = vmatprep.subr.mxu0 0.0
      %5595 = vmatpush1.msra.mxu0 %v4394
      %5596 = vmatprep.subr.mxu0 0.0
      %5597 = vmatpush1.msra.mxu0 %v4393
      %5598 = vmatprep.subr.mxu0 0.0
      %5599 = vmatpush1.msra.mxu0 %v4392
      %5600 = vmatprep.subr.mxu0 0.0
      %5601 = vmatpush1.msra.mxu0 %v4391
      %5602 = vmatprep.subr.mxu0 0.0
      %5603 = vmatpush1.msra.mxu0 %v4390
      %5604 = vmatprep.subr.mxu0 0.0
      %5605 = vmatpush1.msra.mxu0 %v4389
      %5606 = vmatprep.subr.mxu0 0.0
      %5607 = vmatpush1.msra.mxu0 %v4388
      %5608 = vmatprep.subr.mxu0 0.0
      %5609 = vmatpush1.msra.mxu0 %v4387
      %5610 = vmatprep.subr.mxu0 0.0
      %5611 = vmatpush1.msra.mxu0 %v4386
      %5612 = vmatprep.subr.mxu0 0.0
      %5613 = vmatpush1.msra.mxu0 %v4385
      %5614 = vmatprep.subr.mxu0 0.0
      %5615 = vmatpush1.msra.mxu0 %v4384
      %5616 = vmatprep.subr.mxu0 0.0
      %5617 = vmatpush1.msra.mxu0 %v4383
      %5618 = vmatprep.subr.mxu0 0.0
      %5619 = vmatpush1.msra.mxu0 %v4382
      %5620 = vmatprep.subr.mxu0 0.0
      %5621 = vmatpush2.msra.mxu0 %v4413
      %5622 = vmatprep.subr.mxu0 0.0
      %5623 = vmatpush2.msra.mxu0 %v4412
      %5624 = vmatprep.subr.mxu0 0.0
      %5625 = vmatpush2.msra.mxu0 %v4411
      %5626 = vmatprep.subr.mxu0 0.0
      %5627 = vmatpush2.msra.mxu0 %v4410
      %5628 = vmatprep.subr.mxu0 0.0
      %5629 = vmatpush2.msra.mxu0 %v4409
      %5630 = vmatprep.subr.mxu0 0.0
      %5631 = vmatpush2.msra.mxu0 %v4408
      %5632 = vmatprep.subr.mxu0 0.0
      %5633 = vmatpush2.msra.mxu0 %v4407
      %5634 = vmatprep.subr.mxu0 0.0
      %5635 = vmatpush2.msra.mxu0 %v4406
      %5636 = vmatprep.subr.mxu0 0.0
      %5637 = vmatpush2.msra.mxu0 %v4405
      %5638 = vmatprep.subr.mxu0 0.0
      %5639 = vmatpush2.msra.mxu0 %v4404
      %5640 = vmatprep.subr.mxu0 0.0
      %5641 = vmatpush2.msra.mxu0 %v4403
      %5642 = vmatprep.subr.mxu0 0.0
      %5643 = vmatpush2.msra.mxu0 %v4402
      %5644 = vmatprep.subr.mxu0 0.0
      %5645 = vmatpush2.msra.mxu0 %v4401
      %5646 = vmatprep.subr.mxu0 0.0
      %5647 = vmatpush2.msra.mxu0 %v4400
      %5648 = vmatprep.subr.mxu0 0.0
      %5649 = vmatpush2.msra.mxu0 %v4399
      %5650 = vmatprep.subr.mxu0 0.0
      %5651 = vmatpush2.msra.mxu0 %v4398
      %5652 = vmatprep.mubr.f32.mxu0 %v3651
      %5653 = vmatmul.mubr.f32.gmra.mxu0 %v3650
      %v5654 = vpop.f32.mrf.mxu0
      %v5655 = vadd.f32 %v5585, %v5654
      %v5656 = vpop.f32.mrf.mxu0
      %5657 = vdwg.mxu0
      %5658 = vmatprep.subr.mxu0 0.0
      %5659 = vmatpush1.msra.mxu0 %v4429
      %5660 = vmatprep.subr.mxu0 0.0
      %5661 = vmatpush1.msra.mxu0 %v4428
      %5662 = vmatprep.subr.mxu0 0.0
      %5663 = vmatpush1.msra.mxu0 %v4427
      %5664 = vmatprep.subr.mxu0 0.0
      %5665 = vmatpush1.msra.mxu0 %v4426
      %5666 = vmatprep.subr.mxu0 0.0
      %5667 = vmatpush1.msra.mxu0 %v4425
      %5668 = vmatprep.subr.mxu0 0.0
      %5669 = vmatpush1.msra.mxu0 %v4424
      %5670 = vmatprep.subr.mxu0 0.0
      %5671 = vmatpush1.msra.mxu0 %v4423
      %5672 = vmatprep.subr.mxu0 0.0
      %5673 = vmatpush1.msra.mxu0 %v4422
      %5674 = vmatprep.subr.mxu0 0.0
      %5675 = vmatpush1.msra.mxu0 %v4421
      %5676 = vmatprep.subr.mxu0 0.0
      %5677 = vmatpush1.msra.mxu0 %v4420
      %5678 = vmatprep.subr.mxu0 0.0
      %5679 = vmatpush1.msra.mxu0 %v4419
      %5680 = vmatprep.subr.mxu0 0.0
      %5681 = vmatpush1.msra.mxu0 %v4418
      %5682 = vmatprep.subr.mxu0 0.0
      %5683 = vmatpush1.msra.mxu0 %v4417
      %5684 = vmatprep.subr.mxu0 0.0
      %5685 = vmatpush1.msra.mxu0 %v4416
      %5686 = vmatprep.subr.mxu0 0.0
      %5687 = vmatpush1.msra.mxu0 %v4415
      %5688 = vmatprep.subr.mxu0 0.0
      %5689 = vmatpush1.msra.mxu0 %v4414
      %5690 = vmatprep.subr.mxu0 0.0
      %5691 = vmatpush2.msra.mxu0 %v4445
      %5692 = vmatprep.subr.mxu0 0.0
      %5693 = vmatpush2.msra.mxu0 %v4444
      %5694 = vmatprep.subr.mxu0 0.0
      %5695 = vmatpush2.msra.mxu0 %v4443
      %5696 = vmatprep.subr.mxu0 0.0
      %5697 = vmatpush2.msra.mxu0 %v4442
      %5698 = vmatprep.subr.mxu0 0.0
      %5699 = vmatpush2.msra.mxu0 %v4441
      %5700 = vmatprep.subr.mxu0 0.0
      %5701 = vmatpush2.msra.mxu0 %v4440
      %5702 = vmatprep.subr.mxu0 0.0
      %5703 = vmatpush2.msra.mxu0 %v4439
      %5704 = vmatprep.subr.mxu0 0.0
      %5705 = vmatpush2.msra.mxu0 %v4438
      %5706 = vmatprep.subr.mxu0 0.0
      %5707 = vmatpush2.msra.mxu0 %v4437
      %5708 = vmatprep.subr.mxu0 0.0
      %5709 = vmatpush2.msra.mxu0 %v4436
      %5710 = vmatprep.subr.mxu0 0.0
      %5711 = vmatpush2.msra.mxu0 %v4435
      %5712 = vmatprep.subr.mxu0 0.0
      %5713 = vmatpush2.msra.mxu0 %v4434
      %5714 = vmatprep.subr.mxu0 0.0
      %5715 = vmatpush2.msra.mxu0 %v4433
      %5716 = vmatprep.subr.mxu0 0.0
      %5717 = vmatpush2.msra.mxu0 %v4432
      %5718 = vmatprep.subr.mxu0 0.0
      %5719 = vmatpush2.msra.mxu0 %v4431
      %5720 = vmatprep.subr.mxu0 0.0
      %5721 = vmatpush2.msra.mxu0 %v4430
      %5722 = vmatprep.mubr.f32.mxu0 %v3653
      %5723 = vmatmul.mubr.f32.gmra.mxu0 %v3652
      %v5724 = vpop.f32.mrf.mxu0
      %v5725 = vadd.f32 %v5655, %v5724
      %v5726 = vpop.f32.mrf.mxu0
      %5727 = vdwg.mxu0
      %5728 = vmatprep.subr.mxu0 0.0
      %5729 = vmatpush1.msra.mxu0 %v4461
      %5730 = vmatprep.subr.mxu0 0.0
      %5731 = vmatpush1.msra.mxu0 %v4460
      %5732 = vmatprep.subr.mxu0 0.0
      %5733 = vmatpush1.msra.mxu0 %v4459
      %5734 = vmatprep.subr.mxu0 0.0
      %5735 = vmatpush1.msra.mxu0 %v4458
      %5736 = vmatprep.subr.mxu0 0.0
      %5737 = vmatpush1.msra.mxu0 %v4457
      %5738 = vmatprep.subr.mxu0 0.0
      %5739 = vmatpush1.msra.mxu0 %v4456
      %5740 = vmatprep.subr.mxu0 0.0
      %5741 = vmatpush1.msra.mxu0 %v4455
      %5742 = vmatprep.subr.mxu0 0.0
      %5743 = vmatpush1.msra.mxu0 %v4454
      %5744 = vmatprep.subr.mxu0 0.0
      %5745 = vmatpush1.msra.mxu0 %v4453
      %5746 = vmatprep.subr.mxu0 0.0
      %5747 = vmatpush1.msra.mxu0 %v4452
      %5748 = vmatprep.subr.mxu0 0.0
      %5749 = vmatpush1.msra.mxu0 %v4451
      %5750 = vmatprep.subr.mxu0 0.0
      %5751 = vmatpush1.msra.mxu0 %v4450
      %5752 = vmatprep.subr.mxu0 0.0
      %5753 = vmatpush1.msra.mxu0 %v4449
      %5754 = vmatprep.subr.mxu0 0.0
      %5755 = vmatpush1.msra.mxu0 %v4448
      %5756 = vmatprep.subr.mxu0 0.0
      %5757 = vmatpush1.msra.mxu0 %v4447
      %5758 = vmatprep.subr.mxu0 0.0
      %5759 = vmatpush1.msra.mxu0 %v4446
      %5760 = vmatprep.subr.mxu0 0.0
      %5761 = vmatpush2.msra.mxu0 %v4477
      %5762 = vmatprep.subr.mxu0 0.0
      %5763 = vmatpush2.msra.mxu0 %v4476
      %5764 = vmatprep.subr.mxu0 0.0
      %5765 = vmatpush2.msra.mxu0 %v4475
      %5766 = vmatprep.subr.mxu0 0.0
      %5767 = vmatpush2.msra.mxu0 %v4474
      %5768 = vmatprep.subr.mxu0 0.0
      %5769 = vmatpush2.msra.mxu0 %v4473
      %5770 = vmatprep.subr.mxu0 0.0
      %5771 = vmatpush2.msra.mxu0 %v4472
      %5772 = vmatprep.subr.mxu0 0.0
      %5773 = vmatpush2.msra.mxu0 %v4471
      %5774 = vmatprep.subr.mxu0 0.0
      %5775 = vmatpush2.msra.mxu0 %v4470
      %5776 = vmatprep.subr.mxu0 0.0
      %5777 = vmatpush2.msra.mxu0 %v4469
      %5778 = vmatprep.subr.mxu0 0.0
      %5779 = vmatpush2.msra.mxu0 %v4468
      %5780 = vmatprep.subr.mxu0 0.0
      %5781 = vmatpush2.msra.mxu0 %v4467
      %5782 = vmatprep.subr.mxu0 0.0
      %5783 = vmatpush2.msra.mxu0 %v4466
      %5784 = vmatprep.subr.mxu0 0.0
      %5785 = vmatpush2.msra.mxu0 %v4465
      %5786 = vmatprep.subr.mxu0 0.0
      %5787 = vmatpush2.msra.mxu0 %v4464
      %5788 = vmatprep.subr.mxu0 0.0
      %5789 = vmatpush2.msra.mxu0 %v4463
      %5790 = vmatprep.subr.mxu0 0.0
      %5791 = vmatpush2.msra.mxu0 %v4462
      %5792 = vmatprep.mubr.f32.mxu0 %v3655
      %5793 = vmatmul.mubr.f32.gmra.mxu0 %v3654
      %v5794 = vpop.f32.mrf.mxu0
      %v5795 = vadd.f32 %v5725, %v5794
      %v5796 = vpop.f32.mrf.mxu0
      %5797 = vdwg.mxu0
      %5798 = vmatprep.subr.mxu0 0.0
      %5799 = vmatpush1.msra.mxu0 %v4493
      %5800 = vmatprep.subr.mxu0 0.0
      %5801 = vmatpush1.msra.mxu0 %v4492
      %5802 = vmatprep.subr.mxu0 0.0
      %5803 = vmatpush1.msra.mxu0 %v4491
      %5804 = vmatprep.subr.mxu0 0.0
      %5805 = vmatpush1.msra.mxu0 %v4490
      %5806 = vmatprep.subr.mxu0 0.0
      %5807 = vmatpush1.msra.mxu0 %v4489
      %5808 = vmatprep.subr.mxu0 0.0
      %5809 = vmatpush1.msra.mxu0 %v4488
      %5810 = vmatprep.subr.mxu0 0.0
      %5811 = vmatpush1.msra.mxu0 %v4487
      %5812 = vmatprep.subr.mxu0 0.0
      %5813 = vmatpush1.msra.mxu0 %v4486
      %5814 = vmatprep.subr.mxu0 0.0
      %5815 = vmatpush1.msra.mxu0 %v4485
      %5816 = vmatprep.subr.mxu0 0.0
      %5817 = vmatpush1.msra.mxu0 %v4484
      %5818 = vmatprep.subr.mxu0 0.0
      %5819 = vmatpush1.msra.mxu0 %v4483
      %5820 = vmatprep.subr.mxu0 0.0
      %5821 = vmatpush1.msra.mxu0 %v4482
      %5822 = vmatprep.subr.mxu0 0.0
      %5823 = vmatpush1.msra.mxu0 %v4481
      %5824 = vmatprep.subr.mxu0 0.0
      %5825 = vmatpush1.msra.mxu0 %v4480
      %5826 = vmatprep.subr.mxu0 0.0
      %5827 = vmatpush1.msra.mxu0 %v4479
      %5828 = vmatprep.subr.mxu0 0.0
      %5829 = vmatpush1.msra.mxu0 %v4478
      %5830 = vmatprep.subr.mxu0 0.0
      %5831 = vmatpush2.msra.mxu0 %v4509
      %5832 = vmatprep.subr.mxu0 0.0
      %5833 = vmatpush2.msra.mxu0 %v4508
      %5834 = vmatprep.subr.mxu0 0.0
      %5835 = vmatpush2.msra.mxu0 %v4507
      %5836 = vmatprep.subr.mxu0 0.0
      %5837 = vmatpush2.msra.mxu0 %v4506
      %5838 = vmatprep.subr.mxu0 0.0
      %5839 = vmatpush2.msra.mxu0 %v4505
      %5840 = vmatprep.subr.mxu0 0.0
      %5841 = vmatpush2.msra.mxu0 %v4504
      %5842 = vmatprep.subr.mxu0 0.0
      %5843 = vmatpush2.msra.mxu0 %v4503
      %5844 = vmatprep.subr.mxu0 0.0
      %5845 = vmatpush2.msra.mxu0 %v4502
      %5846 = vmatprep.subr.mxu0 0.0
      %5847 = vmatpush2.msra.mxu0 %v4501
      %5848 = vmatprep.subr.mxu0 0.0
      %5849 = vmatpush2.msra.mxu0 %v4500
      %5850 = vmatprep.subr.mxu0 0.0
      %5851 = vmatpush2.msra.mxu0 %v4499
      %5852 = vmatprep.subr.mxu0 0.0
      %5853 = vmatpush2.msra.mxu0 %v4498
      %5854 = vmatprep.subr.mxu0 0.0
      %5855 = vmatpush2.msra.mxu0 %v4497
      %5856 = vmatprep.subr.mxu0 0.0
      %5857 = vmatpush2.msra.mxu0 %v4496
      %5858 = vmatprep.subr.mxu0 0.0
      %5859 = vmatpush2.msra.mxu0 %v4495
      %5860 = vmatprep.subr.mxu0 0.0
      %5861 = vmatpush2.msra.mxu0 %v4494
      %5862 = vmatprep.mubr.f32.mxu0 %v3657
      %5863 = vmatmul.mubr.f32.gmra.mxu0 %v3656
      %v5864 = vpop.f32.mrf.mxu0
      %v5865 = vadd.f32 %v5795, %v5864
      %v5866 = vpop.f32.mrf.mxu0
      %5867 = vdwg.mxu0
      %5868 = vmatprep.subr.mxu0 0.0
      %5869 = vmatpush1.msra.mxu0 %v4525
      %5870 = vmatprep.subr.mxu0 0.0
      %5871 = vmatpush1.msra.mxu0 %v4524
      %5872 = vmatprep.subr.mxu0 0.0
      %5873 = vmatpush1.msra.mxu0 %v4523
      %5874 = vmatprep.subr.mxu0 0.0
      %5875 = vmatpush1.msra.mxu0 %v4522
      %5876 = vmatprep.subr.mxu0 0.0
      %5877 = vmatpush1.msra.mxu0 %v4521
      %5878 = vmatprep.subr.mxu0 0.0
      %5879 = vmatpush1.msra.mxu0 %v4520
      %5880 = vmatprep.subr.mxu0 0.0
      %5881 = vmatpush1.msra.mxu0 %v4519
      %5882 = vmatprep.subr.mxu0 0.0
      %5883 = vmatpush1.msra.mxu0 %v4518
      %5884 = vmatprep.subr.mxu0 0.0
      %5885 = vmatpush1.msra.mxu0 %v4517
      %5886 = vmatprep.subr.mxu0 0.0
      %5887 = vmatpush1.msra.mxu0 %v4516
      %5888 = vmatprep.subr.mxu0 0.0
      %5889 = vmatpush1.msra.mxu0 %v4515
      %5890 = vmatprep.subr.mxu0 0.0
      %5891 = vmatpush1.msra.mxu0 %v4514
      %5892 = vmatprep.subr.mxu0 0.0
      %5893 = vmatpush1.msra.mxu0 %v4513
      %5894 = vmatprep.subr.mxu0 0.0
      %5895 = vmatpush1.msra.mxu0 %v4512
      %5896 = vmatprep.subr.mxu0 0.0
      %5897 = vmatpush1.msra.mxu0 %v4511
      %5898 = vmatprep.subr.mxu0 0.0
      %5899 = vmatpush1.msra.mxu0 %v4510
      %5900 = vmatprep.subr.mxu0 0.0
      %5901 = vmatpush2.msra.mxu0 %v4541
      %5902 = vmatprep.subr.mxu0 0.0
      %5903 = vmatpush2.msra.mxu0 %v4540
      %5904 = vmatprep.subr.mxu0 0.0
      %5905 = vmatpush2.msra.mxu0 %v4539
      %5906 = vmatprep.subr.mxu0 0.0
      %5907 = vmatpush2.msra.mxu0 %v4538
      %5908 = vmatprep.subr.mxu0 0.0
      %5909 = vmatpush2.msra.mxu0 %v4537
      %5910 = vmatprep.subr.mxu0 0.0
      %5911 = vmatpush2.msra.mxu0 %v4536
      %5912 = vmatprep.subr.mxu0 0.0
      %5913 = vmatpush2.msra.mxu0 %v4535
      %5914 = vmatprep.subr.mxu0 0.0
      %5915 = vmatpush2.msra.mxu0 %v4534
      %5916 = vmatprep.subr.mxu0 0.0
      %5917 = vmatpush2.msra.mxu0 %v4533
      %5918 = vmatprep.subr.mxu0 0.0
      %5919 = vmatpush2.msra.mxu0 %v4532
      %5920 = vmatprep.subr.mxu0 0.0
      %5921 = vmatpush2.msra.mxu0 %v4531
      %5922 = vmatprep.subr.mxu0 0.0
      %5923 = vmatpush2.msra.mxu0 %v4530
      %5924 = vmatprep.subr.mxu0 0.0
      %5925 = vmatpush2.msra.mxu0 %v4529
      %5926 = vmatprep.subr.mxu0 0.0
      %5927 = vmatpush2.msra.mxu0 %v4528
      %5928 = vmatprep.subr.mxu0 0.0
      %5929 = vmatpush2.msra.mxu0 %v4527
      %5930 = vmatprep.subr.mxu0 0.0
      %5931 = vmatpush2.msra.mxu0 %v4526
      %5932 = vmatprep.mubr.f32.mxu0 %v3659
      %5933 = vmatmul.mubr.f32.gmra.mxu0 %v3658
      %v5934 = vpop.f32.mrf.mxu0
      %v5935 = vadd.f32 %v5865, %v5934
      %v5936 = vpop.f32.mrf.mxu0
      %5937 = vdwg.mxu0
      %5938 = vmatprep.subr.mxu0 0.0
      %5939 = vmatpush1.msra.mxu0 %v4557
      %5940 = vmatprep.subr.mxu0 0.0
      %5941 = vmatpush1.msra.mxu0 %v4556
      %5942 = vmatprep.subr.mxu0 0.0
      %5943 = vmatpush1.msra.mxu0 %v4555
      %5944 = vmatprep.subr.mxu0 0.0
      %5945 = vmatpush1.msra.mxu0 %v4554
      %5946 = vmatprep.subr.mxu0 0.0
      %5947 = vmatpush1.msra.mxu0 %v4553
      %5948 = vmatprep.subr.mxu0 0.0
      %5949 = vmatpush1.msra.mxu0 %v4552
      %5950 = vmatprep.subr.mxu0 0.0
      %5951 = vmatpush1.msra.mxu0 %v4551
      %5952 = vmatprep.subr.mxu0 0.0
      %5953 = vmatpush1.msra.mxu0 %v4550
      %5954 = vmatprep.subr.mxu0 0.0
      %5955 = vmatpush1.msra.mxu0 %v4549
      %5956 = vmatprep.subr.mxu0 0.0
      %5957 = vmatpush1.msra.mxu0 %v4548
      %5958 = vmatprep.subr.mxu0 0.0
      %5959 = vmatpush1.msra.mxu0 %v4547
      %5960 = vmatprep.subr.mxu0 0.0
      %5961 = vmatpush1.msra.mxu0 %v4546
      %5962 = vmatprep.subr.mxu0 0.0
      %5963 = vmatpush1.msra.mxu0 %v4545
      %5964 = vmatprep.subr.mxu0 0.0
      %5965 = vmatpush1.msra.mxu0 %v4544
      %5966 = vmatprep.subr.mxu0 0.0
      %5967 = vmatpush1.msra.mxu0 %v4543
      %5968 = vmatprep.subr.mxu0 0.0
      %5969 = vmatpush1.msra.mxu0 %v4542
      %5970 = vmatprep.subr.mxu0 0.0
      %5971 = vmatpush2.msra.mxu0 %v4573
      %5972 = vmatprep.subr.mxu0 0.0
      %5973 = vmatpush2.msra.mxu0 %v4572
      %5974 = vmatprep.subr.mxu0 0.0
      %5975 = vmatpush2.msra.mxu0 %v4571
      %5976 = vmatprep.subr.mxu0 0.0
      %5977 = vmatpush2.msra.mxu0 %v4570
      %5978 = vmatprep.subr.mxu0 0.0
      %5979 = vmatpush2.msra.mxu0 %v4569
      %5980 = vmatprep.subr.mxu0 0.0
      %5981 = vmatpush2.msra.mxu0 %v4568
      %5982 = vmatprep.subr.mxu0 0.0
      %5983 = vmatpush2.msra.mxu0 %v4567
      %5984 = vmatprep.subr.mxu0 0.0
      %5985 = vmatpush2.msra.mxu0 %v4566
      %5986 = vmatprep.subr.mxu0 0.0
      %5987 = vmatpush2.msra.mxu0 %v4565
      %5988 = vmatprep.subr.mxu0 0.0
      %5989 = vmatpush2.msra.mxu0 %v4564
      %5990 = vmatprep.subr.mxu0 0.0
      %5991 = vmatpush2.msra.mxu0 %v4563
      %5992 = vmatprep.subr.mxu0 0.0
      %5993 = vmatpush2.msra.mxu0 %v4562
      %5994 = vmatprep.subr.mxu0 0.0
      %5995 = vmatpush2.msra.mxu0 %v4561
      %5996 = vmatprep.subr.mxu0 0.0
      %5997 = vmatpush2.msra.mxu0 %v4560
      %5998 = vmatprep.subr.mxu0 0.0
      %5999 = vmatpush2.msra.mxu0 %v4559
      %6000 = vmatprep.subr.mxu0 0.0
      %6001 = vmatpush2.msra.mxu0 %v4558
      %6002 = vmatprep.mubr.f32.mxu0 %v3661
      %6003 = vmatmul.mubr.f32.gmra.mxu0 %v3660
      %v6004 = vpop.f32.mrf.mxu0
      %v6005 = vadd.f32 %v5935, %v6004
      %v6006 = vpop.f32.mrf.mxu0
      %6007 = vdwg.mxu0
      %6008 = vmatprep.subr.mxu0 0.0
      %6009 = vmatpush1.msra.mxu0 %v4589
      %6010 = vmatprep.subr.mxu0 0.0
      %6011 = vmatpush1.msra.mxu0 %v4588
      %6012 = vmatprep.subr.mxu0 0.0
      %6013 = vmatpush1.msra.mxu0 %v4587
      %6014 = vmatprep.subr.mxu0 0.0
      %6015 = vmatpush1.msra.mxu0 %v4586
      %6016 = vmatprep.subr.mxu0 0.0
      %6017 = vmatpush1.msra.mxu0 %v4585
      %6018 = vmatprep.subr.mxu0 0.0
      %6019 = vmatpush1.msra.mxu0 %v4584
      %6020 = vmatprep.subr.mxu0 0.0
      %6021 = vmatpush1.msra.mxu0 %v4583
      %6022 = vmatprep.subr.mxu0 0.0
      %6023 = vmatpush1.msra.mxu0 %v4582
      %6024 = vmatprep.subr.mxu0 0.0
      %6025 = vmatpush1.msra.mxu0 %v4581
      %6026 = vmatprep.subr.mxu0 0.0
      %6027 = vmatpush1.msra.mxu0 %v4580
      %6028 = vmatprep.subr.mxu0 0.0
      %6029 = vmatpush1.msra.mxu0 %v4579
      %6030 = vmatprep.subr.mxu0 0.0
      %6031 = vmatpush1.msra.mxu0 %v4578
      %6032 = vmatprep.subr.mxu0 0.0
      %6033 = vmatpush1.msra.mxu0 %v4577
      %6034 = vmatprep.subr.mxu0 0.0
      %6035 = vmatpush1.msra.mxu0 %v4576
      %6036 = vmatprep.subr.mxu0 0.0
      %6037 = vmatpush1.msra.mxu0 %v4575
      %6038 = vmatprep.subr.mxu0 0.0
      %6039 = vmatpush1.msra.mxu0 %v4574
      %6040 = vmatprep.subr.mxu0 0.0
      %6041 = vmatpush2.msra.mxu0 %v4605
      %6042 = vmatprep.subr.mxu0 0.0
      %6043 = vmatpush2.msra.mxu0 %v4604
      %6044 = vmatprep.subr.mxu0 0.0
      %6045 = vmatpush2.msra.mxu0 %v4603
      %6046 = vmatprep.subr.mxu0 0.0
      %6047 = vmatpush2.msra.mxu0 %v4602
      %6048 = vmatprep.subr.mxu0 0.0
      %6049 = vmatpush2.msra.mxu0 %v4601
      %6050 = vmatprep.subr.mxu0 0.0
      %6051 = vmatpush2.msra.mxu0 %v4600
      %6052 = vmatprep.subr.mxu0 0.0
      %6053 = vmatpush2.msra.mxu0 %v4599
      %6054 = vmatprep.subr.mxu0 0.0
      %6055 = vmatpush2.msra.mxu0 %v4598
      %6056 = vmatprep.subr.mxu0 0.0
      %6057 = vmatpush2.msra.mxu0 %v4597
      %6058 = vmatprep.subr.mxu0 0.0
      %6059 = vmatpush2.msra.mxu0 %v4596
      %6060 = vmatprep.subr.mxu0 0.0
      %6061 = vmatpush2.msra.mxu0 %v4595
      %6062 = vmatprep.subr.mxu0 0.0
      %6063 = vmatpush2.msra.mxu0 %v4594
      %6064 = vmatprep.subr.mxu0 0.0
      %6065 = vmatpush2.msra.mxu0 %v4593
      %6066 = vmatprep.subr.mxu0 0.0
      %6067 = vmatpush2.msra.mxu0 %v4592
      %6068 = vmatprep.subr.mxu0 0.0
      %6069 = vmatpush2.msra.mxu0 %v4591
      %6070 = vmatprep.subr.mxu0 0.0
      %6071 = vmatpush2.msra.mxu0 %v4590
      %6072 = vmatprep.mubr.f32.mxu0 %v3663
      %6073 = vmatmul.mubr.f32.gmra.mxu0 %v3662
      %v6074 = vpop.f32.mrf.mxu0
      %v6075 = vadd.f32 %v6005, %v6074
      %v6076 = vpop.f32.mrf.mxu0
      %6077 = vdwg.mxu0
      %6078 = vmatprep.subr.mxu0 0.0
      %6079 = vmatpush1.msra.mxu0 %v4621
      %6080 = vmatprep.subr.mxu0 0.0
      %6081 = vmatpush1.msra.mxu0 %v4620
      %6082 = vmatprep.subr.mxu0 0.0
      %6083 = vmatpush1.msra.mxu0 %v4619
      %6084 = vmatprep.subr.mxu0 0.0
      %6085 = vmatpush1.msra.mxu0 %v4618
      %6086 = vmatprep.subr.mxu0 0.0
      %6087 = vmatpush1.msra.mxu0 %v4617
      %6088 = vmatprep.subr.mxu0 0.0
      %6089 = vmatpush1.msra.mxu0 %v4616
      %6090 = vmatprep.subr.mxu0 0.0
      %6091 = vmatpush1.msra.mxu0 %v4615
      %6092 = vmatprep.subr.mxu0 0.0
      %6093 = vmatpush1.msra.mxu0 %v4614
      %6094 = vmatprep.subr.mxu0 0.0
      %6095 = vmatpush1.msra.mxu0 %v4613
      %6096 = vmatprep.subr.mxu0 0.0
      %6097 = vmatpush1.msra.mxu0 %v4612
      %6098 = vmatprep.subr.mxu0 0.0
      %6099 = vmatpush1.msra.mxu0 %v4611
      %6100 = vmatprep.subr.mxu0 0.0
      %6101 = vmatpush1.msra.mxu0 %v4610
      %6102 = vmatprep.subr.mxu0 0.0
      %6103 = vmatpush1.msra.mxu0 %v4609
      %6104 = vmatprep.subr.mxu0 0.0
      %6105 = vmatpush1.msra.mxu0 %v4608
      %6106 = vmatprep.subr.mxu0 0.0
      %6107 = vmatpush1.msra.mxu0 %v4607
      %6108 = vmatprep.subr.mxu0 0.0
      %6109 = vmatpush1.msra.mxu0 %v4606
      %6110 = vmatprep.subr.mxu0 0.0
      %6111 = vmatpush2.msra.mxu0 %v4637
      %6112 = vmatprep.subr.mxu0 0.0
      %6113 = vmatpush2.msra.mxu0 %v4636
      %6114 = vmatprep.subr.mxu0 0.0
      %6115 = vmatpush2.msra.mxu0 %v4635
      %6116 = vmatprep.subr.mxu0 0.0
      %6117 = vmatpush2.msra.mxu0 %v4634
      %6118 = vmatprep.subr.mxu0 0.0
      %6119 = vmatpush2.msra.mxu0 %v4633
      %6120 = vmatprep.subr.mxu0 0.0
      %6121 = vmatpush2.msra.mxu0 %v4632
      %6122 = vmatprep.subr.mxu0 0.0
      %6123 = vmatpush2.msra.mxu0 %v4631
      %6124 = vmatprep.subr.mxu0 0.0
      %6125 = vmatpush2.msra.mxu0 %v4630
      %6126 = vmatprep.subr.mxu0 0.0
      %6127 = vmatpush2.msra.mxu0 %v4629
      %6128 = vmatprep.subr.mxu0 0.0
      %6129 = vmatpush2.msra.mxu0 %v4628
      %6130 = vmatprep.subr.mxu0 0.0
      %6131 = vmatpush2.msra.mxu0 %v4627
      %6132 = vmatprep.subr.mxu0 0.0
      %6133 = vmatpush2.msra.mxu0 %v4626
      %6134 = vmatprep.subr.mxu0 0.0
      %6135 = vmatpush2.msra.mxu0 %v4625
      %6136 = vmatprep.subr.mxu0 0.0
      %6137 = vmatpush2.msra.mxu0 %v4624
      %6138 = vmatprep.subr.mxu0 0.0
      %6139 = vmatpush2.msra.mxu0 %v4623
      %6140 = vmatprep.subr.mxu0 0.0
      %6141 = vmatpush2.msra.mxu0 %v4622
      %6142 = vmatprep.mubr.f32.mxu0 %v3665
      %6143 = vmatmul.mubr.f32.gmra.mxu0 %v3664
      %v6144 = vpop.f32.mrf.mxu0
      %v6145 = vadd.f32 %v6075, %v6144
      %v6146 = vpop.f32.mrf.mxu0
      %6147 = vdwg.mxu0
      %6148 = vmatprep.subr.mxu0 0.0
      %6149 = vmatpush1.msra.mxu0 %v4653
      %6150 = vmatprep.subr.mxu0 0.0
      %6151 = vmatpush1.msra.mxu0 %v4652
      %6152 = vmatprep.subr.mxu0 0.0
      %6153 = vmatpush1.msra.mxu0 %v4651
      %6154 = vmatprep.subr.mxu0 0.0
      %6155 = vmatpush1.msra.mxu0 %v4650
      %6156 = vmatprep.subr.mxu0 0.0
      %6157 = vmatpush1.msra.mxu0 %v4649
      %6158 = vmatprep.subr.mxu0 0.0
      %6159 = vmatpush1.msra.mxu0 %v4648
      %6160 = vmatprep.subr.mxu0 0.0
      %6161 = vmatpush1.msra.mxu0 %v4647
      %6162 = vmatprep.subr.mxu0 0.0
      %6163 = vmatpush1.msra.mxu0 %v4646
      %6164 = vmatprep.subr.mxu0 0.0
      %6165 = vmatpush1.msra.mxu0 %v4645
      %6166 = vmatprep.subr.mxu0 0.0
      %6167 = vmatpush1.msra.mxu0 %v4644
      %6168 = vmatprep.subr.mxu0 0.0
      %6169 = vmatpush1.msra.mxu0 %v4643
      %6170 = vmatprep.subr.mxu0 0.0
      %6171 = vmatpush1.msra.mxu0 %v4642
      %6172 = vmatprep.subr.mxu0 0.0
      %6173 = vmatpush1.msra.mxu0 %v4641
      %6174 = vmatprep.subr.mxu0 0.0
      %6175 = vmatpush1.msra.mxu0 %v4640
      %6176 = vmatprep.subr.mxu0 0.0
      %6177 = vmatpush1.msra.mxu0 %v4639
      %6178 = vmatprep.subr.mxu0 0.0
      %6179 = vmatpush1.msra.mxu0 %v4638
      %6180 = vmatprep.subr.mxu0 0.0
      %6181 = vmatpush2.msra.mxu0 %v4669
      %6182 = vmatprep.subr.mxu0 0.0
      %6183 = vmatpush2.msra.mxu0 %v4668
      %6184 = vmatprep.subr.mxu0 0.0
      %6185 = vmatpush2.msra.mxu0 %v4667
      %6186 = vmatprep.subr.mxu0 0.0
      %6187 = vmatpush2.msra.mxu0 %v4666
      %6188 = vmatprep.subr.mxu0 0.0
      %6189 = vmatpush2.msra.mxu0 %v4665
      %6190 = vmatprep.subr.mxu0 0.0
      %6191 = vmatpush2.msra.mxu0 %v4664
      %6192 = vmatprep.subr.mxu0 0.0
      %6193 = vmatpush2.msra.mxu0 %v4663
      %6194 = vmatprep.subr.mxu0 0.0
      %6195 = vmatpush2.msra.mxu0 %v4662
      %6196 = vmatprep.subr.mxu0 0.0
      %6197 = vmatpush2.msra.mxu0 %v4661
      %6198 = vmatprep.subr.mxu0 0.0
      %6199 = vmatpush2.msra.mxu0 %v4660
      %6200 = vmatprep.subr.mxu0 0.0
      %6201 = vmatpush2.msra.mxu0 %v4659
      %6202 = vmatprep.subr.mxu0 0.0
      %6203 = vmatpush2.msra.mxu0 %v4658
      %6204 = vmatprep.subr.mxu0 0.0
      %6205 = vmatpush2.msra.mxu0 %v4657
      %6206 = vmatprep.subr.mxu0 0.0
      %6207 = vmatpush2.msra.mxu0 %v4656
      %6208 = vmatprep.subr.mxu0 0.0
      %6209 = vmatpush2.msra.mxu0 %v4655
      %6210 = vmatprep.subr.mxu0 0.0
      %6211 = vmatpush2.msra.mxu0 %v4654
      %6212 = vmatprep.mubr.f32.mxu0 %v3667
      %6213 = vmatmul.mubr.f32.gmra.mxu0 %v3666
      %v6214 = vpop.f32.mrf.mxu0
      %v6215 = vadd.f32 %v6145, %v6214
      %v6216 = vpop.f32.mrf.mxu0
      %6217 = vdwg.mxu0
      %6218 = vmatprep.subr.mxu0 0.0
      %6219 = vmatpush1.msra.mxu0 %v4685
      %6220 = vmatprep.subr.mxu0 0.0
      %6221 = vmatpush1.msra.mxu0 %v4684
      %6222 = vmatprep.subr.mxu0 0.0
      %6223 = vmatpush1.msra.mxu0 %v4683
      %6224 = vmatprep.subr.mxu0 0.0
      %6225 = vmatpush1.msra.mxu0 %v4682
      %6226 = vmatprep.subr.mxu0 0.0
      %6227 = vmatpush1.msra.mxu0 %v4681
      %6228 = vmatprep.subr.mxu0 0.0
      %6229 = vmatpush1.msra.mxu0 %v4680
      %6230 = vmatprep.subr.mxu0 0.0
      %6231 = vmatpush1.msra.mxu0 %v4679
      %6232 = vmatprep.subr.mxu0 0.0
      %6233 = vmatpush1.msra.mxu0 %v4678
      %6234 = vmatprep.subr.mxu0 0.0
      %6235 = vmatpush1.msra.mxu0 %v4677
      %6236 = vmatprep.subr.mxu0 0.0
      %6237 = vmatpush1.msra.mxu0 %v4676
      %6238 = vmatprep.subr.mxu0 0.0
      %6239 = vmatpush1.msra.mxu0 %v4675
      %6240 = vmatprep.subr.mxu0 0.0
      %6241 = vmatpush1.msra.mxu0 %v4674
      %6242 = vmatprep.subr.mxu0 0.0
      %6243 = vmatpush1.msra.mxu0 %v4673
      %6244 = vmatprep.subr.mxu0 0.0
      %6245 = vmatpush1.msra.mxu0 %v4672
      %6246 = vmatprep.subr.mxu0 0.0
      %6247 = vmatpush1.msra.mxu0 %v4671
      %6248 = vmatprep.subr.mxu0 0.0
      %6249 = vmatpush1.msra.mxu0 %v4670
      %6250 = vmatprep.subr.mxu0 0.0
      %6251 = vmatpush2.msra.mxu0 %v4701
      %6252 = vmatprep.subr.mxu0 0.0
      %6253 = vmatpush2.msra.mxu0 %v4700
      %6254 = vmatprep.subr.mxu0 0.0
      %6255 = vmatpush2.msra.mxu0 %v4699
      %6256 = vmatprep.subr.mxu0 0.0
      %6257 = vmatpush2.msra.mxu0 %v4698
      %6258 = vmatprep.subr.mxu0 0.0
      %6259 = vmatpush2.msra.mxu0 %v4697
      %6260 = vmatprep.subr.mxu0 0.0
      %6261 = vmatpush2.msra.mxu0 %v4696
      %6262 = vmatprep.subr.mxu0 0.0
      %6263 = vmatpush2.msra.mxu0 %v4695
      %6264 = vmatprep.subr.mxu0 0.0
      %6265 = vmatpush2.msra.mxu0 %v4694
      %6266 = vmatprep.subr.mxu0 0.0
      %6267 = vmatpush2.msra.mxu0 %v4693
      %6268 = vmatprep.subr.mxu0 0.0
      %6269 = vmatpush2.msra.mxu0 %v4692
      %6270 = vmatprep.subr.mxu0 0.0
      %6271 = vmatpush2.msra.mxu0 %v4691
      %6272 = vmatprep.subr.mxu0 0.0
      %6273 = vmatpush2.msra.mxu0 %v4690
      %6274 = vmatprep.subr.mxu0 0.0
      %6275 = vmatpush2.msra.mxu0 %v4689
      %6276 = vmatprep.subr.mxu0 0.0
      %6277 = vmatpush2.msra.mxu0 %v4688
      %6278 = vmatprep.subr.mxu0 0.0
      %6279 = vmatpush2.msra.mxu0 %v4687
      %6280 = vmatprep.subr.mxu0 0.0
      %6281 = vmatpush2.msra.mxu0 %v4686
      %6282 = vmatprep.mubr.f32.mxu0 %v3669
      %6283 = vmatmul.mubr.f32.gmra.mxu0 %v3668
      %v6284 = vpop.f32.mrf.mxu0
      %v6285 = vadd.f32 %v6215, %v6284
      %v6286 = vpop.f32.mrf.mxu0
      %6287 = vdwg.mxu0
      %6288 = vmatprep.subr.mxu0 0.0
      %6289 = vmatpush1.msra.mxu0 %v4717
      %6290 = vmatprep.subr.mxu0 0.0
      %6291 = vmatpush1.msra.mxu0 %v4716
      %6292 = vmatprep.subr.mxu0 0.0
      %6293 = vmatpush1.msra.mxu0 %v4715
      %6294 = vmatprep.subr.mxu0 0.0
      %6295 = vmatpush1.msra.mxu0 %v4714
      %6296 = vmatprep.subr.mxu0 0.0
      %6297 = vmatpush1.msra.mxu0 %v4713
      %6298 = vmatprep.subr.mxu0 0.0
      %6299 = vmatpush1.msra.mxu0 %v4712
      %6300 = vmatprep.subr.mxu0 0.0
      %6301 = vmatpush1.msra.mxu0 %v4711
      %6302 = vmatprep.subr.mxu0 0.0
      %6303 = vmatpush1.msra.mxu0 %v4710
      %6304 = vmatprep.subr.mxu0 0.0
      %6305 = vmatpush1.msra.mxu0 %v4709
      %6306 = vmatprep.subr.mxu0 0.0
      %6307 = vmatpush1.msra.mxu0 %v4708
      %6308 = vmatprep.subr.mxu0 0.0
      %6309 = vmatpush1.msra.mxu0 %v4707
      %6310 = vmatprep.subr.mxu0 0.0
      %6311 = vmatpush1.msra.mxu0 %v4706
      %6312 = vmatprep.subr.mxu0 0.0
      %6313 = vmatpush1.msra.mxu0 %v4705
      %6314 = vmatprep.subr.mxu0 0.0
      %6315 = vmatpush1.msra.mxu0 %v4704
      %6316 = vmatprep.subr.mxu0 0.0
      %6317 = vmatpush1.msra.mxu0 %v4703
      %6318 = vmatprep.subr.mxu0 0.0
      %6319 = vmatpush1.msra.mxu0 %v4702
      %6320 = vmatprep.subr.mxu0 0.0
      %6321 = vmatpush2.msra.mxu0 %v4733
      %6322 = vmatprep.subr.mxu0 0.0
      %6323 = vmatpush2.msra.mxu0 %v4732
      %6324 = vmatprep.subr.mxu0 0.0
      %6325 = vmatpush2.msra.mxu0 %v4731
      %6326 = vmatprep.subr.mxu0 0.0
      %6327 = vmatpush2.msra.mxu0 %v4730
      %6328 = vmatprep.subr.mxu0 0.0
      %6329 = vmatpush2.msra.mxu0 %v4729
      %6330 = vmatprep.subr.mxu0 0.0
      %6331 = vmatpush2.msra.mxu0 %v4728
      %6332 = vmatprep.subr.mxu0 0.0
      %6333 = vmatpush2.msra.mxu0 %v4727
      %6334 = vmatprep.subr.mxu0 0.0
      %6335 = vmatpush2.msra.mxu0 %v4726
      %6336 = vmatprep.subr.mxu0 0.0
      %6337 = vmatpush2.msra.mxu0 %v4725
      %6338 = vmatprep.subr.mxu0 0.0
      %6339 = vmatpush2.msra.mxu0 %v4724
      %6340 = vmatprep.subr.mxu0 0.0
      %6341 = vmatpush2.msra.mxu0 %v4723
      %6342 = vmatprep.subr.mxu0 0.0
      %6343 = vmatpush2.msra.mxu0 %v4722
      %6344 = vmatprep.subr.mxu0 0.0
      %6345 = vmatpush2.msra.mxu0 %v4721
      %6346 = vmatprep.subr.mxu0 0.0
      %6347 = vmatpush2.msra.mxu0 %v4720
      %6348 = vmatprep.subr.mxu0 0.0
      %6349 = vmatpush2.msra.mxu0 %v4719
      %6350 = vmatprep.subr.mxu0 0.0
      %6351 = vmatpush2.msra.mxu0 %v4718
      %6352 = vmatprep.mubr.f32.mxu0 %v3671
      %6353 = vmatmul.mubr.f32.gmra.mxu0 %v3670
      %v6354 = vpop.f32.mrf.mxu0
      %v6355 = vadd.f32 %v6285, %v6354
      %v6356 = vpop.f32.mrf.mxu0
      %6357 = vdwg.mxu0
      %6358 = vmatprep.subr.mxu0 0.0
      %6359 = vmatpush1.msra.mxu0 %v4749
      %6360 = vmatprep.subr.mxu0 0.0
      %6361 = vmatpush1.msra.mxu0 %v4748
      %6362 = vmatprep.subr.mxu0 0.0
      %6363 = vmatpush1.msra.mxu0 %v4747
      %6364 = vmatprep.subr.mxu0 0.0
      %6365 = vmatpush1.msra.mxu0 %v4746
      %6366 = vmatprep.subr.mxu0 0.0
      %6367 = vmatpush1.msra.mxu0 %v4745
      %6368 = vmatprep.subr.mxu0 0.0
      %6369 = vmatpush1.msra.mxu0 %v4744
      %6370 = vmatprep.subr.mxu0 0.0
      %6371 = vmatpush1.msra.mxu0 %v4743
      %6372 = vmatprep.subr.mxu0 0.0
      %6373 = vmatpush1.msra.mxu0 %v4742
      %6374 = vmatprep.subr.mxu0 0.0
      %6375 = vmatpush1.msra.mxu0 %v4741
      %6376 = vmatprep.subr.mxu0 0.0
      %6377 = vmatpush1.msra.mxu0 %v4740
      %6378 = vmatprep.subr.mxu0 0.0
      %6379 = vmatpush1.msra.mxu0 %v4739
      %6380 = vmatprep.subr.mxu0 0.0
      %6381 = vmatpush1.msra.mxu0 %v4738
      %6382 = vmatprep.subr.mxu0 0.0
      %6383 = vmatpush1.msra.mxu0 %v4737
      %6384 = vmatprep.subr.mxu0 0.0
      %6385 = vmatpush1.msra.mxu0 %v4736
      %6386 = vmatprep.subr.mxu0 0.0
      %6387 = vmatpush1.msra.mxu0 %v4735
      %6388 = vmatprep.subr.mxu0 0.0
      %6389 = vmatpush1.msra.mxu0 %v4734
      %6390 = vmatprep.subr.mxu0 0.0
      %6391 = vmatpush2.msra.mxu0 %v4765
      %6392 = vmatprep.subr.mxu0 0.0
      %6393 = vmatpush2.msra.mxu0 %v4764
      %6394 = vmatprep.subr.mxu0 0.0
      %6395 = vmatpush2.msra.mxu0 %v4763
      %6396 = vmatprep.subr.mxu0 0.0
      %6397 = vmatpush2.msra.mxu0 %v4762
      %6398 = vmatprep.subr.mxu0 0.0
      %6399 = vmatpush2.msra.mxu0 %v4761
      %6400 = vmatprep.subr.mxu0 0.0
      %6401 = vmatpush2.msra.mxu0 %v4760
      %6402 = vmatprep.subr.mxu0 0.0
      %6403 = vmatpush2.msra.mxu0 %v4759
      %6404 = vmatprep.subr.mxu0 0.0
      %6405 = vmatpush2.msra.mxu0 %v4758
      %6406 = vmatprep.subr.mxu0 0.0
      %6407 = vmatpush2.msra.mxu0 %v4757
      %6408 = vmatprep.subr.mxu0 0.0
      %6409 = vmatpush2.msra.mxu0 %v4756
      %6410 = vmatprep.subr.mxu0 0.0
      %6411 = vmatpush2.msra.mxu0 %v4755
      %6412 = vmatprep.subr.mxu0 0.0
      %6413 = vmatpush2.msra.mxu0 %v4754
      %6414 = vmatprep.subr.mxu0 0.0
      %6415 = vmatpush2.msra.mxu0 %v4753
      %6416 = vmatprep.subr.mxu0 0.0
      %6417 = vmatpush2.msra.mxu0 %v4752
      %6418 = vmatprep.subr.mxu0 0.0
      %6419 = vmatpush2.msra.mxu0 %v4751
      %6420 = vmatprep.subr.mxu0 0.0
      %6421 = vmatpush2.msra.mxu0 %v4750
      %6422 = vmatprep.mubr.f32.mxu0 %v3673
      %6423 = vmatmul.mubr.f32.gmra.mxu0 %v3672
      %v6424 = vpop.f32.mrf.mxu0
      %v6425 = vadd.f32 %v6355, %v6424
      %v6426 = vpop.f32.mrf.mxu0
      %6427 = vdwg.mxu0
      %6428 = vmatprep.subr.mxu0 0.0
      %6429 = vmatpush1.msra.mxu0 %v4781
      %6430 = vmatprep.subr.mxu0 0.0
      %6431 = vmatpush1.msra.mxu0 %v4780
      %6432 = vmatprep.subr.mxu0 0.0
      %6433 = vmatpush1.msra.mxu0 %v4779
      %6434 = vmatprep.subr.mxu0 0.0
      %6435 = vmatpush1.msra.mxu0 %v4778
      %6436 = vmatprep.subr.mxu0 0.0
      %6437 = vmatpush1.msra.mxu0 %v4777
      %6438 = vmatprep.subr.mxu0 0.0
      %6439 = vmatpush1.msra.mxu0 %v4776
      %6440 = vmatprep.subr.mxu0 0.0
      %6441 = vmatpush1.msra.mxu0 %v4775
      %6442 = vmatprep.subr.mxu0 0.0
      %6443 = vmatpush1.msra.mxu0 %v4774
      %6444 = vmatprep.subr.mxu0 0.0
      %6445 = vmatpush1.msra.mxu0 %v4773
      %6446 = vmatprep.subr.mxu0 0.0
      %6447 = vmatpush1.msra.mxu0 %v4772
      %6448 = vmatprep.subr.mxu0 0.0
      %6449 = vmatpush1.msra.mxu0 %v4771
      %6450 = vmatprep.subr.mxu0 0.0
      %6451 = vmatpush1.msra.mxu0 %v4770
      %6452 = vmatprep.subr.mxu0 0.0
      %6453 = vmatpush1.msra.mxu0 %v4769
      %6454 = vmatprep.subr.mxu0 0.0
      %6455 = vmatpush1.msra.mxu0 %v4768
      %6456 = vmatprep.subr.mxu0 0.0
      %6457 = vmatpush1.msra.mxu0 %v4767
      %6458 = vmatprep.subr.mxu0 0.0
      %6459 = vmatpush1.msra.mxu0 %v4766
      %6460 = vmatprep.subr.mxu0 0.0
      %6461 = vmatpush2.msra.mxu0 %v4797
      %6462 = vmatprep.subr.mxu0 0.0
      %6463 = vmatpush2.msra.mxu0 %v4796
      %6464 = vmatprep.subr.mxu0 0.0
      %6465 = vmatpush2.msra.mxu0 %v4795
      %6466 = vmatprep.subr.mxu0 0.0
      %6467 = vmatpush2.msra.mxu0 %v4794
      %6468 = vmatprep.subr.mxu0 0.0
      %6469 = vmatpush2.msra.mxu0 %v4793
      %6470 = vmatprep.subr.mxu0 0.0
      %6471 = vmatpush2.msra.mxu0 %v4792
      %6472 = vmatprep.subr.mxu0 0.0
      %6473 = vmatpush2.msra.mxu0 %v4791
      %6474 = vmatprep.subr.mxu0 0.0
      %6475 = vmatpush2.msra.mxu0 %v4790
      %6476 = vmatprep.subr.mxu0 0.0
      %6477 = vmatpush2.msra.mxu0 %v4789
      %6478 = vmatprep.subr.mxu0 0.0
      %6479 = vmatpush2.msra.mxu0 %v4788
      %6480 = vmatprep.subr.mxu0 0.0
      %6481 = vmatpush2.msra.mxu0 %v4787
      %6482 = vmatprep.subr.mxu0 0.0
      %6483 = vmatpush2.msra.mxu0 %v4786
      %6484 = vmatprep.subr.mxu0 0.0
      %6485 = vmatpush2.msra.mxu0 %v4785
      %6486 = vmatprep.subr.mxu0 0.0
      %6487 = vmatpush2.msra.mxu0 %v4784
      %6488 = vmatprep.subr.mxu0 0.0
      %6489 = vmatpush2.msra.mxu0 %v4783
      %6490 = vmatprep.subr.mxu0 0.0
      %6491 = vmatpush2.msra.mxu0 %v4782
      %6492 = vmatprep.mubr.f32.mxu0 %v3675
      %6493 = vmatmul.mubr.f32.gmra.mxu0 %v3674
      %v6494 = vpop.f32.mrf.mxu0
      %v6495 = vadd.f32 %v6425, %v6494
      %v6496 = vpop.f32.mrf.mxu0
      %6497 = vdwg.mxu0
      %6498 = vmatprep.subr.mxu0 0.0
      %6499 = vmatpush1.msra.mxu0 %v4813
      %6500 = vmatprep.subr.mxu0 0.0
      %6501 = vmatpush1.msra.mxu0 %v4812
      %6502 = vmatprep.subr.mxu0 0.0
      %6503 = vmatpush1.msra.mxu0 %v4811
      %6504 = vmatprep.subr.mxu0 0.0
      %6505 = vmatpush1.msra.mxu0 %v4810
      %6506 = vmatprep.subr.mxu0 0.0
      %6507 = vmatpush1.msra.mxu0 %v4809
      %6508 = vmatprep.subr.mxu0 0.0
      %6509 = vmatpush1.msra.mxu0 %v4808
      %6510 = vmatprep.subr.mxu0 0.0
      %6511 = vmatpush1.msra.mxu0 %v4807
      %6512 = vmatprep.subr.mxu0 0.0
      %6513 = vmatpush1.msra.mxu0 %v4806
      %6514 = vmatprep.subr.mxu0 0.0
      %6515 = vmatpush1.msra.mxu0 %v4805
      %6516 = vmatprep.subr.mxu0 0.0
      %6517 = vmatpush1.msra.mxu0 %v4804
      %6518 = vmatprep.subr.mxu0 0.0
      %6519 = vmatpush1.msra.mxu0 %v4803
      %6520 = vmatprep.subr.mxu0 0.0
      %6521 = vmatpush1.msra.mxu0 %v4802
      %6522 = vmatprep.subr.mxu0 0.0
      %6523 = vmatpush1.msra.mxu0 %v4801
      %6524 = vmatprep.subr.mxu0 0.0
      %6525 = vmatpush1.msra.mxu0 %v4800
      %6526 = vmatprep.subr.mxu0 0.0
      %6527 = vmatpush1.msra.mxu0 %v4799
      %6528 = vmatprep.subr.mxu0 0.0
      %6529 = vmatpush1.msra.mxu0 %v4798
      %6530 = vmatprep.subr.mxu0 0.0
      %6531 = vmatpush2.msra.mxu0 %v4829
      %6532 = vmatprep.subr.mxu0 0.0
      %6533 = vmatpush2.msra.mxu0 %v4828
      %6534 = vmatprep.subr.mxu0 0.0
      %6535 = vmatpush2.msra.mxu0 %v4827
      %6536 = vmatprep.subr.mxu0 0.0
      %6537 = vmatpush2.msra.mxu0 %v4826
      %6538 = vmatprep.subr.mxu0 0.0
      %6539 = vmatpush2.msra.mxu0 %v4825
      %6540 = vmatprep.subr.mxu0 0.0
      %6541 = vmatpush2.msra.mxu0 %v4824
      %6542 = vmatprep.subr.mxu0 0.0
      %6543 = vmatpush2.msra.mxu0 %v4823
      %6544 = vmatprep.subr.mxu0 0.0
      %6545 = vmatpush2.msra.mxu0 %v4822
      %6546 = vmatprep.subr.mxu0 0.0
      %6547 = vmatpush2.msra.mxu0 %v4821
      %6548 = vmatprep.subr.mxu0 0.0
      %6549 = vmatpush2.msra.mxu0 %v4820
      %6550 = vmatprep.subr.mxu0 0.0
      %6551 = vmatpush2.msra.mxu0 %v4819
      %6552 = vmatprep.subr.mxu0 0.0
      %6553 = vmatpush2.msra.mxu0 %v4818
      %6554 = vmatprep.subr.mxu0 0.0
      %6555 = vmatpush2.msra.mxu0 %v4817
      %6556 = vmatprep.subr.mxu0 0.0
      %6557 = vmatpush2.msra.mxu0 %v4816
      %6558 = vmatprep.subr.mxu0 0.0
      %6559 = vmatpush2.msra.mxu0 %v4815
      %6560 = vmatprep.subr.mxu0 0.0
      %6561 = vmatpush2.msra.mxu0 %v4814
      %6562 = vmatprep.mubr.f32.mxu0 %v3677
      %6563 = vmatmul.mubr.f32.gmra.mxu0 %v3676
      %v6564 = vpop.f32.mrf.mxu0
      %v6565 = vadd.f32 %v6495, %v6564
      %v6566 = vpop.f32.mrf.mxu0
      %6567 = vdwg.mxu0
      %6568 = vmatprep.subr.mxu0 0.0
      %6569 = vmatpush1.msra.mxu0 %v4845
      %6570 = vmatprep.subr.mxu0 0.0
      %6571 = vmatpush1.msra.mxu0 %v4844
      %6572 = vmatprep.subr.mxu0 0.0
      %6573 = vmatpush1.msra.mxu0 %v4843
      %6574 = vmatprep.subr.mxu0 0.0
      %6575 = vmatpush1.msra.mxu0 %v4842
      %6576 = vmatprep.subr.mxu0 0.0
      %6577 = vmatpush1.msra.mxu0 %v4841
      %6578 = vmatprep.subr.mxu0 0.0
      %6579 = vmatpush1.msra.mxu0 %v4840
      %6580 = vmatprep.subr.mxu0 0.0
      %6581 = vmatpush1.msra.mxu0 %v4839
      %6582 = vmatprep.subr.mxu0 0.0
      %6583 = vmatpush1.msra.mxu0 %v4838
      %6584 = vmatprep.subr.mxu0 0.0
      %6585 = vmatpush1.msra.mxu0 %v4837
      %6586 = vmatprep.subr.mxu0 0.0
      %6587 = vmatpush1.msra.mxu0 %v4836
      %6588 = vmatprep.subr.mxu0 0.0
      %6589 = vmatpush1.msra.mxu0 %v4835
      %6590 = vmatprep.subr.mxu0 0.0
      %6591 = vmatpush1.msra.mxu0 %v4834
      %6592 = vmatprep.subr.mxu0 0.0
      %6593 = vmatpush1.msra.mxu0 %v4833
      %6594 = vmatprep.subr.mxu0 0.0
      %6595 = vmatpush1.msra.mxu0 %v4832
      %6596 = vmatprep.subr.mxu0 0.0
      %6597 = vmatpush1.msra.mxu0 %v4831
      %6598 = vmatprep.subr.mxu0 0.0
      %6599 = vmatpush1.msra.mxu0 %v4830
      %6600 = vmatprep.subr.mxu0 0.0
      %6601 = vmatpush2.msra.mxu0 %v4861
      %6602 = vmatprep.subr.mxu0 0.0
      %6603 = vmatpush2.msra.mxu0 %v4860
      %6604 = vmatprep.subr.mxu0 0.0
      %6605 = vmatpush2.msra.mxu0 %v4859
      %6606 = vmatprep.subr.mxu0 0.0
      %6607 = vmatpush2.msra.mxu0 %v4858
      %6608 = vmatprep.subr.mxu0 0.0
      %6609 = vmatpush2.msra.mxu0 %v4857
      %6610 = vmatprep.subr.mxu0 0.0
      %6611 = vmatpush2.msra.mxu0 %v4856
      %6612 = vmatprep.subr.mxu0 0.0
      %6613 = vmatpush2.msra.mxu0 %v4855
      %6614 = vmatprep.subr.mxu0 0.0
      %6615 = vmatpush2.msra.mxu0 %v4854
      %6616 = vmatprep.subr.mxu0 0.0
      %6617 = vmatpush2.msra.mxu0 %v4853
      %6618 = vmatprep.subr.mxu0 0.0
      %6619 = vmatpush2.msra.mxu0 %v4852
      %6620 = vmatprep.subr.mxu0 0.0
      %6621 = vmatpush2.msra.mxu0 %v4851
      %6622 = vmatprep.subr.mxu0 0.0
      %6623 = vmatpush2.msra.mxu0 %v4850
      %6624 = vmatprep.subr.mxu0 0.0
      %6625 = vmatpush2.msra.mxu0 %v4849
      %6626 = vmatprep.subr.mxu0 0.0
      %6627 = vmatpush2.msra.mxu0 %v4848
      %6628 = vmatprep.subr.mxu0 0.0
      %6629 = vmatpush2.msra.mxu0 %v4847
      %6630 = vmatprep.subr.mxu0 0.0
      %6631 = vmatpush2.msra.mxu0 %v4846
      %6632 = vmatprep.mubr.f32.mxu0 %v3679
      %6633 = vmatmul.mubr.f32.gmra.mxu0 %v3678
      %v6634 = vpop.f32.mrf.mxu0
      %v6635 = vadd.f32 %v6565, %v6634
      %v6636 = vpop.f32.mrf.mxu0
      %6637 = vdwg.mxu0
      %6638 = vmatprep.subr.mxu0 0.0
      %6639 = vmatpush1.msra.mxu0 %v4877
      %6640 = vmatprep.subr.mxu0 0.0
      %6641 = vmatpush1.msra.mxu0 %v4876
      %6642 = vmatprep.subr.mxu0 0.0
      %6643 = vmatpush1.msra.mxu0 %v4875
      %6644 = vmatprep.subr.mxu0 0.0
      %6645 = vmatpush1.msra.mxu0 %v4874
      %6646 = vmatprep.subr.mxu0 0.0
      %6647 = vmatpush1.msra.mxu0 %v4873
      %6648 = vmatprep.subr.mxu0 0.0
      %6649 = vmatpush1.msra.mxu0 %v4872
      %6650 = vmatprep.subr.mxu0 0.0
      %6651 = vmatpush1.msra.mxu0 %v4871
      %6652 = vmatprep.subr.mxu0 0.0
      %6653 = vmatpush1.msra.mxu0 %v4870
      %6654 = vmatprep.subr.mxu0 0.0
      %6655 = vmatpush1.msra.mxu0 %v4869
      %6656 = vmatprep.subr.mxu0 0.0
      %6657 = vmatpush1.msra.mxu0 %v4868
      %6658 = vmatprep.subr.mxu0 0.0
      %6659 = vmatpush1.msra.mxu0 %v4867
      %6660 = vmatprep.subr.mxu0 0.0
      %6661 = vmatpush1.msra.mxu0 %v4866
      %6662 = vmatprep.subr.mxu0 0.0
      %6663 = vmatpush1.msra.mxu0 %v4865
      %6664 = vmatprep.subr.mxu0 0.0
      %6665 = vmatpush1.msra.mxu0 %v4864
      %6666 = vmatprep.subr.mxu0 0.0
      %6667 = vmatpush1.msra.mxu0 %v4863
      %6668 = vmatprep.subr.mxu0 0.0
      %6669 = vmatpush1.msra.mxu0 %v4862
      %6670 = vmatprep.subr.mxu0 0.0
      %6671 = vmatpush2.msra.mxu0 %v4893
      %6672 = vmatprep.subr.mxu0 0.0
      %6673 = vmatpush2.msra.mxu0 %v4892
      %6674 = vmatprep.subr.mxu0 0.0
      %6675 = vmatpush2.msra.mxu0 %v4891
      %6676 = vmatprep.subr.mxu0 0.0
      %6677 = vmatpush2.msra.mxu0 %v4890
      %6678 = vmatprep.subr.mxu0 0.0
      %6679 = vmatpush2.msra.mxu0 %v4889
      %6680 = vmatprep.subr.mxu0 0.0
      %6681 = vmatpush2.msra.mxu0 %v4888
      %6682 = vmatprep.subr.mxu0 0.0
      %6683 = vmatpush2.msra.mxu0 %v4887
      %6684 = vmatprep.subr.mxu0 0.0
      %6685 = vmatpush2.msra.mxu0 %v4886
      %6686 = vmatprep.subr.mxu0 0.0
      %6687 = vmatpush2.msra.mxu0 %v4885
      %6688 = vmatprep.subr.mxu0 0.0
      %6689 = vmatpush2.msra.mxu0 %v4884
      %6690 = vmatprep.subr.mxu0 0.0
      %6691 = vmatpush2.msra.mxu0 %v4883
      %6692 = vmatprep.subr.mxu0 0.0
      %6693 = vmatpush2.msra.mxu0 %v4882
      %6694 = vmatprep.subr.mxu0 0.0
      %6695 = vmatpush2.msra.mxu0 %v4881
      %6696 = vmatprep.subr.mxu0 0.0
      %6697 = vmatpush2.msra.mxu0 %v4880
      %6698 = vmatprep.subr.mxu0 0.0
      %6699 = vmatpush2.msra.mxu0 %v4879
      %6700 = vmatprep.subr.mxu0 0.0
      %6701 = vmatpush2.msra.mxu0 %v4878
      %6702 = vmatprep.mubr.f32.mxu0 %v3681
      %6703 = vmatmul.mubr.f32.gmra.mxu0 %v3680
      %v6704 = vpop.f32.mrf.mxu0
      %v6705 = vadd.f32 %v6635, %v6704
      %v6706 = vpop.f32.mrf.mxu0
      %6707 = vdwg.mxu0
      %6708 = vmatprep.subr.mxu0 0.0
      %6709 = vmatpush1.msra.mxu0 %v4909
      %6710 = vmatprep.subr.mxu0 0.0
      %6711 = vmatpush1.msra.mxu0 %v4908
      %6712 = vmatprep.subr.mxu0 0.0
      %6713 = vmatpush1.msra.mxu0 %v4907
      %6714 = vmatprep.subr.mxu0 0.0
      %6715 = vmatpush1.msra.mxu0 %v4906
      %6716 = vmatprep.subr.mxu0 0.0
      %6717 = vmatpush1.msra.mxu0 %v4905
      %6718 = vmatprep.subr.mxu0 0.0
      %6719 = vmatpush1.msra.mxu0 %v4904
      %6720 = vmatprep.subr.mxu0 0.0
      %6721 = vmatpush1.msra.mxu0 %v4903
      %6722 = vmatprep.subr.mxu0 0.0
      %6723 = vmatpush1.msra.mxu0 %v4902
      %6724 = vmatprep.subr.mxu0 0.0
      %6725 = vmatpush1.msra.mxu0 %v4901
      %6726 = vmatprep.subr.mxu0 0.0
      %6727 = vmatpush1.msra.mxu0 %v4900
      %6728 = vmatprep.subr.mxu0 0.0
      %6729 = vmatpush1.msra.mxu0 %v4899
      %6730 = vmatprep.subr.mxu0 0.0
      %6731 = vmatpush1.msra.mxu0 %v4898
      %6732 = vmatprep.subr.mxu0 0.0
      %6733 = vmatpush1.msra.mxu0 %v4897
      %6734 = vmatprep.subr.mxu0 0.0
      %6735 = vmatpush1.msra.mxu0 %v4896
      %6736 = vmatprep.subr.mxu0 0.0
      %6737 = vmatpush1.msra.mxu0 %v4895
      %6738 = vmatprep.subr.mxu0 0.0
      %6739 = vmatpush1.msra.mxu0 %v4894
      %6740 = vmatprep.subr.mxu0 0.0
      %6741 = vmatpush2.msra.mxu0 %v4925
      %6742 = vmatprep.subr.mxu0 0.0
      %6743 = vmatpush2.msra.mxu0 %v4924
      %6744 = vmatprep.subr.mxu0 0.0
      %6745 = vmatpush2.msra.mxu0 %v4923
      %6746 = vmatprep.subr.mxu0 0.0
      %6747 = vmatpush2.msra.mxu0 %v4922
      %6748 = vmatprep.subr.mxu0 0.0
      %6749 = vmatpush2.msra.mxu0 %v4921
      %6750 = vmatprep.subr.mxu0 0.0
      %6751 = vmatpush2.msra.mxu0 %v4920
      %6752 = vmatprep.subr.mxu0 0.0
      %6753 = vmatpush2.msra.mxu0 %v4919
      %6754 = vmatprep.subr.mxu0 0.0
      %6755 = vmatpush2.msra.mxu0 %v4918
      %6756 = vmatprep.subr.mxu0 0.0
      %6757 = vmatpush2.msra.mxu0 %v4917
      %6758 = vmatprep.subr.mxu0 0.0
      %6759 = vmatpush2.msra.mxu0 %v4916
      %6760 = vmatprep.subr.mxu0 0.0
      %6761 = vmatpush2.msra.mxu0 %v4915
      %6762 = vmatprep.subr.mxu0 0.0
      %6763 = vmatpush2.msra.mxu0 %v4914
      %6764 = vmatprep.subr.mxu0 0.0
      %6765 = vmatpush2.msra.mxu0 %v4913
      %6766 = vmatprep.subr.mxu0 0.0
      %6767 = vmatpush2.msra.mxu0 %v4912
      %6768 = vmatprep.subr.mxu0 0.0
      %6769 = vmatpush2.msra.mxu0 %v4911
      %6770 = vmatprep.subr.mxu0 0.0
      %6771 = vmatpush2.msra.mxu0 %v4910
      %6772 = vmatprep.mubr.f32.mxu0 %v3683
      %6773 = vmatmul.mubr.f32.gmra.mxu0 %v3682
      %v6774 = vpop.f32.mrf.mxu0
      %v6775 = vadd.f32 %v6705, %v6774
      %v6776 = vpop.f32.mrf.mxu0
      %6777 = vdwg.mxu0
      %6778 = vmatprep.subr.mxu0 0.0
      %6779 = vmatpush1.msra.mxu0 %v4941
      %6780 = vmatprep.subr.mxu0 0.0
      %6781 = vmatpush1.msra.mxu0 %v4940
      %6782 = vmatprep.subr.mxu0 0.0
      %6783 = vmatpush1.msra.mxu0 %v4939
      %6784 = vmatprep.subr.mxu0 0.0
      %6785 = vmatpush1.msra.mxu0 %v4938
      %6786 = vmatprep.subr.mxu0 0.0
      %6787 = vmatpush1.msra.mxu0 %v4937
      %6788 = vmatprep.subr.mxu0 0.0
      %6789 = vmatpush1.msra.mxu0 %v4936
      %6790 = vmatprep.subr.mxu0 0.0
      %6791 = vmatpush1.msra.mxu0 %v4935
      %6792 = vmatprep.subr.mxu0 0.0
      %6793 = vmatpush1.msra.mxu0 %v4934
      %6794 = vmatprep.subr.mxu0 0.0
      %6795 = vmatpush1.msra.mxu0 %v4933
      %6796 = vmatprep.subr.mxu0 0.0
      %6797 = vmatpush1.msra.mxu0 %v4932
      %6798 = vmatprep.subr.mxu0 0.0
      %6799 = vmatpush1.msra.mxu0 %v4931
      %6800 = vmatprep.subr.mxu0 0.0
      %6801 = vmatpush1.msra.mxu0 %v4930
      %6802 = vmatprep.subr.mxu0 0.0
      %6803 = vmatpush1.msra.mxu0 %v4929
      %6804 = vmatprep.subr.mxu0 0.0
      %6805 = vmatpush1.msra.mxu0 %v4928
      %6806 = vmatprep.subr.mxu0 0.0
      %6807 = vmatpush1.msra.mxu0 %v4927
      %6808 = vmatprep.subr.mxu0 0.0
      %6809 = vmatpush1.msra.mxu0 %v4926
      %6810 = vmatprep.subr.mxu0 0.0
      %6811 = vmatpush2.msra.mxu0 %v4957
      %6812 = vmatprep.subr.mxu0 0.0
      %6813 = vmatpush2.msra.mxu0 %v4956
      %6814 = vmatprep.subr.mxu0 0.0
      %6815 = vmatpush2.msra.mxu0 %v4955
      %6816 = vmatprep.subr.mxu0 0.0
      %6817 = vmatpush2.msra.mxu0 %v4954
      %6818 = vmatprep.subr.mxu0 0.0
      %6819 = vmatpush2.msra.mxu0 %v4953
      %6820 = vmatprep.subr.mxu0 0.0
      %6821 = vmatpush2.msra.mxu0 %v4952
      %6822 = vmatprep.subr.mxu0 0.0
      %6823 = vmatpush2.msra.mxu0 %v4951
      %6824 = vmatprep.subr.mxu0 0.0
      %6825 = vmatpush2.msra.mxu0 %v4950
      %6826 = vmatprep.subr.mxu0 0.0
      %6827 = vmatpush2.msra.mxu0 %v4949
      %6828 = vmatprep.subr.mxu0 0.0
      %6829 = vmatpush2.msra.mxu0 %v4948
      %6830 = vmatprep.subr.mxu0 0.0
      %6831 = vmatpush2.msra.mxu0 %v4947
      %6832 = vmatprep.subr.mxu0 0.0
      %6833 = vmatpush2.msra.mxu0 %v4946
      %6834 = vmatprep.subr.mxu0 0.0
      %6835 = vmatpush2.msra.mxu0 %v4945
      %6836 = vmatprep.subr.mxu0 0.0
      %6837 = vmatpush2.msra.mxu0 %v4944
      %6838 = vmatprep.subr.mxu0 0.0
      %6839 = vmatpush2.msra.mxu0 %v4943
      %6840 = vmatprep.subr.mxu0 0.0
      %6841 = vmatpush2.msra.mxu0 %v4942
      %6842 = vmatprep.mubr.f32.mxu0 %v3685
      %6843 = vmatmul.mubr.f32.gmra.mxu0 %v3684
      %v6844 = vpop.f32.mrf.mxu0
      %v6845 = vadd.f32 %v6775, %v6844
      %v6846 = vpop.f32.mrf.mxu0
      %6847 = vdwg.mxu0
      %6850 = vrot.lane.b32.xlu0 %v569, 96
      %v6851 = vpop.permute.xlu0 %6850
      %6855 = vrot.lane.b32.xlu0 %v820, 96
      %v6856 = vpop.permute.xlu0 %6855
    $region73: #{tpu_custom_call.1} parent=1 // loop_footer
      %s468 = sadd.s32 1, %s464
    $region74: #{tpu_custom_call.1} parent=1 // loop_footer_branch
      %463 = sbr.rel target = $region70
    $region75: #{tpu_custom_call.1} parent=1 // loop_exit
      _
    // Predicated region
    $region76: #{tpu_custom_call.1} parent=1 // pred_check
      _
    $region77: #{tpu_custom_call.1} parent=1 // pred_check_branch
      %6859 = sbr.rel (0) target = $region79
    $region78: #{tpu_custom_call.1} parent=1 // pred_region
      %s6861 = ssub.s32 5184, 5184
      %6862 = vsyncadd [#allocation3], %s6861
      %s6863 = sshll.u32 [#allocation2], 4
      %s6864 = int_to_ptr.vmem [resolvable:$true] %s6863
      %6869 = dma.vmem_to_hbm [thread:$0]  %s6864, 5184, %s15, [#allocation3], 864, 864, 54
    $region79: #{tpu_custom_call.1} parent=1 // pred_fallthru
      _
    // Predicated region
    $region80: #{tpu_custom_call.1} parent=1 // pred_check
      _
    $region81: #{tpu_custom_call.1} parent=1 // pred_check_branch
      %6871 = sbr.rel (0) target = $region83
    $region82: #{tpu_custom_call.1} parent=1 // pred_region
      %6872 = dma.done [#allocation3], 5184
    $region83: #{tpu_custom_call.1} parent=1 // pred_fallthru
      _
    %6873 = vsyncpa [#allocation3], 1

</llo_original>
